<compile_context>
chip_gen: v7x
topology: tpu7x:2x2x1
jax: 0.10.0
libtpu: 0.0.40
codegen_flags: <defaults>
</compile_context>

<pallas_src>
import jax
import jax.numpy as jnp
import numpy as np
from jax import lax
from jax.experimental import pallas as pl
from jax.experimental.pallas import tpu as pltpu


def fasternet_kernel(x_ref, wp_ref, wpw_ref, w11_ref, b_ref, o_ref, xbuf, ybuf):
    # x_ref  : (1, H, W, C) f32   input block (NHWC)
    # wp_ref : (3, 3, Cc, Cc) bf16  PConv weight (HWIO)
    # wpw_ref: (C, C) bf16          PWConv 1x1 weight, BN1 scale folded in
    # w11_ref: (3, 3, C, C) bf16    Conv1x1-block 3x3 weight, BN2 scale folded in
    # b_ref  : (2, C) f32           row 0: PWConv bias + BN1 bias, row 1: BN2 bias
    # xbuf   : (H+2, W+2, Cc) f32 scratch (zero-padded PConv input)
    # ybuf   : (H+2, W+2, C)  f32 scratch (zero-padded second-conv input)
    _, H, W, C = x_ref.shape
    Cc = wp_ref.shape[-1]
    HW = H * W
    bf16 = jnp.bfloat16

    x = x_ref[0]                                       # (H, W, C) f32

    # Re-zero only the 1-element halo borders (cheap); the interiors are fully
    # overwritten below.  Doing it every step keeps the kernel correct even if
    # the "parallel" grid axis is sharded across TensorCores (per-core scratch).
    def zero_borders(buf):
        Cb = buf.shape[-1]
        buf[0:1, :, :] = jnp.zeros((1, W + 2, Cb), jnp.float32)
        buf[H + 1:H + 2, :, :] = jnp.zeros((1, W + 2, Cb), jnp.float32)
        buf[:, 0:1, :] = jnp.zeros((H + 2, 1, Cb), jnp.float32)
        buf[:, W + 1:W + 2, :] = jnp.zeros((H + 2, 1, Cb), jnp.float32)

    zero_borders(xbuf)
    zero_borders(ybuf)

    # ---- PConv: bias-free 3x3 SAME conv on the first Cc channels ----
    xbuf[1:H + 1, 1:W + 1, :] = x[:, :, :Cc]
    acc = None
    for dy in range(3):
        for dx in range(3):
            tap = xbuf[dy:dy + H, dx:dx + W, :].reshape(HW, Cc).astype(bf16)
            part = jnp.dot(tap, wp_ref[dy, dx],
                           preferred_element_type=jnp.float32)
            acc = part if acc is None else acc + part   # (HW, Cc) f32

    # ---- PWConv (1x1 conv) + folded BN1 + ReLU ----
    # concat([conv(x1), x2]) is avoided by splitting the 1x1 weight on its
    # input axis.
    y = jnp.dot(acc.astype(bf16), wpw_ref[:Cc, :],
                preferred_element_type=jnp.float32)
    if Cc < C:
        x2 = x[:, :, Cc:].reshape(HW, C - Cc).astype(bf16)
        y = y + jnp.dot(x2, wpw_ref[Cc:, :],
                        preferred_element_type=jnp.float32)
    y = jnp.maximum(y + b_ref[0:1, :], 0.0)             # (HW, C) f32

    # ---- Conv1x1 block: bias-free 3x3 conv + folded BN2 + ReLU ----
    ybuf[1:H + 1, 1:W + 1, :] = y.reshape(H, W, C)
    acc2 = None
    for dy in range(3):
        for dx in range(3):
            tap = ybuf[dy:dy + H, dx:dx + W, :].reshape(HW, C).astype(bf16)
            part = jnp.dot(tap, w11_ref[dy, dx],
                           preferred_element_type=jnp.float32)
            acc2 = part if acc2 is None else acc2 + part  # (HW, C) f32

    out = jnp.maximum(acc2 + b_ref[1:2, :], 0.0).reshape(H, W, C)

    # ---- residual add (original x, f32) ----
    o_ref[0] = out + x


def fasternet_block(x_nchw, p):
    """x_nchw: (N, C, H, W) float32 -> (N, C, H, W) float32."""
    N, C, H, W = x_nchw.shape
    Cc = p['wp'].shape[-1]

    # Fold eval-mode BatchNorm into the conv weights / biases (in f32), then
    # cast the matmul weights to bf16 for the MXU; biases stay f32.
    wp_b = p['wp'].astype(jnp.bfloat16)                               # (3,3,Cc,Cc)
    wpw_f = (p['wpw'] * p['s1'][None, :]).astype(jnp.bfloat16)        # (C, C)
    w11_f = (p['w11'] * p['s2'][None, None, None, :]).astype(jnp.bfloat16)
    b1 = p['bpw'] * p['s1'] + p['bb1']
    b2 = p['bb2']
    biases = jnp.stack([b1, b2], axis=0)                              # (2, C) f32

    # TODO(synk): keep the whole network NHWC so these layout passes disappear.
    x = jnp.transpose(x_nchw, (0, 2, 3, 1))                           # NHWC

    out = pl.pallas_call(
        fasternet_kernel,
        out_shape=jax.ShapeDtypeStruct((N, H, W, C), jnp.float32),
        grid_spec=pltpu.PrefetchScalarGridSpec(
            num_scalar_prefetch=0,
            grid=(N,),
            in_specs=[
                pl.BlockSpec((1, H, W, C), lambda n: (n, 0, 0, 0)),
                pl.BlockSpec((3, 3, Cc, Cc), lambda n: (0, 0, 0, 0)),
                pl.BlockSpec((C, C), lambda n: (0, 0)),
                pl.BlockSpec((3, 3, C, C), lambda n: (0, 0, 0, 0)),
                pl.BlockSpec((2, C), lambda n: (0, 0)),
            ],
            out_specs=pl.BlockSpec((1, H, W, C), lambda n: (n, 0, 0, 0)),
            scratch_shapes=[
                pltpu.VMEM((H + 2, W + 2, Cc), jnp.float32),
                pltpu.VMEM((H + 2, W + 2, C), jnp.float32),
            ],
        ),
        compiler_params=pltpu.CompilerParams(
            dimension_semantics=("parallel",),
            vmem_limit_bytes=32 * 1024 * 1024,
        ),
    )(x, wp_b, wpw_f, w11_f, biases)

    return jnp.transpose(out, (0, 3, 1, 2))                           # back to NCHW


def init_params(key, C, n_div, eps=1e-5):
    Cc = C // n_div
    ks = jax.random.split(key, 12)
    p = {}
    p['wp'] = 0.1 * jax.random.normal(ks[0], (3, 3, Cc, Cc), jnp.float32)  # HWIO
    p['wpw'] = 0.1 * jax.random.normal(ks[1], (C, C), jnp.float32)         # (Cin,Cout)
    p['bpw'] = 0.1 * jax.random.normal(ks[2], (C,), jnp.float32)
    g1 = jax.random.uniform(ks[3], (C,), jnp.float32, 0.5, 1.5)
    b1 = 0.1 * jax.random.normal(ks[4], (C,), jnp.float32)
    m1 = 0.1 * jax.random.normal(ks[5], (C,), jnp.float32)
    v1 = jax.random.uniform(ks[6], (C,), jnp.float32, 0.5, 1.5)
    p['s1'] = g1 / jnp.sqrt(v1 + eps)
    p['bb1'] = b1 - m1 * p['s1']
    p['w11'] = 0.1 * jax.random.normal(ks[7], (3, 3, C, C), jnp.float32)   # HWIO
    g2 = jax.random.uniform(ks[8], (C,), jnp.float32, 0.5, 1.5)
    b2 = 0.1 * jax.random.normal(ks[9], (C,), jnp.float32)
    m2 = 0.1 * jax.random.normal(ks[10], (C,), jnp.float32)
    v2 = jax.random.uniform(ks[11], (C,), jnp.float32, 0.5, 1.5)
    p['s2'] = g2 / jnp.sqrt(v2 + eps)
    p['bb2'] = b2 - m2 * p['s2']
    return p


def ref_forward(x_nchw, p):
    """Pure-JAX reference matching the PyTorch forward (eval-mode BN)."""
    x = jnp.transpose(x_nchw, (0, 2, 3, 1))
    Cc = p['wp'].shape[-1]
    dn = ('NHWC', 'HWIO', 'NHWC')
    x1 = lax.conv_general_dilated(x[..., :Cc], p['wp'], (1, 1), 'SAME',
                                  dimension_numbers=dn,
                                  precision=lax.Precision.HIGHEST)
    r = jnp.concatenate([x1, x[..., Cc:]], axis=-1)
    y = jnp.einsum('nhwc,cd->nhwd', r, p['wpw'],
                   precision=lax.Precision.HIGHEST) + p['bpw']
    y = jnp.maximum(y * p['s1'] + p['bb1'], 0.0)
    z = lax.conv_general_dilated(y, p['w11'], (1, 1), 'SAME',
                                 dimension_numbers=dn,
                                 precision=lax.Precision.HIGHEST)
    z = jnp.maximum(z * p['s2'] + p['bb2'], 0.0)
    out = z + x
    return jnp.transpose(out, (0, 3, 1, 2))


if __name__ == "__main__":
    key = jax.random.PRNGKey(0)
    kx, kp = jax.random.split(key)
    # residual add requires inp == outp == dim; use n_div = 2
    N, C, H, W = 2, 4, 16, 16
    x = jax.random.normal(kx, (N, C, H, W), jnp.float32)
    params = init_params(kp, C, n_div=2)

    out = fasternet_block(x, params)
    out = jax.block_until_ready(out)

    ref = ref_forward(x, params)
    assert out.shape == (N, C, H, W)
    np.testing.assert_allclose(np.asarray(out), np.asarray(ref),
                               rtol=1e-2, atol=1e-2)
    print("KERNEL_OK")
</pallas_src>

<mosaic_0001>
module attributes {stable_mosaic.version = 11 : i64} {
  func.func @fasternet_kernel(%arg0: i32, %arg1: memref<1x16x16x4xf32, #tpu.memory_space<vmem>>, %arg2: memref<3x3x2x2xbf16, #tpu.memory_space<vmem>>, %arg3: memref<4x4xbf16, #tpu.memory_space<vmem>>, %arg4: memref<3x3x4x4xbf16, #tpu.memory_space<vmem>>, %arg5: memref<2x4xf32, #tpu.memory_space<vmem>>, %arg6: memref<1x16x16x4xf32, #tpu.memory_space<vmem>>, %arg7: memref<18x18x2xf32, #tpu.memory_space<vmem>>, %arg8: memref<18x18x4xf32, #tpu.memory_space<vmem>>) attributes {dimension_semantics = [#tpu.dimension_semantics<parallel>], iteration_bounds = array<i64: 2>, scalar_prefetch = 0 : i64, scratch_operands = 2 : i64, tpu.core_type = #tpu.core_type<tc>, window_params = [{transform_indices = @transform_0, window_bounds = array<i64: 1, 16, 16, 4>}, {pipeline_mode = #tpu.pipeline_mode<synchronous>, transform_indices = @transform_1, window_bounds = array<i64: 3, 3, 2, 2>}, {pipeline_mode = #tpu.pipeline_mode<synchronous>, transform_indices = @transform_2, window_bounds = array<i64: 4, 4>}, {pipeline_mode = #tpu.pipeline_mode<synchronous>, transform_indices = @transform_3, window_bounds = array<i64: 3, 3, 4, 4>}, {pipeline_mode = #tpu.pipeline_mode<synchronous>, transform_indices = @transform_4, window_bounds = array<i64: 2, 4>}, {transform_indices = @transform_5, window_bounds = array<i64: 1, 16, 16, 4>}]} {
    %c0 = arith.constant 0 : index
    %c0_0 = arith.constant 0 : index
    %c0_1 = arith.constant 0 : index
    %c0_2 = arith.constant 0 : index
    %0 = vector.load %arg1[%c0, %c0_0, %c0_1, %c0_2] : memref<1x16x16x4xf32, #tpu.memory_space<vmem>>, vector<1x16x16x4xf32>
    %1 = vector.shape_cast %0 : vector<1x16x16x4xf32> to vector<16x16x4xf32>
    %cst = arith.constant 0.000000e+00 : f32
    %2 = vector.broadcast %cst : f32 to vector<1x18x2xf32>
    %c0_3 = arith.constant 0 : index
    %c0_4 = arith.constant 0 : index
    %c0_5 = arith.constant 0 : index
    %3 = vector.load %arg7[%c0_3, %c0_4, %c0_5] : memref<18x18x2xf32, #tpu.memory_space<vmem>>, vector<1x18x2xf32>
    tpu.vector_store %arg7[%c0_3, %c0_4, %c0_5], %2 {strides = array<i32>} : memref<18x18x2xf32, #tpu.memory_space<vmem>>, vector<1x18x2xf32>,
    %cst_6 = arith.constant 0.000000e+00 : f32
    %4 = vector.broadcast %cst_6 : f32 to vector<1x18x2xf32>
    %c17 = arith.constant 17 : index
    %c0_7 = arith.constant 0 : index
    %c0_8 = arith.constant 0 : index
    %5 = vector.load %arg7[%c17, %c0_7, %c0_8] : memref<18x18x2xf32, #tpu.memory_space<vmem>>, vector<1x18x2xf32>
    tpu.vector_store %arg7[%c17, %c0_7, %c0_8], %4 {strides = array<i32>} : memref<18x18x2xf32, #tpu.memory_space<vmem>>, vector<1x18x2xf32>,
    %cst_9 = arith.constant 0.000000e+00 : f32
    %6 = vector.broadcast %cst_9 : f32 to vector<18x1x2xf32>
    %c0_10 = arith.constant 0 : index
    %c0_11 = arith.constant 0 : index
    %c0_12 = arith.constant 0 : index
    %7 = vector.load %arg7[%c0_10, %c0_11, %c0_12] : memref<18x18x2xf32, #tpu.memory_space<vmem>>, vector<18x1x2xf32>
    tpu.vector_store %arg7[%c0_10, %c0_11, %c0_12], %6 {strides = array<i32>} : memref<18x18x2xf32, #tpu.memory_space<vmem>>, vector<18x1x2xf32>,
    %cst_13 = arith.constant 0.000000e+00 : f32
    %8 = vector.broadcast %cst_13 : f32 to vector<18x1x2xf32>
    %c0_14 = arith.constant 0 : index
    %c17_15 = arith.constant 17 : index
    %c0_16 = arith.constant 0 : index
    %9 = vector.load %arg7[%c0_14, %c17_15, %c0_16] : memref<18x18x2xf32, #tpu.memory_space<vmem>>, vector<18x1x2xf32>
    tpu.vector_store %arg7[%c0_14, %c17_15, %c0_16], %8 {strides = array<i32>} : memref<18x18x2xf32, #tpu.memory_space<vmem>>, vector<18x1x2xf32>,
    %cst_17 = arith.constant 0.000000e+00 : f32
    %10 = vector.broadcast %cst_17 : f32 to vector<1x18x4xf32>
    %c0_18 = arith.constant 0 : index
    %c0_19 = arith.constant 0 : index
    %c0_20 = arith.constant 0 : index
    %11 = vector.load %arg8[%c0_18, %c0_19, %c0_20] : memref<18x18x4xf32, #tpu.memory_space<vmem>>, vector<1x18x4xf32>
    tpu.vector_store %arg8[%c0_18, %c0_19, %c0_20], %10 {strides = array<i32>} : memref<18x18x4xf32, #tpu.memory_space<vmem>>, vector<1x18x4xf32>,
    %cst_21 = arith.constant 0.000000e+00 : f32
    %12 = vector.broadcast %cst_21 : f32 to vector<1x18x4xf32>
    %c17_22 = arith.constant 17 : index
    %c0_23 = arith.constant 0 : index
    %c0_24 = arith.constant 0 : index
    %13 = vector.load %arg8[%c17_22, %c0_23, %c0_24] : memref<18x18x4xf32, #tpu.memory_space<vmem>>, vector<1x18x4xf32>
    tpu.vector_store %arg8[%c17_22, %c0_23, %c0_24], %12 {strides = array<i32>} : memref<18x18x4xf32, #tpu.memory_space<vmem>>, vector<1x18x4xf32>,
    %cst_25 = arith.constant 0.000000e+00 : f32
    %14 = vector.broadcast %cst_25 : f32 to vector<18x1x4xf32>
    %c0_26 = arith.constant 0 : index
    %c0_27 = arith.constant 0 : index
    %c0_28 = arith.constant 0 : index
    %15 = vector.load %arg8[%c0_26, %c0_27, %c0_28] : memref<18x18x4xf32, #tpu.memory_space<vmem>>, vector<18x1x4xf32>
    tpu.vector_store %arg8[%c0_26, %c0_27, %c0_28], %14 {strides = array<i32>} : memref<18x18x4xf32, #tpu.memory_space<vmem>>, vector<18x1x4xf32>,
    %cst_29 = arith.constant 0.000000e+00 : f32
    %16 = vector.broadcast %cst_29 : f32 to vector<18x1x4xf32>
    %c0_30 = arith.constant 0 : index
    %c17_31 = arith.constant 17 : index
    %c0_32 = arith.constant 0 : index
    %17 = vector.load %arg8[%c0_30, %c17_31, %c0_32] : memref<18x18x4xf32, #tpu.memory_space<vmem>>, vector<18x1x4xf32>
    tpu.vector_store %arg8[%c0_30, %c17_31, %c0_32], %16 {strides = array<i32>} : memref<18x18x4xf32, #tpu.memory_space<vmem>>, vector<18x1x4xf32>,
    %18 = vector.extract_strided_slice %1 {offsets = [0, 0, 0], sizes = [16, 16, 2], strides = [1, 1, 1]} : vector<16x16x4xf32> to vector<16x16x2xf32>
    %c1 = arith.constant 1 : index
    %c1_33 = arith.constant 1 : index
    %c0_34 = arith.constant 0 : index
    %19 = vector.load %arg7[%c1, %c1_33, %c0_34] : memref<18x18x2xf32, #tpu.memory_space<vmem>>, vector<16x16x2xf32>
    tpu.vector_store %arg7[%c1, %c1_33, %c0_34], %18 {strides = array<i32>} : memref<18x18x2xf32, #tpu.memory_space<vmem>>, vector<16x16x2xf32>,
    %c0_35 = arith.constant 0 : index
    %c0_36 = arith.constant 0 : index
    %c0_37 = arith.constant 0 : index
    %20 = vector.load %arg7[%c0_35, %c0_36, %c0_37] : memref<18x18x2xf32, #tpu.memory_space<vmem>>, vector<16x16x2xf32>
    %21 = vector.shape_cast %20 : vector<16x16x2xf32> to vector<256x2xf32>
    %22 = arith.truncf %21 : vector<256x2xf32> to vector<256x2xbf16>
    %c0_38 = arith.constant 0 : index
    %c0_39 = arith.constant 0 : index
    %c0_40 = arith.constant 0 : index
    %c0_41 = arith.constant 0 : index
    %23 = vector.load %arg2[%c0_38, %c0_39, %c0_40, %c0_41] : memref<3x3x2x2xbf16, #tpu.memory_space<vmem>>, vector<1x1x2x2xbf16>
    %24 = vector.shape_cast %23 : vector<1x1x2x2xbf16> to vector<2x2xbf16>
    %cst_42 = arith.constant dense<0.000000e+00> : vector<256x2xf32>
    %25 = tpu.matmul %22, %24, %cst_42 {dimension_numbers = #tpu.dot_dimension_numbers<[1], [0], [0], [1], [0, 0, 1, 1], [], []>} : vector<256x2xbf16>, vector<2x2xbf16>, vector<256x2xf32> -> vector<256x2xf32>
    %c0_43 = arith.constant 0 : index
    %c1_44 = arith.constant 1 : index
    %c0_45 = arith.constant 0 : index
    %26 = vector.load %arg7[%c0_43, %c1_44, %c0_45] : memref<18x18x2xf32, #tpu.memory_space<vmem>>, vector<16x16x2xf32>
    %27 = vector.shape_cast %26 : vector<16x16x2xf32> to vector<256x2xf32>
    %28 = arith.truncf %27 : vector<256x2xf32> to vector<256x2xbf16>
    %c0_46 = arith.constant 0 : index
    %c1_47 = arith.constant 1 : index
    %c0_48 = arith.constant 0 : index
    %c0_49 = arith.constant 0 : index
    %29 = vector.load %arg2[%c0_46, %c1_47, %c0_48, %c0_49] : memref<3x3x2x2xbf16, #tpu.memory_space<vmem>>, vector<1x1x2x2xbf16>
    %30 = vector.shape_cast %29 : vector<1x1x2x2xbf16> to vector<2x2xbf16>
    %cst_50 = arith.constant dense<0.000000e+00> : vector<256x2xf32>
    %31 = tpu.matmul %28, %30, %cst_50 {dimension_numbers = #tpu.dot_dimension_numbers<[1], [0], [0], [1], [0, 0, 1, 1], [], []>} : vector<256x2xbf16>, vector<2x2xbf16>, vector<256x2xf32> -> vector<256x2xf32>
    %32 = arith.addf %25, %31 : vector<256x2xf32>
    %c0_51 = arith.constant 0 : index
    %c2 = arith.constant 2 : index
    %c0_52 = arith.constant 0 : index
    %33 = vector.load %arg7[%c0_51, %c2, %c0_52] : memref<18x18x2xf32, #tpu.memory_space<vmem>>, vector<16x16x2xf32>
    %34 = vector.shape_cast %33 : vector<16x16x2xf32> to vector<256x2xf32>
    %35 = arith.truncf %34 : vector<256x2xf32> to vector<256x2xbf16>
    %c0_53 = arith.constant 0 : index
    %c2_54 = arith.constant 2 : index
    %c0_55 = arith.constant 0 : index
    %c0_56 = arith.constant 0 : index
    %36 = vector.load %arg2[%c0_53, %c2_54, %c0_55, %c0_56] : memref<3x3x2x2xbf16, #tpu.memory_space<vmem>>, vector<1x1x2x2xbf16>
    %37 = vector.shape_cast %36 : vector<1x1x2x2xbf16> to vector<2x2xbf16>
    %cst_57 = arith.constant dense<0.000000e+00> : vector<256x2xf32>
    %38 = tpu.matmul %35, %37, %cst_57 {dimension_numbers = #tpu.dot_dimension_numbers<[1], [0], [0], [1], [0, 0, 1, 1], [], []>} : vector<256x2xbf16>, vector<2x2xbf16>, vector<256x2xf32> -> vector<256x2xf32>
    %39 = arith.addf %32, %38 : vector<256x2xf32>
    %c1_58 = arith.constant 1 : index
    %c0_59 = arith.constant 0 : index
    %c0_60 = arith.constant 0 : index
    %40 = vector.load %arg7[%c1_58, %c0_59, %c0_60] : memref<18x18x2xf32, #tpu.memory_space<vmem>>, vector<16x16x2xf32>
    %41 = vector.shape_cast %40 : vector<16x16x2xf32> to vector<256x2xf32>
    %42 = arith.truncf %41 : vector<256x2xf32> to vector<256x2xbf16>
    %c1_61 = arith.constant 1 : index
    %c0_62 = arith.constant 0 : index
    %c0_63 = arith.constant 0 : index
    %c0_64 = arith.constant 0 : index
    %43 = vector.load %arg2[%c1_61, %c0_62, %c0_63, %c0_64] : memref<3x3x2x2xbf16, #tpu.memory_space<vmem>>, vector<1x1x2x2xbf16>
    %44 = vector.shape_cast %43 : vector<1x1x2x2xbf16> to vector<2x2xbf16>
    %cst_65 = arith.constant dense<0.000000e+00> : vector<256x2xf32>
    %45 = tpu.matmul %42, %44, %cst_65 {dimension_numbers = #tpu.dot_dimension_numbers<[1], [0], [0], [1], [0, 0, 1, 1], [], []>} : vector<256x2xbf16>, vector<2x2xbf16>, vector<256x2xf32> -> vector<256x2xf32>
    %46 = arith.addf %39, %45 : vector<256x2xf32>
    %c1_66 = arith.constant 1 : index
    %c1_67 = arith.constant 1 : index
    %c0_68 = arith.constant 0 : index
    %47 = vector.load %arg7[%c1_66, %c1_67, %c0_68] : memref<18x18x2xf32, #tpu.memory_space<vmem>>, vector<16x16x2xf32>
    %48 = vector.shape_cast %47 : vector<16x16x2xf32> to vector<256x2xf32>
    %49 = arith.truncf %48 : vector<256x2xf32> to vector<256x2xbf16>
    %c1_69 = arith.constant 1 : index
    %c1_70 = arith.constant 1 : index
    %c0_71 = arith.constant 0 : index
    %c0_72 = arith.constant 0 : index
    %50 = vector.load %arg2[%c1_69, %c1_70, %c0_71, %c0_72] : memref<3x3x2x2xbf16, #tpu.memory_space<vmem>>, vector<1x1x2x2xbf16>
    %51 = vector.shape_cast %50 : vector<1x1x2x2xbf16> to vector<2x2xbf16>
    %cst_73 = arith.constant dense<0.000000e+00> : vector<256x2xf32>
    %52 = tpu.matmul %49, %51, %cst_73 {dimension_numbers = #tpu.dot_dimension_numbers<[1], [0], [0], [1], [0, 0, 1, 1], [], []>} : vector<256x2xbf16>, vector<2x2xbf16>, vector<256x2xf32> -> vector<256x2xf32>
    %53 = arith.addf %46, %52 : vector<256x2xf32>
    %c1_74 = arith.constant 1 : index
    %c2_75 = arith.constant 2 : index
    %c0_76 = arith.constant 0 : index
    %54 = vector.load %arg7[%c1_74, %c2_75, %c0_76] : memref<18x18x2xf32, #tpu.memory_space<vmem>>, vector<16x16x2xf32>
    %55 = vector.shape_cast %54 : vector<16x16x2xf32> to vector<256x2xf32>
    %56 = arith.truncf %55 : vector<256x2xf32> to vector<256x2xbf16>
    %c1_77 = arith.constant 1 : index
    %c2_78 = arith.constant 2 : index
    %c0_79 = arith.constant 0 : index
    %c0_80 = arith.constant 0 : index
    %57 = vector.load %arg2[%c1_77, %c2_78, %c0_79, %c0_80] : memref<3x3x2x2xbf16, #tpu.memory_space<vmem>>, vector<1x1x2x2xbf16>
    %58 = vector.shape_cast %57 : vector<1x1x2x2xbf16> to vector<2x2xbf16>
    %cst_81 = arith.constant dense<0.000000e+00> : vector<256x2xf32>
    %59 = tpu.matmul %56, %58, %cst_81 {dimension_numbers = #tpu.dot_dimension_numbers<[1], [0], [0], [1], [0, 0, 1, 1], [], []>} : vector<256x2xbf16>, vector<2x2xbf16>, vector<256x2xf32> -> vector<256x2xf32>
    %60 = arith.addf %53, %59 : vector<256x2xf32>
    %c2_82 = arith.constant 2 : index
    %c0_83 = arith.constant 0 : index
    %c0_84 = arith.constant 0 : index
    %61 = vector.load %arg7[%c2_82, %c0_83, %c0_84] : memref<18x18x2xf32, #tpu.memory_space<vmem>>, vector<16x16x2xf32>
    %62 = vector.shape_cast %61 : vector<16x16x2xf32> to vector<256x2xf32>
    %63 = arith.truncf %62 : vector<256x2xf32> to vector<256x2xbf16>
    %c2_85 = arith.constant 2 : index
    %c0_86 = arith.constant 0 : index
    %c0_87 = arith.constant 0 : index
    %c0_88 = arith.constant 0 : index
    %64 = vector.load %arg2[%c2_85, %c0_86, %c0_87, %c0_88] : memref<3x3x2x2xbf16, #tpu.memory_space<vmem>>, vector<1x1x2x2xbf16>
    %65 = vector.shape_cast %64 : vector<1x1x2x2xbf16> to vector<2x2xbf16>
    %cst_89 = arith.constant dense<0.000000e+00> : vector<256x2xf32>
    %66 = tpu.matmul %63, %65, %cst_89 {dimension_numbers = #tpu.dot_dimension_numbers<[1], [0], [0], [1], [0, 0, 1, 1], [], []>} : vector<256x2xbf16>, vector<2x2xbf16>, vector<256x2xf32> -> vector<256x2xf32>
    %67 = arith.addf %60, %66 : vector<256x2xf32>
    %c2_90 = arith.constant 2 : index
    %c1_91 = arith.constant 1 : index
    %c0_92 = arith.constant 0 : index
    %68 = vector.load %arg7[%c2_90, %c1_91, %c0_92] : memref<18x18x2xf32, #tpu.memory_space<vmem>>, vector<16x16x2xf32>
    %69 = vector.shape_cast %68 : vector<16x16x2xf32> to vector<256x2xf32>
    %70 = arith.truncf %69 : vector<256x2xf32> to vector<256x2xbf16>
    %c2_93 = arith.constant 2 : index
    %c1_94 = arith.constant 1 : index
    %c0_95 = arith.constant 0 : index
    %c0_96 = arith.constant 0 : index
    %71 = vector.load %arg2[%c2_93, %c1_94, %c0_95, %c0_96] : memref<3x3x2x2xbf16, #tpu.memory_space<vmem>>, vector<1x1x2x2xbf16>
    %72 = vector.shape_cast %71 : vector<1x1x2x2xbf16> to vector<2x2xbf16>
    %cst_97 = arith.constant dense<0.000000e+00> : vector<256x2xf32>
    %73 = tpu.matmul %70, %72, %cst_97 {dimension_numbers = #tpu.dot_dimension_numbers<[1], [0], [0], [1], [0, 0, 1, 1], [], []>} : vector<256x2xbf16>, vector<2x2xbf16>, vector<256x2xf32> -> vector<256x2xf32>
    %74 = arith.addf %67, %73 : vector<256x2xf32>
    %c2_98 = arith.constant 2 : index
    %c2_99 = arith.constant 2 : index
    %c0_100 = arith.constant 0 : index
    %75 = vector.load %arg7[%c2_98, %c2_99, %c0_100] : memref<18x18x2xf32, #tpu.memory_space<vmem>>, vector<16x16x2xf32>
    %76 = vector.shape_cast %75 : vector<16x16x2xf32> to vector<256x2xf32>
    %77 = arith.truncf %76 : vector<256x2xf32> to vector<256x2xbf16>
    %c2_101 = arith.constant 2 : index
    %c2_102 = arith.constant 2 : index
    %c0_103 = arith.constant 0 : index
    %c0_104 = arith.constant 0 : index
    %78 = vector.load %arg2[%c2_101, %c2_102, %c0_103, %c0_104] : memref<3x3x2x2xbf16, #tpu.memory_space<vmem>>, vector<1x1x2x2xbf16>
    %79 = vector.shape_cast %78 : vector<1x1x2x2xbf16> to vector<2x2xbf16>
    %cst_105 = arith.constant dense<0.000000e+00> : vector<256x2xf32>
    %80 = tpu.matmul %77, %79, %cst_105 {dimension_numbers = #tpu.dot_dimension_numbers<[1], [0], [0], [1], [0, 0, 1, 1], [], []>} : vector<256x2xbf16>, vector<2x2xbf16>, vector<256x2xf32> -> vector<256x2xf32>
    %81 = arith.addf %74, %80 : vector<256x2xf32>
    %82 = arith.truncf %81 : vector<256x2xf32> to vector<256x2xbf16>
    %c0_106 = arith.constant 0 : index
    %c0_107 = arith.constant 0 : index
    %83 = vector.load %arg3[%c0_106, %c0_107] : memref<4x4xbf16, #tpu.memory_space<vmem>>, vector<2x4xbf16>
    %cst_108 = arith.constant dense<0.000000e+00> : vector<256x4xf32>
    %84 = tpu.matmul %82, %83, %cst_108 {dimension_numbers = #tpu.dot_dimension_numbers<[1], [0], [0], [1], [0, 0, 1, 1], [], []>} : vector<256x2xbf16>, vector<2x4xbf16>, vector<256x4xf32> -> vector<256x4xf32>
    %85 = vector.extract_strided_slice %1 {offsets = [0, 0, 2], sizes = [16, 16, 2], strides = [1, 1, 1]} : vector<16x16x4xf32> to vector<16x16x2xf32>
    %86 = vector.shape_cast %85 : vector<16x16x2xf32> to vector<256x2xf32>
    %87 = arith.truncf %86 : vector<256x2xf32> to vector<256x2xbf16>
    %c2_109 = arith.constant 2 : index
    %c0_110 = arith.constant 0 : index
    %88 = vector.load %arg3[%c2_109, %c0_110] : memref<4x4xbf16, #tpu.memory_space<vmem>>, vector<2x4xbf16>
    %cst_111 = arith.constant dense<0.000000e+00> : vector<256x4xf32>
    %89 = tpu.matmul %87, %88, %cst_111 {dimension_numbers = #tpu.dot_dimension_numbers<[1], [0], [0], [1], [0, 0, 1, 1], [], []>} : vector<256x2xbf16>, vector<2x4xbf16>, vector<256x4xf32> -> vector<256x4xf32>
    %90 = arith.addf %84, %89 : vector<256x4xf32>
    %c0_112 = arith.constant 0 : index
    %c0_113 = arith.constant 0 : index
    %91 = vector.load %arg5[%c0_112, %c0_113] : memref<2x4xf32, #tpu.memory_space<vmem>>, vector<1x4xf32>
    %92 = vector.broadcast %91 : vector<1x4xf32> to vector<256x4xf32>
    %93 = arith.addf %90, %92 : vector<256x4xf32>
    %cst_114 = arith.constant 0.000000e+00 : f32
    %94 = vector.broadcast %cst_114 : f32 to vector<256x4xf32>
    %95 = arith.maximumf %93, %94 : vector<256x4xf32>
    %96 = vector.shape_cast %95 : vector<256x4xf32> to vector<16x16x4xf32>
    %c1_115 = arith.constant 1 : index
    %c1_116 = arith.constant 1 : index
    %c0_117 = arith.constant 0 : index
    %97 = vector.load %arg8[%c1_115, %c1_116, %c0_117] : memref<18x18x4xf32, #tpu.memory_space<vmem>>, vector<16x16x4xf32>
    tpu.vector_store %arg8[%c1_115, %c1_116, %c0_117], %96 {strides = array<i32>} : memref<18x18x4xf32, #tpu.memory_space<vmem>>, vector<16x16x4xf32>,
    %c0_118 = arith.constant 0 : index
    %c0_119 = arith.constant 0 : index
    %c0_120 = arith.constant 0 : index
    %98 = vector.load %arg8[%c0_118, %c0_119, %c0_120] : memref<18x18x4xf32, #tpu.memory_space<vmem>>, vector<16x16x4xf32>
    %99 = vector.shape_cast %98 : vector<16x16x4xf32> to vector<256x4xf32>
    %100 = arith.truncf %99 : vector<256x4xf32> to vector<256x4xbf16>
    %c0_121 = arith.constant 0 : index
    %c0_122 = arith.constant 0 : index
    %c0_123 = arith.constant 0 : index
    %c0_124 = arith.constant 0 : index
    %101 = vector.load %arg4[%c0_121, %c0_122, %c0_123, %c0_124] : memref<3x3x4x4xbf16, #tpu.memory_space<vmem>>, vector<1x1x4x4xbf16>
    %102 = vector.shape_cast %101 : vector<1x1x4x4xbf16> to vector<4x4xbf16>
    %cst_125 = arith.constant dense<0.000000e+00> : vector<256x4xf32>
    %103 = tpu.matmul %100, %102, %cst_125 {dimension_numbers = #tpu.dot_dimension_numbers<[1], [0], [0], [1], [0, 0, 1, 1], [], []>} : vector<256x4xbf16>, vector<4x4xbf16>, vector<256x4xf32> -> vector<256x4xf32>
    %c0_126 = arith.constant 0 : index
    %c1_127 = arith.constant 1 : index
    %c0_128 = arith.constant 0 : index
    %104 = vector.load %arg8[%c0_126, %c1_127, %c0_128] : memref<18x18x4xf32, #tpu.memory_space<vmem>>, vector<16x16x4xf32>
    %105 = vector.shape_cast %104 : vector<16x16x4xf32> to vector<256x4xf32>
    %106 = arith.truncf %105 : vector<256x4xf32> to vector<256x4xbf16>
    %c0_129 = arith.constant 0 : index
    %c1_130 = arith.constant 1 : index
    %c0_131 = arith.constant 0 : index
    %c0_132 = arith.constant 0 : index
    %107 = vector.load %arg4[%c0_129, %c1_130, %c0_131, %c0_132] : memref<3x3x4x4xbf16, #tpu.memory_space<vmem>>, vector<1x1x4x4xbf16>
    %108 = vector.shape_cast %107 : vector<1x1x4x4xbf16> to vector<4x4xbf16>
    %cst_133 = arith.constant dense<0.000000e+00> : vector<256x4xf32>
    %109 = tpu.matmul %106, %108, %cst_133 {dimension_numbers = #tpu.dot_dimension_numbers<[1], [0], [0], [1], [0, 0, 1, 1], [], []>} : vector<256x4xbf16>, vector<4x4xbf16>, vector<256x4xf32> -> vector<256x4xf32>
    %110 = arith.addf %103, %109 : vector<256x4xf32>
    %c0_134 = arith.constant 0 : index
    %c2_135 = arith.constant 2 : index
    %c0_136 = arith.constant 0 : index
    %111 = vector.load %arg8[%c0_134, %c2_135, %c0_136] : memref<18x18x4xf32, #tpu.memory_space<vmem>>, vector<16x16x4xf32>
    %112 = vector.shape_cast %111 : vector<16x16x4xf32> to vector<256x4xf32>
    %113 = arith.truncf %112 : vector<256x4xf32> to vector<256x4xbf16>
    %c0_137 = arith.constant 0 : index
    %c2_138 = arith.constant 2 : index
    %c0_139 = arith.constant 0 : index
    %c0_140 = arith.constant 0 : index
    %114 = vector.load %arg4[%c0_137, %c2_138, %c0_139, %c0_140] : memref<3x3x4x4xbf16, #tpu.memory_space<vmem>>, vector<1x1x4x4xbf16>
    %115 = vector.shape_cast %114 : vector<1x1x4x4xbf16> to vector<4x4xbf16>
    %cst_141 = arith.constant dense<0.000000e+00> : vector<256x4xf32>
    %116 = tpu.matmul %113, %115, %cst_141 {dimension_numbers = #tpu.dot_dimension_numbers<[1], [0], [0], [1], [0, 0, 1, 1], [], []>} : vector<256x4xbf16>, vector<4x4xbf16>, vector<256x4xf32> -> vector<256x4xf32>
    %117 = arith.addf %110, %116 : vector<256x4xf32>
    %c1_142 = arith.constant 1 : index
    %c0_143 = arith.constant 0 : index
    %c0_144 = arith.constant 0 : index
    %118 = vector.load %arg8[%c1_142, %c0_143, %c0_144] : memref<18x18x4xf32, #tpu.memory_space<vmem>>, vector<16x16x4xf32>
    %119 = vector.shape_cast %118 : vector<16x16x4xf32> to vector<256x4xf32>
    %120 = arith.truncf %119 : vector<256x4xf32> to vector<256x4xbf16>
    %c1_145 = arith.constant 1 : index
    %c0_146 = arith.constant 0 : index
    %c0_147 = arith.constant 0 : index
    %c0_148 = arith.constant 0 : index
    %121 = vector.load %arg4[%c1_145, %c0_146, %c0_147, %c0_148] : memref<3x3x4x4xbf16, #tpu.memory_space<vmem>>, vector<1x1x4x4xbf16>
    %122 = vector.shape_cast %121 : vector<1x1x4x4xbf16> to vector<4x4xbf16>
    %cst_149 = arith.constant dense<0.000000e+00> : vector<256x4xf32>
    %123 = tpu.matmul %120, %122, %cst_149 {dimension_numbers = #tpu.dot_dimension_numbers<[1], [0], [0], [1], [0, 0, 1, 1], [], []>} : vector<256x4xbf16>, vector<4x4xbf16>, vector<256x4xf32> -> vector<256x4xf32>
    %124 = arith.addf %117, %123 : vector<256x4xf32>
    %c1_150 = arith.constant 1 : index
    %c1_151 = arith.constant 1 : index
    %c0_152 = arith.constant 0 : index
    %125 = vector.load %arg8[%c1_150, %c1_151, %c0_152] : memref<18x18x4xf32, #tpu.memory_space<vmem>>, vector<16x16x4xf32>
    %126 = vector.shape_cast %125 : vector<16x16x4xf32> to vector<256x4xf32>
    %127 = arith.truncf %126 : vector<256x4xf32> to vector<256x4xbf16>
    %c1_153 = arith.constant 1 : index
    %c1_154 = arith.constant 1 : index
    %c0_155 = arith.constant 0 : index
    %c0_156 = arith.constant 0 : index
    %128 = vector.load %arg4[%c1_153, %c1_154, %c0_155, %c0_156] : memref<3x3x4x4xbf16, #tpu.memory_space<vmem>>, vector<1x1x4x4xbf16>
    %129 = vector.shape_cast %128 : vector<1x1x4x4xbf16> to vector<4x4xbf16>
    %cst_157 = arith.constant dense<0.000000e+00> : vector<256x4xf32>
    %130 = tpu.matmul %127, %129, %cst_157 {dimension_numbers = #tpu.dot_dimension_numbers<[1], [0], [0], [1], [0, 0, 1, 1], [], []>} : vector<256x4xbf16>, vector<4x4xbf16>, vector<256x4xf32> -> vector<256x4xf32>
    %131 = arith.addf %124, %130 : vector<256x4xf32>
    %c1_158 = arith.constant 1 : index
    %c2_159 = arith.constant 2 : index
    %c0_160 = arith.constant 0 : index
    %132 = vector.load %arg8[%c1_158, %c2_159, %c0_160] : memref<18x18x4xf32, #tpu.memory_space<vmem>>, vector<16x16x4xf32>
    %133 = vector.shape_cast %132 : vector<16x16x4xf32> to vector<256x4xf32>
    %134 = arith.truncf %133 : vector<256x4xf32> to vector<256x4xbf16>
    %c1_161 = arith.constant 1 : index
    %c2_162 = arith.constant 2 : index
    %c0_163 = arith.constant 0 : index
    %c0_164 = arith.constant 0 : index
    %135 = vector.load %arg4[%c1_161, %c2_162, %c0_163, %c0_164] : memref<3x3x4x4xbf16, #tpu.memory_space<vmem>>, vector<1x1x4x4xbf16>
    %136 = vector.shape_cast %135 : vector<1x1x4x4xbf16> to vector<4x4xbf16>
    %cst_165 = arith.constant dense<0.000000e+00> : vector<256x4xf32>
    %137 = tpu.matmul %134, %136, %cst_165 {dimension_numbers = #tpu.dot_dimension_numbers<[1], [0], [0], [1], [0, 0, 1, 1], [], []>} : vector<256x4xbf16>, vector<4x4xbf16>, vector<256x4xf32> -> vector<256x4xf32>
    %138 = arith.addf %131, %137 : vector<256x4xf32>
    %c2_166 = arith.constant 2 : index
    %c0_167 = arith.constant 0 : index
    %c0_168 = arith.constant 0 : index
    %139 = vector.load %arg8[%c2_166, %c0_167, %c0_168] : memref<18x18x4xf32, #tpu.memory_space<vmem>>, vector<16x16x4xf32>
    %140 = vector.shape_cast %139 : vector<16x16x4xf32> to vector<256x4xf32>
    %141 = arith.truncf %140 : vector<256x4xf32> to vector<256x4xbf16>
    %c2_169 = arith.constant 2 : index
    %c0_170 = arith.constant 0 : index
    %c0_171 = arith.constant 0 : index
    %c0_172 = arith.constant 0 : index
    %142 = vector.load %arg4[%c2_169, %c0_170, %c0_171, %c0_172] : memref<3x3x4x4xbf16, #tpu.memory_space<vmem>>, vector<1x1x4x4xbf16>
    %143 = vector.shape_cast %142 : vector<1x1x4x4xbf16> to vector<4x4xbf16>
    %cst_173 = arith.constant dense<0.000000e+00> : vector<256x4xf32>
    %144 = tpu.matmul %141, %143, %cst_173 {dimension_numbers = #tpu.dot_dimension_numbers<[1], [0], [0], [1], [0, 0, 1, 1], [], []>} : vector<256x4xbf16>, vector<4x4xbf16>, vector<256x4xf32> -> vector<256x4xf32>
    %145 = arith.addf %138, %144 : vector<256x4xf32>
    %c2_174 = arith.constant 2 : index
    %c1_175 = arith.constant 1 : index
    %c0_176 = arith.constant 0 : index
    %146 = vector.load %arg8[%c2_174, %c1_175, %c0_176] : memref<18x18x4xf32, #tpu.memory_space<vmem>>, vector<16x16x4xf32>
    %147 = vector.shape_cast %146 : vector<16x16x4xf32> to vector<256x4xf32>
    %148 = arith.truncf %147 : vector<256x4xf32> to vector<256x4xbf16>
    %c2_177 = arith.constant 2 : index
    %c1_178 = arith.constant 1 : index
    %c0_179 = arith.constant 0 : index
    %c0_180 = arith.constant 0 : index
    %149 = vector.load %arg4[%c2_177, %c1_178, %c0_179, %c0_180] : memref<3x3x4x4xbf16, #tpu.memory_space<vmem>>, vector<1x1x4x4xbf16>
    %150 = vector.shape_cast %149 : vector<1x1x4x4xbf16> to vector<4x4xbf16>
    %cst_181 = arith.constant dense<0.000000e+00> : vector<256x4xf32>
    %151 = tpu.matmul %148, %150, %cst_181 {dimension_numbers = #tpu.dot_dimension_numbers<[1], [0], [0], [1], [0, 0, 1, 1], [], []>} : vector<256x4xbf16>, vector<4x4xbf16>, vector<256x4xf32> -> vector<256x4xf32>
    %152 = arith.addf %145, %151 : vector<256x4xf32>
    %c2_182 = arith.constant 2 : index
    %c2_183 = arith.constant 2 : index
    %c0_184 = arith.constant 0 : index
    %153 = vector.load %arg8[%c2_182, %c2_183, %c0_184] : memref<18x18x4xf32, #tpu.memory_space<vmem>>, vector<16x16x4xf32>
    %154 = vector.shape_cast %153 : vector<16x16x4xf32> to vector<256x4xf32>
    %155 = arith.truncf %154 : vector<256x4xf32> to vector<256x4xbf16>
    %c2_185 = arith.constant 2 : index
    %c2_186 = arith.constant 2 : index
    %c0_187 = arith.constant 0 : index
    %c0_188 = arith.constant 0 : index
    %156 = vector.load %arg4[%c2_185, %c2_186, %c0_187, %c0_188] : memref<3x3x4x4xbf16, #tpu.memory_space<vmem>>, vector<1x1x4x4xbf16>
    %157 = vector.shape_cast %156 : vector<1x1x4x4xbf16> to vector<4x4xbf16>
    %cst_189 = arith.constant dense<0.000000e+00> : vector<256x4xf32>
    %158 = tpu.matmul %155, %157, %cst_189 {dimension_numbers = #tpu.dot_dimension_numbers<[1], [0], [0], [1], [0, 0, 1, 1], [], []>} : vector<256x4xbf16>, vector<4x4xbf16>, vector<256x4xf32> -> vector<256x4xf32>
    %159 = arith.addf %152, %158 : vector<256x4xf32>
    %c1_190 = arith.constant 1 : index
    %c0_191 = arith.constant 0 : index
    %160 = vector.load %arg5[%c1_190, %c0_191] : memref<2x4xf32, #tpu.memory_space<vmem>>, vector<1x4xf32>
    %161 = vector.broadcast %160 : vector<1x4xf32> to vector<256x4xf32>
    %162 = arith.addf %159, %161 : vector<256x4xf32>
    %cst_192 = arith.constant 0.000000e+00 : f32
    %163 = vector.broadcast %cst_192 : f32 to vector<256x4xf32>
    %164 = arith.maximumf %162, %163 : vector<256x4xf32>
    %165 = vector.shape_cast %164 : vector<256x4xf32> to vector<16x16x4xf32>
    %166 = arith.addf %165, %1 : vector<16x16x4xf32>
    %c0_193 = arith.constant 0 : index
    %c0_194 = arith.constant 0 : index
    %c0_195 = arith.constant 0 : index
    %c0_196 = arith.constant 0 : index
    %167 = vector.load %arg6[%c0_193, %c0_194, %c0_195, %c0_196] : memref<1x16x16x4xf32, #tpu.memory_space<vmem>>, vector<1x16x16x4xf32>
    %168 = vector.shape_cast %167 : vector<1x16x16x4xf32> to vector<16x16x4xf32>
    %169 = vector.shape_cast %166 : vector<16x16x4xf32> to vector<1x16x16x4xf32>
    tpu.vector_store %arg6[%c0_193, %c0_194, %c0_195, %c0_196], %169 {strides = array<i32>} : memref<1x16x16x4xf32, #tpu.memory_space<vmem>>, vector<1x16x16x4xf32>,
    return
  }
  func.func @transform_0(%arg0: i32) -> (i32, i32, i32, i32) {
    %c0_i32 = arith.constant 0 : i32
    %c0_i32_0 = arith.constant 0 : i32
    %c0_i32_1 = arith.constant 0 : i32
    %c0_i32_2 = arith.constant 0 : i32
    return %arg0, %c0_i32, %c0_i32_0, %c0_i32_1 : i32, i32, i32, i32
  }
  func.func @transform_1(%arg0: i32) -> (i32, i32, i32, i32) {
    %c0_i32 = arith.constant 0 : i32
    %c0_i32_0 = arith.constant 0 : i32
    %c0_i32_1 = arith.constant 0 : i32
    %c0_i32_2 = arith.constant 0 : i32
    %c0_i32_3 = arith.constant 0 : i32
    return %c0_i32, %c0_i32_0, %c0_i32_1, %c0_i32_2 : i32, i32, i32, i32
  }
  func.func @transform_2(%arg0: i32) -> (i32, i32) {
    %c0_i32 = arith.constant 0 : i32
    %c0_i32_0 = arith.constant 0 : i32
    %c0_i32_1 = arith.constant 0 : i32
    return %c0_i32, %c0_i32_0 : i32, i32
  }
  func.func @transform_3(%arg0: i32) -> (i32, i32, i32, i32) {
    %c0_i32 = arith.constant 0 : i32
    %c0_i32_0 = arith.constant 0 : i32
    %c0_i32_1 = arith.constant 0 : i32
    %c0_i32_2 = arith.constant 0 : i32
    %c0_i32_3 = arith.constant 0 : i32
    return %c0_i32, %c0_i32_0, %c0_i32_1, %c0_i32_2 : i32, i32, i32, i32
  }
  func.func @transform_4(%arg0: i32) -> (i32, i32) {
    %c0_i32 = arith.constant 0 : i32
    %c0_i32_0 = arith.constant 0 : i32
    %c0_i32_1 = arith.constant 0 : i32
    return %c0_i32, %c0_i32_0 : i32, i32
  }
  func.func @transform_5(%arg0: i32) -> (i32, i32, i32, i32) {
    %c0_i32 = arith.constant 0 : i32
    %c0_i32_0 = arith.constant 0 : i32
    %c0_i32_1 = arith.constant 0 : i32
    %c0_i32_2 = arith.constant 0 : i32
    return %arg0, %c0_i32, %c0_i32_0, %c0_i32_1 : i32, i32, i32, i32
  }
}

</mosaic_0001>

<llo_original>
// kernel: tpu_custom_call.1
$region0: #{tpu_custom_call.1}
  #allocation0 [shape = 'u32[]', space=smem, size = 0x4, offset = 0x4, fixed_abs, tag = 'smem constant byte address 0x4 - core index']
  #allocation1 [shape = 'u32[144,128]{1,0:T(1,128)}', space=vmem, size = 0x12000, scoped, tag = 'internal scratch']
  #allocation2 [shape = 'f32[18,18,2]{2,1,0:T(8,128)}', space=vmem, size = 0x36000, scoped, tag = 'scratch operand']
  #allocation3 [shape = 'f32[18,18,4]{2,1,0:T(8,128)}', space=vmem, size = 0x36000, scoped, tag = 'scratch operand']
  %s0 = inlined_call_operand.vmem [shape: f32[2,16,16,4], index: 0, kind: input, shape index: {}]
  %s1 = inlined_call_operand.vmem [shape: bf16[3,3,2,2], index: 1, kind: input, shape index: {}]
  %s2 = inlined_call_operand.vmem [shape: bf16[4,4], index: 2, kind: input, shape index: {}]
  %s3 = inlined_call_operand.vmem [shape: bf16[3,3,4,4], index: 3, kind: input, shape index: {}]
  %s4 = inlined_call_operand.vmem [shape: f32[2,4], index: 4, kind: input, shape index: {}]
  %s5 = inlined_call_operand.vmem [shape: f32[2,16,16,4], index: 5, kind: output, shape index: {}]
  %s6 = sld [smem:[#allocation0]]
  $region53: #{tpu_custom_call.1} parent=0
    _
  %s8 = ssub.s32 1, %s6
  %s9 = scalar_select 0, %s8, %s6
  loop: start=0, step=1, limit=4
  $region2: #{tpu_custom_call.1} parent=0 // loop_pre_header
    _
  $region3: #{tpu_custom_call.1} parent=0 // loop_header
    %s11 = sphi 0, %s15
    %p12 = scmp.ge.s32.totalorder %s11, 4
    %s21 = sphi 0, %s23
    %s24 = sphi 0, %s21
    %s25 = sphi 0, %s24
    %s41 = sphi 0, %s25
    %s45 = sphi 0, %s45
    %s47 = sphi 0, %s45
    %s48 = sphi 0, %s47
    %s62 = sphi 0, %s48
    %s66 = sphi 0, %s66
    %s68 = sphi 0, %s66
    %s69 = sphi 0, %s68
    %s83 = sphi 0, %s69
    %s87 = sphi 0, %s87
    %s89 = sphi 0, %s87
    %s90 = sphi 0, %s89
    %s104 = sphi 0, %s90
    %s108 = sphi 0, %s108
    %s110 = sphi 0, %s108
    %s111 = sphi 0, %s110
    %s125 = sphi 0, %s111
    %s131 = sphi 0, %s133
    %s134 = sphi 0, %s131
    %s135 = sphi 0, %s134
    %s151 = sphi 0, %s135
  $region4: #{tpu_custom_call.1} parent=0 // loop_header_branch
    %14 = sbr.rel (%p12) target = $region8
  $region5: #{tpu_custom_call.1} parent=0 // loop_body
    %s16 = ssub.s32 %s11, 1
    %s17 = ssub.s32 %s11, 2
    %s18 = sadd.s32 %s11, 1
    %s19 = ssub.s32 %s11, %s18
    %p20 = scmp.eq.s32.totalorder %s19, 0
    %s22 = sadd.s32 %s21, 1
    %s23 = scalar_select %p20, %s21, %s22
    %p26 = pneg %p20
    %p27 = scmp.eq.s32.totalorder %s11, 1
    %p28 = por %p26, %p27
    %p29 = scmp.ne.s32.totalorder %s21, %s24
    %p30 = scmp.eq.s32.totalorder %s11, 0
    %p31 = por %p29, %p30
    %p32 = scmp.ne.s32.totalorder %s21, %s24
    %p33 = scmp.eq.s32.totalorder %s16, 1
    %p34 = por %p32, %p33
    %p35 = scmp.ne.s32.totalorder %s24, %s25
    %p36 = scmp.eq.s32.totalorder %s16, 0
    %p37 = por %p35, %p36
    %p38 = scmp.ne.s32.totalorder %s24, %s25
    %p39 = scmp.eq.s32.totalorder %s17, 1
    %p40 = por %p38, %p39
    %p42 = scmp.ne.s32.totalorder %s25, %s41
    %p43 = scmp.eq.s32.totalorder %s17, 0
    %p44 = por %p42, %p43
    %s46 = sadd.s32 %s45, 1
    %p49 = scmp.eq.s32.totalorder %s11, 1
    %p50 = scmp.ne.s32.totalorder %s45, %s47
    %p51 = scmp.eq.s32.totalorder %s11, 0
    %p52 = por %p50, %p51
    %p53 = scmp.ne.s32.totalorder %s45, %s47
    %p54 = scmp.eq.s32.totalorder %s16, 1
    %p55 = por %p53, %p54
    %p56 = scmp.ne.s32.totalorder %s47, %s48
    %p57 = scmp.eq.s32.totalorder %s16, 0
    %p58 = por %p56, %p57
    %p59 = scmp.ne.s32.totalorder %s47, %s48
    %p60 = scmp.eq.s32.totalorder %s17, 1
    %p61 = por %p59, %p60
    %p63 = scmp.ne.s32.totalorder %s48, %s62
    %p64 = scmp.eq.s32.totalorder %s17, 0
    %p65 = por %p63, %p64
    %s67 = sadd.s32 %s66, 1
    %p70 = scmp.eq.s32.totalorder %s11, 1
    %p71 = scmp.ne.s32.totalorder %s66, %s68
    %p72 = scmp.eq.s32.totalorder %s11, 0
    %p73 = por %p71, %p72
    %p74 = scmp.ne.s32.totalorder %s66, %s68
    %p75 = scmp.eq.s32.totalorder %s16, 1
    %p76 = por %p74, %p75
    %p77 = scmp.ne.s32.totalorder %s68, %s69
    %p78 = scmp.eq.s32.totalorder %s16, 0
    %p79 = por %p77, %p78
    %p80 = scmp.ne.s32.totalorder %s68, %s69
    %p81 = scmp.eq.s32.totalorder %s17, 1
    %p82 = por %p80, %p81
    %p84 = scmp.ne.s32.totalorder %s69, %s83
    %p85 = scmp.eq.s32.totalorder %s17, 0
    %p86 = por %p84, %p85
    %s88 = sadd.s32 %s87, 1
    %p91 = scmp.eq.s32.totalorder %s11, 1
    %p92 = scmp.ne.s32.totalorder %s87, %s89
    %p93 = scmp.eq.s32.totalorder %s11, 0
    %p94 = por %p92, %p93
    %p95 = scmp.ne.s32.totalorder %s87, %s89
    %p96 = scmp.eq.s32.totalorder %s16, 1
    %p97 = por %p95, %p96
    %p98 = scmp.ne.s32.totalorder %s89, %s90
    %p99 = scmp.eq.s32.totalorder %s16, 0
    %p100 = por %p98, %p99
    %p101 = scmp.ne.s32.totalorder %s89, %s90
    %p102 = scmp.eq.s32.totalorder %s17, 1
    %p103 = por %p101, %p102
    %p105 = scmp.ne.s32.totalorder %s90, %s104
    %p106 = scmp.eq.s32.totalorder %s17, 0
    %p107 = por %p105, %p106
    %s109 = sadd.s32 %s108, 1
    %p112 = scmp.eq.s32.totalorder %s11, 1
    %p113 = scmp.ne.s32.totalorder %s108, %s110
    %p114 = scmp.eq.s32.totalorder %s11, 0
    %p115 = por %p113, %p114
    %p116 = scmp.ne.s32.totalorder %s108, %s110
    %p117 = scmp.eq.s32.totalorder %s16, 1
    %p118 = por %p116, %p117
    %p119 = scmp.ne.s32.totalorder %s110, %s111
    %p120 = scmp.eq.s32.totalorder %s16, 0
    %p121 = por %p119, %p120
    %p122 = scmp.ne.s32.totalorder %s110, %s111
    %p123 = scmp.eq.s32.totalorder %s17, 1
    %p124 = por %p122, %p123
    %p126 = scmp.ne.s32.totalorder %s111, %s125
    %p127 = scmp.eq.s32.totalorder %s17, 0
    %p128 = por %p126, %p127
    %s129 = ssub.s32 %s11, %s18
    %p130 = scmp.eq.s32.totalorder %s129, 0
    %s132 = sadd.s32 %s131, 1
    %s133 = scalar_select %p130, %s131, %s132
    %p136 = pneg %p130
    %p137 = scmp.eq.s32.totalorder %s11, 1
    %p138 = por %p136, %p137
    %p139 = scmp.ne.s32.totalorder %s131, %s134
    %p140 = scmp.eq.s32.totalorder %s11, 0
    %p141 = por %p139, %p140
    %p142 = scmp.ne.s32.totalorder %s131, %s134
    %p143 = scmp.eq.s32.totalorder %s16, 1
    %p144 = por %p142, %p143
    %p145 = scmp.ne.s32.totalorder %s134, %s135
    %p146 = scmp.eq.s32.totalorder %s16, 0
    %p147 = por %p145, %p146
    %p148 = scmp.ne.s32.totalorder %s134, %s135
    %p149 = scmp.eq.s32.totalorder %s17, 1
    %p150 = por %p148, %p149
    %p152 = scmp.ne.s32.totalorder %s135, %s151
    %p153 = scmp.eq.s32.totalorder %s17, 0
    %p154 = por %p152, %p153
    %p155 = scmp.le.s32.totalorder 1, %s11
    %p156 = scmp.lt.s32.totalorder %s11, 3
    %p157 = pnand %p155, %p156
    %p158 = pneg %p157
    // Predicated region
    $region9: #{tpu_custom_call.1} parent=5 // pred_check
      _
    $region10: #{tpu_custom_call.1} parent=5 // pred_check_branch
      %160 = sbr.rel (%p157) target = $region12
    $region11: #{tpu_custom_call.1} parent=5 // pred_region
      %s161 = ssub.s32 %s11, 1
      // Predicated region
      $region13: #{tpu_custom_call.1} parent=11 // pred_check
        %p162 = pneg %p58
      $region14: #{tpu_custom_call.1} parent=11 // pred_check_branch
        %164 = sbr.rel (%p162) target = $region16
      $region15: #{tpu_custom_call.1} parent=11 // pred_region
        _
      $region16: #{tpu_custom_call.1} parent=11 // pred_fallthru
        _
      // Predicated region
      $region17: #{tpu_custom_call.1} parent=11 // pred_check
        %p165 = pneg %p79
      $region18: #{tpu_custom_call.1} parent=11 // pred_check_branch
        %167 = sbr.rel (%p165) target = $region20
      $region19: #{tpu_custom_call.1} parent=11 // pred_region
        _
      $region20: #{tpu_custom_call.1} parent=11 // pred_fallthru
        _
      // Predicated region
      $region21: #{tpu_custom_call.1} parent=11 // pred_check
        %p168 = pneg %p100
      $region22: #{tpu_custom_call.1} parent=11 // pred_check_branch
        %170 = sbr.rel (%p168) target = $region24
      $region23: #{tpu_custom_call.1} parent=11 // pred_region
        _
      $region24: #{tpu_custom_call.1} parent=11 // pred_fallthru
        _
      // Predicated region
      $region25: #{tpu_custom_call.1} parent=11 // pred_check
        %p171 = pneg %p121
      $region26: #{tpu_custom_call.1} parent=11 // pred_check_branch
        %173 = sbr.rel (%p171) target = $region28
      $region27: #{tpu_custom_call.1} parent=11 // pred_region
        _
      $region28: #{tpu_custom_call.1} parent=11 // pred_fallthru
        _
    $region12: #{tpu_custom_call.1} parent=5 // pred_fallthru
      _
    %p174 = scmp.lt.s32.totalorder %s11, 2
    // Predicated region
    $region29: #{tpu_custom_call.1} parent=5 // pred_check
      %p175 = pneg %p174
    $region30: #{tpu_custom_call.1} parent=5 // pred_check_branch
      %177 = sbr.rel (%p175) target = $region32
    $region31: #{tpu_custom_call.1} parent=5 // pred_region
      // Predicated region
      $region33: #{tpu_custom_call.1} parent=31 // pred_check
        %p178 = pneg %p31
      $region34: #{tpu_custom_call.1} parent=31 // pred_check_branch
        %180 = sbr.rel (%p178) target = $region36
      $region35: #{tpu_custom_call.1} parent=31 // pred_region
        %p181 = scmp.lt.s32.totalorder %s11, 1
        %s182 = scalar_select %p181, %s11, 1
        %s183 = smul.addr %s182, 32
        %s184 = smul.addr %s183, 8
        %s185 = scalar_lea.vmem %s0, %s184
      $region36: #{tpu_custom_call.1} parent=31 // pred_fallthru
        _
    $region32: #{tpu_custom_call.1} parent=5 // pred_fallthru
      _
    %p186 = scmp.le.s32.totalorder 1, %s11
    %p187 = scmp.lt.s32.totalorder %s11, 3
    %p188 = pnand %p186, %p187
    %p189 = pneg %p188
    // Predicated region
    $region37: #{tpu_custom_call.1} parent=5 // pred_check
      _
    $region38: #{tpu_custom_call.1} parent=5 // pred_check_branch
      %191 = sbr.rel (%p188) target = $region40
    $region39: #{tpu_custom_call.1} parent=5 // pred_region
      %s192 = ssub.s32 %s11, 1
      %p193 = scmp.lt.s32.totalorder %s16, 1
      %s194 = scalar_select %p193, %s16, 1
      %s195 = smul.addr %s194, 32
      %s196 = smul.addr %s195, 8
      %s197 = scalar_lea.vmem %s0, %s196
      %p198 = pneg %p37
      %p199 = pneg %p34
      %p200 = pneg %p58
      %p201 = pneg %p55
      %p202 = pneg %p79
      %p203 = pneg %p76
      %p204 = pneg %p100
      %p205 = pneg %p97
      %p206 = pneg %p121
      %p207 = pneg %p118
      %p208 = pneg %p147
      %p209 = pneg %p144
      %p210 = scmp.lt.s32.totalorder %s16, 1
      %s211 = scalar_select %p210, %s16, 1
      %s212 = smul.addr %s211, 32
      %s213 = smul.addr %s212, 8
      %s214 = scalar_lea.vmem %s5, %s213
      %p215 = scmp.lt.s32.totalorder %s16, 1
      %s216 = scalar_select %p215, %s16, 1
      %s217 = smul.addr %s216, 32
      %s218 = smul.addr %s217, 8
      %s219 = scalar_lea.vmem %s0, %s218
      %p220 = scmp.lt.s32.totalorder %s16, 1
      %s221 = scalar_select %p220, %s16, 1
      %s222 = smul.addr %s221, 32
      %s223 = smul.addr %s222, 8
      %s224 = scalar_lea.vmem %s5, %s223
      %v226 = vld [vmem:[%s219] sm:$0xff]
      %v227 = vld [vmem:[%s219 + $0x8] sm:$0xff]
      %v228 = vld [vmem:[%s219 + $0x10] sm:$0xff]
      %v229 = vld [vmem:[%s219 + $0x18] sm:$0xff]
      %v230 = vld [vmem:[%s219 + $0x20] sm:$0xff]
      %v231 = vld [vmem:[%s219 + $0x28] sm:$0xff]
      %v232 = vld [vmem:[%s219 + $0x30] sm:$0xff]
      %v233 = vld [vmem:[%s219 + $0x38] sm:$0xff]
      %v234 = vld [vmem:[%s219 + $0x40] sm:$0xff]
      %v235 = vld [vmem:[%s219 + $0x48] sm:$0xff]
      %v236 = vld [vmem:[%s219 + $0x50] sm:$0xff]
      %v237 = vld [vmem:[%s219 + $0x58] sm:$0xff]
      %v238 = vld [vmem:[%s219 + $0x60] sm:$0xff]
      %v239 = vld [vmem:[%s219 + $0x68] sm:$0xff]
      %v240 = vld [vmem:[%s219 + $0x70] sm:$0xff]
      %v241 = vld [vmem:[%s219 + $0x78] sm:$0xff]
      %v242 = vld [vmem:[%s219 + $0x80] sm:$0xff]
      %v243 = vld [vmem:[%s219 + $0x88] sm:$0xff]
      %v244 = vld [vmem:[%s219 + $0x90] sm:$0xff]
      %v245 = vld [vmem:[%s219 + $0x98] sm:$0xff]
      %v246 = vld [vmem:[%s219 + $0xa0] sm:$0xff]
      %v247 = vld [vmem:[%s219 + $0xa8] sm:$0xff]
      %v248 = vld [vmem:[%s219 + $0xb0] sm:$0xff]
      %v249 = vld [vmem:[%s219 + $0xb8] sm:$0xff]
      %v250 = vld [vmem:[%s219 + $0xc0] sm:$0xff]
      %v251 = vld [vmem:[%s219 + $0xc8] sm:$0xff]
      %v252 = vld [vmem:[%s219 + $0xd0] sm:$0xff]
      %v253 = vld [vmem:[%s219 + $0xd8] sm:$0xff]
      %v254 = vld [vmem:[%s219 + $0xe0] sm:$0xff]
      %v255 = vld [vmem:[%s219 + $0xe8] sm:$0xff]
      %v256 = vld [vmem:[%s219 + $0xf0] sm:$0xff]
      %v257 = vld [vmem:[%s219 + $0xf8] sm:$0xff]
      %vm258 = vcmask 15360
      %259 = vst.msk [vmem:[#allocation2] sm:$0xff] %vm258, 0.0
      %260 = vst.msk [vmem:[#allocation2 + $0x8] sm:$0xff] %vm258, 0.0
      %vm261 = vcmask 9216
      %262 = vst.msk [vmem:[#allocation2 + $0x10] sm:$0x3] %vm261, 0.0
      %s263 = scalar_lea.vmem [#allocation2], 408
      %264 = vst.msk [vmem:[%s263] sm:$0xff] %vm258, 0.0
      %265 = vst.msk [vmem:[%s263 + $0x8] sm:$0xff] %vm258, 0.0
      %266 = vst.msk [vmem:[%s263 + $0x10] sm:$0x3] %vm261, 0.0
      %vm267 = vcmask 8192
      %268 = vst.msk [vmem:[#allocation2] sm:$0x1] %vm267, 0.0
      %269 = vst.msk [vmem:[#allocation2 + $0x18] sm:$0x1] %vm267, 0.0
      %270 = vst.msk [vmem:[#allocation2 + $0x30] sm:$0x1] %vm267, 0.0
      %271 = vst.msk [vmem:[#allocation2 + $0x48] sm:$0x1] %vm267, 0.0
      %272 = vst.msk [vmem:[#allocation2 + $0x60] sm:$0x1] %vm267, 0.0
      %273 = vst.msk [vmem:[#allocation2 + $0x78] sm:$0x1] %vm267, 0.0
      %274 = vst.msk [vmem:[#allocation2 + $0x90] sm:$0x1] %vm267, 0.0
      %275 = vst.msk [vmem:[#allocation2 + $0xa8] sm:$0x1] %vm267, 0.0
      %276 = vst.msk [vmem:[#allocation2 + $0xc0] sm:$0x1] %vm267, 0.0
      %277 = vst.msk [vmem:[#allocation2 + $0xd8] sm:$0x1] %vm267, 0.0
      %278 = vst.msk [vmem:[#allocation2 + $0xf0] sm:$0x1] %vm267, 0.0
      %279 = vst.msk [vmem:[#allocation2 + $0x108] sm:$0x1] %vm267, 0.0
      %280 = vst.msk [vmem:[#allocation2 + $0x120] sm:$0x1] %vm267, 0.0
      %281 = vst.msk [vmem:[#allocation2 + $0x138] sm:$0x1] %vm267, 0.0
      %282 = vst.msk [vmem:[#allocation2 + $0x150] sm:$0x1] %vm267, 0.0
      %283 = vst.msk [vmem:[#allocation2 + $0x168] sm:$0x1] %vm267, 0.0
      %284 = vst.msk [vmem:[#allocation2 + $0x180] sm:$0x1] %vm267, 0.0
      %285 = vst.msk [vmem:[#allocation2 + $0x198] sm:$0x1] %vm267, 0.0
      %286 = vst.msk [vmem:[#allocation2 + $0x11] sm:$0x1] %vm267, 0.0
      %287 = vst.msk [vmem:[#allocation2 + $0x29] sm:$0x1] %vm267, 0.0
      %288 = vst.msk [vmem:[#allocation2 + $0x41] sm:$0x1] %vm267, 0.0
      %289 = vst.msk [vmem:[#allocation2 + $0x59] sm:$0x1] %vm267, 0.0
      %290 = vst.msk [vmem:[#allocation2 + $0x71] sm:$0x1] %vm267, 0.0
      %291 = vst.msk [vmem:[#allocation2 + $0x89] sm:$0x1] %vm267, 0.0
      %292 = vst.msk [vmem:[#allocation2 + $0xa1] sm:$0x1] %vm267, 0.0
      %293 = vst.msk [vmem:[#allocation2 + $0xb9] sm:$0x1] %vm267, 0.0
      %294 = vst.msk [vmem:[#allocation2 + $0xd1] sm:$0x1] %vm267, 0.0
      %295 = vst.msk [vmem:[#allocation2 + $0xe9] sm:$0x1] %vm267, 0.0
      %296 = vst.msk [vmem:[#allocation2 + $0x101] sm:$0x1] %vm267, 0.0
      %297 = vst.msk [vmem:[#allocation2 + $0x119] sm:$0x1] %vm267, 0.0
      %298 = vst.msk [vmem:[#allocation2 + $0x131] sm:$0x1] %vm267, 0.0
      %299 = vst.msk [vmem:[#allocation2 + $0x149] sm:$0x1] %vm267, 0.0
      %300 = vst.msk [vmem:[#allocation2 + $0x161] sm:$0x1] %vm267, 0.0
      %301 = vst.msk [vmem:[#allocation2 + $0x179] sm:$0x1] %vm267, 0.0
      %302 = vst.msk [vmem:[#allocation2 + $0x191] sm:$0x1] %vm267, 0.0
      %303 = vst.msk [vmem:[#allocation2 + $0x1a9] sm:$0x1] %vm267, 0.0
      %vm304 = vcmask 31744
      %305 = vst.msk [vmem:[#allocation3] sm:$0xff] %vm304, 0.0
      %306 = vst.msk [vmem:[#allocation3 + $0x8] sm:$0xff] %vm304, 0.0
      %vm307 = vcmask 25600
      %308 = vst.msk [vmem:[#allocation3 + $0x10] sm:$0x3] %vm307, 0.0
      %s309 = scalar_lea.vmem [#allocation3], 408
      %310 = vst.msk [vmem:[%s309] sm:$0xff] %vm304, 0.0
      %311 = vst.msk [vmem:[%s309 + $0x8] sm:$0xff] %vm304, 0.0
      %312 = vst.msk [vmem:[%s309 + $0x10] sm:$0x3] %vm307, 0.0
      %vm313 = vcmask 24576
      %314 = vst.msk [vmem:[#allocation3] sm:$0x1] %vm313, 0.0
      %315 = vst.msk [vmem:[#allocation3 + $0x18] sm:$0x1] %vm313, 0.0
      %316 = vst.msk [vmem:[#allocation3 + $0x30] sm:$0x1] %vm313, 0.0
      %317 = vst.msk [vmem:[#allocation3 + $0x48] sm:$0x1] %vm313, 0.0
      %318 = vst.msk [vmem:[#allocation3 + $0x60] sm:$0x1] %vm313, 0.0
      %319 = vst.msk [vmem:[#allocation3 + $0x78] sm:$0x1] %vm313, 0.0
      %320 = vst.msk [vmem:[#allocation3 + $0x90] sm:$0x1] %vm313, 0.0
      %321 = vst.msk [vmem:[#allocation3 + $0xa8] sm:$0x1] %vm313, 0.0
      %322 = vst.msk [vmem:[#allocation3 + $0xc0] sm:$0x1] %vm313, 0.0
      %323 = vst.msk [vmem:[#allocation3 + $0xd8] sm:$0x1] %vm313, 0.0
      %324 = vst.msk [vmem:[#allocation3 + $0xf0] sm:$0x1] %vm313, 0.0
      %325 = vst.msk [vmem:[#allocation3 + $0x108] sm:$0x1] %vm313, 0.0
      %326 = vst.msk [vmem:[#allocation3 + $0x120] sm:$0x1] %vm313, 0.0
      %327 = vst.msk [vmem:[#allocation3 + $0x138] sm:$0x1] %vm313, 0.0
      %328 = vst.msk [vmem:[#allocation3 + $0x150] sm:$0x1] %vm313, 0.0
      %329 = vst.msk [vmem:[#allocation3 + $0x168] sm:$0x1] %vm313, 0.0
      %330 = vst.msk [vmem:[#allocation3 + $0x180] sm:$0x1] %vm313, 0.0
      %331 = vst.msk [vmem:[#allocation3 + $0x198] sm:$0x1] %vm313, 0.0
      %332 = vst.msk [vmem:[#allocation3 + $0x11] sm:$0x1] %vm313, 0.0
      %333 = vst.msk [vmem:[#allocation3 + $0x29] sm:$0x1] %vm313, 0.0
      %334 = vst.msk [vmem:[#allocation3 + $0x41] sm:$0x1] %vm313, 0.0
      %335 = vst.msk [vmem:[#allocation3 + $0x59] sm:$0x1] %vm313, 0.0
      %336 = vst.msk [vmem:[#allocation3 + $0x71] sm:$0x1] %vm313, 0.0
      %337 = vst.msk [vmem:[#allocation3 + $0x89] sm:$0x1] %vm313, 0.0
      %338 = vst.msk [vmem:[#allocation3 + $0xa1] sm:$0x1] %vm313, 0.0
      %339 = vst.msk [vmem:[#allocation3 + $0xb9] sm:$0x1] %vm313, 0.0
      %340 = vst.msk [vmem:[#allocation3 + $0xd1] sm:$0x1] %vm313, 0.0
      %341 = vst.msk [vmem:[#allocation3 + $0xe9] sm:$0x1] %vm313, 0.0
      %342 = vst.msk [vmem:[#allocation3 + $0x101] sm:$0x1] %vm313, 0.0
      %343 = vst.msk [vmem:[#allocation3 + $0x119] sm:$0x1] %vm313, 0.0
      %344 = vst.msk [vmem:[#allocation3 + $0x131] sm:$0x1] %vm313, 0.0
      %345 = vst.msk [vmem:[#allocation3 + $0x149] sm:$0x1] %vm313, 0.0
      %346 = vst.msk [vmem:[#allocation3 + $0x161] sm:$0x1] %vm313, 0.0
      %347 = vst.msk [vmem:[#allocation3 + $0x179] sm:$0x1] %vm313, 0.0
      %348 = vst.msk [vmem:[#allocation3 + $0x191] sm:$0x1] %vm313, 0.0
      %349 = vst.msk [vmem:[#allocation3 + $0x1a9] sm:$0x1] %vm313, 0.0
      %s350 = scalar_lea.vmem [#allocation2], 24
      %351 = vst.msk [vmem:[%s350 + $0x1] sm:$0xff] %vm258, %v226
      %352 = vst.msk [vmem:[%s350 + $0x9] sm:$0xff] %vm258, %v227
      %353 = vst.msk [vmem:[%s350 + $0x19] sm:$0xff] %vm258, %v228
      %354 = vst.msk [vmem:[%s350 + $0x21] sm:$0xff] %vm258, %v229
      %355 = vst.msk [vmem:[%s350 + $0x31] sm:$0xff] %vm258, %v230
      %356 = vst.msk [vmem:[%s350 + $0x39] sm:$0xff] %vm258, %v231
      %357 = vst.msk [vmem:[%s350 + $0x49] sm:$0xff] %vm258, %v232
      %358 = vst.msk [vmem:[%s350 + $0x51] sm:$0xff] %vm258, %v233
      %359 = vst.msk [vmem:[%s350 + $0x61] sm:$0xff] %vm258, %v234
      %360 = vst.msk [vmem:[%s350 + $0x69] sm:$0xff] %vm258, %v235
      %361 = vst.msk [vmem:[%s350 + $0x79] sm:$0xff] %vm258, %v236
      %362 = vst.msk [vmem:[%s350 + $0x81] sm:$0xff] %vm258, %v237
      %363 = vst.msk [vmem:[%s350 + $0x91] sm:$0xff] %vm258, %v238
      %364 = vst.msk [vmem:[%s350 + $0x99] sm:$0xff] %vm258, %v239
      %365 = vst.msk [vmem:[%s350 + $0xa9] sm:$0xff] %vm258, %v240
      %366 = vst.msk [vmem:[%s350 + $0xb1] sm:$0xff] %vm258, %v241
      %367 = vst.msk [vmem:[%s350 + $0xc1] sm:$0xff] %vm258, %v242
      %368 = vst.msk [vmem:[%s350 + $0xc9] sm:$0xff] %vm258, %v243
      %369 = vst.msk [vmem:[%s350 + $0xd9] sm:$0xff] %vm258, %v244
      %370 = vst.msk [vmem:[%s350 + $0xe1] sm:$0xff] %vm258, %v245
      %371 = vst.msk [vmem:[%s350 + $0xf1] sm:$0xff] %vm258, %v246
      %372 = vst.msk [vmem:[%s350 + $0xf9] sm:$0xff] %vm258, %v247
      %373 = vst.msk [vmem:[%s350 + $0x109] sm:$0xff] %vm258, %v248
      %374 = vst.msk [vmem:[%s350 + $0x111] sm:$0xff] %vm258, %v249
      %375 = vst.msk [vmem:[%s350 + $0x121] sm:$0xff] %vm258, %v250
      %376 = vst.msk [vmem:[%s350 + $0x129] sm:$0xff] %vm258, %v251
      %377 = vst.msk [vmem:[%s350 + $0x139] sm:$0xff] %vm258, %v252
      %378 = vst.msk [vmem:[%s350 + $0x141] sm:$0xff] %vm258, %v253
      %379 = vst.msk [vmem:[%s350 + $0x151] sm:$0xff] %vm258, %v254
      %380 = vst.msk [vmem:[%s350 + $0x159] sm:$0xff] %vm258, %v255
      %381 = vst.msk [vmem:[%s350 + $0x169] sm:$0xff] %vm258, %v256
      %382 = vst.msk [vmem:[%s350 + $0x171] sm:$0xff] %vm258, %v257
      %v383 = vld [vmem:[#allocation2] sm:$0xff]
      %v384 = vld [vmem:[#allocation2 + $0x8] sm:$0xff]
      %v385 = vld [vmem:[#allocation2 + $0x18] sm:$0xff]
      %v386 = vld [vmem:[#allocation2 + $0x20] sm:$0xff]
      %v387 = vld [vmem:[#allocation2 + $0x30] sm:$0xff]
      %v388 = vld [vmem:[#allocation2 + $0x38] sm:$0xff]
      %v389 = vld [vmem:[#allocation2 + $0x48] sm:$0xff]
      %v390 = vld [vmem:[#allocation2 + $0x50] sm:$0xff]
      %v391 = vld [vmem:[#allocation2 + $0x60] sm:$0xff]
      %v392 = vld [vmem:[#allocation2 + $0x68] sm:$0xff]
      %v393 = vld [vmem:[#allocation2 + $0x78] sm:$0xff]
      %v394 = vld [vmem:[#allocation2 + $0x80] sm:$0xff]
      %v395 = vld [vmem:[#allocation2 + $0x90] sm:$0xff]
      %v396 = vld [vmem:[#allocation2 + $0x98] sm:$0xff]
      %v397 = vld [vmem:[#allocation2 + $0xa8] sm:$0xff]
      %v398 = vld [vmem:[#allocation2 + $0xb0] sm:$0xff]
      %v399 = vld [vmem:[#allocation2 + $0xc0] sm:$0xff]
      %v400 = vld [vmem:[#allocation2 + $0xc8] sm:$0xff]
      %v401 = vld [vmem:[#allocation2 + $0xd8] sm:$0xff]
      %v402 = vld [vmem:[#allocation2 + $0xe0] sm:$0xff]
      %v403 = vld [vmem:[#allocation2 + $0xf0] sm:$0xff]
      %v404 = vld [vmem:[#allocation2 + $0xf8] sm:$0xff]
      %v405 = vld [vmem:[#allocation2 + $0x108] sm:$0xff]
      %v406 = vld [vmem:[#allocation2 + $0x110] sm:$0xff]
      %v407 = vld [vmem:[#allocation2 + $0x120] sm:$0xff]
      %v408 = vld [vmem:[#allocation2 + $0x128] sm:$0xff]
      %v409 = vld [vmem:[#allocation2 + $0x138] sm:$0xff]
      %v410 = vld [vmem:[#allocation2 + $0x140] sm:$0xff]
      %v411 = vld [vmem:[#allocation2 + $0x150] sm:$0xff]
      %v412 = vld [vmem:[#allocation2 + $0x158] sm:$0xff]
      %v413 = vld [vmem:[#allocation2 + $0x168] sm:$0xff]
      %v414 = vld [vmem:[#allocation2 + $0x170] sm:$0xff]
      %v415 = vpack.c.bf16 %v384, %v383
      %v416 = vpack.c.bf16 %v386, %v385
      %v417 = vpack.c.bf16 %v388, %v387
      %v418 = vpack.c.bf16 %v390, %v389
      %v419 = vpack.c.bf16 %v392, %v391
      %v420 = vpack.c.bf16 %v394, %v393
      %v421 = vpack.c.bf16 %v396, %v395
      %v422 = vpack.c.bf16 %v398, %v397
      %v423 = vpack.c.bf16 %v400, %v399
      %v424 = vpack.c.bf16 %v402, %v401
      %v425 = vpack.c.bf16 %v404, %v403
      %v426 = vpack.c.bf16 %v406, %v405
      %v427 = vpack.c.bf16 %v408, %v407
      %v428 = vpack.c.bf16 %v410, %v409
      %v429 = vpack.c.bf16 %v412, %v411
      %v430 = vpack.c.bf16 %v414, %v413
      %v431 = vld [vmem:[%s1] sm:$0x1]
      %v432 = vld [vmem:[#allocation2 + $0x1] sm:$0xff]
      %v433 = vld [vmem:[#allocation2 + $0x9] sm:$0xff]
      %v434 = vld [vmem:[#allocation2 + $0x19] sm:$0xff]
      %v435 = vld [vmem:[#allocation2 + $0x21] sm:$0xff]
      %v436 = vld [vmem:[#allocation2 + $0x31] sm:$0xff]
      %v437 = vld [vmem:[#allocation2 + $0x39] sm:$0xff]
      %v438 = vld [vmem:[#allocation2 + $0x49] sm:$0xff]
      %v439 = vld [vmem:[#allocation2 + $0x51] sm:$0xff]
      %v440 = vld [vmem:[#allocation2 + $0x61] sm:$0xff]
      %v441 = vld [vmem:[#allocation2 + $0x69] sm:$0xff]
      %v442 = vld [vmem:[#allocation2 + $0x79] sm:$0xff]
      %v443 = vld [vmem:[#allocation2 + $0x81] sm:$0xff]
      %v444 = vld [vmem:[#allocation2 + $0x91] sm:$0xff]
      %v445 = vld [vmem:[#allocation2 + $0x99] sm:$0xff]
      %v446 = vld [vmem:[#allocation2 + $0xa9] sm:$0xff]
      %v447 = vld [vmem:[#allocation2 + $0xb1] sm:$0xff]
      %v448 = vld [vmem:[#allocation2 + $0xc1] sm:$0xff]
      %v449 = vld [vmem:[#allocation2 + $0xc9] sm:$0xff]
      %v450 = vld [vmem:[#allocation2 + $0xd9] sm:$0xff]
      %v451 = vld [vmem:[#allocation2 + $0xe1] sm:$0xff]
      %v452 = vld [vmem:[#allocation2 + $0xf1] sm:$0xff]
      %v453 = vld [vmem:[#allocation2 + $0xf9] sm:$0xff]
      %v454 = vld [vmem:[#allocation2 + $0x109] sm:$0xff]
      %v455 = vld [vmem:[#allocation2 + $0x111] sm:$0xff]
      %v456 = vld [vmem:[#allocation2 + $0x121] sm:$0xff]
      %v457 = vld [vmem:[#allocation2 + $0x129] sm:$0xff]
      %v458 = vld [vmem:[#allocation2 + $0x139] sm:$0xff]
      %v459 = vld [vmem:[#allocation2 + $0x141] sm:$0xff]
      %v460 = vld [vmem:[#allocation2 + $0x151] sm:$0xff]
      %v461 = vld [vmem:[#allocation2 + $0x159] sm:$0xff]
      %v462 = vld [vmem:[#allocation2 + $0x169] sm:$0xff]
      %v463 = vld [vmem:[#allocation2 + $0x171] sm:$0xff]
      %v464 = vpack.c.bf16 %v433, %v432
      %v465 = vpack.c.bf16 %v435, %v434
      %v466 = vpack.c.bf16 %v437, %v436
      %v467 = vpack.c.bf16 %v439, %v438
      %v468 = vpack.c.bf16 %v441, %v440
      %v469 = vpack.c.bf16 %v443, %v442
      %v470 = vpack.c.bf16 %v445, %v444
      %v471 = vpack.c.bf16 %v447, %v446
      %v472 = vpack.c.bf16 %v449, %v448
      %v473 = vpack.c.bf16 %v451, %v450
      %v474 = vpack.c.bf16 %v453, %v452
      %v475 = vpack.c.bf16 %v455, %v454
      %v476 = vpack.c.bf16 %v457, %v456
      %v477 = vpack.c.bf16 %v459, %v458
      %v478 = vpack.c.bf16 %v461, %v460
      %v479 = vpack.c.bf16 %v463, %v462
      %s480 = scalar_lea.vmem %s1, 1
      %v481 = vld [vmem:[%s480] sm:$0x1]
      %v483 = vsel %vm258, %v464, 0
      %v486 = vsel %vm258, %v465, 0
      %v489 = vsel %vm258, %v466, 0
      %v492 = vsel %vm258, %v467, 0
      %v495 = vsel %vm258, %v468, 0
      %v498 = vsel %vm258, %v469, 0
      %v501 = vsel %vm258, %v470, 0
      %v504 = vsel %vm258, %v471, 0
      %v507 = vsel %vm258, %v472, 0
      %v510 = vsel %vm258, %v473, 0
      %v513 = vsel %vm258, %v474, 0
      %v516 = vsel %vm258, %v475, 0
      %v519 = vsel %vm258, %v476, 0
      %v522 = vsel %vm258, %v477, 0
      %v525 = vsel %vm258, %v478, 0
      %v528 = vsel %vm258, %v479, 0
      %vm530 = vcmask 1040384
      %v532 = vsel %vm530, %v481, 0
      %534 = vmatprep.subr.bf16.mxu0 0
      %535 = vmatpush1.bf16.msra.mxu0 %v532
      %536 = vmatprep.subr.bf16.mxu0 0
      %537 = vmatpush1.bf16.msra.mxu0 0
      %538 = vmatprep.subr.bf16.mxu0 0
      %539 = vmatpush1.bf16.msra.mxu0 0
      %540 = vmatprep.subr.bf16.mxu0 0
      %541 = vmatpush1.bf16.msra.mxu0 0
      %542 = vmatprep.subr.bf16.mxu0 0
      %543 = vmatpush1.bf16.msra.mxu0 0
      %544 = vmatprep.subr.bf16.mxu0 0
      %545 = vmatpush1.bf16.msra.mxu0 0
      %546 = vmatprep.subr.bf16.mxu0 0
      %547 = vmatpush1.bf16.msra.mxu0 0
      %548 = vmatprep.subr.bf16.mxu0 0
      %549 = vmatpush1.bf16.msra.mxu0 0
      %550 = vmatprep.subr.bf16.mxu0 0
      %551 = vmatpush1.bf16.msra.mxu0 0
      %552 = vmatprep.subr.bf16.mxu0 0
      %553 = vmatpush1.bf16.msra.mxu0 0
      %554 = vmatprep.subr.bf16.mxu0 0
      %555 = vmatpush1.bf16.msra.mxu0 0
      %556 = vmatprep.subr.bf16.mxu0 0
      %557 = vmatpush1.bf16.msra.mxu0 0
      %558 = vmatprep.subr.bf16.mxu0 0
      %559 = vmatpush1.bf16.msra.mxu0 0
      %560 = vmatprep.subr.bf16.mxu0 0
      %561 = vmatpush1.bf16.msra.mxu0 0
      %562 = vmatprep.subr.bf16.mxu0 0
      %563 = vmatpush1.bf16.msra.mxu0 0
      %564 = vmatprep.subr.bf16.mxu0 0
      %565 = vmatpush1.bf16.msra.mxu0 0
      %566 = vmatprep.mubr.bf16.mxu0 0
      %567 = vmatmul.mubr.bf16.gmra.mrb[0].mxu0 %v483
      %v568 = vpop.f32.mrb[0].mxu0
      %v569 = vadd.f32 0.0, %v568
      %v570 = vpop.f32.mrb[0].mxu0
      %v571 = vpop.f32.mrb[0].mxu0
      %v572 = vadd.f32 0.0, %v571
      %v573 = vpop.f32.mrb[0].mxu0
      %574 = vmatprep.mubr.bf16.mxu0 0
      %575 = vmatmul.mubr.bf16.gmra.mrb[0].mxu0 %v486
      %v576 = vpop.f32.mrb[0].mxu0
      %v577 = vadd.f32 0.0, %v576
      %v578 = vpop.f32.mrb[0].mxu0
      %v579 = vpop.f32.mrb[0].mxu0
      %v580 = vadd.f32 0.0, %v579
      %v581 = vpop.f32.mrb[0].mxu0
      %582 = vmatprep.mubr.bf16.mxu0 0
      %583 = vmatmul.mubr.bf16.gmra.mrb[0].mxu0 %v489
      %v584 = vpop.f32.mrb[0].mxu0
      %v585 = vadd.f32 0.0, %v584
      %v586 = vpop.f32.mrb[0].mxu0
      %v587 = vpop.f32.mrb[0].mxu0
      %v588 = vadd.f32 0.0, %v587
      %v589 = vpop.f32.mrb[0].mxu0
      %590 = vmatprep.mubr.bf16.mxu0 0
      %591 = vmatmul.mubr.bf16.gmra.mrb[0].mxu0 %v492
      %v592 = vpop.f32.mrb[0].mxu0
      %v593 = vadd.f32 0.0, %v592
      %v594 = vpop.f32.mrb[0].mxu0
      %v595 = vpop.f32.mrb[0].mxu0
      %v596 = vadd.f32 0.0, %v595
      %v597 = vpop.f32.mrb[0].mxu0
      %598 = vmatprep.mubr.bf16.mxu0 0
      %599 = vmatmul.mubr.bf16.gmra.mrb[0].mxu0 %v495
      %v600 = vpop.f32.mrb[0].mxu0
      %v601 = vadd.f32 0.0, %v600
      %v602 = vpop.f32.mrb[0].mxu0
      %v603 = vpop.f32.mrb[0].mxu0
      %v604 = vadd.f32 0.0, %v603
      %v605 = vpop.f32.mrb[0].mxu0
      %606 = vmatprep.mubr.bf16.mxu0 0
      %607 = vmatmul.mubr.bf16.gmra.mrb[0].mxu0 %v498
      %v608 = vpop.f32.mrb[0].mxu0
      %v609 = vadd.f32 0.0, %v608
      %v610 = vpop.f32.mrb[0].mxu0
      %v611 = vpop.f32.mrb[0].mxu0
      %v612 = vadd.f32 0.0, %v611
      %v613 = vpop.f32.mrb[0].mxu0
      %614 = vmatprep.mubr.bf16.mxu0 0
      %615 = vmatmul.mubr.bf16.gmra.mrb[0].mxu0 %v501
      %v616 = vpop.f32.mrb[0].mxu0
      %v617 = vadd.f32 0.0, %v616
      %v618 = vpop.f32.mrb[0].mxu0
      %v619 = vpop.f32.mrb[0].mxu0
      %v620 = vadd.f32 0.0, %v619
      %v621 = vpop.f32.mrb[0].mxu0
      %622 = vmatprep.mubr.bf16.mxu0 0
      %623 = vmatmul.mubr.bf16.gmra.mrb[0].mxu0 %v504
      %v624 = vpop.f32.mrb[0].mxu0
      %v625 = vadd.f32 0.0, %v624
      %v626 = vpop.f32.mrb[0].mxu0
      %v627 = vpop.f32.mrb[0].mxu0
      %v628 = vadd.f32 0.0, %v627
      %v629 = vpop.f32.mrb[0].mxu0
      %630 = vmatprep.mubr.bf16.mxu0 0
      %631 = vmatmul.mubr.bf16.gmra.mrb[0].mxu0 %v507
      %v632 = vpop.f32.mrb[0].mxu0
      %v633 = vadd.f32 0.0, %v632
      %v634 = vpop.f32.mrb[0].mxu0
      %v635 = vpop.f32.mrb[0].mxu0
      %v636 = vadd.f32 0.0, %v635
      %v637 = vpop.f32.mrb[0].mxu0
      %638 = vmatprep.mubr.bf16.mxu0 0
      %639 = vmatmul.mubr.bf16.gmra.mrb[0].mxu0 %v510
      %v640 = vpop.f32.mrb[0].mxu0
      %v641 = vadd.f32 0.0, %v640
      %v642 = vpop.f32.mrb[0].mxu0
      %v643 = vpop.f32.mrb[0].mxu0
      %v644 = vadd.f32 0.0, %v643
      %v645 = vpop.f32.mrb[0].mxu0
      %646 = vmatprep.mubr.bf16.mxu0 0
      %647 = vmatmul.mubr.bf16.gmra.mrb[0].mxu0 %v513
      %v648 = vpop.f32.mrb[0].mxu0
      %v649 = vadd.f32 0.0, %v648
      %v650 = vpop.f32.mrb[0].mxu0
      %v651 = vpop.f32.mrb[0].mxu0
      %v652 = vadd.f32 0.0, %v651
      %v653 = vpop.f32.mrb[0].mxu0
      %654 = vmatprep.mubr.bf16.mxu0 0
      %655 = vmatmul.mubr.bf16.gmra.mrb[0].mxu0 %v516
      %v656 = vpop.f32.mrb[0].mxu0
      %v657 = vadd.f32 0.0, %v656
      %v658 = vpop.f32.mrb[0].mxu0
      %v659 = vpop.f32.mrb[0].mxu0
      %v660 = vadd.f32 0.0, %v659
      %v661 = vpop.f32.mrb[0].mxu0
      %662 = vmatprep.mubr.bf16.mxu0 0
      %663 = vmatmul.mubr.bf16.gmra.mrb[0].mxu0 %v519
      %v664 = vpop.f32.mrb[0].mxu0
      %v665 = vadd.f32 0.0, %v664
      %v666 = vpop.f32.mrb[0].mxu0
      %v667 = vpop.f32.mrb[0].mxu0
      %v668 = vadd.f32 0.0, %v667
      %v669 = vpop.f32.mrb[0].mxu0
      %670 = vmatprep.mubr.bf16.mxu0 0
      %671 = vmatmul.mubr.bf16.gmra.mrb[0].mxu0 %v522
      %v672 = vpop.f32.mrb[0].mxu0
      %v673 = vadd.f32 0.0, %v672
      %v674 = vpop.f32.mrb[0].mxu0
      %v675 = vpop.f32.mrb[0].mxu0
      %v676 = vadd.f32 0.0, %v675
      %v677 = vpop.f32.mrb[0].mxu0
      %678 = vmatprep.mubr.bf16.mxu0 0
      %679 = vmatmul.mubr.bf16.gmra.mrb[0].mxu0 %v525
      %v680 = vpop.f32.mrb[0].mxu0
      %v681 = vadd.f32 0.0, %v680
      %v682 = vpop.f32.mrb[0].mxu0
      %v683 = vpop.f32.mrb[0].mxu0
      %v684 = vadd.f32 0.0, %v683
      %v685 = vpop.f32.mrb[0].mxu0
      %686 = vmatprep.mubr.bf16.mxu0 0
      %687 = vmatmul.mubr.bf16.gmra.mrb[0].mxu0 %v528
      %v688 = vpop.f32.mrb[0].mxu0
      %v689 = vadd.f32 0.0, %v688
      %v690 = vpop.f32.mrb[0].mxu0
      %v691 = vpop.f32.mrb[0].mxu0
      %v692 = vadd.f32 0.0, %v691
      %v693 = vpop.f32.mrb[0].mxu0
      %694 = vdwg.mxu0
      %v696 = vsel %vm258, %v415, 0
      %v699 = vsel %vm258, %v416, 0
      %v702 = vsel %vm258, %v417, 0
      %v705 = vsel %vm258, %v418, 0
      %v708 = vsel %vm258, %v419, 0
      %v711 = vsel %vm258, %v420, 0
      %v714 = vsel %vm258, %v421, 0
      %v717 = vsel %vm258, %v422, 0
      %v720 = vsel %vm258, %v423, 0
      %v723 = vsel %vm258, %v424, 0
      %v726 = vsel %vm258, %v425, 0
      %v729 = vsel %vm258, %v426, 0
      %v732 = vsel %vm258, %v427, 0
      %v735 = vsel %vm258, %v428, 0
      %v738 = vsel %vm258, %v429, 0
      %v741 = vsel %vm258, %v430, 0
      %v744 = vsel %vm530, %v431, 0
      %746 = vmatprep.subr.bf16.mxu0 0
      %747 = vmatpush1.bf16.msra.mxu0 %v744
      %748 = vmatprep.subr.bf16.mxu0 0
      %749 = vmatpush1.bf16.msra.mxu0 0
      %750 = vmatprep.subr.bf16.mxu0 0
      %751 = vmatpush1.bf16.msra.mxu0 0
      %752 = vmatprep.subr.bf16.mxu0 0
      %753 = vmatpush1.bf16.msra.mxu0 0
      %754 = vmatprep.subr.bf16.mxu0 0
      %755 = vmatpush1.bf16.msra.mxu0 0
      %756 = vmatprep.subr.bf16.mxu0 0
      %757 = vmatpush1.bf16.msra.mxu0 0
      %758 = vmatprep.subr.bf16.mxu0 0
      %759 = vmatpush1.bf16.msra.mxu0 0
      %760 = vmatprep.subr.bf16.mxu0 0
      %761 = vmatpush1.bf16.msra.mxu0 0
      %762 = vmatprep.subr.bf16.mxu0 0
      %763 = vmatpush1.bf16.msra.mxu0 0
      %764 = vmatprep.subr.bf16.mxu0 0
      %765 = vmatpush1.bf16.msra.mxu0 0
      %766 = vmatprep.subr.bf16.mxu0 0
      %767 = vmatpush1.bf16.msra.mxu0 0
      %768 = vmatprep.subr.bf16.mxu0 0
      %769 = vmatpush1.bf16.msra.mxu0 0
      %770 = vmatprep.subr.bf16.mxu0 0
      %771 = vmatpush1.bf16.msra.mxu0 0
      %772 = vmatprep.subr.bf16.mxu0 0
      %773 = vmatpush1.bf16.msra.mxu0 0
      %774 = vmatprep.subr.bf16.mxu0 0
      %775 = vmatpush1.bf16.msra.mxu0 0
      %776 = vmatprep.subr.bf16.mxu0 0
      %777 = vmatpush1.bf16.msra.mxu0 0
      %778 = vmatprep.mubr.bf16.mxu0 0
      %779 = vmatmul.mubr.bf16.gmra.mrb[0].mxu0 %v696
      %v780 = vpop.f32.mrb[0].mxu0
      %v781 = vadd.f32 %v569, %v780
      %v782 = vpop.f32.mrb[0].mxu0
      %v783 = vpop.f32.mrb[0].mxu0
      %v784 = vadd.f32 %v572, %v783
      %v785 = vpop.f32.mrb[0].mxu0
      %786 = vmatprep.mubr.bf16.mxu0 0
      %787 = vmatmul.mubr.bf16.gmra.mrb[0].mxu0 %v699
      %v788 = vpop.f32.mrb[0].mxu0
      %v789 = vadd.f32 %v577, %v788
      %v790 = vpop.f32.mrb[0].mxu0
      %v791 = vpop.f32.mrb[0].mxu0
      %v792 = vadd.f32 %v580, %v791
      %v793 = vpop.f32.mrb[0].mxu0
      %794 = vmatprep.mubr.bf16.mxu0 0
      %795 = vmatmul.mubr.bf16.gmra.mrb[0].mxu0 %v702
      %v796 = vpop.f32.mrb[0].mxu0
      %v797 = vadd.f32 %v585, %v796
      %v798 = vpop.f32.mrb[0].mxu0
      %v799 = vpop.f32.mrb[0].mxu0
      %v800 = vadd.f32 %v588, %v799
      %v801 = vpop.f32.mrb[0].mxu0
      %802 = vmatprep.mubr.bf16.mxu0 0
      %803 = vmatmul.mubr.bf16.gmra.mrb[0].mxu0 %v705
      %v804 = vpop.f32.mrb[0].mxu0
      %v805 = vadd.f32 %v593, %v804
      %v806 = vpop.f32.mrb[0].mxu0
      %v807 = vpop.f32.mrb[0].mxu0
      %v808 = vadd.f32 %v596, %v807
      %v809 = vpop.f32.mrb[0].mxu0
      %810 = vmatprep.mubr.bf16.mxu0 0
      %811 = vmatmul.mubr.bf16.gmra.mrb[0].mxu0 %v708
      %v812 = vpop.f32.mrb[0].mxu0
      %v813 = vadd.f32 %v601, %v812
      %v814 = vpop.f32.mrb[0].mxu0
      %v815 = vpop.f32.mrb[0].mxu0
      %v816 = vadd.f32 %v604, %v815
      %v817 = vpop.f32.mrb[0].mxu0
      %818 = vmatprep.mubr.bf16.mxu0 0
      %819 = vmatmul.mubr.bf16.gmra.mrb[0].mxu0 %v711
      %v820 = vpop.f32.mrb[0].mxu0
      %v821 = vadd.f32 %v609, %v820
      %v822 = vpop.f32.mrb[0].mxu0
      %v823 = vpop.f32.mrb[0].mxu0
      %v824 = vadd.f32 %v612, %v823
      %v825 = vpop.f32.mrb[0].mxu0
      %826 = vmatprep.mubr.bf16.mxu0 0
      %827 = vmatmul.mubr.bf16.gmra.mrb[0].mxu0 %v714
      %v828 = vpop.f32.mrb[0].mxu0
      %v829 = vadd.f32 %v617, %v828
      %v830 = vpop.f32.mrb[0].mxu0
      %v831 = vpop.f32.mrb[0].mxu0
      %v832 = vadd.f32 %v620, %v831
      %v833 = vpop.f32.mrb[0].mxu0
      %834 = vmatprep.mubr.bf16.mxu0 0
      %835 = vmatmul.mubr.bf16.gmra.mrb[0].mxu0 %v717
      %v836 = vpop.f32.mrb[0].mxu0
      %v837 = vadd.f32 %v625, %v836
      %v838 = vpop.f32.mrb[0].mxu0
      %v839 = vpop.f32.mrb[0].mxu0
      %v840 = vadd.f32 %v628, %v839
      %v841 = vpop.f32.mrb[0].mxu0
      %842 = vmatprep.mubr.bf16.mxu0 0
      %843 = vmatmul.mubr.bf16.gmra.mrb[0].mxu0 %v720
      %v844 = vpop.f32.mrb[0].mxu0
      %v845 = vadd.f32 %v633, %v844
      %v846 = vpop.f32.mrb[0].mxu0
      %v847 = vpop.f32.mrb[0].mxu0
      %v848 = vadd.f32 %v636, %v847
      %v849 = vpop.f32.mrb[0].mxu0
      %850 = vmatprep.mubr.bf16.mxu0 0
      %851 = vmatmul.mubr.bf16.gmra.mrb[0].mxu0 %v723
      %v852 = vpop.f32.mrb[0].mxu0
      %v853 = vadd.f32 %v641, %v852
      %v854 = vpop.f32.mrb[0].mxu0
      %v855 = vpop.f32.mrb[0].mxu0
      %v856 = vadd.f32 %v644, %v855
      %v857 = vpop.f32.mrb[0].mxu0
      %858 = vmatprep.mubr.bf16.mxu0 0
      %859 = vmatmul.mubr.bf16.gmra.mrb[0].mxu0 %v726
      %v860 = vpop.f32.mrb[0].mxu0
      %v861 = vadd.f32 %v649, %v860
      %v862 = vpop.f32.mrb[0].mxu0
      %v863 = vpop.f32.mrb[0].mxu0
      %v864 = vadd.f32 %v652, %v863
      %v865 = vpop.f32.mrb[0].mxu0
      %866 = vmatprep.mubr.bf16.mxu0 0
      %867 = vmatmul.mubr.bf16.gmra.mrb[0].mxu0 %v729
      %v868 = vpop.f32.mrb[0].mxu0
      %v869 = vadd.f32 %v657, %v868
      %v870 = vpop.f32.mrb[0].mxu0
      %v871 = vpop.f32.mrb[0].mxu0
      %v872 = vadd.f32 %v660, %v871
      %v873 = vpop.f32.mrb[0].mxu0
      %874 = vmatprep.mubr.bf16.mxu0 0
      %875 = vmatmul.mubr.bf16.gmra.mrb[0].mxu0 %v732
      %v876 = vpop.f32.mrb[0].mxu0
      %v877 = vadd.f32 %v665, %v876
      %v878 = vpop.f32.mrb[0].mxu0
      %v879 = vpop.f32.mrb[0].mxu0
      %v880 = vadd.f32 %v668, %v879
      %v881 = vpop.f32.mrb[0].mxu0
      %882 = vmatprep.mubr.bf16.mxu0 0
      %883 = vmatmul.mubr.bf16.gmra.mrb[0].mxu0 %v735
      %v884 = vpop.f32.mrb[0].mxu0
      %v885 = vadd.f32 %v673, %v884
      %v886 = vpop.f32.mrb[0].mxu0
      %v887 = vpop.f32.mrb[0].mxu0
      %v888 = vadd.f32 %v676, %v887
      %v889 = vpop.f32.mrb[0].mxu0
      %890 = vmatprep.mubr.bf16.mxu0 0
      %891 = vmatmul.mubr.bf16.gmra.mrb[0].mxu0 %v738
      %v892 = vpop.f32.mrb[0].mxu0
      %v893 = vadd.f32 %v681, %v892
      %v894 = vpop.f32.mrb[0].mxu0
      %v895 = vpop.f32.mrb[0].mxu0
      %v896 = vadd.f32 %v684, %v895
      %v897 = vpop.f32.mrb[0].mxu0
      %898 = vmatprep.mubr.bf16.mxu0 0
      %899 = vmatmul.mubr.bf16.gmra.mrb[0].mxu0 %v741
      %v900 = vpop.f32.mrb[0].mxu0
      %v901 = vadd.f32 %v689, %v900
      %v902 = vpop.f32.mrb[0].mxu0
      %v903 = vpop.f32.mrb[0].mxu0
      %v904 = vadd.f32 %v692, %v903
      %v905 = vpop.f32.mrb[0].mxu0
      %906 = vdwg.mxu0
      %v907 = vld [vmem:[#allocation2 + $0x2] sm:$0xff]
      %v908 = vld [vmem:[#allocation2 + $0xa] sm:$0xff]
      %v909 = vld [vmem:[#allocation2 + $0x1a] sm:$0xff]
      %v910 = vld [vmem:[#allocation2 + $0x22] sm:$0xff]
      %v911 = vld [vmem:[#allocation2 + $0x32] sm:$0xff]
      %v912 = vld [vmem:[#allocation2 + $0x3a] sm:$0xff]
      %v913 = vld [vmem:[#allocation2 + $0x4a] sm:$0xff]
      %v914 = vld [vmem:[#allocation2 + $0x52] sm:$0xff]
      %v915 = vld [vmem:[#allocation2 + $0x62] sm:$0xff]
      %v916 = vld [vmem:[#allocation2 + $0x6a] sm:$0xff]
      %v917 = vld [vmem:[#allocation2 + $0x7a] sm:$0xff]
      %v918 = vld [vmem:[#allocation2 + $0x82] sm:$0xff]
      %v919 = vld [vmem:[#allocation2 + $0x92] sm:$0xff]
      %v920 = vld [vmem:[#allocation2 + $0x9a] sm:$0xff]
      %v921 = vld [vmem:[#allocation2 + $0xaa] sm:$0xff]
      %v922 = vld [vmem:[#allocation2 + $0xb2] sm:$0xff]
      %v923 = vld [vmem:[#allocation2 + $0xc2] sm:$0xff]
      %v924 = vld [vmem:[#allocation2 + $0xca] sm:$0xff]
      %v925 = vld [vmem:[#allocation2 + $0xda] sm:$0xff]
      %v926 = vld [vmem:[#allocation2 + $0xe2] sm:$0xff]
      %v927 = vld [vmem:[#allocation2 + $0xf2] sm:$0xff]
      %v928 = vld [vmem:[#allocation2 + $0xfa] sm:$0xff]
      %v929 = vld [vmem:[#allocation2 + $0x10a] sm:$0xff]
      %v930 = vld [vmem:[#allocation2 + $0x112] sm:$0xff]
      %v931 = vld [vmem:[#allocation2 + $0x122] sm:$0xff]
      %v932 = vld [vmem:[#allocation2 + $0x12a] sm:$0xff]
      %v933 = vld [vmem:[#allocation2 + $0x13a] sm:$0xff]
      %v934 = vld [vmem:[#allocation2 + $0x142] sm:$0xff]
      %v935 = vld [vmem:[#allocation2 + $0x152] sm:$0xff]
      %v936 = vld [vmem:[#allocation2 + $0x15a] sm:$0xff]
      %v937 = vld [vmem:[#allocation2 + $0x16a] sm:$0xff]
      %v938 = vld [vmem:[#allocation2 + $0x172] sm:$0xff]
      %v939 = vpack.c.bf16 %v908, %v907
      %v940 = vpack.c.bf16 %v910, %v909
      %v941 = vpack.c.bf16 %v912, %v911
      %v942 = vpack.c.bf16 %v914, %v913
      %v943 = vpack.c.bf16 %v916, %v915
      %v944 = vpack.c.bf16 %v918, %v917
      %v945 = vpack.c.bf16 %v920, %v919
      %v946 = vpack.c.bf16 %v922, %v921
      %v947 = vpack.c.bf16 %v924, %v923
      %v948 = vpack.c.bf16 %v926, %v925
      %v949 = vpack.c.bf16 %v928, %v927
      %v950 = vpack.c.bf16 %v930, %v929
      %v951 = vpack.c.bf16 %v932, %v931
      %v952 = vpack.c.bf16 %v934, %v933
      %v953 = vpack.c.bf16 %v936, %v935
      %v954 = vpack.c.bf16 %v938, %v937
      %s955 = scalar_lea.vmem %s1, 2
      %v956 = vld [vmem:[%s955] sm:$0x1]
      %v958 = vsel %vm258, %v939, 0
      %v961 = vsel %vm258, %v940, 0
      %v964 = vsel %vm258, %v941, 0
      %v967 = vsel %vm258, %v942, 0
      %v970 = vsel %vm258, %v943, 0
      %v973 = vsel %vm258, %v944, 0
      %v976 = vsel %vm258, %v945, 0
      %v979 = vsel %vm258, %v946, 0
      %v982 = vsel %vm258, %v947, 0
      %v985 = vsel %vm258, %v948, 0
      %v988 = vsel %vm258, %v949, 0
      %v991 = vsel %vm258, %v950, 0
      %v994 = vsel %vm258, %v951, 0
      %v997 = vsel %vm258, %v952, 0
      %v1000 = vsel %vm258, %v953, 0
      %v1003 = vsel %vm258, %v954, 0
      %v1006 = vsel %vm530, %v956, 0
      %1008 = vmatprep.subr.bf16.mxu0 0
      %1009 = vmatpush1.bf16.msra.mxu0 %v1006
      %1010 = vmatprep.subr.bf16.mxu0 0
      %1011 = vmatpush1.bf16.msra.mxu0 0
      %1012 = vmatprep.subr.bf16.mxu0 0
      %1013 = vmatpush1.bf16.msra.mxu0 0
      %1014 = vmatprep.subr.bf16.mxu0 0
      %1015 = vmatpush1.bf16.msra.mxu0 0
      %1016 = vmatprep.subr.bf16.mxu0 0
      %1017 = vmatpush1.bf16.msra.mxu0 0
      %1018 = vmatprep.subr.bf16.mxu0 0
      %1019 = vmatpush1.bf16.msra.mxu0 0
      %1020 = vmatprep.subr.bf16.mxu0 0
      %1021 = vmatpush1.bf16.msra.mxu0 0
      %1022 = vmatprep.subr.bf16.mxu0 0
      %1023 = vmatpush1.bf16.msra.mxu0 0
      %1024 = vmatprep.subr.bf16.mxu0 0
      %1025 = vmatpush1.bf16.msra.mxu0 0
      %1026 = vmatprep.subr.bf16.mxu0 0
      %1027 = vmatpush1.bf16.msra.mxu0 0
      %1028 = vmatprep.subr.bf16.mxu0 0
      %1029 = vmatpush1.bf16.msra.mxu0 0
      %1030 = vmatprep.subr.bf16.mxu0 0
      %1031 = vmatpush1.bf16.msra.mxu0 0
      %1032 = vmatprep.subr.bf16.mxu0 0
      %1033 = vmatpush1.bf16.msra.mxu0 0
      %1034 = vmatprep.subr.bf16.mxu0 0
      %1035 = vmatpush1.bf16.msra.mxu0 0
      %1036 = vmatprep.subr.bf16.mxu0 0
      %1037 = vmatpush1.bf16.msra.mxu0 0
      %1038 = vmatprep.subr.bf16.mxu0 0
      %1039 = vmatpush1.bf16.msra.mxu0 0
      %1040 = vmatprep.mubr.bf16.mxu0 0
      %1041 = vmatmul.mubr.bf16.gmra.mrb[0].mxu0 %v958
      %v1042 = vpop.f32.mrb[0].mxu0
      %v1043 = vadd.f32 0.0, %v1042
      %v1044 = vpop.f32.mrb[0].mxu0
      %v1045 = vpop.f32.mrb[0].mxu0
      %v1046 = vadd.f32 0.0, %v1045
      %v1047 = vpop.f32.mrb[0].mxu0
      %1048 = vmatprep.mubr.bf16.mxu0 0
      %1049 = vmatmul.mubr.bf16.gmra.mrb[0].mxu0 %v961
      %v1050 = vpop.f32.mrb[0].mxu0
      %v1051 = vadd.f32 0.0, %v1050
      %v1052 = vpop.f32.mrb[0].mxu0
      %v1053 = vpop.f32.mrb[0].mxu0
      %v1054 = vadd.f32 0.0, %v1053
      %v1055 = vpop.f32.mrb[0].mxu0
      %1056 = vmatprep.mubr.bf16.mxu0 0
      %1057 = vmatmul.mubr.bf16.gmra.mrb[0].mxu0 %v964
      %v1058 = vpop.f32.mrb[0].mxu0
      %v1059 = vadd.f32 0.0, %v1058
      %v1060 = vpop.f32.mrb[0].mxu0
      %v1061 = vpop.f32.mrb[0].mxu0
      %v1062 = vadd.f32 0.0, %v1061
      %v1063 = vpop.f32.mrb[0].mxu0
      %1064 = vmatprep.mubr.bf16.mxu0 0
      %1065 = vmatmul.mubr.bf16.gmra.mrb[0].mxu0 %v967
      %v1066 = vpop.f32.mrb[0].mxu0
      %v1067 = vadd.f32 0.0, %v1066
      %v1068 = vpop.f32.mrb[0].mxu0
      %v1069 = vpop.f32.mrb[0].mxu0
      %v1070 = vadd.f32 0.0, %v1069
      %v1071 = vpop.f32.mrb[0].mxu0
      %1072 = vmatprep.mubr.bf16.mxu0 0
      %1073 = vmatmul.mubr.bf16.gmra.mrb[0].mxu0 %v970
      %v1074 = vpop.f32.mrb[0].mxu0
      %v1075 = vadd.f32 0.0, %v1074
      %v1076 = vpop.f32.mrb[0].mxu0
      %v1077 = vpop.f32.mrb[0].mxu0
      %v1078 = vadd.f32 0.0, %v1077
      %v1079 = vpop.f32.mrb[0].mxu0
      %1080 = vmatprep.mubr.bf16.mxu0 0
      %1081 = vmatmul.mubr.bf16.gmra.mrb[0].mxu0 %v973
      %v1082 = vpop.f32.mrb[0].mxu0
      %v1083 = vadd.f32 0.0, %v1082
      %v1084 = vpop.f32.mrb[0].mxu0
      %v1085 = vpop.f32.mrb[0].mxu0
      %v1086 = vadd.f32 0.0, %v1085
      %v1087 = vpop.f32.mrb[0].mxu0
      %1088 = vmatprep.mubr.bf16.mxu0 0
      %1089 = vmatmul.mubr.bf16.gmra.mrb[0].mxu0 %v976
      %v1090 = vpop.f32.mrb[0].mxu0
      %v1091 = vadd.f32 0.0, %v1090
      %v1092 = vpop.f32.mrb[0].mxu0
      %v1093 = vpop.f32.mrb[0].mxu0
      %v1094 = vadd.f32 0.0, %v1093
      %v1095 = vpop.f32.mrb[0].mxu0
      %1096 = vmatprep.mubr.bf16.mxu0 0
      %1097 = vmatmul.mubr.bf16.gmra.mrb[0].mxu0 %v979
      %v1098 = vpop.f32.mrb[0].mxu0
      %v1099 = vadd.f32 0.0, %v1098
      %v1100 = vpop.f32.mrb[0].mxu0
      %v1101 = vpop.f32.mrb[0].mxu0
      %v1102 = vadd.f32 0.0, %v1101
      %v1103 = vpop.f32.mrb[0].mxu0
      %1104 = vmatprep.mubr.bf16.mxu0 0
      %1105 = vmatmul.mubr.bf16.gmra.mrb[0].mxu0 %v982
      %v1106 = vpop.f32.mrb[0].mxu0
      %v1107 = vadd.f32 0.0, %v1106
      %v1108 = vpop.f32.mrb[0].mxu0
      %v1109 = vpop.f32.mrb[0].mxu0
      %v1110 = vadd.f32 0.0, %v1109
      %v1111 = vpop.f32.mrb[0].mxu0
      %1112 = vmatprep.mubr.bf16.mxu0 0
      %1113 = vmatmul.mubr.bf16.gmra.mrb[0].mxu0 %v985
      %v1114 = vpop.f32.mrb[0].mxu0
      %v1115 = vadd.f32 0.0, %v1114
      %v1116 = vpop.f32.mrb[0].mxu0
      %v1117 = vpop.f32.mrb[0].mxu0
      %v1118 = vadd.f32 0.0, %v1117
      %v1119 = vpop.f32.mrb[0].mxu0
      %1120 = vmatprep.mubr.bf16.mxu0 0
      %1121 = vmatmul.mubr.bf16.gmra.mrb[0].mxu0 %v988
      %v1122 = vpop.f32.mrb[0].mxu0
      %v1123 = vadd.f32 0.0, %v1122
      %v1124 = vpop.f32.mrb[0].mxu0
      %v1125 = vpop.f32.mrb[0].mxu0
      %v1126 = vadd.f32 0.0, %v1125
      %v1127 = vpop.f32.mrb[0].mxu0
      %1128 = vmatprep.mubr.bf16.mxu0 0
      %1129 = vmatmul.mubr.bf16.gmra.mrb[0].mxu0 %v991
      %v1130 = vpop.f32.mrb[0].mxu0
      %v1131 = vadd.f32 0.0, %v1130
      %v1132 = vpop.f32.mrb[0].mxu0
      %v1133 = vpop.f32.mrb[0].mxu0
      %v1134 = vadd.f32 0.0, %v1133
      %v1135 = vpop.f32.mrb[0].mxu0
      %1136 = vmatprep.mubr.bf16.mxu0 0
      %1137 = vmatmul.mubr.bf16.gmra.mrb[0].mxu0 %v994
      %v1138 = vpop.f32.mrb[0].mxu0
      %v1139 = vadd.f32 0.0, %v1138
      %v1140 = vpop.f32.mrb[0].mxu0
      %v1141 = vpop.f32.mrb[0].mxu0
      %v1142 = vadd.f32 0.0, %v1141
      %v1143 = vpop.f32.mrb[0].mxu0
      %1144 = vmatprep.mubr.bf16.mxu0 0
      %1145 = vmatmul.mubr.bf16.gmra.mrb[0].mxu0 %v997
      %v1146 = vpop.f32.mrb[0].mxu0
      %v1147 = vadd.f32 0.0, %v1146
      %v1148 = vpop.f32.mrb[0].mxu0
      %v1149 = vpop.f32.mrb[0].mxu0
      %v1150 = vadd.f32 0.0, %v1149
      %v1151 = vpop.f32.mrb[0].mxu0
      %1152 = vmatprep.mubr.bf16.mxu0 0
      %1153 = vmatmul.mubr.bf16.gmra.mrb[0].mxu0 %v1000
      %v1154 = vpop.f32.mrb[0].mxu0
      %v1155 = vadd.f32 0.0, %v1154
      %v1156 = vpop.f32.mrb[0].mxu0
      %v1157 = vpop.f32.mrb[0].mxu0
      %v1158 = vadd.f32 0.0, %v1157
      %v1159 = vpop.f32.mrb[0].mxu0
      %1160 = vmatprep.mubr.bf16.mxu0 0
      %1161 = vmatmul.mubr.bf16.gmra.mrb[0].mxu0 %v1003
      %v1162 = vpop.f32.mrb[0].mxu0
      %v1163 = vadd.f32 0.0, %v1162
      %v1164 = vpop.f32.mrb[0].mxu0
      %v1165 = vpop.f32.mrb[0].mxu0
      %v1166 = vadd.f32 0.0, %v1165
      %v1167 = vpop.f32.mrb[0].mxu0
      %1168 = vdwg.mxu0
      %v1169 = vadd.f32 %v781, %v1043
      %v1170 = vadd.f32 %v784, %v1046
      %v1171 = vadd.f32 %v789, %v1051
      %v1172 = vadd.f32 %v792, %v1054
      %v1173 = vadd.f32 %v797, %v1059
      %v1174 = vadd.f32 %v800, %v1062
      %v1175 = vadd.f32 %v805, %v1067
      %v1176 = vadd.f32 %v808, %v1070
      %v1177 = vadd.f32 %v813, %v1075
      %v1178 = vadd.f32 %v816, %v1078
      %v1179 = vadd.f32 %v821, %v1083
      %v1180 = vadd.f32 %v824, %v1086
      %v1181 = vadd.f32 %v829, %v1091
      %v1182 = vadd.f32 %v832, %v1094
      %v1183 = vadd.f32 %v837, %v1099
      %v1184 = vadd.f32 %v840, %v1102
      %v1185 = vadd.f32 %v845, %v1107
      %v1186 = vadd.f32 %v848, %v1110
      %v1187 = vadd.f32 %v853, %v1115
      %v1188 = vadd.f32 %v856, %v1118
      %v1189 = vadd.f32 %v861, %v1123
      %v1190 = vadd.f32 %v864, %v1126
      %v1191 = vadd.f32 %v869, %v1131
      %v1192 = vadd.f32 %v872, %v1134
      %v1193 = vadd.f32 %v877, %v1139
      %v1194 = vadd.f32 %v880, %v1142
      %v1195 = vadd.f32 %v885, %v1147
      %v1196 = vadd.f32 %v888, %v1150
      %v1197 = vadd.f32 %v893, %v1155
      %v1198 = vadd.f32 %v896, %v1158
      %v1199 = vadd.f32 %v901, %v1163
      %v1200 = vadd.f32 %v904, %v1166
      %v1201 = vld [vmem:[%s350] sm:$0xff]
      %v1202 = vld [vmem:[%s350 + $0x8] sm:$0xff]
      %v1203 = vld [vmem:[%s350 + $0x18] sm:$0xff]
      %v1204 = vld [vmem:[%s350 + $0x20] sm:$0xff]
      %v1205 = vld [vmem:[%s350 + $0x30] sm:$0xff]
      %v1206 = vld [vmem:[%s350 + $0x38] sm:$0xff]
      %v1207 = vld [vmem:[%s350 + $0x48] sm:$0xff]
      %v1208 = vld [vmem:[%s350 + $0x50] sm:$0xff]
      %v1209 = vld [vmem:[%s350 + $0x60] sm:$0xff]
      %v1210 = vld [vmem:[%s350 + $0x68] sm:$0xff]
      %v1211 = vld [vmem:[%s350 + $0x78] sm:$0xff]
      %v1212 = vld [vmem:[%s350 + $0x80] sm:$0xff]
      %v1213 = vld [vmem:[%s350 + $0x90] sm:$0xff]
      %v1214 = vld [vmem:[%s350 + $0x98] sm:$0xff]
      %v1215 = vld [vmem:[%s350 + $0xa8] sm:$0xff]
      %v1216 = vld [vmem:[%s350 + $0xb0] sm:$0xff]
      %v1217 = vld [vmem:[%s350 + $0xc0] sm:$0xff]
      %v1218 = vld [vmem:[%s350 + $0xc8] sm:$0xff]
      %v1219 = vld [vmem:[%s350 + $0xd8] sm:$0xff]
      %v1220 = vld [vmem:[%s350 + $0xe0] sm:$0xff]
      %v1221 = vld [vmem:[%s350 + $0xf0] sm:$0xff]
      %v1222 = vld [vmem:[%s350 + $0xf8] sm:$0xff]
      %v1223 = vld [vmem:[%s350 + $0x108] sm:$0xff]
      %v1224 = vld [vmem:[%s350 + $0x110] sm:$0xff]
      %v1225 = vld [vmem:[%s350 + $0x120] sm:$0xff]
      %v1226 = vld [vmem:[%s350 + $0x128] sm:$0xff]
      %v1227 = vld [vmem:[%s350 + $0x138] sm:$0xff]
      %v1228 = vld [vmem:[%s350 + $0x140] sm:$0xff]
      %v1229 = vld [vmem:[%s350 + $0x150] sm:$0xff]
      %v1230 = vld [vmem:[%s350 + $0x158] sm:$0xff]
      %v1231 = vld [vmem:[%s350 + $0x168] sm:$0xff]
      %v1232 = vld [vmem:[%s350 + $0x170] sm:$0xff]
      %v1233 = vpack.c.bf16 %v1202, %v1201
      %v1234 = vpack.c.bf16 %v1204, %v1203
      %v1235 = vpack.c.bf16 %v1206, %v1205
      %v1236 = vpack.c.bf16 %v1208, %v1207
      %v1237 = vpack.c.bf16 %v1210, %v1209
      %v1238 = vpack.c.bf16 %v1212, %v1211
      %v1239 = vpack.c.bf16 %v1214, %v1213
      %v1240 = vpack.c.bf16 %v1216, %v1215
      %v1241 = vpack.c.bf16 %v1218, %v1217
      %v1242 = vpack.c.bf16 %v1220, %v1219
      %v1243 = vpack.c.bf16 %v1222, %v1221
      %v1244 = vpack.c.bf16 %v1224, %v1223
      %v1245 = vpack.c.bf16 %v1226, %v1225
      %v1246 = vpack.c.bf16 %v1228, %v1227
      %v1247 = vpack.c.bf16 %v1230, %v1229
      %v1248 = vpack.c.bf16 %v1232, %v1231
      %s1249 = scalar_lea.vmem %s1, 3
      %v1250 = vld [vmem:[%s1249] sm:$0x1]
      %v1252 = vsel %vm258, %v1233, 0
      %v1255 = vsel %vm258, %v1234, 0
      %v1258 = vsel %vm258, %v1235, 0
      %v1261 = vsel %vm258, %v1236, 0
      %v1264 = vsel %vm258, %v1237, 0
      %v1267 = vsel %vm258, %v1238, 0
      %v1270 = vsel %vm258, %v1239, 0
      %v1273 = vsel %vm258, %v1240, 0
      %v1276 = vsel %vm258, %v1241, 0
      %v1279 = vsel %vm258, %v1242, 0
      %v1282 = vsel %vm258, %v1243, 0
      %v1285 = vsel %vm258, %v1244, 0
      %v1288 = vsel %vm258, %v1245, 0
      %v1291 = vsel %vm258, %v1246, 0
      %v1294 = vsel %vm258, %v1247, 0
      %v1297 = vsel %vm258, %v1248, 0
      %v1300 = vsel %vm530, %v1250, 0
      %1302 = vmatprep.subr.bf16.mxu0 0
      %1303 = vmatpush1.bf16.msra.mxu0 %v1300
      %1304 = vmatprep.subr.bf16.mxu0 0
      %1305 = vmatpush1.bf16.msra.mxu0 0
      %1306 = vmatprep.subr.bf16.mxu0 0
      %1307 = vmatpush1.bf16.msra.mxu0 0
      %1308 = vmatprep.subr.bf16.mxu0 0
      %1309 = vmatpush1.bf16.msra.mxu0 0
      %1310 = vmatprep.subr.bf16.mxu0 0
      %1311 = vmatpush1.bf16.msra.mxu0 0
      %1312 = vmatprep.subr.bf16.mxu0 0
      %1313 = vmatpush1.bf16.msra.mxu0 0
      %1314 = vmatprep.subr.bf16.mxu0 0
      %1315 = vmatpush1.bf16.msra.mxu0 0
      %1316 = vmatprep.subr.bf16.mxu0 0
      %1317 = vmatpush1.bf16.msra.mxu0 0
      %1318 = vmatprep.subr.bf16.mxu0 0
      %1319 = vmatpush1.bf16.msra.mxu0 0
      %1320 = vmatprep.subr.bf16.mxu0 0
      %1321 = vmatpush1.bf16.msra.mxu0 0
      %1322 = vmatprep.subr.bf16.mxu0 0
      %1323 = vmatpush1.bf16.msra.mxu0 0
      %1324 = vmatprep.subr.bf16.mxu0 0
      %1325 = vmatpush1.bf16.msra.mxu0 0
      %1326 = vmatprep.subr.bf16.mxu0 0
      %1327 = vmatpush1.bf16.msra.mxu0 0
      %1328 = vmatprep.subr.bf16.mxu0 0
      %1329 = vmatpush1.bf16.msra.mxu0 0
      %1330 = vmatprep.subr.bf16.mxu0 0
      %1331 = vmatpush1.bf16.msra.mxu0 0
      %1332 = vmatprep.subr.bf16.mxu0 0
      %1333 = vmatpush1.bf16.msra.mxu0 0
      %1334 = vmatprep.mubr.bf16.mxu0 0
      %1335 = vmatmul.mubr.bf16.gmra.mrb[0].mxu0 %v1252
      %v1336 = vpop.f32.mrb[0].mxu0
      %v1337 = vadd.f32 0.0, %v1336
      %v1338 = vpop.f32.mrb[0].mxu0
      %v1339 = vpop.f32.mrb[0].mxu0
      %v1340 = vadd.f32 0.0, %v1339
      %v1341 = vpop.f32.mrb[0].mxu0
      %1342 = vmatprep.mubr.bf16.mxu0 0
      %1343 = vmatmul.mubr.bf16.gmra.mrb[0].mxu0 %v1255
      %v1344 = vpop.f32.mrb[0].mxu0
      %v1345 = vadd.f32 0.0, %v1344
      %v1346 = vpop.f32.mrb[0].mxu0
      %v1347 = vpop.f32.mrb[0].mxu0
      %v1348 = vadd.f32 0.0, %v1347
      %v1349 = vpop.f32.mrb[0].mxu0
      %1350 = vmatprep.mubr.bf16.mxu0 0
      %1351 = vmatmul.mubr.bf16.gmra.mrb[0].mxu0 %v1258
      %v1352 = vpop.f32.mrb[0].mxu0
      %v1353 = vadd.f32 0.0, %v1352
      %v1354 = vpop.f32.mrb[0].mxu0
      %v1355 = vpop.f32.mrb[0].mxu0
      %v1356 = vadd.f32 0.0, %v1355
      %v1357 = vpop.f32.mrb[0].mxu0
      %1358 = vmatprep.mubr.bf16.mxu0 0
      %1359 = vmatmul.mubr.bf16.gmra.mrb[0].mxu0 %v1261
      %v1360 = vpop.f32.mrb[0].mxu0
      %v1361 = vadd.f32 0.0, %v1360
      %v1362 = vpop.f32.mrb[0].mxu0
      %v1363 = vpop.f32.mrb[0].mxu0
      %v1364 = vadd.f32 0.0, %v1363
      %v1365 = vpop.f32.mrb[0].mxu0
      %1366 = vmatprep.mubr.bf16.mxu0 0
      %1367 = vmatmul.mubr.bf16.gmra.mrb[0].mxu0 %v1264
      %v1368 = vpop.f32.mrb[0].mxu0
      %v1369 = vadd.f32 0.0, %v1368
      %v1370 = vpop.f32.mrb[0].mxu0
      %v1371 = vpop.f32.mrb[0].mxu0
      %v1372 = vadd.f32 0.0, %v1371
      %v1373 = vpop.f32.mrb[0].mxu0
      %1374 = vmatprep.mubr.bf16.mxu0 0
      %1375 = vmatmul.mubr.bf16.gmra.mrb[0].mxu0 %v1267
      %v1376 = vpop.f32.mrb[0].mxu0
      %v1377 = vadd.f32 0.0, %v1376
      %v1378 = vpop.f32.mrb[0].mxu0
      %v1379 = vpop.f32.mrb[0].mxu0
      %v1380 = vadd.f32 0.0, %v1379
      %v1381 = vpop.f32.mrb[0].mxu0
      %1382 = vmatprep.mubr.bf16.mxu0 0
      %1383 = vmatmul.mubr.bf16.gmra.mrb[0].mxu0 %v1270
      %v1384 = vpop.f32.mrb[0].mxu0
      %v1385 = vadd.f32 0.0, %v1384
      %v1386 = vpop.f32.mrb[0].mxu0
      %v1387 = vpop.f32.mrb[0].mxu0
      %v1388 = vadd.f32 0.0, %v1387
      %v1389 = vpop.f32.mrb[0].mxu0
      %1390 = vmatprep.mubr.bf16.mxu0 0
      %1391 = vmatmul.mubr.bf16.gmra.mrb[0].mxu0 %v1273
      %v1392 = vpop.f32.mrb[0].mxu0
      %v1393 = vadd.f32 0.0, %v1392
      %v1394 = vpop.f32.mrb[0].mxu0
      %v1395 = vpop.f32.mrb[0].mxu0
      %v1396 = vadd.f32 0.0, %v1395
      %v1397 = vpop.f32.mrb[0].mxu0
      %1398 = vmatprep.mubr.bf16.mxu0 0
      %1399 = vmatmul.mubr.bf16.gmra.mrb[0].mxu0 %v1276
      %v1400 = vpop.f32.mrb[0].mxu0
      %v1401 = vadd.f32 0.0, %v1400
      %v1402 = vpop.f32.mrb[0].mxu0
      %v1403 = vpop.f32.mrb[0].mxu0
      %v1404 = vadd.f32 0.0, %v1403
      %v1405 = vpop.f32.mrb[0].mxu0
      %1406 = vmatprep.mubr.bf16.mxu0 0
      %1407 = vmatmul.mubr.bf16.gmra.mrb[0].mxu0 %v1279
      %v1408 = vpop.f32.mrb[0].mxu0
      %v1409 = vadd.f32 0.0, %v1408
      %v1410 = vpop.f32.mrb[0].mxu0
      %v1411 = vpop.f32.mrb[0].mxu0
      %v1412 = vadd.f32 0.0, %v1411
      %v1413 = vpop.f32.mrb[0].mxu0
      %1414 = vmatprep.mubr.bf16.mxu0 0
      %1415 = vmatmul.mubr.bf16.gmra.mrb[0].mxu0 %v1282
      %v1416 = vpop.f32.mrb[0].mxu0
      %v1417 = vadd.f32 0.0, %v1416
      %v1418 = vpop.f32.mrb[0].mxu0
      %v1419 = vpop.f32.mrb[0].mxu0
      %v1420 = vadd.f32 0.0, %v1419
      %v1421 = vpop.f32.mrb[0].mxu0
      %1422 = vmatprep.mubr.bf16.mxu0 0
      %1423 = vmatmul.mubr.bf16.gmra.mrb[0].mxu0 %v1285
      %v1424 = vpop.f32.mrb[0].mxu0
      %v1425 = vadd.f32 0.0, %v1424
      %v1426 = vpop.f32.mrb[0].mxu0
      %v1427 = vpop.f32.mrb[0].mxu0
      %v1428 = vadd.f32 0.0, %v1427
      %v1429 = vpop.f32.mrb[0].mxu0
      %1430 = vmatprep.mubr.bf16.mxu0 0
      %1431 = vmatmul.mubr.bf16.gmra.mrb[0].mxu0 %v1288
      %v1432 = vpop.f32.mrb[0].mxu0
      %v1433 = vadd.f32 0.0, %v1432
      %v1434 = vpop.f32.mrb[0].mxu0
      %v1435 = vpop.f32.mrb[0].mxu0
      %v1436 = vadd.f32 0.0, %v1435
      %v1437 = vpop.f32.mrb[0].mxu0
      %1438 = vmatprep.mubr.bf16.mxu0 0
      %1439 = vmatmul.mubr.bf16.gmra.mrb[0].mxu0 %v1291
      %v1440 = vpop.f32.mrb[0].mxu0
      %v1441 = vadd.f32 0.0, %v1440
      %v1442 = vpop.f32.mrb[0].mxu0
      %v1443 = vpop.f32.mrb[0].mxu0
      %v1444 = vadd.f32 0.0, %v1443
      %v1445 = vpop.f32.mrb[0].mxu0
      %1446 = vmatprep.mubr.bf16.mxu0 0
      %1447 = vmatmul.mubr.bf16.gmra.mrb[0].mxu0 %v1294
      %v1448 = vpop.f32.mrb[0].mxu0
      %v1449 = vadd.f32 0.0, %v1448
      %v1450 = vpop.f32.mrb[0].mxu0
      %v1451 = vpop.f32.mrb[0].mxu0
      %v1452 = vadd.f32 0.0, %v1451
      %v1453 = vpop.f32.mrb[0].mxu0
      %1454 = vmatprep.mubr.bf16.mxu0 0
      %1455 = vmatmul.mubr.bf16.gmra.mrb[0].mxu0 %v1297
      %v1456 = vpop.f32.mrb[0].mxu0
      %v1457 = vadd.f32 0.0, %v1456
      %v1458 = vpop.f32.mrb[0].mxu0
      %v1459 = vpop.f32.mrb[0].mxu0
      %v1460 = vadd.f32 0.0, %v1459
      %v1461 = vpop.f32.mrb[0].mxu0
      %1462 = vdwg.mxu0
      %v1463 = vadd.f32 %v1169, %v1337
      %v1464 = vadd.f32 %v1170, %v1340
      %v1465 = vadd.f32 %v1171, %v1345
      %v1466 = vadd.f32 %v1172, %v1348
      %v1467 = vadd.f32 %v1173, %v1353
      %v1468 = vadd.f32 %v1174, %v1356
      %v1469 = vadd.f32 %v1175, %v1361
      %v1470 = vadd.f32 %v1176, %v1364
      %v1471 = vadd.f32 %v1177, %v1369
      %v1472 = vadd.f32 %v1178, %v1372
      %v1473 = vadd.f32 %v1179, %v1377
      %v1474 = vadd.f32 %v1180, %v1380
      %v1475 = vadd.f32 %v1181, %v1385
      %v1476 = vadd.f32 %v1182, %v1388
      %v1477 = vadd.f32 %v1183, %v1393
      %v1478 = vadd.f32 %v1184, %v1396
      %v1479 = vadd.f32 %v1185, %v1401
      %v1480 = vadd.f32 %v1186, %v1404
      %v1481 = vadd.f32 %v1187, %v1409
      %v1482 = vadd.f32 %v1188, %v1412
      %v1483 = vadd.f32 %v1189, %v1417
      %v1484 = vadd.f32 %v1190, %v1420
      %v1485 = vadd.f32 %v1191, %v1425
      %v1486 = vadd.f32 %v1192, %v1428
      %v1487 = vadd.f32 %v1193, %v1433
      %v1488 = vadd.f32 %v1194, %v1436
      %v1489 = vadd.f32 %v1195, %v1441
      %v1490 = vadd.f32 %v1196, %v1444
      %v1491 = vadd.f32 %v1197, %v1449
      %v1492 = vadd.f32 %v1198, %v1452
      %v1493 = vadd.f32 %v1199, %v1457
      %v1494 = vadd.f32 %v1200, %v1460
      %v1495 = vld [vmem:[%s350 + $0x1] sm:$0xff]
      %v1496 = vld [vmem:[%s350 + $0x9] sm:$0xff]
      %v1497 = vld [vmem:[%s350 + $0x19] sm:$0xff]
      %v1498 = vld [vmem:[%s350 + $0x21] sm:$0xff]
      %v1499 = vld [vmem:[%s350 + $0x31] sm:$0xff]
      %v1500 = vld [vmem:[%s350 + $0x39] sm:$0xff]
      %v1501 = vld [vmem:[%s350 + $0x49] sm:$0xff]
      %v1502 = vld [vmem:[%s350 + $0x51] sm:$0xff]
      %v1503 = vld [vmem:[%s350 + $0x61] sm:$0xff]
      %v1504 = vld [vmem:[%s350 + $0x69] sm:$0xff]
      %v1505 = vld [vmem:[%s350 + $0x79] sm:$0xff]
      %v1506 = vld [vmem:[%s350 + $0x81] sm:$0xff]
      %v1507 = vld [vmem:[%s350 + $0x91] sm:$0xff]
      %v1508 = vld [vmem:[%s350 + $0x99] sm:$0xff]
      %v1509 = vld [vmem:[%s350 + $0xa9] sm:$0xff]
      %v1510 = vld [vmem:[%s350 + $0xb1] sm:$0xff]
      %v1511 = vld [vmem:[%s350 + $0xc1] sm:$0xff]
      %v1512 = vld [vmem:[%s350 + $0xc9] sm:$0xff]
      %v1513 = vld [vmem:[%s350 + $0xd9] sm:$0xff]
      %v1514 = vld [vmem:[%s350 + $0xe1] sm:$0xff]
      %v1515 = vld [vmem:[%s350 + $0xf1] sm:$0xff]
      %v1516 = vld [vmem:[%s350 + $0xf9] sm:$0xff]
      %v1517 = vld [vmem:[%s350 + $0x109] sm:$0xff]
      %v1518 = vld [vmem:[%s350 + $0x111] sm:$0xff]
      %v1519 = vld [vmem:[%s350 + $0x121] sm:$0xff]
      %v1520 = vld [vmem:[%s350 + $0x129] sm:$0xff]
      %v1521 = vld [vmem:[%s350 + $0x139] sm:$0xff]
      %v1522 = vld [vmem:[%s350 + $0x141] sm:$0xff]
      %v1523 = vld [vmem:[%s350 + $0x151] sm:$0xff]
      %v1524 = vld [vmem:[%s350 + $0x159] sm:$0xff]
      %v1525 = vld [vmem:[%s350 + $0x169] sm:$0xff]
      %v1526 = vld [vmem:[%s350 + $0x171] sm:$0xff]
      %v1527 = vpack.c.bf16 %v1496, %v1495
      %v1528 = vpack.c.bf16 %v1498, %v1497
      %v1529 = vpack.c.bf16 %v1500, %v1499
      %v1530 = vpack.c.bf16 %v1502, %v1501
      %v1531 = vpack.c.bf16 %v1504, %v1503
      %v1532 = vpack.c.bf16 %v1506, %v1505
      %v1533 = vpack.c.bf16 %v1508, %v1507
      %v1534 = vpack.c.bf16 %v1510, %v1509
      %v1535 = vpack.c.bf16 %v1512, %v1511
      %v1536 = vpack.c.bf16 %v1514, %v1513
      %v1537 = vpack.c.bf16 %v1516, %v1515
      %v1538 = vpack.c.bf16 %v1518, %v1517
      %v1539 = vpack.c.bf16 %v1520, %v1519
      %v1540 = vpack.c.bf16 %v1522, %v1521
      %v1541 = vpack.c.bf16 %v1524, %v1523
      %v1542 = vpack.c.bf16 %v1526, %v1525
      %s1543 = scalar_lea.vmem %s1, 4
      %v1544 = vld [vmem:[%s1543] sm:$0x1]
      %v1546 = vsel %vm258, %v1527, 0
      %v1549 = vsel %vm258, %v1528, 0
      %v1552 = vsel %vm258, %v1529, 0
      %v1555 = vsel %vm258, %v1530, 0
      %v1558 = vsel %vm258, %v1531, 0
      %v1561 = vsel %vm258, %v1532, 0
      %v1564 = vsel %vm258, %v1533, 0
      %v1567 = vsel %vm258, %v1534, 0
      %v1570 = vsel %vm258, %v1535, 0
      %v1573 = vsel %vm258, %v1536, 0
      %v1576 = vsel %vm258, %v1537, 0
      %v1579 = vsel %vm258, %v1538, 0
      %v1582 = vsel %vm258, %v1539, 0
      %v1585 = vsel %vm258, %v1540, 0
      %v1588 = vsel %vm258, %v1541, 0
      %v1591 = vsel %vm258, %v1542, 0
      %v1594 = vsel %vm530, %v1544, 0
      %1596 = vmatprep.subr.bf16.mxu0 0
      %1597 = vmatpush1.bf16.msra.mxu0 %v1594
      %1598 = vmatprep.subr.bf16.mxu0 0
      %1599 = vmatpush1.bf16.msra.mxu0 0
      %1600 = vmatprep.subr.bf16.mxu0 0
      %1601 = vmatpush1.bf16.msra.mxu0 0
      %1602 = vmatprep.subr.bf16.mxu0 0
      %1603 = vmatpush1.bf16.msra.mxu0 0
      %1604 = vmatprep.subr.bf16.mxu0 0
      %1605 = vmatpush1.bf16.msra.mxu0 0
      %1606 = vmatprep.subr.bf16.mxu0 0
      %1607 = vmatpush1.bf16.msra.mxu0 0
      %1608 = vmatprep.subr.bf16.mxu0 0
      %1609 = vmatpush1.bf16.msra.mxu0 0
      %1610 = vmatprep.subr.bf16.mxu0 0
      %1611 = vmatpush1.bf16.msra.mxu0 0
      %1612 = vmatprep.subr.bf16.mxu0 0
      %1613 = vmatpush1.bf16.msra.mxu0 0
      %1614 = vmatprep.subr.bf16.mxu0 0
      %1615 = vmatpush1.bf16.msra.mxu0 0
      %1616 = vmatprep.subr.bf16.mxu0 0
      %1617 = vmatpush1.bf16.msra.mxu0 0
      %1618 = vmatprep.subr.bf16.mxu0 0
      %1619 = vmatpush1.bf16.msra.mxu0 0
      %1620 = vmatprep.subr.bf16.mxu0 0
      %1621 = vmatpush1.bf16.msra.mxu0 0
      %1622 = vmatprep.subr.bf16.mxu0 0
      %1623 = vmatpush1.bf16.msra.mxu0 0
      %1624 = vmatprep.subr.bf16.mxu0 0
      %1625 = vmatpush1.bf16.msra.mxu0 0
      %1626 = vmatprep.subr.bf16.mxu0 0
      %1627 = vmatpush1.bf16.msra.mxu0 0
      %1628 = vmatprep.mubr.bf16.mxu0 0
      %1629 = vmatmul.mubr.bf16.gmra.mrb[0].mxu0 %v1546
      %v1630 = vpop.f32.mrb[0].mxu0
      %v1631 = vadd.f32 0.0, %v1630
      %v1632 = vpop.f32.mrb[0].mxu0
      %v1633 = vpop.f32.mrb[0].mxu0
      %v1634 = vadd.f32 0.0, %v1633
      %v1635 = vpop.f32.mrb[0].mxu0
      %1636 = vmatprep.mubr.bf16.mxu0 0
      %1637 = vmatmul.mubr.bf16.gmra.mrb[0].mxu0 %v1549
      %v1638 = vpop.f32.mrb[0].mxu0
      %v1639 = vadd.f32 0.0, %v1638
      %v1640 = vpop.f32.mrb[0].mxu0
      %v1641 = vpop.f32.mrb[0].mxu0
      %v1642 = vadd.f32 0.0, %v1641
      %v1643 = vpop.f32.mrb[0].mxu0
      %1644 = vmatprep.mubr.bf16.mxu0 0
      %1645 = vmatmul.mubr.bf16.gmra.mrb[0].mxu0 %v1552
      %v1646 = vpop.f32.mrb[0].mxu0
      %v1647 = vadd.f32 0.0, %v1646
      %v1648 = vpop.f32.mrb[0].mxu0
      %v1649 = vpop.f32.mrb[0].mxu0
      %v1650 = vadd.f32 0.0, %v1649
      %v1651 = vpop.f32.mrb[0].mxu0
      %1652 = vmatprep.mubr.bf16.mxu0 0
      %1653 = vmatmul.mubr.bf16.gmra.mrb[0].mxu0 %v1555
      %v1654 = vpop.f32.mrb[0].mxu0
      %v1655 = vadd.f32 0.0, %v1654
      %v1656 = vpop.f32.mrb[0].mxu0
      %v1657 = vpop.f32.mrb[0].mxu0
      %v1658 = vadd.f32 0.0, %v1657
      %v1659 = vpop.f32.mrb[0].mxu0
      %1660 = vmatprep.mubr.bf16.mxu0 0
      %1661 = vmatmul.mubr.bf16.gmra.mrb[0].mxu0 %v1558
      %v1662 = vpop.f32.mrb[0].mxu0
      %v1663 = vadd.f32 0.0, %v1662
      %v1664 = vpop.f32.mrb[0].mxu0
      %v1665 = vpop.f32.mrb[0].mxu0
      %v1666 = vadd.f32 0.0, %v1665
      %v1667 = vpop.f32.mrb[0].mxu0
      %1668 = vmatprep.mubr.bf16.mxu0 0
      %1669 = vmatmul.mubr.bf16.gmra.mrb[0].mxu0 %v1561
      %v1670 = vpop.f32.mrb[0].mxu0
      %v1671 = vadd.f32 0.0, %v1670
      %v1672 = vpop.f32.mrb[0].mxu0
      %v1673 = vpop.f32.mrb[0].mxu0
      %v1674 = vadd.f32 0.0, %v1673
      %v1675 = vpop.f32.mrb[0].mxu0
      %1676 = vmatprep.mubr.bf16.mxu0 0
      %1677 = vmatmul.mubr.bf16.gmra.mrb[0].mxu0 %v1564
      %v1678 = vpop.f32.mrb[0].mxu0
      %v1679 = vadd.f32 0.0, %v1678
      %v1680 = vpop.f32.mrb[0].mxu0
      %v1681 = vpop.f32.mrb[0].mxu0
      %v1682 = vadd.f32 0.0, %v1681
      %v1683 = vpop.f32.mrb[0].mxu0
      %1684 = vmatprep.mubr.bf16.mxu0 0
      %1685 = vmatmul.mubr.bf16.gmra.mrb[0].mxu0 %v1567
      %v1686 = vpop.f32.mrb[0].mxu0
      %v1687 = vadd.f32 0.0, %v1686
      %v1688 = vpop.f32.mrb[0].mxu0
      %v1689 = vpop.f32.mrb[0].mxu0
      %v1690 = vadd.f32 0.0, %v1689
      %v1691 = vpop.f32.mrb[0].mxu0
      %1692 = vmatprep.mubr.bf16.mxu0 0
      %1693 = vmatmul.mubr.bf16.gmra.mrb[0].mxu0 %v1570
      %v1694 = vpop.f32.mrb[0].mxu0
      %v1695 = vadd.f32 0.0, %v1694
      %v1696 = vpop.f32.mrb[0].mxu0
      %v1697 = vpop.f32.mrb[0].mxu0
      %v1698 = vadd.f32 0.0, %v1697
      %v1699 = vpop.f32.mrb[0].mxu0
      %1700 = vmatprep.mubr.bf16.mxu0 0
      %1701 = vmatmul.mubr.bf16.gmra.mrb[0].mxu0 %v1573
      %v1702 = vpop.f32.mrb[0].mxu0
      %v1703 = vadd.f32 0.0, %v1702
      %v1704 = vpop.f32.mrb[0].mxu0
      %v1705 = vpop.f32.mrb[0].mxu0
      %v1706 = vadd.f32 0.0, %v1705
      %v1707 = vpop.f32.mrb[0].mxu0
      %1708 = vmatprep.mubr.bf16.mxu0 0
      %1709 = vmatmul.mubr.bf16.gmra.mrb[0].mxu0 %v1576
      %v1710 = vpop.f32.mrb[0].mxu0
      %v1711 = vadd.f32 0.0, %v1710
      %v1712 = vpop.f32.mrb[0].mxu0
      %v1713 = vpop.f32.mrb[0].mxu0
      %v1714 = vadd.f32 0.0, %v1713
      %v1715 = vpop.f32.mrb[0].mxu0
      %1716 = vmatprep.mubr.bf16.mxu0 0
      %1717 = vmatmul.mubr.bf16.gmra.mrb[0].mxu0 %v1579
      %v1718 = vpop.f32.mrb[0].mxu0
      %v1719 = vadd.f32 0.0, %v1718
      %v1720 = vpop.f32.mrb[0].mxu0
      %v1721 = vpop.f32.mrb[0].mxu0
      %v1722 = vadd.f32 0.0, %v1721
      %v1723 = vpop.f32.mrb[0].mxu0
      %1724 = vmatprep.mubr.bf16.mxu0 0
      %1725 = vmatmul.mubr.bf16.gmra.mrb[0].mxu0 %v1582
      %v1726 = vpop.f32.mrb[0].mxu0
      %v1727 = vadd.f32 0.0, %v1726
      %v1728 = vpop.f32.mrb[0].mxu0
      %v1729 = vpop.f32.mrb[0].mxu0
      %v1730 = vadd.f32 0.0, %v1729
      %v1731 = vpop.f32.mrb[0].mxu0
      %1732 = vmatprep.mubr.bf16.mxu0 0
      %1733 = vmatmul.mubr.bf16.gmra.mrb[0].mxu0 %v1585
      %v1734 = vpop.f32.mrb[0].mxu0
      %v1735 = vadd.f32 0.0, %v1734
      %v1736 = vpop.f32.mrb[0].mxu0
      %v1737 = vpop.f32.mrb[0].mxu0
      %v1738 = vadd.f32 0.0, %v1737
      %v1739 = vpop.f32.mrb[0].mxu0
      %1740 = vmatprep.mubr.bf16.mxu0 0
      %1741 = vmatmul.mubr.bf16.gmra.mrb[0].mxu0 %v1588
      %v1742 = vpop.f32.mrb[0].mxu0
      %v1743 = vadd.f32 0.0, %v1742
      %v1744 = vpop.f32.mrb[0].mxu0
      %v1745 = vpop.f32.mrb[0].mxu0
      %v1746 = vadd.f32 0.0, %v1745
      %v1747 = vpop.f32.mrb[0].mxu0
      %1748 = vmatprep.mubr.bf16.mxu0 0
      %1749 = vmatmul.mubr.bf16.gmra.mrb[0].mxu0 %v1591
      %v1750 = vpop.f32.mrb[0].mxu0
      %v1751 = vadd.f32 0.0, %v1750
      %v1752 = vpop.f32.mrb[0].mxu0
      %v1753 = vpop.f32.mrb[0].mxu0
      %v1754 = vadd.f32 0.0, %v1753
      %v1755 = vpop.f32.mrb[0].mxu0
      %1756 = vdwg.mxu0
      %v1757 = vadd.f32 %v1463, %v1631
      %v1758 = vadd.f32 %v1464, %v1634
      %v1759 = vadd.f32 %v1465, %v1639
      %v1760 = vadd.f32 %v1466, %v1642
      %v1761 = vadd.f32 %v1467, %v1647
      %v1762 = vadd.f32 %v1468, %v1650
      %v1763 = vadd.f32 %v1469, %v1655
      %v1764 = vadd.f32 %v1470, %v1658
      %v1765 = vadd.f32 %v1471, %v1663
      %v1766 = vadd.f32 %v1472, %v1666
      %v1767 = vadd.f32 %v1473, %v1671
      %v1768 = vadd.f32 %v1474, %v1674
      %v1769 = vadd.f32 %v1475, %v1679
      %v1770 = vadd.f32 %v1476, %v1682
      %v1771 = vadd.f32 %v1477, %v1687
      %v1772 = vadd.f32 %v1478, %v1690
      %v1773 = vadd.f32 %v1479, %v1695
      %v1774 = vadd.f32 %v1480, %v1698
      %v1775 = vadd.f32 %v1481, %v1703
      %v1776 = vadd.f32 %v1482, %v1706
      %v1777 = vadd.f32 %v1483, %v1711
      %v1778 = vadd.f32 %v1484, %v1714
      %v1779 = vadd.f32 %v1485, %v1719
      %v1780 = vadd.f32 %v1486, %v1722
      %v1781 = vadd.f32 %v1487, %v1727
      %v1782 = vadd.f32 %v1488, %v1730
      %v1783 = vadd.f32 %v1489, %v1735
      %v1784 = vadd.f32 %v1490, %v1738
      %v1785 = vadd.f32 %v1491, %v1743
      %v1786 = vadd.f32 %v1492, %v1746
      %v1787 = vadd.f32 %v1493, %v1751
      %v1788 = vadd.f32 %v1494, %v1754
      %v1789 = vld [vmem:[%s350 + $0x2] sm:$0xff]
      %v1790 = vld [vmem:[%s350 + $0xa] sm:$0xff]
      %v1791 = vld [vmem:[%s350 + $0x1a] sm:$0xff]
      %v1792 = vld [vmem:[%s350 + $0x22] sm:$0xff]
      %v1793 = vld [vmem:[%s350 + $0x32] sm:$0xff]
      %v1794 = vld [vmem:[%s350 + $0x3a] sm:$0xff]
      %v1795 = vld [vmem:[%s350 + $0x4a] sm:$0xff]
      %v1796 = vld [vmem:[%s350 + $0x52] sm:$0xff]
      %v1797 = vld [vmem:[%s350 + $0x62] sm:$0xff]
      %v1798 = vld [vmem:[%s350 + $0x6a] sm:$0xff]
      %v1799 = vld [vmem:[%s350 + $0x7a] sm:$0xff]
      %v1800 = vld [vmem:[%s350 + $0x82] sm:$0xff]
      %v1801 = vld [vmem:[%s350 + $0x92] sm:$0xff]
      %v1802 = vld [vmem:[%s350 + $0x9a] sm:$0xff]
      %v1803 = vld [vmem:[%s350 + $0xaa] sm:$0xff]
      %v1804 = vld [vmem:[%s350 + $0xb2] sm:$0xff]
      %v1805 = vld [vmem:[%s350 + $0xc2] sm:$0xff]
      %v1806 = vld [vmem:[%s350 + $0xca] sm:$0xff]
      %v1807 = vld [vmem:[%s350 + $0xda] sm:$0xff]
      %v1808 = vld [vmem:[%s350 + $0xe2] sm:$0xff]
      %v1809 = vld [vmem:[%s350 + $0xf2] sm:$0xff]
      %v1810 = vld [vmem:[%s350 + $0xfa] sm:$0xff]
      %v1811 = vld [vmem:[%s350 + $0x10a] sm:$0xff]
      %v1812 = vld [vmem:[%s350 + $0x112] sm:$0xff]
      %v1813 = vld [vmem:[%s350 + $0x122] sm:$0xff]
      %v1814 = vld [vmem:[%s350 + $0x12a] sm:$0xff]
      %v1815 = vld [vmem:[%s350 + $0x13a] sm:$0xff]
      %v1816 = vld [vmem:[%s350 + $0x142] sm:$0xff]
      %v1817 = vld [vmem:[%s350 + $0x152] sm:$0xff]
      %v1818 = vld [vmem:[%s350 + $0x15a] sm:$0xff]
      %v1819 = vld [vmem:[%s350 + $0x16a] sm:$0xff]
      %v1820 = vld [vmem:[%s350 + $0x172] sm:$0xff]
      %v1821 = vpack.c.bf16 %v1790, %v1789
      %v1822 = vpack.c.bf16 %v1792, %v1791
      %v1823 = vpack.c.bf16 %v1794, %v1793
      %v1824 = vpack.c.bf16 %v1796, %v1795
      %v1825 = vpack.c.bf16 %v1798, %v1797
      %v1826 = vpack.c.bf16 %v1800, %v1799
      %v1827 = vpack.c.bf16 %v1802, %v1801
      %v1828 = vpack.c.bf16 %v1804, %v1803
      %v1829 = vpack.c.bf16 %v1806, %v1805
      %v1830 = vpack.c.bf16 %v1808, %v1807
      %v1831 = vpack.c.bf16 %v1810, %v1809
      %v1832 = vpack.c.bf16 %v1812, %v1811
      %v1833 = vpack.c.bf16 %v1814, %v1813
      %v1834 = vpack.c.bf16 %v1816, %v1815
      %v1835 = vpack.c.bf16 %v1818, %v1817
      %v1836 = vpack.c.bf16 %v1820, %v1819
      %s1837 = scalar_lea.vmem %s1, 5
      %v1838 = vld [vmem:[%s1837] sm:$0x1]
      %v1840 = vsel %vm258, %v1821, 0
      %v1843 = vsel %vm258, %v1822, 0
      %v1846 = vsel %vm258, %v1823, 0
      %v1849 = vsel %vm258, %v1824, 0
      %v1852 = vsel %vm258, %v1825, 0
      %v1855 = vsel %vm258, %v1826, 0
      %v1858 = vsel %vm258, %v1827, 0
      %v1861 = vsel %vm258, %v1828, 0
      %v1864 = vsel %vm258, %v1829, 0
      %v1867 = vsel %vm258, %v1830, 0
      %v1870 = vsel %vm258, %v1831, 0
      %v1873 = vsel %vm258, %v1832, 0
      %v1876 = vsel %vm258, %v1833, 0
      %v1879 = vsel %vm258, %v1834, 0
      %v1882 = vsel %vm258, %v1835, 0
      %v1885 = vsel %vm258, %v1836, 0
      %v1888 = vsel %vm530, %v1838, 0
      %1890 = vmatprep.subr.bf16.mxu0 0
      %1891 = vmatpush1.bf16.msra.mxu0 %v1888
      %1892 = vmatprep.subr.bf16.mxu0 0
      %1893 = vmatpush1.bf16.msra.mxu0 0
      %1894 = vmatprep.subr.bf16.mxu0 0
      %1895 = vmatpush1.bf16.msra.mxu0 0
      %1896 = vmatprep.subr.bf16.mxu0 0
      %1897 = vmatpush1.bf16.msra.mxu0 0
      %1898 = vmatprep.subr.bf16.mxu0 0
      %1899 = vmatpush1.bf16.msra.mxu0 0
      %1900 = vmatprep.subr.bf16.mxu0 0
      %1901 = vmatpush1.bf16.msra.mxu0 0
      %1902 = vmatprep.subr.bf16.mxu0 0
      %1903 = vmatpush1.bf16.msra.mxu0 0
      %1904 = vmatprep.subr.bf16.mxu0 0
      %1905 = vmatpush1.bf16.msra.mxu0 0
      %1906 = vmatprep.subr.bf16.mxu0 0
      %1907 = vmatpush1.bf16.msra.mxu0 0
      %1908 = vmatprep.subr.bf16.mxu0 0
      %1909 = vmatpush1.bf16.msra.mxu0 0
      %1910 = vmatprep.subr.bf16.mxu0 0
      %1911 = vmatpush1.bf16.msra.mxu0 0
      %1912 = vmatprep.subr.bf16.mxu0 0
      %1913 = vmatpush1.bf16.msra.mxu0 0
      %1914 = vmatprep.subr.bf16.mxu0 0
      %1915 = vmatpush1.bf16.msra.mxu0 0
      %1916 = vmatprep.subr.bf16.mxu0 0
      %1917 = vmatpush1.bf16.msra.mxu0 0
      %1918 = vmatprep.subr.bf16.mxu0 0
      %1919 = vmatpush1.bf16.msra.mxu0 0
      %1920 = vmatprep.subr.bf16.mxu0 0
      %1921 = vmatpush1.bf16.msra.mxu0 0
      %1922 = vmatprep.mubr.bf16.mxu0 0
      %1923 = vmatmul.mubr.bf16.gmra.mrb[0].mxu0 %v1840
      %v1924 = vpop.f32.mrb[0].mxu0
      %v1925 = vadd.f32 0.0, %v1924
      %v1926 = vpop.f32.mrb[0].mxu0
      %v1927 = vpop.f32.mrb[0].mxu0
      %v1928 = vadd.f32 0.0, %v1927
      %v1929 = vpop.f32.mrb[0].mxu0
      %1930 = vmatprep.mubr.bf16.mxu0 0
      %1931 = vmatmul.mubr.bf16.gmra.mrb[0].mxu0 %v1843
      %v1932 = vpop.f32.mrb[0].mxu0
      %v1933 = vadd.f32 0.0, %v1932
      %v1934 = vpop.f32.mrb[0].mxu0
      %v1935 = vpop.f32.mrb[0].mxu0
      %v1936 = vadd.f32 0.0, %v1935
      %v1937 = vpop.f32.mrb[0].mxu0
      %1938 = vmatprep.mubr.bf16.mxu0 0
      %1939 = vmatmul.mubr.bf16.gmra.mrb[0].mxu0 %v1846
      %v1940 = vpop.f32.mrb[0].mxu0
      %v1941 = vadd.f32 0.0, %v1940
      %v1942 = vpop.f32.mrb[0].mxu0
      %v1943 = vpop.f32.mrb[0].mxu0
      %v1944 = vadd.f32 0.0, %v1943
      %v1945 = vpop.f32.mrb[0].mxu0
      %1946 = vmatprep.mubr.bf16.mxu0 0
      %1947 = vmatmul.mubr.bf16.gmra.mrb[0].mxu0 %v1849
      %v1948 = vpop.f32.mrb[0].mxu0
      %v1949 = vadd.f32 0.0, %v1948
      %v1950 = vpop.f32.mrb[0].mxu0
      %v1951 = vpop.f32.mrb[0].mxu0
      %v1952 = vadd.f32 0.0, %v1951
      %v1953 = vpop.f32.mrb[0].mxu0
      %1954 = vmatprep.mubr.bf16.mxu0 0
      %1955 = vmatmul.mubr.bf16.gmra.mrb[0].mxu0 %v1852
      %v1956 = vpop.f32.mrb[0].mxu0
      %v1957 = vadd.f32 0.0, %v1956
      %v1958 = vpop.f32.mrb[0].mxu0
      %v1959 = vpop.f32.mrb[0].mxu0
      %v1960 = vadd.f32 0.0, %v1959
      %v1961 = vpop.f32.mrb[0].mxu0
      %1962 = vmatprep.mubr.bf16.mxu0 0
      %1963 = vmatmul.mubr.bf16.gmra.mrb[0].mxu0 %v1855
      %v1964 = vpop.f32.mrb[0].mxu0
      %v1965 = vadd.f32 0.0, %v1964
      %v1966 = vpop.f32.mrb[0].mxu0
      %v1967 = vpop.f32.mrb[0].mxu0
      %v1968 = vadd.f32 0.0, %v1967
      %v1969 = vpop.f32.mrb[0].mxu0
      %1970 = vmatprep.mubr.bf16.mxu0 0
      %1971 = vmatmul.mubr.bf16.gmra.mrb[0].mxu0 %v1858
      %v1972 = vpop.f32.mrb[0].mxu0
      %v1973 = vadd.f32 0.0, %v1972
      %v1974 = vpop.f32.mrb[0].mxu0
      %v1975 = vpop.f32.mrb[0].mxu0
      %v1976 = vadd.f32 0.0, %v1975
      %v1977 = vpop.f32.mrb[0].mxu0
      %1978 = vmatprep.mubr.bf16.mxu0 0
      %1979 = vmatmul.mubr.bf16.gmra.mrb[0].mxu0 %v1861
      %v1980 = vpop.f32.mrb[0].mxu0
      %v1981 = vadd.f32 0.0, %v1980
      %v1982 = vpop.f32.mrb[0].mxu0
      %v1983 = vpop.f32.mrb[0].mxu0
      %v1984 = vadd.f32 0.0, %v1983
      %v1985 = vpop.f32.mrb[0].mxu0
      %1986 = vmatprep.mubr.bf16.mxu0 0
      %1987 = vmatmul.mubr.bf16.gmra.mrb[0].mxu0 %v1864
      %v1988 = vpop.f32.mrb[0].mxu0
      %v1989 = vadd.f32 0.0, %v1988
      %v1990 = vpop.f32.mrb[0].mxu0
      %v1991 = vpop.f32.mrb[0].mxu0
      %v1992 = vadd.f32 0.0, %v1991
      %v1993 = vpop.f32.mrb[0].mxu0
      %1994 = vmatprep.mubr.bf16.mxu0 0
      %1995 = vmatmul.mubr.bf16.gmra.mrb[0].mxu0 %v1867
      %v1996 = vpop.f32.mrb[0].mxu0
      %v1997 = vadd.f32 0.0, %v1996
      %v1998 = vpop.f32.mrb[0].mxu0
      %v1999 = vpop.f32.mrb[0].mxu0
      %v2000 = vadd.f32 0.0, %v1999
      %v2001 = vpop.f32.mrb[0].mxu0
      %2002 = vmatprep.mubr.bf16.mxu0 0
      %2003 = vmatmul.mubr.bf16.gmra.mrb[0].mxu0 %v1870
      %v2004 = vpop.f32.mrb[0].mxu0
      %v2005 = vadd.f32 0.0, %v2004
      %v2006 = vpop.f32.mrb[0].mxu0
      %v2007 = vpop.f32.mrb[0].mxu0
      %v2008 = vadd.f32 0.0, %v2007
      %v2009 = vpop.f32.mrb[0].mxu0
      %2010 = vmatprep.mubr.bf16.mxu0 0
      %2011 = vmatmul.mubr.bf16.gmra.mrb[0].mxu0 %v1873
      %v2012 = vpop.f32.mrb[0].mxu0
      %v2013 = vadd.f32 0.0, %v2012
      %v2014 = vpop.f32.mrb[0].mxu0
      %v2015 = vpop.f32.mrb[0].mxu0
      %v2016 = vadd.f32 0.0, %v2015
      %v2017 = vpop.f32.mrb[0].mxu0
      %2018 = vmatprep.mubr.bf16.mxu0 0
      %2019 = vmatmul.mubr.bf16.gmra.mrb[0].mxu0 %v1876
      %v2020 = vpop.f32.mrb[0].mxu0
      %v2021 = vadd.f32 0.0, %v2020
      %v2022 = vpop.f32.mrb[0].mxu0
      %v2023 = vpop.f32.mrb[0].mxu0
      %v2024 = vadd.f32 0.0, %v2023
      %v2025 = vpop.f32.mrb[0].mxu0
      %2026 = vmatprep.mubr.bf16.mxu0 0
      %2027 = vmatmul.mubr.bf16.gmra.mrb[0].mxu0 %v1879
      %v2028 = vpop.f32.mrb[0].mxu0
      %v2029 = vadd.f32 0.0, %v2028
      %v2030 = vpop.f32.mrb[0].mxu0
      %v2031 = vpop.f32.mrb[0].mxu0
      %v2032 = vadd.f32 0.0, %v2031
      %v2033 = vpop.f32.mrb[0].mxu0
      %2034 = vmatprep.mubr.bf16.mxu0 0
      %2035 = vmatmul.mubr.bf16.gmra.mrb[0].mxu0 %v1882
      %v2036 = vpop.f32.mrb[0].mxu0
      %v2037 = vadd.f32 0.0, %v2036
      %v2038 = vpop.f32.mrb[0].mxu0
      %v2039 = vpop.f32.mrb[0].mxu0
      %v2040 = vadd.f32 0.0, %v2039
      %v2041 = vpop.f32.mrb[0].mxu0
      %2042 = vmatprep.mubr.bf16.mxu0 0
      %2043 = vmatmul.mubr.bf16.gmra.mrb[0].mxu0 %v1885
      %v2044 = vpop.f32.mrb[0].mxu0
      %v2045 = vadd.f32 0.0, %v2044
      %v2046 = vpop.f32.mrb[0].mxu0
      %v2047 = vpop.f32.mrb[0].mxu0
      %v2048 = vadd.f32 0.0, %v2047
      %v2049 = vpop.f32.mrb[0].mxu0
      %2050 = vdwg.mxu0
      %v2051 = vadd.f32 %v1757, %v1925
      %v2052 = vadd.f32 %v1758, %v1928
      %v2053 = vadd.f32 %v1759, %v1933
      %v2054 = vadd.f32 %v1760, %v1936
      %v2055 = vadd.f32 %v1761, %v1941
      %v2056 = vadd.f32 %v1762, %v1944
      %v2057 = vadd.f32 %v1763, %v1949
      %v2058 = vadd.f32 %v1764, %v1952
      %v2059 = vadd.f32 %v1765, %v1957
      %v2060 = vadd.f32 %v1766, %v1960
      %v2061 = vadd.f32 %v1767, %v1965
      %v2062 = vadd.f32 %v1768, %v1968
      %v2063 = vadd.f32 %v1769, %v1973
      %v2064 = vadd.f32 %v1770, %v1976
      %v2065 = vadd.f32 %v1771, %v1981
      %v2066 = vadd.f32 %v1772, %v1984
      %v2067 = vadd.f32 %v1773, %v1989
      %v2068 = vadd.f32 %v1774, %v1992
      %v2069 = vadd.f32 %v1775, %v1997
      %v2070 = vadd.f32 %v1776, %v2000
      %v2071 = vadd.f32 %v1777, %v2005
      %v2072 = vadd.f32 %v1778, %v2008
      %v2073 = vadd.f32 %v1779, %v2013
      %v2074 = vadd.f32 %v1780, %v2016
      %v2075 = vadd.f32 %v1781, %v2021
      %v2076 = vadd.f32 %v1782, %v2024
      %v2077 = vadd.f32 %v1783, %v2029
      %v2078 = vadd.f32 %v1784, %v2032
      %v2079 = vadd.f32 %v1785, %v2037
      %v2080 = vadd.f32 %v1786, %v2040
      %v2081 = vadd.f32 %v1787, %v2045
      %v2082 = vadd.f32 %v1788, %v2048
      %s2083 = scalar_lea.vmem [#allocation2], 48
      %v2084 = vld [vmem:[%s2083] sm:$0xff]
      %v2085 = vld [vmem:[%s2083 + $0x8] sm:$0xff]
      %v2086 = vld [vmem:[%s2083 + $0x18] sm:$0xff]
      %v2087 = vld [vmem:[%s2083 + $0x20] sm:$0xff]
      %v2088 = vld [vmem:[%s2083 + $0x30] sm:$0xff]
      %v2089 = vld [vmem:[%s2083 + $0x38] sm:$0xff]
      %v2090 = vld [vmem:[%s2083 + $0x48] sm:$0xff]
      %v2091 = vld [vmem:[%s2083 + $0x50] sm:$0xff]
      %v2092 = vld [vmem:[%s2083 + $0x60] sm:$0xff]
      %v2093 = vld [vmem:[%s2083 + $0x68] sm:$0xff]
      %v2094 = vld [vmem:[%s2083 + $0x78] sm:$0xff]
      %v2095 = vld [vmem:[%s2083 + $0x80] sm:$0xff]
      %v2096 = vld [vmem:[%s2083 + $0x90] sm:$0xff]
      %v2097 = vld [vmem:[%s2083 + $0x98] sm:$0xff]
      %v2098 = vld [vmem:[%s2083 + $0xa8] sm:$0xff]
      %v2099 = vld [vmem:[%s2083 + $0xb0] sm:$0xff]
      %v2100 = vld [vmem:[%s2083 + $0xc0] sm:$0xff]
      %v2101 = vld [vmem:[%s2083 + $0xc8] sm:$0xff]
      %v2102 = vld [vmem:[%s2083 + $0xd8] sm:$0xff]
      %v2103 = vld [vmem:[%s2083 + $0xe0] sm:$0xff]
      %v2104 = vld [vmem:[%s2083 + $0xf0] sm:$0xff]
      %v2105 = vld [vmem:[%s2083 + $0xf8] sm:$0xff]
      %v2106 = vld [vmem:[%s2083 + $0x108] sm:$0xff]
      %v2107 = vld [vmem:[%s2083 + $0x110] sm:$0xff]
      %v2108 = vld [vmem:[%s2083 + $0x120] sm:$0xff]
      %v2109 = vld [vmem:[%s2083 + $0x128] sm:$0xff]
      %v2110 = vld [vmem:[%s2083 + $0x138] sm:$0xff]
      %v2111 = vld [vmem:[%s2083 + $0x140] sm:$0xff]
      %v2112 = vld [vmem:[%s2083 + $0x150] sm:$0xff]
      %v2113 = vld [vmem:[%s2083 + $0x158] sm:$0xff]
      %v2114 = vld [vmem:[%s2083 + $0x168] sm:$0xff]
      %v2115 = vld [vmem:[%s2083 + $0x170] sm:$0xff]
      %v2116 = vpack.c.bf16 %v2085, %v2084
      %v2117 = vpack.c.bf16 %v2087, %v2086
      %v2118 = vpack.c.bf16 %v2089, %v2088
      %v2119 = vpack.c.bf16 %v2091, %v2090
      %v2120 = vpack.c.bf16 %v2093, %v2092
      %v2121 = vpack.c.bf16 %v2095, %v2094
      %v2122 = vpack.c.bf16 %v2097, %v2096
      %v2123 = vpack.c.bf16 %v2099, %v2098
      %v2124 = vpack.c.bf16 %v2101, %v2100
      %v2125 = vpack.c.bf16 %v2103, %v2102
      %v2126 = vpack.c.bf16 %v2105, %v2104
      %v2127 = vpack.c.bf16 %v2107, %v2106
      %v2128 = vpack.c.bf16 %v2109, %v2108
      %v2129 = vpack.c.bf16 %v2111, %v2110
      %v2130 = vpack.c.bf16 %v2113, %v2112
      %v2131 = vpack.c.bf16 %v2115, %v2114
      %s2132 = scalar_lea.vmem %s1, 6
      %v2133 = vld [vmem:[%s2132] sm:$0x1]
      %v2135 = vsel %vm258, %v2116, 0
      %v2138 = vsel %vm258, %v2117, 0
      %v2141 = vsel %vm258, %v2118, 0
      %v2144 = vsel %vm258, %v2119, 0
      %v2147 = vsel %vm258, %v2120, 0
      %v2150 = vsel %vm258, %v2121, 0
      %v2153 = vsel %vm258, %v2122, 0
      %v2156 = vsel %vm258, %v2123, 0
      %v2159 = vsel %vm258, %v2124, 0
      %v2162 = vsel %vm258, %v2125, 0
      %v2165 = vsel %vm258, %v2126, 0
      %v2168 = vsel %vm258, %v2127, 0
      %v2171 = vsel %vm258, %v2128, 0
      %v2174 = vsel %vm258, %v2129, 0
      %v2177 = vsel %vm258, %v2130, 0
      %v2180 = vsel %vm258, %v2131, 0
      %v2183 = vsel %vm530, %v2133, 0
      %2185 = vmatprep.subr.bf16.mxu0 0
      %2186 = vmatpush1.bf16.msra.mxu0 %v2183
      %2187 = vmatprep.subr.bf16.mxu0 0
      %2188 = vmatpush1.bf16.msra.mxu0 0
      %2189 = vmatprep.subr.bf16.mxu0 0
      %2190 = vmatpush1.bf16.msra.mxu0 0
      %2191 = vmatprep.subr.bf16.mxu0 0
      %2192 = vmatpush1.bf16.msra.mxu0 0
      %2193 = vmatprep.subr.bf16.mxu0 0
      %2194 = vmatpush1.bf16.msra.mxu0 0
      %2195 = vmatprep.subr.bf16.mxu0 0
      %2196 = vmatpush1.bf16.msra.mxu0 0
      %2197 = vmatprep.subr.bf16.mxu0 0
      %2198 = vmatpush1.bf16.msra.mxu0 0
      %2199 = vmatprep.subr.bf16.mxu0 0
      %2200 = vmatpush1.bf16.msra.mxu0 0
      %2201 = vmatprep.subr.bf16.mxu0 0
      %2202 = vmatpush1.bf16.msra.mxu0 0
      %2203 = vmatprep.subr.bf16.mxu0 0
      %2204 = vmatpush1.bf16.msra.mxu0 0
      %2205 = vmatprep.subr.bf16.mxu0 0
      %2206 = vmatpush1.bf16.msra.mxu0 0
      %2207 = vmatprep.subr.bf16.mxu0 0
      %2208 = vmatpush1.bf16.msra.mxu0 0
      %2209 = vmatprep.subr.bf16.mxu0 0
      %2210 = vmatpush1.bf16.msra.mxu0 0
      %2211 = vmatprep.subr.bf16.mxu0 0
      %2212 = vmatpush1.bf16.msra.mxu0 0
      %2213 = vmatprep.subr.bf16.mxu0 0
      %2214 = vmatpush1.bf16.msra.mxu0 0
      %2215 = vmatprep.subr.bf16.mxu0 0
      %2216 = vmatpush1.bf16.msra.mxu0 0
      %2217 = vmatprep.mubr.bf16.mxu0 0
      %2218 = vmatmul.mubr.bf16.gmra.mrb[0].mxu0 %v2135
      %v2219 = vpop.f32.mrb[0].mxu0
      %v2220 = vadd.f32 0.0, %v2219
      %v2221 = vpop.f32.mrb[0].mxu0
      %v2222 = vpop.f32.mrb[0].mxu0
      %v2223 = vadd.f32 0.0, %v2222
      %v2224 = vpop.f32.mrb[0].mxu0
      %2225 = vmatprep.mubr.bf16.mxu0 0
      %2226 = vmatmul.mubr.bf16.gmra.mrb[0].mxu0 %v2138
      %v2227 = vpop.f32.mrb[0].mxu0
      %v2228 = vadd.f32 0.0, %v2227
      %v2229 = vpop.f32.mrb[0].mxu0
      %v2230 = vpop.f32.mrb[0].mxu0
      %v2231 = vadd.f32 0.0, %v2230
      %v2232 = vpop.f32.mrb[0].mxu0
      %2233 = vmatprep.mubr.bf16.mxu0 0
      %2234 = vmatmul.mubr.bf16.gmra.mrb[0].mxu0 %v2141
      %v2235 = vpop.f32.mrb[0].mxu0
      %v2236 = vadd.f32 0.0, %v2235
      %v2237 = vpop.f32.mrb[0].mxu0
      %v2238 = vpop.f32.mrb[0].mxu0
      %v2239 = vadd.f32 0.0, %v2238
      %v2240 = vpop.f32.mrb[0].mxu0
      %2241 = vmatprep.mubr.bf16.mxu0 0
      %2242 = vmatmul.mubr.bf16.gmra.mrb[0].mxu0 %v2144
      %v2243 = vpop.f32.mrb[0].mxu0
      %v2244 = vadd.f32 0.0, %v2243
      %v2245 = vpop.f32.mrb[0].mxu0
      %v2246 = vpop.f32.mrb[0].mxu0
      %v2247 = vadd.f32 0.0, %v2246
      %v2248 = vpop.f32.mrb[0].mxu0
      %2249 = vmatprep.mubr.bf16.mxu0 0
      %2250 = vmatmul.mubr.bf16.gmra.mrb[0].mxu0 %v2147
      %v2251 = vpop.f32.mrb[0].mxu0
      %v2252 = vadd.f32 0.0, %v2251
      %v2253 = vpop.f32.mrb[0].mxu0
      %v2254 = vpop.f32.mrb[0].mxu0
      %v2255 = vadd.f32 0.0, %v2254
      %v2256 = vpop.f32.mrb[0].mxu0
      %2257 = vmatprep.mubr.bf16.mxu0 0
      %2258 = vmatmul.mubr.bf16.gmra.mrb[0].mxu0 %v2150
      %v2259 = vpop.f32.mrb[0].mxu0
      %v2260 = vadd.f32 0.0, %v2259
      %v2261 = vpop.f32.mrb[0].mxu0
      %v2262 = vpop.f32.mrb[0].mxu0
      %v2263 = vadd.f32 0.0, %v2262
      %v2264 = vpop.f32.mrb[0].mxu0
      %2265 = vmatprep.mubr.bf16.mxu0 0
      %2266 = vmatmul.mubr.bf16.gmra.mrb[0].mxu0 %v2153
      %v2267 = vpop.f32.mrb[0].mxu0
      %v2268 = vadd.f32 0.0, %v2267
      %v2269 = vpop.f32.mrb[0].mxu0
      %v2270 = vpop.f32.mrb[0].mxu0
      %v2271 = vadd.f32 0.0, %v2270
      %v2272 = vpop.f32.mrb[0].mxu0
      %2273 = vmatprep.mubr.bf16.mxu0 0
      %2274 = vmatmul.mubr.bf16.gmra.mrb[0].mxu0 %v2156
      %v2275 = vpop.f32.mrb[0].mxu0
      %v2276 = vadd.f32 0.0, %v2275
      %v2277 = vpop.f32.mrb[0].mxu0
      %v2278 = vpop.f32.mrb[0].mxu0
      %v2279 = vadd.f32 0.0, %v2278
      %v2280 = vpop.f32.mrb[0].mxu0
      %2281 = vmatprep.mubr.bf16.mxu0 0
      %2282 = vmatmul.mubr.bf16.gmra.mrb[0].mxu0 %v2159
      %v2283 = vpop.f32.mrb[0].mxu0
      %v2284 = vadd.f32 0.0, %v2283
      %v2285 = vpop.f32.mrb[0].mxu0
      %v2286 = vpop.f32.mrb[0].mxu0
      %v2287 = vadd.f32 0.0, %v2286
      %v2288 = vpop.f32.mrb[0].mxu0
      %2289 = vmatprep.mubr.bf16.mxu0 0
      %2290 = vmatmul.mubr.bf16.gmra.mrb[0].mxu0 %v2162
      %v2291 = vpop.f32.mrb[0].mxu0
      %v2292 = vadd.f32 0.0, %v2291
      %v2293 = vpop.f32.mrb[0].mxu0
      %v2294 = vpop.f32.mrb[0].mxu0
      %v2295 = vadd.f32 0.0, %v2294
      %v2296 = vpop.f32.mrb[0].mxu0
      %2297 = vmatprep.mubr.bf16.mxu0 0
      %2298 = vmatmul.mubr.bf16.gmra.mrb[0].mxu0 %v2165
      %v2299 = vpop.f32.mrb[0].mxu0
      %v2300 = vadd.f32 0.0, %v2299
      %v2301 = vpop.f32.mrb[0].mxu0
      %v2302 = vpop.f32.mrb[0].mxu0
      %v2303 = vadd.f32 0.0, %v2302
      %v2304 = vpop.f32.mrb[0].mxu0
      %2305 = vmatprep.mubr.bf16.mxu0 0
      %2306 = vmatmul.mubr.bf16.gmra.mrb[0].mxu0 %v2168
      %v2307 = vpop.f32.mrb[0].mxu0
      %v2308 = vadd.f32 0.0, %v2307
      %v2309 = vpop.f32.mrb[0].mxu0
      %v2310 = vpop.f32.mrb[0].mxu0
      %v2311 = vadd.f32 0.0, %v2310
      %v2312 = vpop.f32.mrb[0].mxu0
      %2313 = vmatprep.mubr.bf16.mxu0 0
      %2314 = vmatmul.mubr.bf16.gmra.mrb[0].mxu0 %v2171
      %v2315 = vpop.f32.mrb[0].mxu0
      %v2316 = vadd.f32 0.0, %v2315
      %v2317 = vpop.f32.mrb[0].mxu0
      %v2318 = vpop.f32.mrb[0].mxu0
      %v2319 = vadd.f32 0.0, %v2318
      %v2320 = vpop.f32.mrb[0].mxu0
      %2321 = vmatprep.mubr.bf16.mxu0 0
      %2322 = vmatmul.mubr.bf16.gmra.mrb[0].mxu0 %v2174
      %v2323 = vpop.f32.mrb[0].mxu0
      %v2324 = vadd.f32 0.0, %v2323
      %v2325 = vpop.f32.mrb[0].mxu0
      %v2326 = vpop.f32.mrb[0].mxu0
      %v2327 = vadd.f32 0.0, %v2326
      %v2328 = vpop.f32.mrb[0].mxu0
      %2329 = vmatprep.mubr.bf16.mxu0 0
      %2330 = vmatmul.mubr.bf16.gmra.mrb[0].mxu0 %v2177
      %v2331 = vpop.f32.mrb[0].mxu0
      %v2332 = vadd.f32 0.0, %v2331
      %v2333 = vpop.f32.mrb[0].mxu0
      %v2334 = vpop.f32.mrb[0].mxu0
      %v2335 = vadd.f32 0.0, %v2334
      %v2336 = vpop.f32.mrb[0].mxu0
      %2337 = vmatprep.mubr.bf16.mxu0 0
      %2338 = vmatmul.mubr.bf16.gmra.mrb[0].mxu0 %v2180
      %v2339 = vpop.f32.mrb[0].mxu0
      %v2340 = vadd.f32 0.0, %v2339
      %v2341 = vpop.f32.mrb[0].mxu0
      %v2342 = vpop.f32.mrb[0].mxu0
      %v2343 = vadd.f32 0.0, %v2342
      %v2344 = vpop.f32.mrb[0].mxu0
      %2345 = vdwg.mxu0
      %v2346 = vadd.f32 %v2051, %v2220
      %v2347 = vadd.f32 %v2052, %v2223
      %v2348 = vadd.f32 %v2053, %v2228
      %v2349 = vadd.f32 %v2054, %v2231
      %v2350 = vadd.f32 %v2055, %v2236
      %v2351 = vadd.f32 %v2056, %v2239
      %v2352 = vadd.f32 %v2057, %v2244
      %v2353 = vadd.f32 %v2058, %v2247
      %v2354 = vadd.f32 %v2059, %v2252
      %v2355 = vadd.f32 %v2060, %v2255
      %v2356 = vadd.f32 %v2061, %v2260
      %v2357 = vadd.f32 %v2062, %v2263
      %v2358 = vadd.f32 %v2063, %v2268
      %v2359 = vadd.f32 %v2064, %v2271
      %v2360 = vadd.f32 %v2065, %v2276
      %v2361 = vadd.f32 %v2066, %v2279
      %v2362 = vadd.f32 %v2067, %v2284
      %v2363 = vadd.f32 %v2068, %v2287
      %v2364 = vadd.f32 %v2069, %v2292
      %v2365 = vadd.f32 %v2070, %v2295
      %v2366 = vadd.f32 %v2071, %v2300
      %v2367 = vadd.f32 %v2072, %v2303
      %v2368 = vadd.f32 %v2073, %v2308
      %v2369 = vadd.f32 %v2074, %v2311
      %v2370 = vadd.f32 %v2075, %v2316
      %v2371 = vadd.f32 %v2076, %v2319
      %v2372 = vadd.f32 %v2077, %v2324
      %v2373 = vadd.f32 %v2078, %v2327
      %v2374 = vadd.f32 %v2079, %v2332
      %v2375 = vadd.f32 %v2080, %v2335
      %v2376 = vadd.f32 %v2081, %v2340
      %v2377 = vadd.f32 %v2082, %v2343
      %v2378 = vld [vmem:[%s2083 + $0x1] sm:$0xff]
      %v2379 = vld [vmem:[%s2083 + $0x9] sm:$0xff]
      %v2380 = vld [vmem:[%s2083 + $0x19] sm:$0xff]
      %v2381 = vld [vmem:[%s2083 + $0x21] sm:$0xff]
      %v2382 = vld [vmem:[%s2083 + $0x31] sm:$0xff]
      %v2383 = vld [vmem:[%s2083 + $0x39] sm:$0xff]
      %v2384 = vld [vmem:[%s2083 + $0x49] sm:$0xff]
      %v2385 = vld [vmem:[%s2083 + $0x51] sm:$0xff]
      %v2386 = vld [vmem:[%s2083 + $0x61] sm:$0xff]
      %v2387 = vld [vmem:[%s2083 + $0x69] sm:$0xff]
      %v2388 = vld [vmem:[%s2083 + $0x79] sm:$0xff]
      %v2389 = vld [vmem:[%s2083 + $0x81] sm:$0xff]
      %v2390 = vld [vmem:[%s2083 + $0x91] sm:$0xff]
      %v2391 = vld [vmem:[%s2083 + $0x99] sm:$0xff]
      %v2392 = vld [vmem:[%s2083 + $0xa9] sm:$0xff]
      %v2393 = vld [vmem:[%s2083 + $0xb1] sm:$0xff]
      %v2394 = vld [vmem:[%s2083 + $0xc1] sm:$0xff]
      %v2395 = vld [vmem:[%s2083 + $0xc9] sm:$0xff]
      %v2396 = vld [vmem:[%s2083 + $0xd9] sm:$0xff]
      %v2397 = vld [vmem:[%s2083 + $0xe1] sm:$0xff]
      %v2398 = vld [vmem:[%s2083 + $0xf1] sm:$0xff]
      %v2399 = vld [vmem:[%s2083 + $0xf9] sm:$0xff]
      %v2400 = vld [vmem:[%s2083 + $0x109] sm:$0xff]
      %v2401 = vld [vmem:[%s2083 + $0x111] sm:$0xff]
      %v2402 = vld [vmem:[%s2083 + $0x121] sm:$0xff]
      %v2403 = vld [vmem:[%s2083 + $0x129] sm:$0xff]
      %v2404 = vld [vmem:[%s2083 + $0x139] sm:$0xff]
      %v2405 = vld [vmem:[%s2083 + $0x141] sm:$0xff]
      %v2406 = vld [vmem:[%s2083 + $0x151] sm:$0xff]
      %v2407 = vld [vmem:[%s2083 + $0x159] sm:$0xff]
      %v2408 = vld [vmem:[%s2083 + $0x169] sm:$0xff]
      %v2409 = vld [vmem:[%s2083 + $0x171] sm:$0xff]
      %v2410 = vpack.c.bf16 %v2379, %v2378
      %v2411 = vpack.c.bf16 %v2381, %v2380
      %v2412 = vpack.c.bf16 %v2383, %v2382
      %v2413 = vpack.c.bf16 %v2385, %v2384
      %v2414 = vpack.c.bf16 %v2387, %v2386
      %v2415 = vpack.c.bf16 %v2389, %v2388
      %v2416 = vpack.c.bf16 %v2391, %v2390
      %v2417 = vpack.c.bf16 %v2393, %v2392
      %v2418 = vpack.c.bf16 %v2395, %v2394
      %v2419 = vpack.c.bf16 %v2397, %v2396
      %v2420 = vpack.c.bf16 %v2399, %v2398
      %v2421 = vpack.c.bf16 %v2401, %v2400
      %v2422 = vpack.c.bf16 %v2403, %v2402
      %v2423 = vpack.c.bf16 %v2405, %v2404
      %v2424 = vpack.c.bf16 %v2407, %v2406
      %v2425 = vpack.c.bf16 %v2409, %v2408
      %s2426 = scalar_lea.vmem %s1, 7
      %v2427 = vld [vmem:[%s2426] sm:$0x1]
      %v2429 = vsel %vm258, %v2410, 0
      %v2432 = vsel %vm258, %v2411, 0
      %v2435 = vsel %vm258, %v2412, 0
      %v2438 = vsel %vm258, %v2413, 0
      %v2441 = vsel %vm258, %v2414, 0
      %v2444 = vsel %vm258, %v2415, 0
      %v2447 = vsel %vm258, %v2416, 0
      %v2450 = vsel %vm258, %v2417, 0
      %v2453 = vsel %vm258, %v2418, 0
      %v2456 = vsel %vm258, %v2419, 0
      %v2459 = vsel %vm258, %v2420, 0
      %v2462 = vsel %vm258, %v2421, 0
      %v2465 = vsel %vm258, %v2422, 0
      %v2468 = vsel %vm258, %v2423, 0
      %v2471 = vsel %vm258, %v2424, 0
      %v2474 = vsel %vm258, %v2425, 0
      %v2477 = vsel %vm530, %v2427, 0
      %2479 = vmatprep.subr.bf16.mxu0 0
      %2480 = vmatpush1.bf16.msra.mxu0 %v2477
      %2481 = vmatprep.subr.bf16.mxu0 0
      %2482 = vmatpush1.bf16.msra.mxu0 0
      %2483 = vmatprep.subr.bf16.mxu0 0
      %2484 = vmatpush1.bf16.msra.mxu0 0
      %2485 = vmatprep.subr.bf16.mxu0 0
      %2486 = vmatpush1.bf16.msra.mxu0 0
      %2487 = vmatprep.subr.bf16.mxu0 0
      %2488 = vmatpush1.bf16.msra.mxu0 0
      %2489 = vmatprep.subr.bf16.mxu0 0
      %2490 = vmatpush1.bf16.msra.mxu0 0
      %2491 = vmatprep.subr.bf16.mxu0 0
      %2492 = vmatpush1.bf16.msra.mxu0 0
      %2493 = vmatprep.subr.bf16.mxu0 0
      %2494 = vmatpush1.bf16.msra.mxu0 0
      %2495 = vmatprep.subr.bf16.mxu0 0
      %2496 = vmatpush1.bf16.msra.mxu0 0
      %2497 = vmatprep.subr.bf16.mxu0 0
      %2498 = vmatpush1.bf16.msra.mxu0 0
      %2499 = vmatprep.subr.bf16.mxu0 0
      %2500 = vmatpush1.bf16.msra.mxu0 0
      %2501 = vmatprep.subr.bf16.mxu0 0
      %2502 = vmatpush1.bf16.msra.mxu0 0
      %2503 = vmatprep.subr.bf16.mxu0 0
      %2504 = vmatpush1.bf16.msra.mxu0 0
      %2505 = vmatprep.subr.bf16.mxu0 0
      %2506 = vmatpush1.bf16.msra.mxu0 0
      %2507 = vmatprep.subr.bf16.mxu0 0
      %2508 = vmatpush1.bf16.msra.mxu0 0
      %2509 = vmatprep.subr.bf16.mxu0 0
      %2510 = vmatpush1.bf16.msra.mxu0 0
      %2511 = vmatprep.mubr.bf16.mxu0 0
      %2512 = vmatmul.mubr.bf16.gmra.mrb[0].mxu0 %v2429
      %v2513 = vpop.f32.mrb[0].mxu0
      %v2514 = vadd.f32 0.0, %v2513
      %v2515 = vpop.f32.mrb[0].mxu0
      %v2516 = vpop.f32.mrb[0].mxu0
      %v2517 = vadd.f32 0.0, %v2516
      %v2518 = vpop.f32.mrb[0].mxu0
      %2519 = vmatprep.mubr.bf16.mxu0 0
      %2520 = vmatmul.mubr.bf16.gmra.mrb[0].mxu0 %v2432
      %v2521 = vpop.f32.mrb[0].mxu0
      %v2522 = vadd.f32 0.0, %v2521
      %v2523 = vpop.f32.mrb[0].mxu0
      %v2524 = vpop.f32.mrb[0].mxu0
      %v2525 = vadd.f32 0.0, %v2524
      %v2526 = vpop.f32.mrb[0].mxu0
      %2527 = vmatprep.mubr.bf16.mxu0 0
      %2528 = vmatmul.mubr.bf16.gmra.mrb[0].mxu0 %v2435
      %v2529 = vpop.f32.mrb[0].mxu0
      %v2530 = vadd.f32 0.0, %v2529
      %v2531 = vpop.f32.mrb[0].mxu0
      %v2532 = vpop.f32.mrb[0].mxu0
      %v2533 = vadd.f32 0.0, %v2532
      %v2534 = vpop.f32.mrb[0].mxu0
      %2535 = vmatprep.mubr.bf16.mxu0 0
      %2536 = vmatmul.mubr.bf16.gmra.mrb[0].mxu0 %v2438
      %v2537 = vpop.f32.mrb[0].mxu0
      %v2538 = vadd.f32 0.0, %v2537
      %v2539 = vpop.f32.mrb[0].mxu0
      %v2540 = vpop.f32.mrb[0].mxu0
      %v2541 = vadd.f32 0.0, %v2540
      %v2542 = vpop.f32.mrb[0].mxu0
      %2543 = vmatprep.mubr.bf16.mxu0 0
      %2544 = vmatmul.mubr.bf16.gmra.mrb[0].mxu0 %v2441
      %v2545 = vpop.f32.mrb[0].mxu0
      %v2546 = vadd.f32 0.0, %v2545
      %v2547 = vpop.f32.mrb[0].mxu0
      %v2548 = vpop.f32.mrb[0].mxu0
      %v2549 = vadd.f32 0.0, %v2548
      %v2550 = vpop.f32.mrb[0].mxu0
      %2551 = vmatprep.mubr.bf16.mxu0 0
      %2552 = vmatmul.mubr.bf16.gmra.mrb[0].mxu0 %v2444
      %v2553 = vpop.f32.mrb[0].mxu0
      %v2554 = vadd.f32 0.0, %v2553
      %v2555 = vpop.f32.mrb[0].mxu0
      %v2556 = vpop.f32.mrb[0].mxu0
      %v2557 = vadd.f32 0.0, %v2556
      %v2558 = vpop.f32.mrb[0].mxu0
      %2559 = vmatprep.mubr.bf16.mxu0 0
      %2560 = vmatmul.mubr.bf16.gmra.mrb[0].mxu0 %v2447
      %v2561 = vpop.f32.mrb[0].mxu0
      %v2562 = vadd.f32 0.0, %v2561
      %v2563 = vpop.f32.mrb[0].mxu0
      %v2564 = vpop.f32.mrb[0].mxu0
      %v2565 = vadd.f32 0.0, %v2564
      %v2566 = vpop.f32.mrb[0].mxu0
      %2567 = vmatprep.mubr.bf16.mxu0 0
      %2568 = vmatmul.mubr.bf16.gmra.mrb[0].mxu0 %v2450
      %v2569 = vpop.f32.mrb[0].mxu0
      %v2570 = vadd.f32 0.0, %v2569
      %v2571 = vpop.f32.mrb[0].mxu0
      %v2572 = vpop.f32.mrb[0].mxu0
      %v2573 = vadd.f32 0.0, %v2572
      %v2574 = vpop.f32.mrb[0].mxu0
      %2575 = vmatprep.mubr.bf16.mxu0 0
      %2576 = vmatmul.mubr.bf16.gmra.mrb[0].mxu0 %v2453
      %v2577 = vpop.f32.mrb[0].mxu0
      %v2578 = vadd.f32 0.0, %v2577
      %v2579 = vpop.f32.mrb[0].mxu0
      %v2580 = vpop.f32.mrb[0].mxu0
      %v2581 = vadd.f32 0.0, %v2580
      %v2582 = vpop.f32.mrb[0].mxu0
      %2583 = vmatprep.mubr.bf16.mxu0 0
      %2584 = vmatmul.mubr.bf16.gmra.mrb[0].mxu0 %v2456
      %v2585 = vpop.f32.mrb[0].mxu0
      %v2586 = vadd.f32 0.0, %v2585
      %v2587 = vpop.f32.mrb[0].mxu0
      %v2588 = vpop.f32.mrb[0].mxu0
      %v2589 = vadd.f32 0.0, %v2588
      %v2590 = vpop.f32.mrb[0].mxu0
      %2591 = vmatprep.mubr.bf16.mxu0 0
      %2592 = vmatmul.mubr.bf16.gmra.mrb[0].mxu0 %v2459
      %v2593 = vpop.f32.mrb[0].mxu0
      %v2594 = vadd.f32 0.0, %v2593
      %v2595 = vpop.f32.mrb[0].mxu0
      %v2596 = vpop.f32.mrb[0].mxu0
      %v2597 = vadd.f32 0.0, %v2596
      %v2598 = vpop.f32.mrb[0].mxu0
      %2599 = vmatprep.mubr.bf16.mxu0 0
      %2600 = vmatmul.mubr.bf16.gmra.mrb[0].mxu0 %v2462
      %v2601 = vpop.f32.mrb[0].mxu0
      %v2602 = vadd.f32 0.0, %v2601
      %v2603 = vpop.f32.mrb[0].mxu0
      %v2604 = vpop.f32.mrb[0].mxu0
      %v2605 = vadd.f32 0.0, %v2604
      %v2606 = vpop.f32.mrb[0].mxu0
      %2607 = vmatprep.mubr.bf16.mxu0 0
      %2608 = vmatmul.mubr.bf16.gmra.mrb[0].mxu0 %v2465
      %v2609 = vpop.f32.mrb[0].mxu0
      %v2610 = vadd.f32 0.0, %v2609
      %v2611 = vpop.f32.mrb[0].mxu0
      %v2612 = vpop.f32.mrb[0].mxu0
      %v2613 = vadd.f32 0.0, %v2612
      %v2614 = vpop.f32.mrb[0].mxu0
      %2615 = vmatprep.mubr.bf16.mxu0 0
      %2616 = vmatmul.mubr.bf16.gmra.mrb[0].mxu0 %v2468
      %v2617 = vpop.f32.mrb[0].mxu0
      %v2618 = vadd.f32 0.0, %v2617
      %v2619 = vpop.f32.mrb[0].mxu0
      %v2620 = vpop.f32.mrb[0].mxu0
      %v2621 = vadd.f32 0.0, %v2620
      %v2622 = vpop.f32.mrb[0].mxu0
      %2623 = vmatprep.mubr.bf16.mxu0 0
      %2624 = vmatmul.mubr.bf16.gmra.mrb[0].mxu0 %v2471
      %v2625 = vpop.f32.mrb[0].mxu0
      %v2626 = vadd.f32 0.0, %v2625
      %v2627 = vpop.f32.mrb[0].mxu0
      %v2628 = vpop.f32.mrb[0].mxu0
      %v2629 = vadd.f32 0.0, %v2628
      %v2630 = vpop.f32.mrb[0].mxu0
      %2631 = vmatprep.mubr.bf16.mxu0 0
      %2632 = vmatmul.mubr.bf16.gmra.mrb[0].mxu0 %v2474
      %v2633 = vpop.f32.mrb[0].mxu0
      %v2634 = vadd.f32 0.0, %v2633
      %v2635 = vpop.f32.mrb[0].mxu0
      %v2636 = vpop.f32.mrb[0].mxu0
      %v2637 = vadd.f32 0.0, %v2636
      %v2638 = vpop.f32.mrb[0].mxu0
      %2639 = vdwg.mxu0
      %v2640 = vadd.f32 %v2346, %v2514
      %v2641 = vadd.f32 %v2347, %v2517
      %v2642 = vadd.f32 %v2348, %v2522
      %v2643 = vadd.f32 %v2349, %v2525
      %v2644 = vadd.f32 %v2350, %v2530
      %v2645 = vadd.f32 %v2351, %v2533
      %v2646 = vadd.f32 %v2352, %v2538
      %v2647 = vadd.f32 %v2353, %v2541
      %v2648 = vadd.f32 %v2354, %v2546
      %v2649 = vadd.f32 %v2355, %v2549
      %v2650 = vadd.f32 %v2356, %v2554
      %v2651 = vadd.f32 %v2357, %v2557
      %v2652 = vadd.f32 %v2358, %v2562
      %v2653 = vadd.f32 %v2359, %v2565
      %v2654 = vadd.f32 %v2360, %v2570
      %v2655 = vadd.f32 %v2361, %v2573
      %v2656 = vadd.f32 %v2362, %v2578
      %v2657 = vadd.f32 %v2363, %v2581
      %v2658 = vadd.f32 %v2364, %v2586
      %v2659 = vadd.f32 %v2365, %v2589
      %v2660 = vadd.f32 %v2366, %v2594
      %v2661 = vadd.f32 %v2367, %v2597
      %v2662 = vadd.f32 %v2368, %v2602
      %v2663 = vadd.f32 %v2369, %v2605
      %v2664 = vadd.f32 %v2370, %v2610
      %v2665 = vadd.f32 %v2371, %v2613
      %v2666 = vadd.f32 %v2372, %v2618
      %v2667 = vadd.f32 %v2373, %v2621
      %v2668 = vadd.f32 %v2374, %v2626
      %v2669 = vadd.f32 %v2375, %v2629
      %v2670 = vadd.f32 %v2376, %v2634
      %v2671 = vadd.f32 %v2377, %v2637
      %v2672 = vld [vmem:[%s2083 + $0x2] sm:$0xff]
      %v2673 = vld [vmem:[%s2083 + $0xa] sm:$0xff]
      %v2674 = vld [vmem:[%s2083 + $0x1a] sm:$0xff]
      %v2675 = vld [vmem:[%s2083 + $0x22] sm:$0xff]
      %v2676 = vld [vmem:[%s2083 + $0x32] sm:$0xff]
      %v2677 = vld [vmem:[%s2083 + $0x3a] sm:$0xff]
      %v2678 = vld [vmem:[%s2083 + $0x4a] sm:$0xff]
      %v2679 = vld [vmem:[%s2083 + $0x52] sm:$0xff]
      %v2680 = vld [vmem:[%s2083 + $0x62] sm:$0xff]
      %v2681 = vld [vmem:[%s2083 + $0x6a] sm:$0xff]
      %v2682 = vld [vmem:[%s2083 + $0x7a] sm:$0xff]
      %v2683 = vld [vmem:[%s2083 + $0x82] sm:$0xff]
      %v2684 = vld [vmem:[%s2083 + $0x92] sm:$0xff]
      %v2685 = vld [vmem:[%s2083 + $0x9a] sm:$0xff]
      %v2686 = vld [vmem:[%s2083 + $0xaa] sm:$0xff]
      %v2687 = vld [vmem:[%s2083 + $0xb2] sm:$0xff]
      %v2688 = vld [vmem:[%s2083 + $0xc2] sm:$0xff]
      %v2689 = vld [vmem:[%s2083 + $0xca] sm:$0xff]
      %v2690 = vld [vmem:[%s2083 + $0xda] sm:$0xff]
      %v2691 = vld [vmem:[%s2083 + $0xe2] sm:$0xff]
      %v2692 = vld [vmem:[%s2083 + $0xf2] sm:$0xff]
      %v2693 = vld [vmem:[%s2083 + $0xfa] sm:$0xff]
      %v2694 = vld [vmem:[%s2083 + $0x10a] sm:$0xff]
      %v2695 = vld [vmem:[%s2083 + $0x112] sm:$0xff]
      %v2696 = vld [vmem:[%s2083 + $0x122] sm:$0xff]
      %v2697 = vld [vmem:[%s2083 + $0x12a] sm:$0xff]
      %v2698 = vld [vmem:[%s2083 + $0x13a] sm:$0xff]
      %v2699 = vld [vmem:[%s2083 + $0x142] sm:$0xff]
      %v2700 = vld [vmem:[%s2083 + $0x152] sm:$0xff]
      %v2701 = vld [vmem:[%s2083 + $0x15a] sm:$0xff]
      %v2702 = vld [vmem:[%s2083 + $0x16a] sm:$0xff]
      %v2703 = vld [vmem:[%s2083 + $0x172] sm:$0xff]
      %v2704 = vpack.c.bf16 %v2673, %v2672
      %v2705 = vpack.c.bf16 %v2675, %v2674
      %v2706 = vpack.c.bf16 %v2677, %v2676
      %v2707 = vpack.c.bf16 %v2679, %v2678
      %v2708 = vpack.c.bf16 %v2681, %v2680
      %v2709 = vpack.c.bf16 %v2683, %v2682
      %v2710 = vpack.c.bf16 %v2685, %v2684
      %v2711 = vpack.c.bf16 %v2687, %v2686
      %v2712 = vpack.c.bf16 %v2689, %v2688
      %v2713 = vpack.c.bf16 %v2691, %v2690
      %v2714 = vpack.c.bf16 %v2693, %v2692
      %v2715 = vpack.c.bf16 %v2695, %v2694
      %v2716 = vpack.c.bf16 %v2697, %v2696
      %v2717 = vpack.c.bf16 %v2699, %v2698
      %v2718 = vpack.c.bf16 %v2701, %v2700
      %v2719 = vpack.c.bf16 %v2703, %v2702
      %s2720 = scalar_lea.vmem %s1, 8
      %v2721 = vld [vmem:[%s2720] sm:$0x1]
      %v2723 = vsel %vm258, %v2704, 0
      %v2726 = vsel %vm258, %v2705, 0
      %v2729 = vsel %vm258, %v2706, 0
      %v2732 = vsel %vm258, %v2707, 0
      %v2735 = vsel %vm258, %v2708, 0
      %v2738 = vsel %vm258, %v2709, 0
      %v2741 = vsel %vm258, %v2710, 0
      %v2744 = vsel %vm258, %v2711, 0
      %v2747 = vsel %vm258, %v2712, 0
      %v2750 = vsel %vm258, %v2713, 0
      %v2753 = vsel %vm258, %v2714, 0
      %v2756 = vsel %vm258, %v2715, 0
      %v2759 = vsel %vm258, %v2716, 0
      %v2762 = vsel %vm258, %v2717, 0
      %v2765 = vsel %vm258, %v2718, 0
      %v2768 = vsel %vm258, %v2719, 0
      %v2771 = vsel %vm530, %v2721, 0
      %2773 = vmatprep.subr.bf16.mxu0 0
      %2774 = vmatpush1.bf16.msra.mxu0 %v2771
      %2775 = vmatprep.subr.bf16.mxu0 0
      %2776 = vmatpush1.bf16.msra.mxu0 0
      %2777 = vmatprep.subr.bf16.mxu0 0
      %2778 = vmatpush1.bf16.msra.mxu0 0
      %2779 = vmatprep.subr.bf16.mxu0 0
      %2780 = vmatpush1.bf16.msra.mxu0 0
      %2781 = vmatprep.subr.bf16.mxu0 0
      %2782 = vmatpush1.bf16.msra.mxu0 0
      %2783 = vmatprep.subr.bf16.mxu0 0
      %2784 = vmatpush1.bf16.msra.mxu0 0
      %2785 = vmatprep.subr.bf16.mxu0 0
      %2786 = vmatpush1.bf16.msra.mxu0 0
      %2787 = vmatprep.subr.bf16.mxu0 0
      %2788 = vmatpush1.bf16.msra.mxu0 0
      %2789 = vmatprep.subr.bf16.mxu0 0
      %2790 = vmatpush1.bf16.msra.mxu0 0
      %2791 = vmatprep.subr.bf16.mxu0 0
      %2792 = vmatpush1.bf16.msra.mxu0 0
      %2793 = vmatprep.subr.bf16.mxu0 0
      %2794 = vmatpush1.bf16.msra.mxu0 0
      %2795 = vmatprep.subr.bf16.mxu0 0
      %2796 = vmatpush1.bf16.msra.mxu0 0
      %2797 = vmatprep.subr.bf16.mxu0 0
      %2798 = vmatpush1.bf16.msra.mxu0 0
      %2799 = vmatprep.subr.bf16.mxu0 0
      %2800 = vmatpush1.bf16.msra.mxu0 0
      %2801 = vmatprep.subr.bf16.mxu0 0
      %2802 = vmatpush1.bf16.msra.mxu0 0
      %2803 = vmatprep.subr.bf16.mxu0 0
      %2804 = vmatpush1.bf16.msra.mxu0 0
      %2805 = vmatprep.mubr.bf16.mxu0 0
      %2806 = vmatmul.mubr.bf16.gmra.mrb[0].mxu0 %v2723
      %v2807 = vpop.f32.mrb[0].mxu0
      %v2808 = vadd.f32 0.0, %v2807
      %v2809 = vpop.f32.mrb[0].mxu0
      %v2810 = vpop.f32.mrb[0].mxu0
      %v2811 = vadd.f32 0.0, %v2810
      %v2812 = vpop.f32.mrb[0].mxu0
      %2813 = vmatprep.mubr.bf16.mxu0 0
      %2814 = vmatmul.mubr.bf16.gmra.mrb[0].mxu0 %v2726
      %v2815 = vpop.f32.mrb[0].mxu0
      %v2816 = vadd.f32 0.0, %v2815
      %v2817 = vpop.f32.mrb[0].mxu0
      %v2818 = vpop.f32.mrb[0].mxu0
      %v2819 = vadd.f32 0.0, %v2818
      %v2820 = vpop.f32.mrb[0].mxu0
      %2821 = vmatprep.mubr.bf16.mxu0 0
      %2822 = vmatmul.mubr.bf16.gmra.mrb[0].mxu0 %v2729
      %v2823 = vpop.f32.mrb[0].mxu0
      %v2824 = vadd.f32 0.0, %v2823
      %v2825 = vpop.f32.mrb[0].mxu0
      %v2826 = vpop.f32.mrb[0].mxu0
      %v2827 = vadd.f32 0.0, %v2826
      %v2828 = vpop.f32.mrb[0].mxu0
      %2829 = vmatprep.mubr.bf16.mxu0 0
      %2830 = vmatmul.mubr.bf16.gmra.mrb[0].mxu0 %v2732
      %v2831 = vpop.f32.mrb[0].mxu0
      %v2832 = vadd.f32 0.0, %v2831
      %v2833 = vpop.f32.mrb[0].mxu0
      %v2834 = vpop.f32.mrb[0].mxu0
      %v2835 = vadd.f32 0.0, %v2834
      %v2836 = vpop.f32.mrb[0].mxu0
      %2837 = vmatprep.mubr.bf16.mxu0 0
      %2838 = vmatmul.mubr.bf16.gmra.mrb[0].mxu0 %v2735
      %v2839 = vpop.f32.mrb[0].mxu0
      %v2840 = vadd.f32 0.0, %v2839
      %v2841 = vpop.f32.mrb[0].mxu0
      %v2842 = vpop.f32.mrb[0].mxu0
      %v2843 = vadd.f32 0.0, %v2842
      %v2844 = vpop.f32.mrb[0].mxu0
      %2845 = vmatprep.mubr.bf16.mxu0 0
      %2846 = vmatmul.mubr.bf16.gmra.mrb[0].mxu0 %v2738
      %v2847 = vpop.f32.mrb[0].mxu0
      %v2848 = vadd.f32 0.0, %v2847
      %v2849 = vpop.f32.mrb[0].mxu0
      %v2850 = vpop.f32.mrb[0].mxu0
      %v2851 = vadd.f32 0.0, %v2850
      %v2852 = vpop.f32.mrb[0].mxu0
      %2853 = vmatprep.mubr.bf16.mxu0 0
      %2854 = vmatmul.mubr.bf16.gmra.mrb[0].mxu0 %v2741
      %v2855 = vpop.f32.mrb[0].mxu0
      %v2856 = vadd.f32 0.0, %v2855
      %v2857 = vpop.f32.mrb[0].mxu0
      %v2858 = vpop.f32.mrb[0].mxu0
      %v2859 = vadd.f32 0.0, %v2858
      %v2860 = vpop.f32.mrb[0].mxu0
      %2861 = vmatprep.mubr.bf16.mxu0 0
      %2862 = vmatmul.mubr.bf16.gmra.mrb[0].mxu0 %v2744
      %v2863 = vpop.f32.mrb[0].mxu0
      %v2864 = vadd.f32 0.0, %v2863
      %v2865 = vpop.f32.mrb[0].mxu0
      %v2866 = vpop.f32.mrb[0].mxu0
      %v2867 = vadd.f32 0.0, %v2866
      %v2868 = vpop.f32.mrb[0].mxu0
      %2869 = vmatprep.mubr.bf16.mxu0 0
      %2870 = vmatmul.mubr.bf16.gmra.mrb[0].mxu0 %v2747
      %v2871 = vpop.f32.mrb[0].mxu0
      %v2872 = vadd.f32 0.0, %v2871
      %v2873 = vpop.f32.mrb[0].mxu0
      %v2874 = vpop.f32.mrb[0].mxu0
      %v2875 = vadd.f32 0.0, %v2874
      %v2876 = vpop.f32.mrb[0].mxu0
      %2877 = vmatprep.mubr.bf16.mxu0 0
      %2878 = vmatmul.mubr.bf16.gmra.mrb[0].mxu0 %v2750
      %v2879 = vpop.f32.mrb[0].mxu0
      %v2880 = vadd.f32 0.0, %v2879
      %v2881 = vpop.f32.mrb[0].mxu0
      %v2882 = vpop.f32.mrb[0].mxu0
      %v2883 = vadd.f32 0.0, %v2882
      %v2884 = vpop.f32.mrb[0].mxu0
      %2885 = vmatprep.mubr.bf16.mxu0 0
      %2886 = vmatmul.mubr.bf16.gmra.mrb[0].mxu0 %v2753
      %v2887 = vpop.f32.mrb[0].mxu0
      %v2888 = vadd.f32 0.0, %v2887
      %v2889 = vpop.f32.mrb[0].mxu0
      %v2890 = vpop.f32.mrb[0].mxu0
      %v2891 = vadd.f32 0.0, %v2890
      %v2892 = vpop.f32.mrb[0].mxu0
      %2893 = vmatprep.mubr.bf16.mxu0 0
      %2894 = vmatmul.mubr.bf16.gmra.mrb[0].mxu0 %v2756
      %v2895 = vpop.f32.mrb[0].mxu0
      %v2896 = vadd.f32 0.0, %v2895
      %v2897 = vpop.f32.mrb[0].mxu0
      %v2898 = vpop.f32.mrb[0].mxu0
      %v2899 = vadd.f32 0.0, %v2898
      %v2900 = vpop.f32.mrb[0].mxu0
      %2901 = vmatprep.mubr.bf16.mxu0 0
      %2902 = vmatmul.mubr.bf16.gmra.mrb[0].mxu0 %v2759
      %v2903 = vpop.f32.mrb[0].mxu0
      %v2904 = vadd.f32 0.0, %v2903
      %v2905 = vpop.f32.mrb[0].mxu0
      %v2906 = vpop.f32.mrb[0].mxu0
      %v2907 = vadd.f32 0.0, %v2906
      %v2908 = vpop.f32.mrb[0].mxu0
      %2909 = vmatprep.mubr.bf16.mxu0 0
      %2910 = vmatmul.mubr.bf16.gmra.mrb[0].mxu0 %v2762
      %v2911 = vpop.f32.mrb[0].mxu0
      %v2912 = vadd.f32 0.0, %v2911
      %v2913 = vpop.f32.mrb[0].mxu0
      %v2914 = vpop.f32.mrb[0].mxu0
      %v2915 = vadd.f32 0.0, %v2914
      %v2916 = vpop.f32.mrb[0].mxu0
      %2917 = vmatprep.mubr.bf16.mxu0 0
      %2918 = vmatmul.mubr.bf16.gmra.mrb[0].mxu0 %v2765
      %v2919 = vpop.f32.mrb[0].mxu0
      %v2920 = vadd.f32 0.0, %v2919
      %v2921 = vpop.f32.mrb[0].mxu0
      %v2922 = vpop.f32.mrb[0].mxu0
      %v2923 = vadd.f32 0.0, %v2922
      %v2924 = vpop.f32.mrb[0].mxu0
      %2925 = vmatprep.mubr.bf16.mxu0 0
      %2926 = vmatmul.mubr.bf16.gmra.mrb[0].mxu0 %v2768
      %v2927 = vpop.f32.mrb[0].mxu0
      %v2928 = vadd.f32 0.0, %v2927
      %v2929 = vpop.f32.mrb[0].mxu0
      %v2930 = vpop.f32.mrb[0].mxu0
      %v2931 = vadd.f32 0.0, %v2930
      %v2932 = vpop.f32.mrb[0].mxu0
      %2933 = vdwg.mxu0
      %v2934 = vadd.f32 %v2640, %v2808
      %v2935 = vadd.f32 %v2641, %v2811
      %v2936 = vadd.f32 %v2642, %v2816
      %v2937 = vadd.f32 %v2643, %v2819
      %v2938 = vadd.f32 %v2644, %v2824
      %v2939 = vadd.f32 %v2645, %v2827
      %v2940 = vadd.f32 %v2646, %v2832
      %v2941 = vadd.f32 %v2647, %v2835
      %v2942 = vadd.f32 %v2648, %v2840
      %v2943 = vadd.f32 %v2649, %v2843
      %v2944 = vadd.f32 %v2650, %v2848
      %v2945 = vadd.f32 %v2651, %v2851
      %v2946 = vadd.f32 %v2652, %v2856
      %v2947 = vadd.f32 %v2653, %v2859
      %v2948 = vadd.f32 %v2654, %v2864
      %v2949 = vadd.f32 %v2655, %v2867
      %v2950 = vadd.f32 %v2656, %v2872
      %v2951 = vadd.f32 %v2657, %v2875
      %v2952 = vadd.f32 %v2658, %v2880
      %v2953 = vadd.f32 %v2659, %v2883
      %v2954 = vadd.f32 %v2660, %v2888
      %v2955 = vadd.f32 %v2661, %v2891
      %v2956 = vadd.f32 %v2662, %v2896
      %v2957 = vadd.f32 %v2663, %v2899
      %v2958 = vadd.f32 %v2664, %v2904
      %v2959 = vadd.f32 %v2665, %v2907
      %v2960 = vadd.f32 %v2666, %v2912
      %v2961 = vadd.f32 %v2667, %v2915
      %v2962 = vadd.f32 %v2668, %v2920
      %v2963 = vadd.f32 %v2669, %v2923
      %v2964 = vadd.f32 %v2670, %v2928
      %v2965 = vadd.f32 %v2671, %v2931
      %v2966 = vpack.c.bf16 %v2935, %v2934
      %v2967 = vpack.c.bf16 %v2937, %v2936
      %v2968 = vpack.c.bf16 %v2939, %v2938
      %v2969 = vpack.c.bf16 %v2941, %v2940
      %v2970 = vpack.c.bf16 %v2943, %v2942
      %v2971 = vpack.c.bf16 %v2945, %v2944
      %v2972 = vpack.c.bf16 %v2947, %v2946
      %v2973 = vpack.c.bf16 %v2949, %v2948
      %v2974 = vpack.c.bf16 %v2951, %v2950
      %v2975 = vpack.c.bf16 %v2953, %v2952
      %v2976 = vpack.c.bf16 %v2955, %v2954
      %v2977 = vpack.c.bf16 %v2957, %v2956
      %v2978 = vpack.c.bf16 %v2959, %v2958
      %v2979 = vpack.c.bf16 %v2961, %v2960
      %v2980 = vpack.c.bf16 %v2963, %v2962
      %v2981 = vpack.c.bf16 %v2965, %v2964
      %v2982 = vld [vmem:[%s2] sm:$0x1]
      %v2983 = vpack.c.bf16 %v227, %v226
      %v2984 = vpack.c.bf16 %v229, %v228
      %v2985 = vpack.c.bf16 %v231, %v230
      %v2986 = vpack.c.bf16 %v233, %v232
      %v2987 = vpack.c.bf16 %v235, %v234
      %v2988 = vpack.c.bf16 %v237, %v236
      %v2989 = vpack.c.bf16 %v239, %v238
      %v2990 = vpack.c.bf16 %v241, %v240
      %v2991 = vpack.c.bf16 %v243, %v242
      %v2992 = vpack.c.bf16 %v245, %v244
      %v2993 = vpack.c.bf16 %v247, %v246
      %v2994 = vpack.c.bf16 %v249, %v248
      %v2995 = vpack.c.bf16 %v251, %v250
      %v2996 = vpack.c.bf16 %v253, %v252
      %v2997 = vpack.c.bf16 %v255, %v254
      %v2998 = vpack.c.bf16 %v257, %v256
      %v2999 = vld [vmem:[%s2] sm:$0x2]
      %3016 = vrot.lane.b32.xlu0 %v2983, 126
      %v3017 = vpop.permute.xlu0 %3016
      %3018 = vrot.lane.b32.xlu0 %v2984, 126
      %v3019 = vpop.permute.xlu0 %3018
      %3020 = vrot.lane.b32.xlu0 %v2985, 126
      %v3021 = vpop.permute.xlu0 %3020
      %3022 = vrot.lane.b32.xlu0 %v2986, 126
      %v3023 = vpop.permute.xlu0 %3022
      %3024 = vrot.lane.b32.xlu0 %v2987, 126
      %v3025 = vpop.permute.xlu0 %3024
      %3026 = vrot.lane.b32.xlu0 %v2988, 126
      %v3027 = vpop.permute.xlu0 %3026
      %3028 = vrot.lane.b32.xlu0 %v2989, 126
      %v3029 = vpop.permute.xlu0 %3028
      %3030 = vrot.lane.b32.xlu0 %v2990, 126
      %v3031 = vpop.permute.xlu0 %3030
      %3032 = vrot.lane.b32.xlu0 %v2991, 126
      %v3033 = vpop.permute.xlu0 %3032
      %3034 = vrot.lane.b32.xlu0 %v2992, 126
      %v3035 = vpop.permute.xlu0 %3034
      %3036 = vrot.lane.b32.xlu0 %v2993, 126
      %v3037 = vpop.permute.xlu0 %3036
      %3038 = vrot.lane.b32.xlu0 %v2994, 126
      %v3039 = vpop.permute.xlu0 %3038
      %3040 = vrot.lane.b32.xlu0 %v2995, 126
      %v3041 = vpop.permute.xlu0 %3040
      %3042 = vrot.lane.b32.xlu0 %v2996, 126
      %v3043 = vpop.permute.xlu0 %3042
      %3044 = vrot.lane.b32.xlu0 %v2997, 126
      %v3045 = vpop.permute.xlu0 %3044
      %3046 = vrot.lane.b32.xlu0 %v2998, 126
      %v3047 = vpop.permute.xlu0 %3046
      %v3050 = vunpack.c.l.s4 1983009808
      %v3051 = vunpack.c.0.s8 %v3050
      %v3052 = vlaneseq
      %v3053 = vshrl.u32 %v3052, 7
      %v3054 = vsub.s32 %v3051, %v3053
      %v3055 = vrot.slane %v2999, %v3054
      %v3056 = vrot.slane %v3055, 1
      %v3058 = vsel %vm258, %v3017, 0
      %v3061 = vsel %vm258, %v3019, 0
      %v3064 = vsel %vm258, %v3021, 0
      %v3067 = vsel %vm258, %v3023, 0
      %v3070 = vsel %vm258, %v3025, 0
      %v3073 = vsel %vm258, %v3027, 0
      %v3076 = vsel %vm258, %v3029, 0
      %v3079 = vsel %vm258, %v3031, 0
      %v3082 = vsel %vm258, %v3033, 0
      %v3085 = vsel %vm258, %v3035, 0
      %v3088 = vsel %vm258, %v3037, 0
      %v3091 = vsel %vm258, %v3039, 0
      %v3094 = vsel %vm258, %v3041, 0
      %v3097 = vsel %vm258, %v3043, 0
      %v3100 = vsel %vm258, %v3045, 0
      %v3103 = vsel %vm258, %v3047, 0
      %v3106 = vsel %vm530, %v3056, 0
      %3108 = vmatprep.subr.bf16.mxu0 0
      %3109 = vmatpush1.bf16.msra.mxu0 %v3106
      %3110 = vmatprep.subr.bf16.mxu0 0
      %3111 = vmatpush1.bf16.msra.mxu0 0
      %3112 = vmatprep.subr.bf16.mxu0 0
      %3113 = vmatpush1.bf16.msra.mxu0 0
      %3114 = vmatprep.subr.bf16.mxu0 0
      %3115 = vmatpush1.bf16.msra.mxu0 0
      %3116 = vmatprep.subr.bf16.mxu0 0
      %3117 = vmatpush1.bf16.msra.mxu0 0
      %3118 = vmatprep.subr.bf16.mxu0 0
      %3119 = vmatpush1.bf16.msra.mxu0 0
      %3120 = vmatprep.subr.bf16.mxu0 0
      %3121 = vmatpush1.bf16.msra.mxu0 0
      %3122 = vmatprep.subr.bf16.mxu0 0
      %3123 = vmatpush1.bf16.msra.mxu0 0
      %3124 = vmatprep.subr.bf16.mxu0 0
      %3125 = vmatpush1.bf16.msra.mxu0 0
      %3126 = vmatprep.subr.bf16.mxu0 0
      %3127 = vmatpush1.bf16.msra.mxu0 0
      %3128 = vmatprep.subr.bf16.mxu0 0
      %3129 = vmatpush1.bf16.msra.mxu0 0
      %3130 = vmatprep.subr.bf16.mxu0 0
      %3131 = vmatpush1.bf16.msra.mxu0 0
      %3132 = vmatprep.subr.bf16.mxu0 0
      %3133 = vmatpush1.bf16.msra.mxu0 0
      %3134 = vmatprep.subr.bf16.mxu0 0
      %3135 = vmatpush1.bf16.msra.mxu0 0
      %3136 = vmatprep.subr.bf16.mxu0 0
      %3137 = vmatpush1.bf16.msra.mxu0 0
      %3138 = vmatprep.subr.bf16.mxu0 0
      %3139 = vmatpush1.bf16.msra.mxu0 0
      %3140 = vmatprep.mubr.bf16.mxu0 0
      %3141 = vmatmul.mubr.bf16.gmra.mrb[0].mxu0 %v3058
      %v3142 = vpop.f32.mrb[0].mxu0
      %v3143 = vadd.f32 0.0, %v3142
      %v3144 = vpop.f32.mrb[0].mxu0
      %v3145 = vpop.f32.mrb[0].mxu0
      %v3146 = vadd.f32 0.0, %v3145
      %v3147 = vpop.f32.mrb[0].mxu0
      %3148 = vmatprep.mubr.bf16.mxu0 0
      %3149 = vmatmul.mubr.bf16.gmra.mrb[0].mxu0 %v3061
      %v3150 = vpop.f32.mrb[0].mxu0
      %v3151 = vadd.f32 0.0, %v3150
      %v3152 = vpop.f32.mrb[0].mxu0
      %v3153 = vpop.f32.mrb[0].mxu0
      %v3154 = vadd.f32 0.0, %v3153
      %v3155 = vpop.f32.mrb[0].mxu0
      %3156 = vmatprep.mubr.bf16.mxu0 0
      %3157 = vmatmul.mubr.bf16.gmra.mrb[0].mxu0 %v3064
      %v3158 = vpop.f32.mrb[0].mxu0
      %v3159 = vadd.f32 0.0, %v3158
      %v3160 = vpop.f32.mrb[0].mxu0
      %v3161 = vpop.f32.mrb[0].mxu0
      %v3162 = vadd.f32 0.0, %v3161
      %v3163 = vpop.f32.mrb[0].mxu0
      %3164 = vmatprep.mubr.bf16.mxu0 0
      %3165 = vmatmul.mubr.bf16.gmra.mrb[0].mxu0 %v3067
      %v3166 = vpop.f32.mrb[0].mxu0
      %v3167 = vadd.f32 0.0, %v3166
      %v3168 = vpop.f32.mrb[0].mxu0
      %v3169 = vpop.f32.mrb[0].mxu0
      %v3170 = vadd.f32 0.0, %v3169
      %v3171 = vpop.f32.mrb[0].mxu0
      %3172 = vmatprep.mubr.bf16.mxu0 0
      %3173 = vmatmul.mubr.bf16.gmra.mrb[0].mxu0 %v3070
      %v3174 = vpop.f32.mrb[0].mxu0
      %v3175 = vadd.f32 0.0, %v3174
      %v3176 = vpop.f32.mrb[0].mxu0
      %v3177 = vpop.f32.mrb[0].mxu0
      %v3178 = vadd.f32 0.0, %v3177
      %v3179 = vpop.f32.mrb[0].mxu0
      %3180 = vmatprep.mubr.bf16.mxu0 0
      %3181 = vmatmul.mubr.bf16.gmra.mrb[0].mxu0 %v3073
      %v3182 = vpop.f32.mrb[0].mxu0
      %v3183 = vadd.f32 0.0, %v3182
      %v3184 = vpop.f32.mrb[0].mxu0
      %v3185 = vpop.f32.mrb[0].mxu0
      %v3186 = vadd.f32 0.0, %v3185
      %v3187 = vpop.f32.mrb[0].mxu0
      %3188 = vmatprep.mubr.bf16.mxu0 0
      %3189 = vmatmul.mubr.bf16.gmra.mrb[0].mxu0 %v3076
      %v3190 = vpop.f32.mrb[0].mxu0
      %v3191 = vadd.f32 0.0, %v3190
      %v3192 = vpop.f32.mrb[0].mxu0
      %v3193 = vpop.f32.mrb[0].mxu0
      %v3194 = vadd.f32 0.0, %v3193
      %v3195 = vpop.f32.mrb[0].mxu0
      %3196 = vmatprep.mubr.bf16.mxu0 0
      %3197 = vmatmul.mubr.bf16.gmra.mrb[0].mxu0 %v3079
      %v3198 = vpop.f32.mrb[0].mxu0
      %v3199 = vadd.f32 0.0, %v3198
      %v3200 = vpop.f32.mrb[0].mxu0
      %v3201 = vpop.f32.mrb[0].mxu0
      %v3202 = vadd.f32 0.0, %v3201
      %v3203 = vpop.f32.mrb[0].mxu0
      %3204 = vmatprep.mubr.bf16.mxu0 0
      %3205 = vmatmul.mubr.bf16.gmra.mrb[0].mxu0 %v3082
      %v3206 = vpop.f32.mrb[0].mxu0
      %v3207 = vadd.f32 0.0, %v3206
      %v3208 = vpop.f32.mrb[0].mxu0
      %v3209 = vpop.f32.mrb[0].mxu0
      %v3210 = vadd.f32 0.0, %v3209
      %v3211 = vpop.f32.mrb[0].mxu0
      %3212 = vmatprep.mubr.bf16.mxu0 0
      %3213 = vmatmul.mubr.bf16.gmra.mrb[0].mxu0 %v3085
      %v3214 = vpop.f32.mrb[0].mxu0
      %v3215 = vadd.f32 0.0, %v3214
      %v3216 = vpop.f32.mrb[0].mxu0
      %v3217 = vpop.f32.mrb[0].mxu0
      %v3218 = vadd.f32 0.0, %v3217
      %v3219 = vpop.f32.mrb[0].mxu0
      %3220 = vmatprep.mubr.bf16.mxu0 0
      %3221 = vmatmul.mubr.bf16.gmra.mrb[0].mxu0 %v3088
      %v3222 = vpop.f32.mrb[0].mxu0
      %v3223 = vadd.f32 0.0, %v3222
      %v3224 = vpop.f32.mrb[0].mxu0
      %v3225 = vpop.f32.mrb[0].mxu0
      %v3226 = vadd.f32 0.0, %v3225
      %v3227 = vpop.f32.mrb[0].mxu0
      %3228 = vmatprep.mubr.bf16.mxu0 0
      %3229 = vmatmul.mubr.bf16.gmra.mrb[0].mxu0 %v3091
      %v3230 = vpop.f32.mrb[0].mxu0
      %v3231 = vadd.f32 0.0, %v3230
      %v3232 = vpop.f32.mrb[0].mxu0
      %v3233 = vpop.f32.mrb[0].mxu0
      %v3234 = vadd.f32 0.0, %v3233
      %v3235 = vpop.f32.mrb[0].mxu0
      %3236 = vmatprep.mubr.bf16.mxu0 0
      %3237 = vmatmul.mubr.bf16.gmra.mrb[0].mxu0 %v3094
      %v3238 = vpop.f32.mrb[0].mxu0
      %v3239 = vadd.f32 0.0, %v3238
      %v3240 = vpop.f32.mrb[0].mxu0
      %v3241 = vpop.f32.mrb[0].mxu0
      %v3242 = vadd.f32 0.0, %v3241
      %v3243 = vpop.f32.mrb[0].mxu0
      %3244 = vmatprep.mubr.bf16.mxu0 0
      %3245 = vmatmul.mubr.bf16.gmra.mrb[0].mxu0 %v3097
      %v3246 = vpop.f32.mrb[0].mxu0
      %v3247 = vadd.f32 0.0, %v3246
      %v3248 = vpop.f32.mrb[0].mxu0
      %v3249 = vpop.f32.mrb[0].mxu0
      %v3250 = vadd.f32 0.0, %v3249
      %v3251 = vpop.f32.mrb[0].mxu0
      %3252 = vmatprep.mubr.bf16.mxu0 0
      %3253 = vmatmul.mubr.bf16.gmra.mrb[0].mxu0 %v3100
      %v3254 = vpop.f32.mrb[0].mxu0
      %v3255 = vadd.f32 0.0, %v3254
      %v3256 = vpop.f32.mrb[0].mxu0
      %v3257 = vpop.f32.mrb[0].mxu0
      %v3258 = vadd.f32 0.0, %v3257
      %v3259 = vpop.f32.mrb[0].mxu0
      %3260 = vmatprep.mubr.bf16.mxu0 0
      %3261 = vmatmul.mubr.bf16.gmra.mrb[0].mxu0 %v3103
      %v3262 = vpop.f32.mrb[0].mxu0
      %v3263 = vadd.f32 0.0, %v3262
      %v3264 = vpop.f32.mrb[0].mxu0
      %v3265 = vpop.f32.mrb[0].mxu0
      %v3266 = vadd.f32 0.0, %v3265
      %v3267 = vpop.f32.mrb[0].mxu0
      %3268 = vdwg.mxu0
      %v3270 = vsel %vm258, %v2966, 0
      %v3273 = vsel %vm258, %v2967, 0
      %v3276 = vsel %vm258, %v2968, 0
      %v3279 = vsel %vm258, %v2969, 0
      %v3282 = vsel %vm258, %v2970, 0
      %v3285 = vsel %vm258, %v2971, 0
      %v3288 = vsel %vm258, %v2972, 0
      %v3291 = vsel %vm258, %v2973, 0
      %v3294 = vsel %vm258, %v2974, 0
      %v3297 = vsel %vm258, %v2975, 0
      %v3300 = vsel %vm258, %v2976, 0
      %v3303 = vsel %vm258, %v2977, 0
      %v3306 = vsel %vm258, %v2978, 0
      %v3309 = vsel %vm258, %v2979, 0
      %v3312 = vsel %vm258, %v2980, 0
      %v3315 = vsel %vm258, %v2981, 0
      %v3318 = vsel %vm530, %v2982, 0
      %3320 = vmatprep.subr.bf16.mxu0 0
      %3321 = vmatpush1.bf16.msra.mxu0 %v3318
      %3322 = vmatprep.subr.bf16.mxu0 0
      %3323 = vmatpush1.bf16.msra.mxu0 0
      %3324 = vmatprep.subr.bf16.mxu0 0
      %3325 = vmatpush1.bf16.msra.mxu0 0
      %3326 = vmatprep.subr.bf16.mxu0 0
      %3327 = vmatpush1.bf16.msra.mxu0 0
      %3328 = vmatprep.subr.bf16.mxu0 0
      %3329 = vmatpush1.bf16.msra.mxu0 0
      %3330 = vmatprep.subr.bf16.mxu0 0
      %3331 = vmatpush1.bf16.msra.mxu0 0
      %3332 = vmatprep.subr.bf16.mxu0 0
      %3333 = vmatpush1.bf16.msra.mxu0 0
      %3334 = vmatprep.subr.bf16.mxu0 0
      %3335 = vmatpush1.bf16.msra.mxu0 0
      %3336 = vmatprep.subr.bf16.mxu0 0
      %3337 = vmatpush1.bf16.msra.mxu0 0
      %3338 = vmatprep.subr.bf16.mxu0 0
      %3339 = vmatpush1.bf16.msra.mxu0 0
      %3340 = vmatprep.subr.bf16.mxu0 0
      %3341 = vmatpush1.bf16.msra.mxu0 0
      %3342 = vmatprep.subr.bf16.mxu0 0
      %3343 = vmatpush1.bf16.msra.mxu0 0
      %3344 = vmatprep.subr.bf16.mxu0 0
      %3345 = vmatpush1.bf16.msra.mxu0 0
      %3346 = vmatprep.subr.bf16.mxu0 0
      %3347 = vmatpush1.bf16.msra.mxu0 0
      %3348 = vmatprep.subr.bf16.mxu0 0
      %3349 = vmatpush1.bf16.msra.mxu0 0
      %3350 = vmatprep.subr.bf16.mxu0 0
      %3351 = vmatpush1.bf16.msra.mxu0 0
      %3352 = vmatprep.mubr.bf16.mxu0 0
      %3353 = vmatmul.mubr.bf16.gmra.mrb[0].mxu0 %v3270
      %v3354 = vpop.f32.mrb[0].mxu0
      %v3355 = vadd.f32 %v3143, %v3354
      %v3356 = vpop.f32.mrb[0].mxu0
      %v3357 = vpop.f32.mrb[0].mxu0
      %v3358 = vadd.f32 %v3146, %v3357
      %v3359 = vpop.f32.mrb[0].mxu0
      %3360 = vmatprep.mubr.bf16.mxu0 0
      %3361 = vmatmul.mubr.bf16.gmra.mrb[0].mxu0 %v3273
      %v3362 = vpop.f32.mrb[0].mxu0
      %v3363 = vadd.f32 %v3151, %v3362
      %v3364 = vpop.f32.mrb[0].mxu0
      %v3365 = vpop.f32.mrb[0].mxu0
      %v3366 = vadd.f32 %v3154, %v3365
      %v3367 = vpop.f32.mrb[0].mxu0
      %3368 = vmatprep.mubr.bf16.mxu0 0
      %3369 = vmatmul.mubr.bf16.gmra.mrb[0].mxu0 %v3276
      %v3370 = vpop.f32.mrb[0].mxu0
      %v3371 = vadd.f32 %v3159, %v3370
      %v3372 = vpop.f32.mrb[0].mxu0
      %v3373 = vpop.f32.mrb[0].mxu0
      %v3374 = vadd.f32 %v3162, %v3373
      %v3375 = vpop.f32.mrb[0].mxu0
      %3376 = vmatprep.mubr.bf16.mxu0 0
      %3377 = vmatmul.mubr.bf16.gmra.mrb[0].mxu0 %v3279
      %v3378 = vpop.f32.mrb[0].mxu0
      %v3379 = vadd.f32 %v3167, %v3378
      %v3380 = vpop.f32.mrb[0].mxu0
      %v3381 = vpop.f32.mrb[0].mxu0
      %v3382 = vadd.f32 %v3170, %v3381
      %v3383 = vpop.f32.mrb[0].mxu0
      %3384 = vmatprep.mubr.bf16.mxu0 0
      %3385 = vmatmul.mubr.bf16.gmra.mrb[0].mxu0 %v3282
      %v3386 = vpop.f32.mrb[0].mxu0
      %v3387 = vadd.f32 %v3175, %v3386
      %v3388 = vpop.f32.mrb[0].mxu0
      %v3389 = vpop.f32.mrb[0].mxu0
      %v3390 = vadd.f32 %v3178, %v3389
      %v3391 = vpop.f32.mrb[0].mxu0
      %3392 = vmatprep.mubr.bf16.mxu0 0
      %3393 = vmatmul.mubr.bf16.gmra.mrb[0].mxu0 %v3285
      %v3394 = vpop.f32.mrb[0].mxu0
      %v3395 = vadd.f32 %v3183, %v3394
      %v3396 = vpop.f32.mrb[0].mxu0
      %v3397 = vpop.f32.mrb[0].mxu0
      %v3398 = vadd.f32 %v3186, %v3397
      %v3399 = vpop.f32.mrb[0].mxu0
      %3400 = vmatprep.mubr.bf16.mxu0 0
      %3401 = vmatmul.mubr.bf16.gmra.mrb[0].mxu0 %v3288
      %v3402 = vpop.f32.mrb[0].mxu0
      %v3403 = vadd.f32 %v3191, %v3402
      %v3404 = vpop.f32.mrb[0].mxu0
      %v3405 = vpop.f32.mrb[0].mxu0
      %v3406 = vadd.f32 %v3194, %v3405
      %v3407 = vpop.f32.mrb[0].mxu0
      %3408 = vmatprep.mubr.bf16.mxu0 0
      %3409 = vmatmul.mubr.bf16.gmra.mrb[0].mxu0 %v3291
      %v3410 = vpop.f32.mrb[0].mxu0
      %v3411 = vadd.f32 %v3199, %v3410
      %v3412 = vpop.f32.mrb[0].mxu0
      %v3413 = vpop.f32.mrb[0].mxu0
      %v3414 = vadd.f32 %v3202, %v3413
      %v3415 = vpop.f32.mrb[0].mxu0
      %3416 = vmatprep.mubr.bf16.mxu0 0
      %3417 = vmatmul.mubr.bf16.gmra.mrb[0].mxu0 %v3294
      %v3418 = vpop.f32.mrb[0].mxu0
      %v3419 = vadd.f32 %v3207, %v3418
      %v3420 = vpop.f32.mrb[0].mxu0
      %v3421 = vpop.f32.mrb[0].mxu0
      %v3422 = vadd.f32 %v3210, %v3421
      %v3423 = vpop.f32.mrb[0].mxu0
      %3424 = vmatprep.mubr.bf16.mxu0 0
      %3425 = vmatmul.mubr.bf16.gmra.mrb[0].mxu0 %v3297
      %v3426 = vpop.f32.mrb[0].mxu0
      %v3427 = vadd.f32 %v3215, %v3426
      %v3428 = vpop.f32.mrb[0].mxu0
      %v3429 = vpop.f32.mrb[0].mxu0
      %v3430 = vadd.f32 %v3218, %v3429
      %v3431 = vpop.f32.mrb[0].mxu0
      %3432 = vmatprep.mubr.bf16.mxu0 0
      %3433 = vmatmul.mubr.bf16.gmra.mrb[0].mxu0 %v3300
      %v3434 = vpop.f32.mrb[0].mxu0
      %v3435 = vadd.f32 %v3223, %v3434
      %v3436 = vpop.f32.mrb[0].mxu0
      %v3437 = vpop.f32.mrb[0].mxu0
      %v3438 = vadd.f32 %v3226, %v3437
      %v3439 = vpop.f32.mrb[0].mxu0
      %3440 = vmatprep.mubr.bf16.mxu0 0
      %3441 = vmatmul.mubr.bf16.gmra.mrb[0].mxu0 %v3303
      %v3442 = vpop.f32.mrb[0].mxu0
      %v3443 = vadd.f32 %v3231, %v3442
      %v3444 = vpop.f32.mrb[0].mxu0
      %v3445 = vpop.f32.mrb[0].mxu0
      %v3446 = vadd.f32 %v3234, %v3445
      %v3447 = vpop.f32.mrb[0].mxu0
      %3448 = vmatprep.mubr.bf16.mxu0 0
      %3449 = vmatmul.mubr.bf16.gmra.mrb[0].mxu0 %v3306
      %v3450 = vpop.f32.mrb[0].mxu0
      %v3451 = vadd.f32 %v3239, %v3450
      %v3452 = vpop.f32.mrb[0].mxu0
      %v3453 = vpop.f32.mrb[0].mxu0
      %v3454 = vadd.f32 %v3242, %v3453
      %v3455 = vpop.f32.mrb[0].mxu0
      %3456 = vmatprep.mubr.bf16.mxu0 0
      %3457 = vmatmul.mubr.bf16.gmra.mrb[0].mxu0 %v3309
      %v3458 = vpop.f32.mrb[0].mxu0
      %v3459 = vadd.f32 %v3247, %v3458
      %v3460 = vpop.f32.mrb[0].mxu0
      %v3461 = vpop.f32.mrb[0].mxu0
      %v3462 = vadd.f32 %v3250, %v3461
      %v3463 = vpop.f32.mrb[0].mxu0
      %3464 = vmatprep.mubr.bf16.mxu0 0
      %3465 = vmatmul.mubr.bf16.gmra.mrb[0].mxu0 %v3312
      %v3466 = vpop.f32.mrb[0].mxu0
      %v3467 = vadd.f32 %v3255, %v3466
      %v3468 = vpop.f32.mrb[0].mxu0
      %v3469 = vpop.f32.mrb[0].mxu0
      %v3470 = vadd.f32 %v3258, %v3469
      %v3471 = vpop.f32.mrb[0].mxu0
      %3472 = vmatprep.mubr.bf16.mxu0 0
      %3473 = vmatmul.mubr.bf16.gmra.mrb[0].mxu0 %v3315
      %v3474 = vpop.f32.mrb[0].mxu0
      %v3475 = vadd.f32 %v3263, %v3474
      %v3476 = vpop.f32.mrb[0].mxu0
      %v3477 = vpop.f32.mrb[0].mxu0
      %v3478 = vadd.f32 %v3266, %v3477
      %v3479 = vpop.f32.mrb[0].mxu0
      %3480 = vdwg.mxu0
      %v3481 = vld [vmem:[%s4] sm:$0x1]
      %v3482 = vlaneseq
      %v3483 = vshrl.u32 %v3482, 7
      %v3484 = vsub.s32 0, %v3483
      %v3485 = vrot.slane %v3481, %v3484
      %v3486 = vadd.f32 %v3355, %v3485
      %v3487 = vadd.f32 %v3358, %v3485
      %v3488 = vadd.f32 %v3363, %v3485
      %v3489 = vadd.f32 %v3366, %v3485
      %v3490 = vadd.f32 %v3371, %v3485
      %v3491 = vadd.f32 %v3374, %v3485
      %v3492 = vadd.f32 %v3379, %v3485
      %v3493 = vadd.f32 %v3382, %v3485
      %v3494 = vadd.f32 %v3387, %v3485
      %v3495 = vadd.f32 %v3390, %v3485
      %v3496 = vadd.f32 %v3395, %v3485
      %v3497 = vadd.f32 %v3398, %v3485
      %v3498 = vadd.f32 %v3403, %v3485
      %v3499 = vadd.f32 %v3406, %v3485
      %v3500 = vadd.f32 %v3411, %v3485
      %v3501 = vadd.f32 %v3414, %v3485
      %v3502 = vadd.f32 %v3419, %v3485
      %v3503 = vadd.f32 %v3422, %v3485
      %v3504 = vadd.f32 %v3427, %v3485
      %v3505 = vadd.f32 %v3430, %v3485
      %v3506 = vadd.f32 %v3435, %v3485
      %v3507 = vadd.f32 %v3438, %v3485
      %v3508 = vadd.f32 %v3443, %v3485
      %v3509 = vadd.f32 %v3446, %v3485
      %v3510 = vadd.f32 %v3451, %v3485
      %v3511 = vadd.f32 %v3454, %v3485
      %v3512 = vadd.f32 %v3459, %v3485
      %v3513 = vadd.f32 %v3462, %v3485
      %v3514 = vadd.f32 %v3467, %v3485
      %v3515 = vadd.f32 %v3470, %v3485
      %v3516 = vadd.f32 %v3475, %v3485
      %v3517 = vadd.f32 %v3478, %v3485
      %v3518 = vmax.f32 %v3486, 0.0
      %v3519 = vmax.f32 %v3487, 0.0
      %v3520 = vmax.f32 %v3488, 0.0
      %v3521 = vmax.f32 %v3489, 0.0
      %v3522 = vmax.f32 %v3490, 0.0
      %v3523 = vmax.f32 %v3491, 0.0
      %v3524 = vmax.f32 %v3492, 0.0
      %v3525 = vmax.f32 %v3493, 0.0
      %v3526 = vmax.f32 %v3494, 0.0
      %v3527 = vmax.f32 %v3495, 0.0
      %v3528 = vmax.f32 %v3496, 0.0
      %v3529 = vmax.f32 %v3497, 0.0
      %v3530 = vmax.f32 %v3498, 0.0
      %v3531 = vmax.f32 %v3499, 0.0
      %v3532 = vmax.f32 %v3500, 0.0
      %v3533 = vmax.f32 %v3501, 0.0
      %v3534 = vmax.f32 %v3502, 0.0
      %v3535 = vmax.f32 %v3503, 0.0
      %v3536 = vmax.f32 %v3504, 0.0
      %v3537 = vmax.f32 %v3505, 0.0
      %v3538 = vmax.f32 %v3506, 0.0
      %v3539 = vmax.f32 %v3507, 0.0
      %v3540 = vmax.f32 %v3508, 0.0
      %v3541 = vmax.f32 %v3509, 0.0
      %v3542 = vmax.f32 %v3510, 0.0
      %v3543 = vmax.f32 %v3511, 0.0
      %v3544 = vmax.f32 %v3512, 0.0
      %v3545 = vmax.f32 %v3513, 0.0
      %v3546 = vmax.f32 %v3514, 0.0
      %v3547 = vmax.f32 %v3515, 0.0
      %v3548 = vmax.f32 %v3516, 0.0
      %v3549 = vmax.f32 %v3517, 0.0
      %s3550 = scalar_lea.vmem [#allocation3], 24
      %3551 = vst.msk [vmem:[%s3550 + $0x1] sm:$0xff] %vm304, %v3518
      %3552 = vst.msk [vmem:[%s3550 + $0x9] sm:$0xff] %vm304, %v3519
      %3553 = vst.msk [vmem:[%s3550 + $0x19] sm:$0xff] %vm304, %v3520
      %3554 = vst.msk [vmem:[%s3550 + $0x21] sm:$0xff] %vm304, %v3521
      %3555 = vst.msk [vmem:[%s3550 + $0x31] sm:$0xff] %vm304, %v3522
      %3556 = vst.msk [vmem:[%s3550 + $0x39] sm:$0xff] %vm304, %v3523
      %3557 = vst.msk [vmem:[%s3550 + $0x49] sm:$0xff] %vm304, %v3524
      %3558 = vst.msk [vmem:[%s3550 + $0x51] sm:$0xff] %vm304, %v3525
      %3559 = vst.msk [vmem:[%s3550 + $0x61] sm:$0xff] %vm304, %v3526
      %3560 = vst.msk [vmem:[%s3550 + $0x69] sm:$0xff] %vm304, %v3527
      %3561 = vst.msk [vmem:[%s3550 + $0x79] sm:$0xff] %vm304, %v3528
      %3562 = vst.msk [vmem:[%s3550 + $0x81] sm:$0xff] %vm304, %v3529
      %3563 = vst.msk [vmem:[%s3550 + $0x91] sm:$0xff] %vm304, %v3530
      %3564 = vst.msk [vmem:[%s3550 + $0x99] sm:$0xff] %vm304, %v3531
      %3565 = vst.msk [vmem:[%s3550 + $0xa9] sm:$0xff] %vm304, %v3532
      %3566 = vst.msk [vmem:[%s3550 + $0xb1] sm:$0xff] %vm304, %v3533
      %3567 = vst.msk [vmem:[%s3550 + $0xc1] sm:$0xff] %vm304, %v3534
      %3568 = vst.msk [vmem:[%s3550 + $0xc9] sm:$0xff] %vm304, %v3535
      %3569 = vst.msk [vmem:[%s3550 + $0xd9] sm:$0xff] %vm304, %v3536
      %3570 = vst.msk [vmem:[%s3550 + $0xe1] sm:$0xff] %vm304, %v3537
      %3571 = vst.msk [vmem:[%s3550 + $0xf1] sm:$0xff] %vm304, %v3538
      %3572 = vst.msk [vmem:[%s3550 + $0xf9] sm:$0xff] %vm304, %v3539
      %3573 = vst.msk [vmem:[%s3550 + $0x109] sm:$0xff] %vm304, %v3540
      %3574 = vst.msk [vmem:[%s3550 + $0x111] sm:$0xff] %vm304, %v3541
      %3575 = vst.msk [vmem:[%s3550 + $0x121] sm:$0xff] %vm304, %v3542
      %3576 = vst.msk [vmem:[%s3550 + $0x129] sm:$0xff] %vm304, %v3543
      %3577 = vst.msk [vmem:[%s3550 + $0x139] sm:$0xff] %vm304, %v3544
      %3578 = vst.msk [vmem:[%s3550 + $0x141] sm:$0xff] %vm304, %v3545
      %3579 = vst.msk [vmem:[%s3550 + $0x151] sm:$0xff] %vm304, %v3546
      %3580 = vst.msk [vmem:[%s3550 + $0x159] sm:$0xff] %vm304, %v3547
      %3581 = vst.msk [vmem:[%s3550 + $0x169] sm:$0xff] %vm304, %v3548
      %3582 = vst.msk [vmem:[%s3550 + $0x171] sm:$0xff] %vm304, %v3549
      %v3583 = vld [vmem:[#allocation3] sm:$0xff]
      %v3584 = vld [vmem:[#allocation3 + $0x8] sm:$0xff]
      %v3585 = vld [vmem:[#allocation3 + $0x18] sm:$0xff]
      %v3586 = vld [vmem:[#allocation3 + $0x20] sm:$0xff]
      %v3587 = vld [vmem:[#allocation3 + $0x30] sm:$0xff]
      %v3588 = vld [vmem:[#allocation3 + $0x38] sm:$0xff]
      %v3589 = vld [vmem:[#allocation3 + $0x48] sm:$0xff]
      %v3590 = vld [vmem:[#allocation3 + $0x50] sm:$0xff]
      %v3591 = vld [vmem:[#allocation3 + $0x60] sm:$0xff]
      %v3592 = vld [vmem:[#allocation3 + $0x68] sm:$0xff]
      %v3593 = vld [vmem:[#allocation3 + $0x78] sm:$0xff]
      %v3594 = vld [vmem:[#allocation3 + $0x80] sm:$0xff]
      %v3595 = vld [vmem:[#allocation3 + $0x90] sm:$0xff]
      %v3596 = vld [vmem:[#allocation3 + $0x98] sm:$0xff]
      %v3597 = vld [vmem:[#allocation3 + $0xa8] sm:$0xff]
      %v3598 = vld [vmem:[#allocation3 + $0xb0] sm:$0xff]
      %v3599 = vld [vmem:[#allocation3 + $0xc0] sm:$0xff]
      %v3600 = vld [vmem:[#allocation3 + $0xc8] sm:$0xff]
      %v3601 = vld [vmem:[#allocation3 + $0xd8] sm:$0xff]
      %v3602 = vld [vmem:[#allocation3 + $0xe0] sm:$0xff]
      %v3603 = vld [vmem:[#allocation3 + $0xf0] sm:$0xff]
      %v3604 = vld [vmem:[#allocation3 + $0xf8] sm:$0xff]
      %v3605 = vld [vmem:[#allocation3 + $0x108] sm:$0xff]
      %v3606 = vld [vmem:[#allocation3 + $0x110] sm:$0xff]
      %v3607 = vld [vmem:[#allocation3 + $0x120] sm:$0xff]
      %v3608 = vld [vmem:[#allocation3 + $0x128] sm:$0xff]
      %v3609 = vld [vmem:[#allocation3 + $0x138] sm:$0xff]
      %v3610 = vld [vmem:[#allocation3 + $0x140] sm:$0xff]
      %v3611 = vld [vmem:[#allocation3 + $0x150] sm:$0xff]
      %v3612 = vld [vmem:[#allocation3 + $0x158] sm:$0xff]
      %v3613 = vld [vmem:[#allocation3 + $0x168] sm:$0xff]
      %v3614 = vld [vmem:[#allocation3 + $0x170] sm:$0xff]
      %v3615 = vpack.c.bf16 %v3584, %v3583
      %v3616 = vpack.c.bf16 %v3586, %v3585
      %v3617 = vpack.c.bf16 %v3588, %v3587
      %v3618 = vpack.c.bf16 %v3590, %v3589
      %v3619 = vpack.c.bf16 %v3592, %v3591
      %v3620 = vpack.c.bf16 %v3594, %v3593
      %v3621 = vpack.c.bf16 %v3596, %v3595
      %v3622 = vpack.c.bf16 %v3598, %v3597
      %v3623 = vpack.c.bf16 %v3600, %v3599
      %v3624 = vpack.c.bf16 %v3602, %v3601
      %v3625 = vpack.c.bf16 %v3604, %v3603
      %v3626 = vpack.c.bf16 %v3606, %v3605
      %v3627 = vpack.c.bf16 %v3608, %v3607
      %v3628 = vpack.c.bf16 %v3610, %v3609
      %v3629 = vpack.c.bf16 %v3612, %v3611
      %v3630 = vpack.c.bf16 %v3614, %v3613
      %v3631 = vld [vmem:[%s3] sm:$0x3]
      %v3632 = vld [vmem:[#allocation3 + $0x1] sm:$0xff]
      %v3633 = vld [vmem:[#allocation3 + $0x9] sm:$0xff]
      %v3634 = vld [vmem:[#allocation3 + $0x19] sm:$0xff]
      %v3635 = vld [vmem:[#allocation3 + $0x21] sm:$0xff]
      %v3636 = vld [vmem:[#allocation3 + $0x31] sm:$0xff]
      %v3637 = vld [vmem:[#allocation3 + $0x39] sm:$0xff]
      %v3638 = vld [vmem:[#allocation3 + $0x49] sm:$0xff]
      %v3639 = vld [vmem:[#allocation3 + $0x51] sm:$0xff]
      %v3640 = vld [vmem:[#allocation3 + $0x61] sm:$0xff]
      %v3641 = vld [vmem:[#allocation3 + $0x69] sm:$0xff]
      %v3642 = vld [vmem:[#allocation3 + $0x79] sm:$0xff]
      %v3643 = vld [vmem:[#allocation3 + $0x81] sm:$0xff]
      %v3644 = vld [vmem:[#allocation3 + $0x91] sm:$0xff]
      %v3645 = vld [vmem:[#allocation3 + $0x99] sm:$0xff]
      %v3646 = vld [vmem:[#allocation3 + $0xa9] sm:$0xff]
      %v3647 = vld [vmem:[#allocation3 + $0xb1] sm:$0xff]
      %v3648 = vld [vmem:[#allocation3 + $0xc1] sm:$0xff]
      %v3649 = vld [vmem:[#allocation3 + $0xc9] sm:$0xff]
      %v3650 = vld [vmem:[#allocation3 + $0xd9] sm:$0xff]
      %v3651 = vld [vmem:[#allocation3 + $0xe1] sm:$0xff]
      %v3652 = vld [vmem:[#allocation3 + $0xf1] sm:$0xff]
      %v3653 = vld [vmem:[#allocation3 + $0xf9] sm:$0xff]
      %v3654 = vld [vmem:[#allocation3 + $0x109] sm:$0xff]
      %v3655 = vld [vmem:[#allocation3 + $0x111] sm:$0xff]
      %v3656 = vld [vmem:[#allocation3 + $0x121] sm:$0xff]
      %v3657 = vld [vmem:[#allocation3 + $0x129] sm:$0xff]
      %v3658 = vld [vmem:[#allocation3 + $0x139] sm:$0xff]
      %v3659 = vld [vmem:[#allocation3 + $0x141] sm:$0xff]
      %v3660 = vld [vmem:[#allocation3 + $0x151] sm:$0xff]
      %v3661 = vld [vmem:[#allocation3 + $0x159] sm:$0xff]
      %v3662 = vld [vmem:[#allocation3 + $0x169] sm:$0xff]
      %v3663 = vld [vmem:[#allocation3 + $0x171] sm:$0xff]
      %v3664 = vpack.c.bf16 %v3633, %v3632
      %v3665 = vpack.c.bf16 %v3635, %v3634
      %v3666 = vpack.c.bf16 %v3637, %v3636
      %v3667 = vpack.c.bf16 %v3639, %v3638
      %v3668 = vpack.c.bf16 %v3641, %v3640
      %v3669 = vpack.c.bf16 %v3643, %v3642
      %v3670 = vpack.c.bf16 %v3645, %v3644
      %v3671 = vpack.c.bf16 %v3647, %v3646
      %v3672 = vpack.c.bf16 %v3649, %v3648
      %v3673 = vpack.c.bf16 %v3651, %v3650
      %v3674 = vpack.c.bf16 %v3653, %v3652
      %v3675 = vpack.c.bf16 %v3655, %v3654
      %v3676 = vpack.c.bf16 %v3657, %v3656
      %v3677 = vpack.c.bf16 %v3659, %v3658
      %v3678 = vpack.c.bf16 %v3661, %v3660
      %v3679 = vpack.c.bf16 %v3663, %v3662
      %s3680 = scalar_lea.vmem %s3, 2
      %v3681 = vld [vmem:[%s3680] sm:$0x3]
      %v3683 = vsel %vm304, %v3664, 0
      %v3686 = vsel %vm304, %v3665, 0
      %v3689 = vsel %vm304, %v3666, 0
      %v3692 = vsel %vm304, %v3667, 0
      %v3695 = vsel %vm304, %v3668, 0
      %v3698 = vsel %vm304, %v3669, 0
      %v3701 = vsel %vm304, %v3670, 0
      %v3704 = vsel %vm304, %v3671, 0
      %v3707 = vsel %vm304, %v3672, 0
      %v3710 = vsel %vm304, %v3673, 0
      %v3713 = vsel %vm304, %v3674, 0
      %v3716 = vsel %vm304, %v3675, 0
      %v3719 = vsel %vm304, %v3676, 0
      %v3722 = vsel %vm304, %v3677, 0
      %v3725 = vsel %vm304, %v3678, 0
      %v3728 = vsel %vm304, %v3679, 0
      %vm3730 = vcmask 1041408
      %v3732 = vsel %vm3730, %v3681, 0
      %3734 = vmatprep.subr.bf16.mxu0 0
      %3735 = vmatpush1.bf16.msra.mxu0 %v3732
      %3736 = vmatprep.subr.bf16.mxu0 0
      %3737 = vmatpush1.bf16.msra.mxu0 0
      %3738 = vmatprep.subr.bf16.mxu0 0
      %3739 = vmatpush1.bf16.msra.mxu0 0
      %3740 = vmatprep.subr.bf16.mxu0 0
      %3741 = vmatpush1.bf16.msra.mxu0 0
      %3742 = vmatprep.subr.bf16.mxu0 0
      %3743 = vmatpush1.bf16.msra.mxu0 0
      %3744 = vmatprep.subr.bf16.mxu0 0
      %3745 = vmatpush1.bf16.msra.mxu0 0
      %3746 = vmatprep.subr.bf16.mxu0 0
      %3747 = vmatpush1.bf16.msra.mxu0 0
      %3748 = vmatprep.subr.bf16.mxu0 0
      %3749 = vmatpush1.bf16.msra.mxu0 0
      %3750 = vmatprep.subr.bf16.mxu0 0
      %3751 = vmatpush1.bf16.msra.mxu0 0
      %3752 = vmatprep.subr.bf16.mxu0 0
      %3753 = vmatpush1.bf16.msra.mxu0 0
      %3754 = vmatprep.subr.bf16.mxu0 0
      %3755 = vmatpush1.bf16.msra.mxu0 0
      %3756 = vmatprep.subr.bf16.mxu0 0
      %3757 = vmatpush1.bf16.msra.mxu0 0
      %3758 = vmatprep.subr.bf16.mxu0 0
      %3759 = vmatpush1.bf16.msra.mxu0 0
      %3760 = vmatprep.subr.bf16.mxu0 0
      %3761 = vmatpush1.bf16.msra.mxu0 0
      %3762 = vmatprep.subr.bf16.mxu0 0
      %3763 = vmatpush1.bf16.msra.mxu0 0
      %3764 = vmatprep.subr.bf16.mxu0 0
      %3765 = vmatpush1.bf16.msra.mxu0 0
      %3766 = vmatprep.mubr.bf16.mxu0 0
      %3767 = vmatmul.mubr.bf16.gmra.mrb[0].mxu0 %v3683
      %v3768 = vpop.f32.mrb[0].mxu0
      %v3769 = vadd.f32 0.0, %v3768
      %v3770 = vpop.f32.mrb[0].mxu0
      %v3771 = vpop.f32.mrb[0].mxu0
      %v3772 = vadd.f32 0.0, %v3771
      %v3773 = vpop.f32.mrb[0].mxu0
      %3774 = vmatprep.mubr.bf16.mxu0 0
      %3775 = vmatmul.mubr.bf16.gmra.mrb[0].mxu0 %v3686
      %v3776 = vpop.f32.mrb[0].mxu0
      %v3777 = vadd.f32 0.0, %v3776
      %v3778 = vpop.f32.mrb[0].mxu0
      %v3779 = vpop.f32.mrb[0].mxu0
      %v3780 = vadd.f32 0.0, %v3779
      %v3781 = vpop.f32.mrb[0].mxu0
      %3782 = vmatprep.mubr.bf16.mxu0 0
      %3783 = vmatmul.mubr.bf16.gmra.mrb[0].mxu0 %v3689
      %v3784 = vpop.f32.mrb[0].mxu0
      %v3785 = vadd.f32 0.0, %v3784
      %v3786 = vpop.f32.mrb[0].mxu0
      %v3787 = vpop.f32.mrb[0].mxu0
      %v3788 = vadd.f32 0.0, %v3787
      %v3789 = vpop.f32.mrb[0].mxu0
      %3790 = vmatprep.mubr.bf16.mxu0 0
      %3791 = vmatmul.mubr.bf16.gmra.mrb[0].mxu0 %v3692
      %v3792 = vpop.f32.mrb[0].mxu0
      %v3793 = vadd.f32 0.0, %v3792
      %v3794 = vpop.f32.mrb[0].mxu0
      %v3795 = vpop.f32.mrb[0].mxu0
      %v3796 = vadd.f32 0.0, %v3795
      %v3797 = vpop.f32.mrb[0].mxu0
      %3798 = vmatprep.mubr.bf16.mxu0 0
      %3799 = vmatmul.mubr.bf16.gmra.mrb[0].mxu0 %v3695
      %v3800 = vpop.f32.mrb[0].mxu0
      %v3801 = vadd.f32 0.0, %v3800
      %v3802 = vpop.f32.mrb[0].mxu0
      %v3803 = vpop.f32.mrb[0].mxu0
      %v3804 = vadd.f32 0.0, %v3803
      %v3805 = vpop.f32.mrb[0].mxu0
      %3806 = vmatprep.mubr.bf16.mxu0 0
      %3807 = vmatmul.mubr.bf16.gmra.mrb[0].mxu0 %v3698
      %v3808 = vpop.f32.mrb[0].mxu0
      %v3809 = vadd.f32 0.0, %v3808
      %v3810 = vpop.f32.mrb[0].mxu0
      %v3811 = vpop.f32.mrb[0].mxu0
      %v3812 = vadd.f32 0.0, %v3811
      %v3813 = vpop.f32.mrb[0].mxu0
      %3814 = vmatprep.mubr.bf16.mxu0 0
      %3815 = vmatmul.mubr.bf16.gmra.mrb[0].mxu0 %v3701
      %v3816 = vpop.f32.mrb[0].mxu0
      %v3817 = vadd.f32 0.0, %v3816
      %v3818 = vpop.f32.mrb[0].mxu0
      %v3819 = vpop.f32.mrb[0].mxu0
      %v3820 = vadd.f32 0.0, %v3819
      %v3821 = vpop.f32.mrb[0].mxu0
      %3822 = vmatprep.mubr.bf16.mxu0 0
      %3823 = vmatmul.mubr.bf16.gmra.mrb[0].mxu0 %v3704
      %v3824 = vpop.f32.mrb[0].mxu0
      %v3825 = vadd.f32 0.0, %v3824
      %v3826 = vpop.f32.mrb[0].mxu0
      %v3827 = vpop.f32.mrb[0].mxu0
      %v3828 = vadd.f32 0.0, %v3827
      %v3829 = vpop.f32.mrb[0].mxu0
      %3830 = vmatprep.mubr.bf16.mxu0 0
      %3831 = vmatmul.mubr.bf16.gmra.mrb[0].mxu0 %v3707
      %v3832 = vpop.f32.mrb[0].mxu0
      %v3833 = vadd.f32 0.0, %v3832
      %v3834 = vpop.f32.mrb[0].mxu0
      %v3835 = vpop.f32.mrb[0].mxu0
      %v3836 = vadd.f32 0.0, %v3835
      %v3837 = vpop.f32.mrb[0].mxu0
      %3838 = vmatprep.mubr.bf16.mxu0 0
      %3839 = vmatmul.mubr.bf16.gmra.mrb[0].mxu0 %v3710
      %v3840 = vpop.f32.mrb[0].mxu0
      %v3841 = vadd.f32 0.0, %v3840
      %v3842 = vpop.f32.mrb[0].mxu0
      %v3843 = vpop.f32.mrb[0].mxu0
      %v3844 = vadd.f32 0.0, %v3843
      %v3845 = vpop.f32.mrb[0].mxu0
      %3846 = vmatprep.mubr.bf16.mxu0 0
      %3847 = vmatmul.mubr.bf16.gmra.mrb[0].mxu0 %v3713
      %v3848 = vpop.f32.mrb[0].mxu0
      %v3849 = vadd.f32 0.0, %v3848
      %v3850 = vpop.f32.mrb[0].mxu0
      %v3851 = vpop.f32.mrb[0].mxu0
      %v3852 = vadd.f32 0.0, %v3851
      %v3853 = vpop.f32.mrb[0].mxu0
      %3854 = vmatprep.mubr.bf16.mxu0 0
      %3855 = vmatmul.mubr.bf16.gmra.mrb[0].mxu0 %v3716
      %v3856 = vpop.f32.mrb[0].mxu0
      %v3857 = vadd.f32 0.0, %v3856
      %v3858 = vpop.f32.mrb[0].mxu0
      %v3859 = vpop.f32.mrb[0].mxu0
      %v3860 = vadd.f32 0.0, %v3859
      %v3861 = vpop.f32.mrb[0].mxu0
      %3862 = vmatprep.mubr.bf16.mxu0 0
      %3863 = vmatmul.mubr.bf16.gmra.mrb[0].mxu0 %v3719
      %v3864 = vpop.f32.mrb[0].mxu0
      %v3865 = vadd.f32 0.0, %v3864
      %v3866 = vpop.f32.mrb[0].mxu0
      %v3867 = vpop.f32.mrb[0].mxu0
      %v3868 = vadd.f32 0.0, %v3867
      %v3869 = vpop.f32.mrb[0].mxu0
      %3870 = vmatprep.mubr.bf16.mxu0 0
      %3871 = vmatmul.mubr.bf16.gmra.mrb[0].mxu0 %v3722
      %v3872 = vpop.f32.mrb[0].mxu0
      %v3873 = vadd.f32 0.0, %v3872
      %v3874 = vpop.f32.mrb[0].mxu0
      %v3875 = vpop.f32.mrb[0].mxu0
      %v3876 = vadd.f32 0.0, %v3875
      %v3877 = vpop.f32.mrb[0].mxu0
      %3878 = vmatprep.mubr.bf16.mxu0 0
      %3879 = vmatmul.mubr.bf16.gmra.mrb[0].mxu0 %v3725
      %v3880 = vpop.f32.mrb[0].mxu0
      %v3881 = vadd.f32 0.0, %v3880
      %v3882 = vpop.f32.mrb[0].mxu0
      %v3883 = vpop.f32.mrb[0].mxu0
      %v3884 = vadd.f32 0.0, %v3883
      %v3885 = vpop.f32.mrb[0].mxu0
      %3886 = vmatprep.mubr.bf16.mxu0 0
      %3887 = vmatmul.mubr.bf16.gmra.mrb[0].mxu0 %v3728
      %v3888 = vpop.f32.mrb[0].mxu0
      %v3889 = vadd.f32 0.0, %v3888
      %v3890 = vpop.f32.mrb[0].mxu0
      %v3891 = vpop.f32.mrb[0].mxu0
      %v3892 = vadd.f32 0.0, %v3891
      %v3893 = vpop.f32.mrb[0].mxu0
      %3894 = vdwg.mxu0
      %v3896 = vsel %vm304, %v3615, 0
      %v3899 = vsel %vm304, %v3616, 0
      %v3902 = vsel %vm304, %v3617, 0
      %v3905 = vsel %vm304, %v3618, 0
      %v3908 = vsel %vm304, %v3619, 0
      %v3911 = vsel %vm304, %v3620, 0
      %v3914 = vsel %vm304, %v3621, 0
      %v3917 = vsel %vm304, %v3622, 0
      %v3920 = vsel %vm304, %v3623, 0
      %v3923 = vsel %vm304, %v3624, 0
      %v3926 = vsel %vm304, %v3625, 0
      %v3929 = vsel %vm304, %v3626, 0
      %v3932 = vsel %vm304, %v3627, 0
      %v3935 = vsel %vm304, %v3628, 0
      %v3938 = vsel %vm304, %v3629, 0
      %v3941 = vsel %vm304, %v3630, 0
      %v3944 = vsel %vm3730, %v3631, 0
      %3946 = vmatprep.subr.bf16.mxu0 0
      %3947 = vmatpush1.bf16.msra.mxu0 %v3944
      %3948 = vmatprep.subr.bf16.mxu0 0
      %3949 = vmatpush1.bf16.msra.mxu0 0
      %3950 = vmatprep.subr.bf16.mxu0 0
      %3951 = vmatpush1.bf16.msra.mxu0 0
      %3952 = vmatprep.subr.bf16.mxu0 0
      %3953 = vmatpush1.bf16.msra.mxu0 0
      %3954 = vmatprep.subr.bf16.mxu0 0
      %3955 = vmatpush1.bf16.msra.mxu0 0
      %3956 = vmatprep.subr.bf16.mxu0 0
      %3957 = vmatpush1.bf16.msra.mxu0 0
      %3958 = vmatprep.subr.bf16.mxu0 0
      %3959 = vmatpush1.bf16.msra.mxu0 0
      %3960 = vmatprep.subr.bf16.mxu0 0
      %3961 = vmatpush1.bf16.msra.mxu0 0
      %3962 = vmatprep.subr.bf16.mxu0 0
      %3963 = vmatpush1.bf16.msra.mxu0 0
      %3964 = vmatprep.subr.bf16.mxu0 0
      %3965 = vmatpush1.bf16.msra.mxu0 0
      %3966 = vmatprep.subr.bf16.mxu0 0
      %3967 = vmatpush1.bf16.msra.mxu0 0
      %3968 = vmatprep.subr.bf16.mxu0 0
      %3969 = vmatpush1.bf16.msra.mxu0 0
      %3970 = vmatprep.subr.bf16.mxu0 0
      %3971 = vmatpush1.bf16.msra.mxu0 0
      %3972 = vmatprep.subr.bf16.mxu0 0
      %3973 = vmatpush1.bf16.msra.mxu0 0
      %3974 = vmatprep.subr.bf16.mxu0 0
      %3975 = vmatpush1.bf16.msra.mxu0 0
      %3976 = vmatprep.subr.bf16.mxu0 0
      %3977 = vmatpush1.bf16.msra.mxu0 0
      %3978 = vmatprep.mubr.bf16.mxu0 0
      %3979 = vmatmul.mubr.bf16.gmra.mrb[0].mxu0 %v3896
      %v3980 = vpop.f32.mrb[0].mxu0
      %v3981 = vadd.f32 %v3769, %v3980
      %v3982 = vpop.f32.mrb[0].mxu0
      %v3983 = vpop.f32.mrb[0].mxu0
      %v3984 = vadd.f32 %v3772, %v3983
      %v3985 = vpop.f32.mrb[0].mxu0
      %3986 = vmatprep.mubr.bf16.mxu0 0
      %3987 = vmatmul.mubr.bf16.gmra.mrb[0].mxu0 %v3899
      %v3988 = vpop.f32.mrb[0].mxu0
      %v3989 = vadd.f32 %v3777, %v3988
      %v3990 = vpop.f32.mrb[0].mxu0
      %v3991 = vpop.f32.mrb[0].mxu0
      %v3992 = vadd.f32 %v3780, %v3991
      %v3993 = vpop.f32.mrb[0].mxu0
      %3994 = vmatprep.mubr.bf16.mxu0 0
      %3995 = vmatmul.mubr.bf16.gmra.mrb[0].mxu0 %v3902
      %v3996 = vpop.f32.mrb[0].mxu0
      %v3997 = vadd.f32 %v3785, %v3996
      %v3998 = vpop.f32.mrb[0].mxu0
      %v3999 = vpop.f32.mrb[0].mxu0
      %v4000 = vadd.f32 %v3788, %v3999
      %v4001 = vpop.f32.mrb[0].mxu0
      %4002 = vmatprep.mubr.bf16.mxu0 0
      %4003 = vmatmul.mubr.bf16.gmra.mrb[0].mxu0 %v3905
      %v4004 = vpop.f32.mrb[0].mxu0
      %v4005 = vadd.f32 %v3793, %v4004
      %v4006 = vpop.f32.mrb[0].mxu0
      %v4007 = vpop.f32.mrb[0].mxu0
      %v4008 = vadd.f32 %v3796, %v4007
      %v4009 = vpop.f32.mrb[0].mxu0
      %4010 = vmatprep.mubr.bf16.mxu0 0
      %4011 = vmatmul.mubr.bf16.gmra.mrb[0].mxu0 %v3908
      %v4012 = vpop.f32.mrb[0].mxu0
      %v4013 = vadd.f32 %v3801, %v4012
      %v4014 = vpop.f32.mrb[0].mxu0
      %v4015 = vpop.f32.mrb[0].mxu0
      %v4016 = vadd.f32 %v3804, %v4015
      %v4017 = vpop.f32.mrb[0].mxu0
      %4018 = vmatprep.mubr.bf16.mxu0 0
      %4019 = vmatmul.mubr.bf16.gmra.mrb[0].mxu0 %v3911
      %v4020 = vpop.f32.mrb[0].mxu0
      %v4021 = vadd.f32 %v3809, %v4020
      %v4022 = vpop.f32.mrb[0].mxu0
      %v4023 = vpop.f32.mrb[0].mxu0
      %v4024 = vadd.f32 %v3812, %v4023
      %v4025 = vpop.f32.mrb[0].mxu0
      %4026 = vmatprep.mubr.bf16.mxu0 0
      %4027 = vmatmul.mubr.bf16.gmra.mrb[0].mxu0 %v3914
      %v4028 = vpop.f32.mrb[0].mxu0
      %v4029 = vadd.f32 %v3817, %v4028
      %v4030 = vpop.f32.mrb[0].mxu0
      %v4031 = vpop.f32.mrb[0].mxu0
      %v4032 = vadd.f32 %v3820, %v4031
      %v4033 = vpop.f32.mrb[0].mxu0
      %4034 = vmatprep.mubr.bf16.mxu0 0
      %4035 = vmatmul.mubr.bf16.gmra.mrb[0].mxu0 %v3917
      %v4036 = vpop.f32.mrb[0].mxu0
      %v4037 = vadd.f32 %v3825, %v4036
      %v4038 = vpop.f32.mrb[0].mxu0
      %v4039 = vpop.f32.mrb[0].mxu0
      %v4040 = vadd.f32 %v3828, %v4039
      %v4041 = vpop.f32.mrb[0].mxu0
      %4042 = vmatprep.mubr.bf16.mxu0 0
      %4043 = vmatmul.mubr.bf16.gmra.mrb[0].mxu0 %v3920
      %v4044 = vpop.f32.mrb[0].mxu0
      %v4045 = vadd.f32 %v3833, %v4044
      %v4046 = vpop.f32.mrb[0].mxu0
      %v4047 = vpop.f32.mrb[0].mxu0
      %v4048 = vadd.f32 %v3836, %v4047
      %v4049 = vpop.f32.mrb[0].mxu0
      %4050 = vmatprep.mubr.bf16.mxu0 0
      %4051 = vmatmul.mubr.bf16.gmra.mrb[0].mxu0 %v3923
      %v4052 = vpop.f32.mrb[0].mxu0
      %v4053 = vadd.f32 %v3841, %v4052
      %v4054 = vpop.f32.mrb[0].mxu0
      %v4055 = vpop.f32.mrb[0].mxu0
      %v4056 = vadd.f32 %v3844, %v4055
      %v4057 = vpop.f32.mrb[0].mxu0
      %4058 = vmatprep.mubr.bf16.mxu0 0
      %4059 = vmatmul.mubr.bf16.gmra.mrb[0].mxu0 %v3926
      %v4060 = vpop.f32.mrb[0].mxu0
      %v4061 = vadd.f32 %v3849, %v4060
      %v4062 = vpop.f32.mrb[0].mxu0
      %v4063 = vpop.f32.mrb[0].mxu0
      %v4064 = vadd.f32 %v3852, %v4063
      %v4065 = vpop.f32.mrb[0].mxu0
      %4066 = vmatprep.mubr.bf16.mxu0 0
      %4067 = vmatmul.mubr.bf16.gmra.mrb[0].mxu0 %v3929
      %v4068 = vpop.f32.mrb[0].mxu0
      %v4069 = vadd.f32 %v3857, %v4068
      %v4070 = vpop.f32.mrb[0].mxu0
      %v4071 = vpop.f32.mrb[0].mxu0
      %v4072 = vadd.f32 %v3860, %v4071
      %v4073 = vpop.f32.mrb[0].mxu0
      %4074 = vmatprep.mubr.bf16.mxu0 0
      %4075 = vmatmul.mubr.bf16.gmra.mrb[0].mxu0 %v3932
      %v4076 = vpop.f32.mrb[0].mxu0
      %v4077 = vadd.f32 %v3865, %v4076
      %v4078 = vpop.f32.mrb[0].mxu0
      %v4079 = vpop.f32.mrb[0].mxu0
      %v4080 = vadd.f32 %v3868, %v4079
      %v4081 = vpop.f32.mrb[0].mxu0
      %4082 = vmatprep.mubr.bf16.mxu0 0
      %4083 = vmatmul.mubr.bf16.gmra.mrb[0].mxu0 %v3935
      %v4084 = vpop.f32.mrb[0].mxu0
      %v4085 = vadd.f32 %v3873, %v4084
      %v4086 = vpop.f32.mrb[0].mxu0
      %v4087 = vpop.f32.mrb[0].mxu0
      %v4088 = vadd.f32 %v3876, %v4087
      %v4089 = vpop.f32.mrb[0].mxu0
      %4090 = vmatprep.mubr.bf16.mxu0 0
      %4091 = vmatmul.mubr.bf16.gmra.mrb[0].mxu0 %v3938
      %v4092 = vpop.f32.mrb[0].mxu0
      %v4093 = vadd.f32 %v3881, %v4092
      %v4094 = vpop.f32.mrb[0].mxu0
      %v4095 = vpop.f32.mrb[0].mxu0
      %v4096 = vadd.f32 %v3884, %v4095
      %v4097 = vpop.f32.mrb[0].mxu0
      %4098 = vmatprep.mubr.bf16.mxu0 0
      %4099 = vmatmul.mubr.bf16.gmra.mrb[0].mxu0 %v3941
      %v4100 = vpop.f32.mrb[0].mxu0
      %v4101 = vadd.f32 %v3889, %v4100
      %v4102 = vpop.f32.mrb[0].mxu0
      %v4103 = vpop.f32.mrb[0].mxu0
      %v4104 = vadd.f32 %v3892, %v4103
      %v4105 = vpop.f32.mrb[0].mxu0
      %4106 = vdwg.mxu0
      %v4107 = vld [vmem:[#allocation3 + $0x2] sm:$0xff]
      %v4108 = vld [vmem:[#allocation3 + $0xa] sm:$0xff]
      %v4109 = vld [vmem:[#allocation3 + $0x1a] sm:$0xff]
      %v4110 = vld [vmem:[#allocation3 + $0x22] sm:$0xff]
      %v4111 = vld [vmem:[#allocation3 + $0x32] sm:$0xff]
      %v4112 = vld [vmem:[#allocation3 + $0x3a] sm:$0xff]
      %v4113 = vld [vmem:[#allocation3 + $0x4a] sm:$0xff]
      %v4114 = vld [vmem:[#allocation3 + $0x52] sm:$0xff]
      %v4115 = vld [vmem:[#allocation3 + $0x62] sm:$0xff]
      %v4116 = vld [vmem:[#allocation3 + $0x6a] sm:$0xff]
      %v4117 = vld [vmem:[#allocation3 + $0x7a] sm:$0xff]
      %v4118 = vld [vmem:[#allocation3 + $0x82] sm:$0xff]
      %v4119 = vld [vmem:[#allocation3 + $0x92] sm:$0xff]
      %v4120 = vld [vmem:[#allocation3 + $0x9a] sm:$0xff]
      %v4121 = vld [vmem:[#allocation3 + $0xaa] sm:$0xff]
      %v4122 = vld [vmem:[#allocation3 + $0xb2] sm:$0xff]
      %v4123 = vld [vmem:[#allocation3 + $0xc2] sm:$0xff]
      %v4124 = vld [vmem:[#allocation3 + $0xca] sm:$0xff]
      %v4125 = vld [vmem:[#allocation3 + $0xda] sm:$0xff]
      %v4126 = vld [vmem:[#allocation3 + $0xe2] sm:$0xff]
      %v4127 = vld [vmem:[#allocation3 + $0xf2] sm:$0xff]
      %v4128 = vld [vmem:[#allocation3 + $0xfa] sm:$0xff]
      %v4129 = vld [vmem:[#allocation3 + $0x10a] sm:$0xff]
      %v4130 = vld [vmem:[#allocation3 + $0x112] sm:$0xff]
      %v4131 = vld [vmem:[#allocation3 + $0x122] sm:$0xff]
      %v4132 = vld [vmem:[#allocation3 + $0x12a] sm:$0xff]
      %v4133 = vld [vmem:[#allocation3 + $0x13a] sm:$0xff]
      %v4134 = vld [vmem:[#allocation3 + $0x142] sm:$0xff]
      %v4135 = vld [vmem:[#allocation3 + $0x152] sm:$0xff]
      %v4136 = vld [vmem:[#allocation3 + $0x15a] sm:$0xff]
      %v4137 = vld [vmem:[#allocation3 + $0x16a] sm:$0xff]
      %v4138 = vld [vmem:[#allocation3 + $0x172] sm:$0xff]
      %v4139 = vpack.c.bf16 %v4108, %v4107
      %v4140 = vpack.c.bf16 %v4110, %v4109
      %v4141 = vpack.c.bf16 %v4112, %v4111
      %v4142 = vpack.c.bf16 %v4114, %v4113
      %v4143 = vpack.c.bf16 %v4116, %v4115
      %v4144 = vpack.c.bf16 %v4118, %v4117
      %v4145 = vpack.c.bf16 %v4120, %v4119
      %v4146 = vpack.c.bf16 %v4122, %v4121
      %v4147 = vpack.c.bf16 %v4124, %v4123
      %v4148 = vpack.c.bf16 %v4126, %v4125
      %v4149 = vpack.c.bf16 %v4128, %v4127
      %v4150 = vpack.c.bf16 %v4130, %v4129
      %v4151 = vpack.c.bf16 %v4132, %v4131
      %v4152 = vpack.c.bf16 %v4134, %v4133
      %v4153 = vpack.c.bf16 %v4136, %v4135
      %v4154 = vpack.c.bf16 %v4138, %v4137
      %s4155 = scalar_lea.vmem %s3, 4
      %v4156 = vld [vmem:[%s4155] sm:$0x3]
      %v4158 = vsel %vm304, %v4139, 0
      %v4161 = vsel %vm304, %v4140, 0
      %v4164 = vsel %vm304, %v4141, 0
      %v4167 = vsel %vm304, %v4142, 0
      %v4170 = vsel %vm304, %v4143, 0
      %v4173 = vsel %vm304, %v4144, 0
      %v4176 = vsel %vm304, %v4145, 0
      %v4179 = vsel %vm304, %v4146, 0
      %v4182 = vsel %vm304, %v4147, 0
      %v4185 = vsel %vm304, %v4148, 0
      %v4188 = vsel %vm304, %v4149, 0
      %v4191 = vsel %vm304, %v4150, 0
      %v4194 = vsel %vm304, %v4151, 0
      %v4197 = vsel %vm304, %v4152, 0
      %v4200 = vsel %vm304, %v4153, 0
      %v4203 = vsel %vm304, %v4154, 0
      %v4206 = vsel %vm3730, %v4156, 0
      %4208 = vmatprep.subr.bf16.mxu0 0
      %4209 = vmatpush1.bf16.msra.mxu0 %v4206
      %4210 = vmatprep.subr.bf16.mxu0 0
      %4211 = vmatpush1.bf16.msra.mxu0 0
      %4212 = vmatprep.subr.bf16.mxu0 0
      %4213 = vmatpush1.bf16.msra.mxu0 0
      %4214 = vmatprep.subr.bf16.mxu0 0
      %4215 = vmatpush1.bf16.msra.mxu0 0
      %4216 = vmatprep.subr.bf16.mxu0 0
      %4217 = vmatpush1.bf16.msra.mxu0 0
      %4218 = vmatprep.subr.bf16.mxu0 0
      %4219 = vmatpush1.bf16.msra.mxu0 0
      %4220 = vmatprep.subr.bf16.mxu0 0
      %4221 = vmatpush1.bf16.msra.mxu0 0
      %4222 = vmatprep.subr.bf16.mxu0 0
      %4223 = vmatpush1.bf16.msra.mxu0 0
      %4224 = vmatprep.subr.bf16.mxu0 0
      %4225 = vmatpush1.bf16.msra.mxu0 0
      %4226 = vmatprep.subr.bf16.mxu0 0
      %4227 = vmatpush1.bf16.msra.mxu0 0
      %4228 = vmatprep.subr.bf16.mxu0 0
      %4229 = vmatpush1.bf16.msra.mxu0 0
      %4230 = vmatprep.subr.bf16.mxu0 0
      %4231 = vmatpush1.bf16.msra.mxu0 0
      %4232 = vmatprep.subr.bf16.mxu0 0
      %4233 = vmatpush1.bf16.msra.mxu0 0
      %4234 = vmatprep.subr.bf16.mxu0 0
      %4235 = vmatpush1.bf16.msra.mxu0 0
      %4236 = vmatprep.subr.bf16.mxu0 0
      %4237 = vmatpush1.bf16.msra.mxu0 0
      %4238 = vmatprep.subr.bf16.mxu0 0
      %4239 = vmatpush1.bf16.msra.mxu0 0
      %4240 = vmatprep.mubr.bf16.mxu0 0
      %4241 = vmatmul.mubr.bf16.gmra.mrb[0].mxu0 %v4158
      %v4242 = vpop.f32.mrb[0].mxu0
      %v4243 = vadd.f32 0.0, %v4242
      %v4244 = vpop.f32.mrb[0].mxu0
      %v4245 = vpop.f32.mrb[0].mxu0
      %v4246 = vadd.f32 0.0, %v4245
      %v4247 = vpop.f32.mrb[0].mxu0
      %4248 = vmatprep.mubr.bf16.mxu0 0
      %4249 = vmatmul.mubr.bf16.gmra.mrb[0].mxu0 %v4161
      %v4250 = vpop.f32.mrb[0].mxu0
      %v4251 = vadd.f32 0.0, %v4250
      %v4252 = vpop.f32.mrb[0].mxu0
      %v4253 = vpop.f32.mrb[0].mxu0
      %v4254 = vadd.f32 0.0, %v4253
      %v4255 = vpop.f32.mrb[0].mxu0
      %4256 = vmatprep.mubr.bf16.mxu0 0
      %4257 = vmatmul.mubr.bf16.gmra.mrb[0].mxu0 %v4164
      %v4258 = vpop.f32.mrb[0].mxu0
      %v4259 = vadd.f32 0.0, %v4258
      %v4260 = vpop.f32.mrb[0].mxu0
      %v4261 = vpop.f32.mrb[0].mxu0
      %v4262 = vadd.f32 0.0, %v4261
      %v4263 = vpop.f32.mrb[0].mxu0
      %4264 = vmatprep.mubr.bf16.mxu0 0
      %4265 = vmatmul.mubr.bf16.gmra.mrb[0].mxu0 %v4167
      %v4266 = vpop.f32.mrb[0].mxu0
      %v4267 = vadd.f32 0.0, %v4266
      %v4268 = vpop.f32.mrb[0].mxu0
      %v4269 = vpop.f32.mrb[0].mxu0
      %v4270 = vadd.f32 0.0, %v4269
      %v4271 = vpop.f32.mrb[0].mxu0
      %4272 = vmatprep.mubr.bf16.mxu0 0
      %4273 = vmatmul.mubr.bf16.gmra.mrb[0].mxu0 %v4170
      %v4274 = vpop.f32.mrb[0].mxu0
      %v4275 = vadd.f32 0.0, %v4274
      %v4276 = vpop.f32.mrb[0].mxu0
      %v4277 = vpop.f32.mrb[0].mxu0
      %v4278 = vadd.f32 0.0, %v4277
      %v4279 = vpop.f32.mrb[0].mxu0
      %4280 = vmatprep.mubr.bf16.mxu0 0
      %4281 = vmatmul.mubr.bf16.gmra.mrb[0].mxu0 %v4173
      %v4282 = vpop.f32.mrb[0].mxu0
      %v4283 = vadd.f32 0.0, %v4282
      %v4284 = vpop.f32.mrb[0].mxu0
      %v4285 = vpop.f32.mrb[0].mxu0
      %v4286 = vadd.f32 0.0, %v4285
      %v4287 = vpop.f32.mrb[0].mxu0
      %4288 = vmatprep.mubr.bf16.mxu0 0
      %4289 = vmatmul.mubr.bf16.gmra.mrb[0].mxu0 %v4176
      %v4290 = vpop.f32.mrb[0].mxu0
      %v4291 = vadd.f32 0.0, %v4290
      %v4292 = vpop.f32.mrb[0].mxu0
      %v4293 = vpop.f32.mrb[0].mxu0
      %v4294 = vadd.f32 0.0, %v4293
      %v4295 = vpop.f32.mrb[0].mxu0
      %4296 = vmatprep.mubr.bf16.mxu0 0
      %4297 = vmatmul.mubr.bf16.gmra.mrb[0].mxu0 %v4179
      %v4298 = vpop.f32.mrb[0].mxu0
      %v4299 = vadd.f32 0.0, %v4298
      %v4300 = vpop.f32.mrb[0].mxu0
      %v4301 = vpop.f32.mrb[0].mxu0
      %v4302 = vadd.f32 0.0, %v4301
      %v4303 = vpop.f32.mrb[0].mxu0
      %4304 = vmatprep.mubr.bf16.mxu0 0
      %4305 = vmatmul.mubr.bf16.gmra.mrb[0].mxu0 %v4182
      %v4306 = vpop.f32.mrb[0].mxu0
      %v4307 = vadd.f32 0.0, %v4306
      %v4308 = vpop.f32.mrb[0].mxu0
      %v4309 = vpop.f32.mrb[0].mxu0
      %v4310 = vadd.f32 0.0, %v4309
      %v4311 = vpop.f32.mrb[0].mxu0
      %4312 = vmatprep.mubr.bf16.mxu0 0
      %4313 = vmatmul.mubr.bf16.gmra.mrb[0].mxu0 %v4185
      %v4314 = vpop.f32.mrb[0].mxu0
      %v4315 = vadd.f32 0.0, %v4314
      %v4316 = vpop.f32.mrb[0].mxu0
      %v4317 = vpop.f32.mrb[0].mxu0
      %v4318 = vadd.f32 0.0, %v4317
      %v4319 = vpop.f32.mrb[0].mxu0
      %4320 = vmatprep.mubr.bf16.mxu0 0
      %4321 = vmatmul.mubr.bf16.gmra.mrb[0].mxu0 %v4188
      %v4322 = vpop.f32.mrb[0].mxu0
      %v4323 = vadd.f32 0.0, %v4322
      %v4324 = vpop.f32.mrb[0].mxu0
      %v4325 = vpop.f32.mrb[0].mxu0
      %v4326 = vadd.f32 0.0, %v4325
      %v4327 = vpop.f32.mrb[0].mxu0
      %4328 = vmatprep.mubr.bf16.mxu0 0
      %4329 = vmatmul.mubr.bf16.gmra.mrb[0].mxu0 %v4191
      %v4330 = vpop.f32.mrb[0].mxu0
      %v4331 = vadd.f32 0.0, %v4330
      %v4332 = vpop.f32.mrb[0].mxu0
      %v4333 = vpop.f32.mrb[0].mxu0
      %v4334 = vadd.f32 0.0, %v4333
      %v4335 = vpop.f32.mrb[0].mxu0
      %4336 = vmatprep.mubr.bf16.mxu0 0
      %4337 = vmatmul.mubr.bf16.gmra.mrb[0].mxu0 %v4194
      %v4338 = vpop.f32.mrb[0].mxu0
      %v4339 = vadd.f32 0.0, %v4338
      %v4340 = vpop.f32.mrb[0].mxu0
      %v4341 = vpop.f32.mrb[0].mxu0
      %v4342 = vadd.f32 0.0, %v4341
      %v4343 = vpop.f32.mrb[0].mxu0
      %4344 = vmatprep.mubr.bf16.mxu0 0
      %4345 = vmatmul.mubr.bf16.gmra.mrb[0].mxu0 %v4197
      %v4346 = vpop.f32.mrb[0].mxu0
      %v4347 = vadd.f32 0.0, %v4346
      %v4348 = vpop.f32.mrb[0].mxu0
      %v4349 = vpop.f32.mrb[0].mxu0
      %v4350 = vadd.f32 0.0, %v4349
      %v4351 = vpop.f32.mrb[0].mxu0
      %4352 = vmatprep.mubr.bf16.mxu0 0
      %4353 = vmatmul.mubr.bf16.gmra.mrb[0].mxu0 %v4200
      %v4354 = vpop.f32.mrb[0].mxu0
      %v4355 = vadd.f32 0.0, %v4354
      %v4356 = vpop.f32.mrb[0].mxu0
      %v4357 = vpop.f32.mrb[0].mxu0
      %v4358 = vadd.f32 0.0, %v4357
      %v4359 = vpop.f32.mrb[0].mxu0
      %4360 = vmatprep.mubr.bf16.mxu0 0
      %4361 = vmatmul.mubr.bf16.gmra.mrb[0].mxu0 %v4203
      %v4362 = vpop.f32.mrb[0].mxu0
      %v4363 = vadd.f32 0.0, %v4362
      %v4364 = vpop.f32.mrb[0].mxu0
      %v4365 = vpop.f32.mrb[0].mxu0
      %v4366 = vadd.f32 0.0, %v4365
      %v4367 = vpop.f32.mrb[0].mxu0
      %4368 = vdwg.mxu0
      %v4369 = vadd.f32 %v3981, %v4243
      %v4370 = vadd.f32 %v3984, %v4246
      %v4371 = vadd.f32 %v3989, %v4251
      %v4372 = vadd.f32 %v3992, %v4254
      %v4373 = vadd.f32 %v3997, %v4259
      %v4374 = vadd.f32 %v4000, %v4262
      %v4375 = vadd.f32 %v4005, %v4267
      %v4376 = vadd.f32 %v4008, %v4270
      %v4377 = vadd.f32 %v4013, %v4275
      %v4378 = vadd.f32 %v4016, %v4278
      %v4379 = vadd.f32 %v4021, %v4283
      %v4380 = vadd.f32 %v4024, %v4286
      %v4381 = vadd.f32 %v4029, %v4291
      %v4382 = vadd.f32 %v4032, %v4294
      %v4383 = vadd.f32 %v4037, %v4299
      %v4384 = vadd.f32 %v4040, %v4302
      %v4385 = vadd.f32 %v4045, %v4307
      %v4386 = vadd.f32 %v4048, %v4310
      %v4387 = vadd.f32 %v4053, %v4315
      %v4388 = vadd.f32 %v4056, %v4318
      %v4389 = vadd.f32 %v4061, %v4323
      %v4390 = vadd.f32 %v4064, %v4326
      %v4391 = vadd.f32 %v4069, %v4331
      %v4392 = vadd.f32 %v4072, %v4334
      %v4393 = vadd.f32 %v4077, %v4339
      %v4394 = vadd.f32 %v4080, %v4342
      %v4395 = vadd.f32 %v4085, %v4347
      %v4396 = vadd.f32 %v4088, %v4350
      %v4397 = vadd.f32 %v4093, %v4355
      %v4398 = vadd.f32 %v4096, %v4358
      %v4399 = vadd.f32 %v4101, %v4363
      %v4400 = vadd.f32 %v4104, %v4366
      %v4401 = vld [vmem:[%s3550] sm:$0xff]
      %v4402 = vld [vmem:[%s3550 + $0x8] sm:$0xff]
      %v4403 = vld [vmem:[%s3550 + $0x18] sm:$0xff]
      %v4404 = vld [vmem:[%s3550 + $0x20] sm:$0xff]
      %v4405 = vld [vmem:[%s3550 + $0x30] sm:$0xff]
      %v4406 = vld [vmem:[%s3550 + $0x38] sm:$0xff]
      %v4407 = vld [vmem:[%s3550 + $0x48] sm:$0xff]
      %v4408 = vld [vmem:[%s3550 + $0x50] sm:$0xff]
      %v4409 = vld [vmem:[%s3550 + $0x60] sm:$0xff]
      %v4410 = vld [vmem:[%s3550 + $0x68] sm:$0xff]
      %v4411 = vld [vmem:[%s3550 + $0x78] sm:$0xff]
      %v4412 = vld [vmem:[%s3550 + $0x80] sm:$0xff]
      %v4413 = vld [vmem:[%s3550 + $0x90] sm:$0xff]
      %v4414 = vld [vmem:[%s3550 + $0x98] sm:$0xff]
      %v4415 = vld [vmem:[%s3550 + $0xa8] sm:$0xff]
      %v4416 = vld [vmem:[%s3550 + $0xb0] sm:$0xff]
      %v4417 = vld [vmem:[%s3550 + $0xc0] sm:$0xff]
      %v4418 = vld [vmem:[%s3550 + $0xc8] sm:$0xff]
      %v4419 = vld [vmem:[%s3550 + $0xd8] sm:$0xff]
      %v4420 = vld [vmem:[%s3550 + $0xe0] sm:$0xff]
      %v4421 = vld [vmem:[%s3550 + $0xf0] sm:$0xff]
      %v4422 = vld [vmem:[%s3550 + $0xf8] sm:$0xff]
      %v4423 = vld [vmem:[%s3550 + $0x108] sm:$0xff]
      %v4424 = vld [vmem:[%s3550 + $0x110] sm:$0xff]
      %v4425 = vld [vmem:[%s3550 + $0x120] sm:$0xff]
      %v4426 = vld [vmem:[%s3550 + $0x128] sm:$0xff]
      %v4427 = vld [vmem:[%s3550 + $0x138] sm:$0xff]
      %v4428 = vld [vmem:[%s3550 + $0x140] sm:$0xff]
      %v4429 = vld [vmem:[%s3550 + $0x150] sm:$0xff]
      %v4430 = vld [vmem:[%s3550 + $0x158] sm:$0xff]
      %v4431 = vld [vmem:[%s3550 + $0x168] sm:$0xff]
      %v4432 = vld [vmem:[%s3550 + $0x170] sm:$0xff]
      %v4433 = vpack.c.bf16 %v4402, %v4401
      %v4434 = vpack.c.bf16 %v4404, %v4403
      %v4435 = vpack.c.bf16 %v4406, %v4405
      %v4436 = vpack.c.bf16 %v4408, %v4407
      %v4437 = vpack.c.bf16 %v4410, %v4409
      %v4438 = vpack.c.bf16 %v4412, %v4411
      %v4439 = vpack.c.bf16 %v4414, %v4413
      %v4440 = vpack.c.bf16 %v4416, %v4415
      %v4441 = vpack.c.bf16 %v4418, %v4417
      %v4442 = vpack.c.bf16 %v4420, %v4419
      %v4443 = vpack.c.bf16 %v4422, %v4421
      %v4444 = vpack.c.bf16 %v4424, %v4423
      %v4445 = vpack.c.bf16 %v4426, %v4425
      %v4446 = vpack.c.bf16 %v4428, %v4427
      %v4447 = vpack.c.bf16 %v4430, %v4429
      %v4448 = vpack.c.bf16 %v4432, %v4431
      %s4449 = scalar_lea.vmem %s3, 6
      %v4450 = vld [vmem:[%s4449] sm:$0x3]
      %v4452 = vsel %vm304, %v4433, 0
      %v4455 = vsel %vm304, %v4434, 0
      %v4458 = vsel %vm304, %v4435, 0
      %v4461 = vsel %vm304, %v4436, 0
      %v4464 = vsel %vm304, %v4437, 0
      %v4467 = vsel %vm304, %v4438, 0
      %v4470 = vsel %vm304, %v4439, 0
      %v4473 = vsel %vm304, %v4440, 0
      %v4476 = vsel %vm304, %v4441, 0
      %v4479 = vsel %vm304, %v4442, 0
      %v4482 = vsel %vm304, %v4443, 0
      %v4485 = vsel %vm304, %v4444, 0
      %v4488 = vsel %vm304, %v4445, 0
      %v4491 = vsel %vm304, %v4446, 0
      %v4494 = vsel %vm304, %v4447, 0
      %v4497 = vsel %vm304, %v4448, 0
      %v4500 = vsel %vm3730, %v4450, 0
      %4502 = vmatprep.subr.bf16.mxu0 0
      %4503 = vmatpush1.bf16.msra.mxu0 %v4500
      %4504 = vmatprep.subr.bf16.mxu0 0
      %4505 = vmatpush1.bf16.msra.mxu0 0
      %4506 = vmatprep.subr.bf16.mxu0 0
      %4507 = vmatpush1.bf16.msra.mxu0 0
      %4508 = vmatprep.subr.bf16.mxu0 0
      %4509 = vmatpush1.bf16.msra.mxu0 0
      %4510 = vmatprep.subr.bf16.mxu0 0
      %4511 = vmatpush1.bf16.msra.mxu0 0
      %4512 = vmatprep.subr.bf16.mxu0 0
      %4513 = vmatpush1.bf16.msra.mxu0 0
      %4514 = vmatprep.subr.bf16.mxu0 0
      %4515 = vmatpush1.bf16.msra.mxu0 0
      %4516 = vmatprep.subr.bf16.mxu0 0
      %4517 = vmatpush1.bf16.msra.mxu0 0
      %4518 = vmatprep.subr.bf16.mxu0 0
      %4519 = vmatpush1.bf16.msra.mxu0 0
      %4520 = vmatprep.subr.bf16.mxu0 0
      %4521 = vmatpush1.bf16.msra.mxu0 0
      %4522 = vmatprep.subr.bf16.mxu0 0
      %4523 = vmatpush1.bf16.msra.mxu0 0
      %4524 = vmatprep.subr.bf16.mxu0 0
      %4525 = vmatpush1.bf16.msra.mxu0 0
      %4526 = vmatprep.subr.bf16.mxu0 0
      %4527 = vmatpush1.bf16.msra.mxu0 0
      %4528 = vmatprep.subr.bf16.mxu0 0
      %4529 = vmatpush1.bf16.msra.mxu0 0
      %4530 = vmatprep.subr.bf16.mxu0 0
      %4531 = vmatpush1.bf16.msra.mxu0 0
      %4532 = vmatprep.subr.bf16.mxu0 0
      %4533 = vmatpush1.bf16.msra.mxu0 0
      %4534 = vmatprep.mubr.bf16.mxu0 0
      %4535 = vmatmul.mubr.bf16.gmra.mrb[0].mxu0 %v4452
      %v4536 = vpop.f32.mrb[0].mxu0
      %v4537 = vadd.f32 0.0, %v4536
      %v4538 = vpop.f32.mrb[0].mxu0
      %v4539 = vpop.f32.mrb[0].mxu0
      %v4540 = vadd.f32 0.0, %v4539
      %v4541 = vpop.f32.mrb[0].mxu0
      %4542 = vmatprep.mubr.bf16.mxu0 0
      %4543 = vmatmul.mubr.bf16.gmra.mrb[0].mxu0 %v4455
      %v4544 = vpop.f32.mrb[0].mxu0
      %v4545 = vadd.f32 0.0, %v4544
      %v4546 = vpop.f32.mrb[0].mxu0
      %v4547 = vpop.f32.mrb[0].mxu0
      %v4548 = vadd.f32 0.0, %v4547
      %v4549 = vpop.f32.mrb[0].mxu0
      %4550 = vmatprep.mubr.bf16.mxu0 0
      %4551 = vmatmul.mubr.bf16.gmra.mrb[0].mxu0 %v4458
      %v4552 = vpop.f32.mrb[0].mxu0
      %v4553 = vadd.f32 0.0, %v4552
      %v4554 = vpop.f32.mrb[0].mxu0
      %v4555 = vpop.f32.mrb[0].mxu0
      %v4556 = vadd.f32 0.0, %v4555
      %v4557 = vpop.f32.mrb[0].mxu0
      %4558 = vmatprep.mubr.bf16.mxu0 0
      %4559 = vmatmul.mubr.bf16.gmra.mrb[0].mxu0 %v4461
      %v4560 = vpop.f32.mrb[0].mxu0
      %v4561 = vadd.f32 0.0, %v4560
      %v4562 = vpop.f32.mrb[0].mxu0
      %v4563 = vpop.f32.mrb[0].mxu0
      %v4564 = vadd.f32 0.0, %v4563
      %v4565 = vpop.f32.mrb[0].mxu0
      %4566 = vmatprep.mubr.bf16.mxu0 0
      %4567 = vmatmul.mubr.bf16.gmra.mrb[0].mxu0 %v4464
      %v4568 = vpop.f32.mrb[0].mxu0
      %v4569 = vadd.f32 0.0, %v4568
      %v4570 = vpop.f32.mrb[0].mxu0
      %v4571 = vpop.f32.mrb[0].mxu0
      %v4572 = vadd.f32 0.0, %v4571
      %v4573 = vpop.f32.mrb[0].mxu0
      %4574 = vmatprep.mubr.bf16.mxu0 0
      %4575 = vmatmul.mubr.bf16.gmra.mrb[0].mxu0 %v4467
      %v4576 = vpop.f32.mrb[0].mxu0
      %v4577 = vadd.f32 0.0, %v4576
      %v4578 = vpop.f32.mrb[0].mxu0
      %v4579 = vpop.f32.mrb[0].mxu0
      %v4580 = vadd.f32 0.0, %v4579
      %v4581 = vpop.f32.mrb[0].mxu0
      %4582 = vmatprep.mubr.bf16.mxu0 0
      %4583 = vmatmul.mubr.bf16.gmra.mrb[0].mxu0 %v4470
      %v4584 = vpop.f32.mrb[0].mxu0
      %v4585 = vadd.f32 0.0, %v4584
      %v4586 = vpop.f32.mrb[0].mxu0
      %v4587 = vpop.f32.mrb[0].mxu0
      %v4588 = vadd.f32 0.0, %v4587
      %v4589 = vpop.f32.mrb[0].mxu0
      %4590 = vmatprep.mubr.bf16.mxu0 0
      %4591 = vmatmul.mubr.bf16.gmra.mrb[0].mxu0 %v4473
      %v4592 = vpop.f32.mrb[0].mxu0
      %v4593 = vadd.f32 0.0, %v4592
      %v4594 = vpop.f32.mrb[0].mxu0
      %v4595 = vpop.f32.mrb[0].mxu0
      %v4596 = vadd.f32 0.0, %v4595
      %v4597 = vpop.f32.mrb[0].mxu0
      %4598 = vmatprep.mubr.bf16.mxu0 0
      %4599 = vmatmul.mubr.bf16.gmra.mrb[0].mxu0 %v4476
      %v4600 = vpop.f32.mrb[0].mxu0
      %v4601 = vadd.f32 0.0, %v4600
      %v4602 = vpop.f32.mrb[0].mxu0
      %v4603 = vpop.f32.mrb[0].mxu0
      %v4604 = vadd.f32 0.0, %v4603
      %v4605 = vpop.f32.mrb[0].mxu0
      %4606 = vmatprep.mubr.bf16.mxu0 0
      %4607 = vmatmul.mubr.bf16.gmra.mrb[0].mxu0 %v4479
      %v4608 = vpop.f32.mrb[0].mxu0
      %v4609 = vadd.f32 0.0, %v4608
      %v4610 = vpop.f32.mrb[0].mxu0
      %v4611 = vpop.f32.mrb[0].mxu0
      %v4612 = vadd.f32 0.0, %v4611
      %v4613 = vpop.f32.mrb[0].mxu0
      %4614 = vmatprep.mubr.bf16.mxu0 0
      %4615 = vmatmul.mubr.bf16.gmra.mrb[0].mxu0 %v4482
      %v4616 = vpop.f32.mrb[0].mxu0
      %v4617 = vadd.f32 0.0, %v4616
      %v4618 = vpop.f32.mrb[0].mxu0
      %v4619 = vpop.f32.mrb[0].mxu0
      %v4620 = vadd.f32 0.0, %v4619
      %v4621 = vpop.f32.mrb[0].mxu0
      %4622 = vmatprep.mubr.bf16.mxu0 0
      %4623 = vmatmul.mubr.bf16.gmra.mrb[0].mxu0 %v4485
      %v4624 = vpop.f32.mrb[0].mxu0
      %v4625 = vadd.f32 0.0, %v4624
      %v4626 = vpop.f32.mrb[0].mxu0
      %v4627 = vpop.f32.mrb[0].mxu0
      %v4628 = vadd.f32 0.0, %v4627
      %v4629 = vpop.f32.mrb[0].mxu0
      %4630 = vmatprep.mubr.bf16.mxu0 0
      %4631 = vmatmul.mubr.bf16.gmra.mrb[0].mxu0 %v4488
      %v4632 = vpop.f32.mrb[0].mxu0
      %v4633 = vadd.f32 0.0, %v4632
      %v4634 = vpop.f32.mrb[0].mxu0
      %v4635 = vpop.f32.mrb[0].mxu0
      %v4636 = vadd.f32 0.0, %v4635
      %v4637 = vpop.f32.mrb[0].mxu0
      %4638 = vmatprep.mubr.bf16.mxu0 0
      %4639 = vmatmul.mubr.bf16.gmra.mrb[0].mxu0 %v4491
      %v4640 = vpop.f32.mrb[0].mxu0
      %v4641 = vadd.f32 0.0, %v4640
      %v4642 = vpop.f32.mrb[0].mxu0
      %v4643 = vpop.f32.mrb[0].mxu0
      %v4644 = vadd.f32 0.0, %v4643
      %v4645 = vpop.f32.mrb[0].mxu0
      %4646 = vmatprep.mubr.bf16.mxu0 0
      %4647 = vmatmul.mubr.bf16.gmra.mrb[0].mxu0 %v4494
      %v4648 = vpop.f32.mrb[0].mxu0
      %v4649 = vadd.f32 0.0, %v4648
      %v4650 = vpop.f32.mrb[0].mxu0
      %v4651 = vpop.f32.mrb[0].mxu0
      %v4652 = vadd.f32 0.0, %v4651
      %v4653 = vpop.f32.mrb[0].mxu0
      %4654 = vmatprep.mubr.bf16.mxu0 0
      %4655 = vmatmul.mubr.bf16.gmra.mrb[0].mxu0 %v4497
      %v4656 = vpop.f32.mrb[0].mxu0
      %v4657 = vadd.f32 0.0, %v4656
      %v4658 = vpop.f32.mrb[0].mxu0
      %v4659 = vpop.f32.mrb[0].mxu0
      %v4660 = vadd.f32 0.0, %v4659
      %v4661 = vpop.f32.mrb[0].mxu0
      %4662 = vdwg.mxu0
      %v4663 = vadd.f32 %v4369, %v4537
      %v4664 = vadd.f32 %v4370, %v4540
      %v4665 = vadd.f32 %v4371, %v4545
      %v4666 = vadd.f32 %v4372, %v4548
      %v4667 = vadd.f32 %v4373, %v4553
      %v4668 = vadd.f32 %v4374, %v4556
      %v4669 = vadd.f32 %v4375, %v4561
      %v4670 = vadd.f32 %v4376, %v4564
      %v4671 = vadd.f32 %v4377, %v4569
      %v4672 = vadd.f32 %v4378, %v4572
      %v4673 = vadd.f32 %v4379, %v4577
      %v4674 = vadd.f32 %v4380, %v4580
      %v4675 = vadd.f32 %v4381, %v4585
      %v4676 = vadd.f32 %v4382, %v4588
      %v4677 = vadd.f32 %v4383, %v4593
      %v4678 = vadd.f32 %v4384, %v4596
      %v4679 = vadd.f32 %v4385, %v4601
      %v4680 = vadd.f32 %v4386, %v4604
      %v4681 = vadd.f32 %v4387, %v4609
      %v4682 = vadd.f32 %v4388, %v4612
      %v4683 = vadd.f32 %v4389, %v4617
      %v4684 = vadd.f32 %v4390, %v4620
      %v4685 = vadd.f32 %v4391, %v4625
      %v4686 = vadd.f32 %v4392, %v4628
      %v4687 = vadd.f32 %v4393, %v4633
      %v4688 = vadd.f32 %v4394, %v4636
      %v4689 = vadd.f32 %v4395, %v4641
      %v4690 = vadd.f32 %v4396, %v4644
      %v4691 = vadd.f32 %v4397, %v4649
      %v4692 = vadd.f32 %v4398, %v4652
      %v4693 = vadd.f32 %v4399, %v4657
      %v4694 = vadd.f32 %v4400, %v4660
      %v4695 = vld [vmem:[%s3550 + $0x1] sm:$0xff]
      %v4696 = vld [vmem:[%s3550 + $0x9] sm:$0xff]
      %v4697 = vld [vmem:[%s3550 + $0x19] sm:$0xff]
      %v4698 = vld [vmem:[%s3550 + $0x21] sm:$0xff]
      %v4699 = vld [vmem:[%s3550 + $0x31] sm:$0xff]
      %v4700 = vld [vmem:[%s3550 + $0x39] sm:$0xff]
      %v4701 = vld [vmem:[%s3550 + $0x49] sm:$0xff]
      %v4702 = vld [vmem:[%s3550 + $0x51] sm:$0xff]
      %v4703 = vld [vmem:[%s3550 + $0x61] sm:$0xff]
      %v4704 = vld [vmem:[%s3550 + $0x69] sm:$0xff]
      %v4705 = vld [vmem:[%s3550 + $0x79] sm:$0xff]
      %v4706 = vld [vmem:[%s3550 + $0x81] sm:$0xff]
      %v4707 = vld [vmem:[%s3550 + $0x91] sm:$0xff]
      %v4708 = vld [vmem:[%s3550 + $0x99] sm:$0xff]
      %v4709 = vld [vmem:[%s3550 + $0xa9] sm:$0xff]
      %v4710 = vld [vmem:[%s3550 + $0xb1] sm:$0xff]
      %v4711 = vld [vmem:[%s3550 + $0xc1] sm:$0xff]
      %v4712 = vld [vmem:[%s3550 + $0xc9] sm:$0xff]
      %v4713 = vld [vmem:[%s3550 + $0xd9] sm:$0xff]
      %v4714 = vld [vmem:[%s3550 + $0xe1] sm:$0xff]
      %v4715 = vld [vmem:[%s3550 + $0xf1] sm:$0xff]
      %v4716 = vld [vmem:[%s3550 + $0xf9] sm:$0xff]
      %v4717 = vld [vmem:[%s3550 + $0x109] sm:$0xff]
      %v4718 = vld [vmem:[%s3550 + $0x111] sm:$0xff]
      %v4719 = vld [vmem:[%s3550 + $0x121] sm:$0xff]
      %v4720 = vld [vmem:[%s3550 + $0x129] sm:$0xff]
      %v4721 = vld [vmem:[%s3550 + $0x139] sm:$0xff]
      %v4722 = vld [vmem:[%s3550 + $0x141] sm:$0xff]
      %v4723 = vld [vmem:[%s3550 + $0x151] sm:$0xff]
      %v4724 = vld [vmem:[%s3550 + $0x159] sm:$0xff]
      %v4725 = vld [vmem:[%s3550 + $0x169] sm:$0xff]
      %v4726 = vld [vmem:[%s3550 + $0x171] sm:$0xff]
      %v4727 = vpack.c.bf16 %v4696, %v4695
      %v4728 = vpack.c.bf16 %v4698, %v4697
      %v4729 = vpack.c.bf16 %v4700, %v4699
      %v4730 = vpack.c.bf16 %v4702, %v4701
      %v4731 = vpack.c.bf16 %v4704, %v4703
      %v4732 = vpack.c.bf16 %v4706, %v4705
      %v4733 = vpack.c.bf16 %v4708, %v4707
      %v4734 = vpack.c.bf16 %v4710, %v4709
      %v4735 = vpack.c.bf16 %v4712, %v4711
      %v4736 = vpack.c.bf16 %v4714, %v4713
      %v4737 = vpack.c.bf16 %v4716, %v4715
      %v4738 = vpack.c.bf16 %v4718, %v4717
      %v4739 = vpack.c.bf16 %v4720, %v4719
      %v4740 = vpack.c.bf16 %v4722, %v4721
      %v4741 = vpack.c.bf16 %v4724, %v4723
      %v4742 = vpack.c.bf16 %v4726, %v4725
      %s4743 = scalar_lea.vmem %s3, 8
      %v4744 = vld [vmem:[%s4743] sm:$0x3]
      %v4746 = vsel %vm304, %v4727, 0
      %v4749 = vsel %vm304, %v4728, 0
      %v4752 = vsel %vm304, %v4729, 0
      %v4755 = vsel %vm304, %v4730, 0
      %v4758 = vsel %vm304, %v4731, 0
      %v4761 = vsel %vm304, %v4732, 0
      %v4764 = vsel %vm304, %v4733, 0
      %v4767 = vsel %vm304, %v4734, 0
      %v4770 = vsel %vm304, %v4735, 0
      %v4773 = vsel %vm304, %v4736, 0
      %v4776 = vsel %vm304, %v4737, 0
      %v4779 = vsel %vm304, %v4738, 0
      %v4782 = vsel %vm304, %v4739, 0
      %v4785 = vsel %vm304, %v4740, 0
      %v4788 = vsel %vm304, %v4741, 0
      %v4791 = vsel %vm304, %v4742, 0
      %v4794 = vsel %vm3730, %v4744, 0
      %4796 = vmatprep.subr.bf16.mxu0 0
      %4797 = vmatpush1.bf16.msra.mxu0 %v4794
      %4798 = vmatprep.subr.bf16.mxu0 0
      %4799 = vmatpush1.bf16.msra.mxu0 0
      %4800 = vmatprep.subr.bf16.mxu0 0
      %4801 = vmatpush1.bf16.msra.mxu0 0
      %4802 = vmatprep.subr.bf16.mxu0 0
      %4803 = vmatpush1.bf16.msra.mxu0 0
      %4804 = vmatprep.subr.bf16.mxu0 0
      %4805 = vmatpush1.bf16.msra.mxu0 0
      %4806 = vmatprep.subr.bf16.mxu0 0
      %4807 = vmatpush1.bf16.msra.mxu0 0
      %4808 = vmatprep.subr.bf16.mxu0 0
      %4809 = vmatpush1.bf16.msra.mxu0 0
      %4810 = vmatprep.subr.bf16.mxu0 0
      %4811 = vmatpush1.bf16.msra.mxu0 0
      %4812 = vmatprep.subr.bf16.mxu0 0
      %4813 = vmatpush1.bf16.msra.mxu0 0
      %4814 = vmatprep.subr.bf16.mxu0 0
      %4815 = vmatpush1.bf16.msra.mxu0 0
      %4816 = vmatprep.subr.bf16.mxu0 0
      %4817 = vmatpush1.bf16.msra.mxu0 0
      %4818 = vmatprep.subr.bf16.mxu0 0
      %4819 = vmatpush1.bf16.msra.mxu0 0
      %4820 = vmatprep.subr.bf16.mxu0 0
      %4821 = vmatpush1.bf16.msra.mxu0 0
      %4822 = vmatprep.subr.bf16.mxu0 0
      %4823 = vmatpush1.bf16.msra.mxu0 0
      %4824 = vmatprep.subr.bf16.mxu0 0
      %4825 = vmatpush1.bf16.msra.mxu0 0
      %4826 = vmatprep.subr.bf16.mxu0 0
      %4827 = vmatpush1.bf16.msra.mxu0 0
      %4828 = vmatprep.mubr.bf16.mxu0 0
      %4829 = vmatmul.mubr.bf16.gmra.mrb[0].mxu0 %v4746
      %v4830 = vpop.f32.mrb[0].mxu0
      %v4831 = vadd.f32 0.0, %v4830
      %v4832 = vpop.f32.mrb[0].mxu0
      %v4833 = vpop.f32.mrb[0].mxu0
      %v4834 = vadd.f32 0.0, %v4833
      %v4835 = vpop.f32.mrb[0].mxu0
      %4836 = vmatprep.mubr.bf16.mxu0 0
      %4837 = vmatmul.mubr.bf16.gmra.mrb[0].mxu0 %v4749
      %v4838 = vpop.f32.mrb[0].mxu0
      %v4839 = vadd.f32 0.0, %v4838
      %v4840 = vpop.f32.mrb[0].mxu0
      %v4841 = vpop.f32.mrb[0].mxu0
      %v4842 = vadd.f32 0.0, %v4841
      %v4843 = vpop.f32.mrb[0].mxu0
      %4844 = vmatprep.mubr.bf16.mxu0 0
      %4845 = vmatmul.mubr.bf16.gmra.mrb[0].mxu0 %v4752
      %v4846 = vpop.f32.mrb[0].mxu0
      %v4847 = vadd.f32 0.0, %v4846
      %v4848 = vpop.f32.mrb[0].mxu0
      %v4849 = vpop.f32.mrb[0].mxu0
      %v4850 = vadd.f32 0.0, %v4849
      %v4851 = vpop.f32.mrb[0].mxu0
      %4852 = vmatprep.mubr.bf16.mxu0 0
      %4853 = vmatmul.mubr.bf16.gmra.mrb[0].mxu0 %v4755
      %v4854 = vpop.f32.mrb[0].mxu0
      %v4855 = vadd.f32 0.0, %v4854
      %v4856 = vpop.f32.mrb[0].mxu0
      %v4857 = vpop.f32.mrb[0].mxu0
      %v4858 = vadd.f32 0.0, %v4857
      %v4859 = vpop.f32.mrb[0].mxu0
      %4860 = vmatprep.mubr.bf16.mxu0 0
      %4861 = vmatmul.mubr.bf16.gmra.mrb[0].mxu0 %v4758
      %v4862 = vpop.f32.mrb[0].mxu0
      %v4863 = vadd.f32 0.0, %v4862
      %v4864 = vpop.f32.mrb[0].mxu0
      %v4865 = vpop.f32.mrb[0].mxu0
      %v4866 = vadd.f32 0.0, %v4865
      %v4867 = vpop.f32.mrb[0].mxu0
      %4868 = vmatprep.mubr.bf16.mxu0 0
      %4869 = vmatmul.mubr.bf16.gmra.mrb[0].mxu0 %v4761
      %v4870 = vpop.f32.mrb[0].mxu0
      %v4871 = vadd.f32 0.0, %v4870
      %v4872 = vpop.f32.mrb[0].mxu0
      %v4873 = vpop.f32.mrb[0].mxu0
      %v4874 = vadd.f32 0.0, %v4873
      %v4875 = vpop.f32.mrb[0].mxu0
      %4876 = vmatprep.mubr.bf16.mxu0 0
      %4877 = vmatmul.mubr.bf16.gmra.mrb[0].mxu0 %v4764
      %v4878 = vpop.f32.mrb[0].mxu0
      %v4879 = vadd.f32 0.0, %v4878
      %v4880 = vpop.f32.mrb[0].mxu0
      %v4881 = vpop.f32.mrb[0].mxu0
      %v4882 = vadd.f32 0.0, %v4881
      %v4883 = vpop.f32.mrb[0].mxu0
      %4884 = vmatprep.mubr.bf16.mxu0 0
      %4885 = vmatmul.mubr.bf16.gmra.mrb[0].mxu0 %v4767
      %v4886 = vpop.f32.mrb[0].mxu0
      %v4887 = vadd.f32 0.0, %v4886
      %v4888 = vpop.f32.mrb[0].mxu0
      %v4889 = vpop.f32.mrb[0].mxu0
      %v4890 = vadd.f32 0.0, %v4889
      %v4891 = vpop.f32.mrb[0].mxu0
      %4892 = vmatprep.mubr.bf16.mxu0 0
      %4893 = vmatmul.mubr.bf16.gmra.mrb[0].mxu0 %v4770
      %v4894 = vpop.f32.mrb[0].mxu0
      %v4895 = vadd.f32 0.0, %v4894
      %v4896 = vpop.f32.mrb[0].mxu0
      %v4897 = vpop.f32.mrb[0].mxu0
      %v4898 = vadd.f32 0.0, %v4897
      %v4899 = vpop.f32.mrb[0].mxu0
      %4900 = vmatprep.mubr.bf16.mxu0 0
      %4901 = vmatmul.mubr.bf16.gmra.mrb[0].mxu0 %v4773
      %v4902 = vpop.f32.mrb[0].mxu0
      %v4903 = vadd.f32 0.0, %v4902
      %v4904 = vpop.f32.mrb[0].mxu0
      %v4905 = vpop.f32.mrb[0].mxu0
      %v4906 = vadd.f32 0.0, %v4905
      %v4907 = vpop.f32.mrb[0].mxu0
      %4908 = vmatprep.mubr.bf16.mxu0 0
      %4909 = vmatmul.mubr.bf16.gmra.mrb[0].mxu0 %v4776
      %v4910 = vpop.f32.mrb[0].mxu0
      %v4911 = vadd.f32 0.0, %v4910
      %v4912 = vpop.f32.mrb[0].mxu0
      %v4913 = vpop.f32.mrb[0].mxu0
      %v4914 = vadd.f32 0.0, %v4913
      %v4915 = vpop.f32.mrb[0].mxu0
      %4916 = vmatprep.mubr.bf16.mxu0 0
      %4917 = vmatmul.mubr.bf16.gmra.mrb[0].mxu0 %v4779
      %v4918 = vpop.f32.mrb[0].mxu0
      %v4919 = vadd.f32 0.0, %v4918
      %v4920 = vpop.f32.mrb[0].mxu0
      %v4921 = vpop.f32.mrb[0].mxu0
      %v4922 = vadd.f32 0.0, %v4921
      %v4923 = vpop.f32.mrb[0].mxu0
      %4924 = vmatprep.mubr.bf16.mxu0 0
      %4925 = vmatmul.mubr.bf16.gmra.mrb[0].mxu0 %v4782
      %v4926 = vpop.f32.mrb[0].mxu0
      %v4927 = vadd.f32 0.0, %v4926
      %v4928 = vpop.f32.mrb[0].mxu0
      %v4929 = vpop.f32.mrb[0].mxu0
      %v4930 = vadd.f32 0.0, %v4929
      %v4931 = vpop.f32.mrb[0].mxu0
      %4932 = vmatprep.mubr.bf16.mxu0 0
      %4933 = vmatmul.mubr.bf16.gmra.mrb[0].mxu0 %v4785
      %v4934 = vpop.f32.mrb[0].mxu0
      %v4935 = vadd.f32 0.0, %v4934
      %v4936 = vpop.f32.mrb[0].mxu0
      %v4937 = vpop.f32.mrb[0].mxu0
      %v4938 = vadd.f32 0.0, %v4937
      %v4939 = vpop.f32.mrb[0].mxu0
      %4940 = vmatprep.mubr.bf16.mxu0 0
      %4941 = vmatmul.mubr.bf16.gmra.mrb[0].mxu0 %v4788
      %v4942 = vpop.f32.mrb[0].mxu0
      %v4943 = vadd.f32 0.0, %v4942
      %v4944 = vpop.f32.mrb[0].mxu0
      %v4945 = vpop.f32.mrb[0].mxu0
      %v4946 = vadd.f32 0.0, %v4945
      %v4947 = vpop.f32.mrb[0].mxu0
      %4948 = vmatprep.mubr.bf16.mxu0 0
      %4949 = vmatmul.mubr.bf16.gmra.mrb[0].mxu0 %v4791
      %v4950 = vpop.f32.mrb[0].mxu0
      %v4951 = vadd.f32 0.0, %v4950
      %v4952 = vpop.f32.mrb[0].mxu0
      %v4953 = vpop.f32.mrb[0].mxu0
      %v4954 = vadd.f32 0.0, %v4953
      %v4955 = vpop.f32.mrb[0].mxu0
      %4956 = vdwg.mxu0
      %v4957 = vadd.f32 %v4663, %v4831
      %v4958 = vadd.f32 %v4664, %v4834
      %v4959 = vadd.f32 %v4665, %v4839
      %v4960 = vadd.f32 %v4666, %v4842
      %v4961 = vadd.f32 %v4667, %v4847
      %v4962 = vadd.f32 %v4668, %v4850
      %v4963 = vadd.f32 %v4669, %v4855
      %v4964 = vadd.f32 %v4670, %v4858
      %v4965 = vadd.f32 %v4671, %v4863
      %v4966 = vadd.f32 %v4672, %v4866
      %v4967 = vadd.f32 %v4673, %v4871
      %v4968 = vadd.f32 %v4674, %v4874
      %v4969 = vadd.f32 %v4675, %v4879
      %v4970 = vadd.f32 %v4676, %v4882
      %v4971 = vadd.f32 %v4677, %v4887
      %v4972 = vadd.f32 %v4678, %v4890
      %v4973 = vadd.f32 %v4679, %v4895
      %v4974 = vadd.f32 %v4680, %v4898
      %v4975 = vadd.f32 %v4681, %v4903
      %v4976 = vadd.f32 %v4682, %v4906
      %v4977 = vadd.f32 %v4683, %v4911
      %v4978 = vadd.f32 %v4684, %v4914
      %v4979 = vadd.f32 %v4685, %v4919
      %v4980 = vadd.f32 %v4686, %v4922
      %v4981 = vadd.f32 %v4687, %v4927
      %v4982 = vadd.f32 %v4688, %v4930
      %v4983 = vadd.f32 %v4689, %v4935
      %v4984 = vadd.f32 %v4690, %v4938
      %v4985 = vadd.f32 %v4691, %v4943
      %v4986 = vadd.f32 %v4692, %v4946
      %v4987 = vadd.f32 %v4693, %v4951
      %v4988 = vadd.f32 %v4694, %v4954
      %v4989 = vld [vmem:[%s3550 + $0x2] sm:$0xff]
      %v4990 = vld [vmem:[%s3550 + $0xa] sm:$0xff]
      %v4991 = vld [vmem:[%s3550 + $0x1a] sm:$0xff]
      %v4992 = vld [vmem:[%s3550 + $0x22] sm:$0xff]
      %v4993 = vld [vmem:[%s3550 + $0x32] sm:$0xff]
      %v4994 = vld [vmem:[%s3550 + $0x3a] sm:$0xff]
      %v4995 = vld [vmem:[%s3550 + $0x4a] sm:$0xff]
      %v4996 = vld [vmem:[%s3550 + $0x52] sm:$0xff]
      %v4997 = vld [vmem:[%s3550 + $0x62] sm:$0xff]
      %v4998 = vld [vmem:[%s3550 + $0x6a] sm:$0xff]
      %v4999 = vld [vmem:[%s3550 + $0x7a] sm:$0xff]
      %v5000 = vld [vmem:[%s3550 + $0x82] sm:$0xff]
      %v5001 = vld [vmem:[%s3550 + $0x92] sm:$0xff]
      %v5002 = vld [vmem:[%s3550 + $0x9a] sm:$0xff]
      %v5003 = vld [vmem:[%s3550 + $0xaa] sm:$0xff]
      %v5004 = vld [vmem:[%s3550 + $0xb2] sm:$0xff]
      %v5005 = vld [vmem:[%s3550 + $0xc2] sm:$0xff]
      %v5006 = vld [vmem:[%s3550 + $0xca] sm:$0xff]
      %v5007 = vld [vmem:[%s3550 + $0xda] sm:$0xff]
      %v5008 = vld [vmem:[%s3550 + $0xe2] sm:$0xff]
      %v5009 = vld [vmem:[%s3550 + $0xf2] sm:$0xff]
      %v5010 = vld [vmem:[%s3550 + $0xfa] sm:$0xff]
      %v5011 = vld [vmem:[%s3550 + $0x10a] sm:$0xff]
      %v5012 = vld [vmem:[%s3550 + $0x112] sm:$0xff]
      %v5013 = vld [vmem:[%s3550 + $0x122] sm:$0xff]
      %v5014 = vld [vmem:[%s3550 + $0x12a] sm:$0xff]
      %v5015 = vld [vmem:[%s3550 + $0x13a] sm:$0xff]
      %v5016 = vld [vmem:[%s3550 + $0x142] sm:$0xff]
      %v5017 = vld [vmem:[%s3550 + $0x152] sm:$0xff]
      %v5018 = vld [vmem:[%s3550 + $0x15a] sm:$0xff]
      %v5019 = vld [vmem:[%s3550 + $0x16a] sm:$0xff]
      %v5020 = vld [vmem:[%s3550 + $0x172] sm:$0xff]
      %v5021 = vpack.c.bf16 %v4990, %v4989
      %v5022 = vpack.c.bf16 %v4992, %v4991
      %v5023 = vpack.c.bf16 %v4994, %v4993
      %v5024 = vpack.c.bf16 %v4996, %v4995
      %v5025 = vpack.c.bf16 %v4998, %v4997
      %v5026 = vpack.c.bf16 %v5000, %v4999
      %v5027 = vpack.c.bf16 %v5002, %v5001
      %v5028 = vpack.c.bf16 %v5004, %v5003
      %v5029 = vpack.c.bf16 %v5006, %v5005
      %v5030 = vpack.c.bf16 %v5008, %v5007
      %v5031 = vpack.c.bf16 %v5010, %v5009
      %v5032 = vpack.c.bf16 %v5012, %v5011
      %v5033 = vpack.c.bf16 %v5014, %v5013
      %v5034 = vpack.c.bf16 %v5016, %v5015
      %v5035 = vpack.c.bf16 %v5018, %v5017
      %v5036 = vpack.c.bf16 %v5020, %v5019
      %s5037 = scalar_lea.vmem %s3, 10
      %v5038 = vld [vmem:[%s5037] sm:$0x3]
      %v5040 = vsel %vm304, %v5021, 0
      %v5043 = vsel %vm304, %v5022, 0
      %v5046 = vsel %vm304, %v5023, 0
      %v5049 = vsel %vm304, %v5024, 0
      %v5052 = vsel %vm304, %v5025, 0
      %v5055 = vsel %vm304, %v5026, 0
      %v5058 = vsel %vm304, %v5027, 0
      %v5061 = vsel %vm304, %v5028, 0
      %v5064 = vsel %vm304, %v5029, 0
      %v5067 = vsel %vm304, %v5030, 0
      %v5070 = vsel %vm304, %v5031, 0
      %v5073 = vsel %vm304, %v5032, 0
      %v5076 = vsel %vm304, %v5033, 0
      %v5079 = vsel %vm304, %v5034, 0
      %v5082 = vsel %vm304, %v5035, 0
      %v5085 = vsel %vm304, %v5036, 0
      %v5088 = vsel %vm3730, %v5038, 0
      %5090 = vmatprep.subr.bf16.mxu0 0
      %5091 = vmatpush1.bf16.msra.mxu0 %v5088
      %5092 = vmatprep.subr.bf16.mxu0 0
      %5093 = vmatpush1.bf16.msra.mxu0 0
      %5094 = vmatprep.subr.bf16.mxu0 0
      %5095 = vmatpush1.bf16.msra.mxu0 0
      %5096 = vmatprep.subr.bf16.mxu0 0
      %5097 = vmatpush1.bf16.msra.mxu0 0
      %5098 = vmatprep.subr.bf16.mxu0 0
      %5099 = vmatpush1.bf16.msra.mxu0 0
      %5100 = vmatprep.subr.bf16.mxu0 0
      %5101 = vmatpush1.bf16.msra.mxu0 0
      %5102 = vmatprep.subr.bf16.mxu0 0
      %5103 = vmatpush1.bf16.msra.mxu0 0
      %5104 = vmatprep.subr.bf16.mxu0 0
      %5105 = vmatpush1.bf16.msra.mxu0 0
      %5106 = vmatprep.subr.bf16.mxu0 0
      %5107 = vmatpush1.bf16.msra.mxu0 0
      %5108 = vmatprep.subr.bf16.mxu0 0
      %5109 = vmatpush1.bf16.msra.mxu0 0
      %5110 = vmatprep.subr.bf16.mxu0 0
      %5111 = vmatpush1.bf16.msra.mxu0 0
      %5112 = vmatprep.subr.bf16.mxu0 0
      %5113 = vmatpush1.bf16.msra.mxu0 0
      %5114 = vmatprep.subr.bf16.mxu0 0
      %5115 = vmatpush1.bf16.msra.mxu0 0
      %5116 = vmatprep.subr.bf16.mxu0 0
      %5117 = vmatpush1.bf16.msra.mxu0 0
      %5118 = vmatprep.subr.bf16.mxu0 0
      %5119 = vmatpush1.bf16.msra.mxu0 0
      %5120 = vmatprep.subr.bf16.mxu0 0
      %5121 = vmatpush1.bf16.msra.mxu0 0
      %5122 = vmatprep.mubr.bf16.mxu0 0
      %5123 = vmatmul.mubr.bf16.gmra.mrb[0].mxu0 %v5040
      %v5124 = vpop.f32.mrb[0].mxu0
      %v5125 = vadd.f32 0.0, %v5124
      %v5126 = vpop.f32.mrb[0].mxu0
      %v5127 = vpop.f32.mrb[0].mxu0
      %v5128 = vadd.f32 0.0, %v5127
      %v5129 = vpop.f32.mrb[0].mxu0
      %5130 = vmatprep.mubr.bf16.mxu0 0
      %5131 = vmatmul.mubr.bf16.gmra.mrb[0].mxu0 %v5043
      %v5132 = vpop.f32.mrb[0].mxu0
      %v5133 = vadd.f32 0.0, %v5132
      %v5134 = vpop.f32.mrb[0].mxu0
      %v5135 = vpop.f32.mrb[0].mxu0
      %v5136 = vadd.f32 0.0, %v5135
      %v5137 = vpop.f32.mrb[0].mxu0
      %5138 = vmatprep.mubr.bf16.mxu0 0
      %5139 = vmatmul.mubr.bf16.gmra.mrb[0].mxu0 %v5046
      %v5140 = vpop.f32.mrb[0].mxu0
      %v5141 = vadd.f32 0.0, %v5140
      %v5142 = vpop.f32.mrb[0].mxu0
      %v5143 = vpop.f32.mrb[0].mxu0
      %v5144 = vadd.f32 0.0, %v5143
      %v5145 = vpop.f32.mrb[0].mxu0
      %5146 = vmatprep.mubr.bf16.mxu0 0
      %5147 = vmatmul.mubr.bf16.gmra.mrb[0].mxu0 %v5049
      %v5148 = vpop.f32.mrb[0].mxu0
      %v5149 = vadd.f32 0.0, %v5148
      %v5150 = vpop.f32.mrb[0].mxu0
      %v5151 = vpop.f32.mrb[0].mxu0
      %v5152 = vadd.f32 0.0, %v5151
      %v5153 = vpop.f32.mrb[0].mxu0
      %5154 = vmatprep.mubr.bf16.mxu0 0
      %5155 = vmatmul.mubr.bf16.gmra.mrb[0].mxu0 %v5052
      %v5156 = vpop.f32.mrb[0].mxu0
      %v5157 = vadd.f32 0.0, %v5156
      %v5158 = vpop.f32.mrb[0].mxu0
      %v5159 = vpop.f32.mrb[0].mxu0
      %v5160 = vadd.f32 0.0, %v5159
      %v5161 = vpop.f32.mrb[0].mxu0
      %5162 = vmatprep.mubr.bf16.mxu0 0
      %5163 = vmatmul.mubr.bf16.gmra.mrb[0].mxu0 %v5055
      %v5164 = vpop.f32.mrb[0].mxu0
      %v5165 = vadd.f32 0.0, %v5164
      %v5166 = vpop.f32.mrb[0].mxu0
      %v5167 = vpop.f32.mrb[0].mxu0
      %v5168 = vadd.f32 0.0, %v5167
      %v5169 = vpop.f32.mrb[0].mxu0
      %5170 = vmatprep.mubr.bf16.mxu0 0
      %5171 = vmatmul.mubr.bf16.gmra.mrb[0].mxu0 %v5058
      %v5172 = vpop.f32.mrb[0].mxu0
      %v5173 = vadd.f32 0.0, %v5172
      %v5174 = vpop.f32.mrb[0].mxu0
      %v5175 = vpop.f32.mrb[0].mxu0
      %v5176 = vadd.f32 0.0, %v5175
      %v5177 = vpop.f32.mrb[0].mxu0
      %5178 = vmatprep.mubr.bf16.mxu0 0
      %5179 = vmatmul.mubr.bf16.gmra.mrb[0].mxu0 %v5061
      %v5180 = vpop.f32.mrb[0].mxu0
      %v5181 = vadd.f32 0.0, %v5180
      %v5182 = vpop.f32.mrb[0].mxu0
      %v5183 = vpop.f32.mrb[0].mxu0
      %v5184 = vadd.f32 0.0, %v5183
      %v5185 = vpop.f32.mrb[0].mxu0
      %5186 = vmatprep.mubr.bf16.mxu0 0
      %5187 = vmatmul.mubr.bf16.gmra.mrb[0].mxu0 %v5064
      %v5188 = vpop.f32.mrb[0].mxu0
      %v5189 = vadd.f32 0.0, %v5188
      %v5190 = vpop.f32.mrb[0].mxu0
      %v5191 = vpop.f32.mrb[0].mxu0
      %v5192 = vadd.f32 0.0, %v5191
      %v5193 = vpop.f32.mrb[0].mxu0
      %5194 = vmatprep.mubr.bf16.mxu0 0
      %5195 = vmatmul.mubr.bf16.gmra.mrb[0].mxu0 %v5067
      %v5196 = vpop.f32.mrb[0].mxu0
      %v5197 = vadd.f32 0.0, %v5196
      %v5198 = vpop.f32.mrb[0].mxu0
      %v5199 = vpop.f32.mrb[0].mxu0
      %v5200 = vadd.f32 0.0, %v5199
      %v5201 = vpop.f32.mrb[0].mxu0
      %5202 = vmatprep.mubr.bf16.mxu0 0
      %5203 = vmatmul.mubr.bf16.gmra.mrb[0].mxu0 %v5070
      %v5204 = vpop.f32.mrb[0].mxu0
      %v5205 = vadd.f32 0.0, %v5204
      %v5206 = vpop.f32.mrb[0].mxu0
      %v5207 = vpop.f32.mrb[0].mxu0
      %v5208 = vadd.f32 0.0, %v5207
      %v5209 = vpop.f32.mrb[0].mxu0
      %5210 = vmatprep.mubr.bf16.mxu0 0
      %5211 = vmatmul.mubr.bf16.gmra.mrb[0].mxu0 %v5073
      %v5212 = vpop.f32.mrb[0].mxu0
      %v5213 = vadd.f32 0.0, %v5212
      %v5214 = vpop.f32.mrb[0].mxu0
      %v5215 = vpop.f32.mrb[0].mxu0
      %v5216 = vadd.f32 0.0, %v5215
      %v5217 = vpop.f32.mrb[0].mxu0
      %5218 = vmatprep.mubr.bf16.mxu0 0
      %5219 = vmatmul.mubr.bf16.gmra.mrb[0].mxu0 %v5076
      %v5220 = vpop.f32.mrb[0].mxu0
      %v5221 = vadd.f32 0.0, %v5220
      %v5222 = vpop.f32.mrb[0].mxu0
      %v5223 = vpop.f32.mrb[0].mxu0
      %v5224 = vadd.f32 0.0, %v5223
      %v5225 = vpop.f32.mrb[0].mxu0
      %5226 = vmatprep.mubr.bf16.mxu0 0
      %5227 = vmatmul.mubr.bf16.gmra.mrb[0].mxu0 %v5079
      %v5228 = vpop.f32.mrb[0].mxu0
      %v5229 = vadd.f32 0.0, %v5228
      %v5230 = vpop.f32.mrb[0].mxu0
      %v5231 = vpop.f32.mrb[0].mxu0
      %v5232 = vadd.f32 0.0, %v5231
      %v5233 = vpop.f32.mrb[0].mxu0
      %5234 = vmatprep.mubr.bf16.mxu0 0
      %5235 = vmatmul.mubr.bf16.gmra.mrb[0].mxu0 %v5082
      %v5236 = vpop.f32.mrb[0].mxu0
      %v5237 = vadd.f32 0.0, %v5236
      %v5238 = vpop.f32.mrb[0].mxu0
      %v5239 = vpop.f32.mrb[0].mxu0
      %v5240 = vadd.f32 0.0, %v5239
      %v5241 = vpop.f32.mrb[0].mxu0
      %5242 = vmatprep.mubr.bf16.mxu0 0
      %5243 = vmatmul.mubr.bf16.gmra.mrb[0].mxu0 %v5085
      %v5244 = vpop.f32.mrb[0].mxu0
      %v5245 = vadd.f32 0.0, %v5244
      %v5246 = vpop.f32.mrb[0].mxu0
      %v5247 = vpop.f32.mrb[0].mxu0
      %v5248 = vadd.f32 0.0, %v5247
      %v5249 = vpop.f32.mrb[0].mxu0
      %5250 = vdwg.mxu0
      %v5251 = vadd.f32 %v4957, %v5125
      %v5252 = vadd.f32 %v4958, %v5128
      %v5253 = vadd.f32 %v4959, %v5133
      %v5254 = vadd.f32 %v4960, %v5136
      %v5255 = vadd.f32 %v4961, %v5141
      %v5256 = vadd.f32 %v4962, %v5144
      %v5257 = vadd.f32 %v4963, %v5149
      %v5258 = vadd.f32 %v4964, %v5152
      %v5259 = vadd.f32 %v4965, %v5157
      %v5260 = vadd.f32 %v4966, %v5160
      %v5261 = vadd.f32 %v4967, %v5165
      %v5262 = vadd.f32 %v4968, %v5168
      %v5263 = vadd.f32 %v4969, %v5173
      %v5264 = vadd.f32 %v4970, %v5176
      %v5265 = vadd.f32 %v4971, %v5181
      %v5266 = vadd.f32 %v4972, %v5184
      %v5267 = vadd.f32 %v4973, %v5189
      %v5268 = vadd.f32 %v4974, %v5192
      %v5269 = vadd.f32 %v4975, %v5197
      %v5270 = vadd.f32 %v4976, %v5200
      %v5271 = vadd.f32 %v4977, %v5205
      %v5272 = vadd.f32 %v4978, %v5208
      %v5273 = vadd.f32 %v4979, %v5213
      %v5274 = vadd.f32 %v4980, %v5216
      %v5275 = vadd.f32 %v4981, %v5221
      %v5276 = vadd.f32 %v4982, %v5224
      %v5277 = vadd.f32 %v4983, %v5229
      %v5278 = vadd.f32 %v4984, %v5232
      %v5279 = vadd.f32 %v4985, %v5237
      %v5280 = vadd.f32 %v4986, %v5240
      %v5281 = vadd.f32 %v4987, %v5245
      %v5282 = vadd.f32 %v4988, %v5248
      %s5283 = scalar_lea.vmem [#allocation3], 48
      %v5284 = vld [vmem:[%s5283] sm:$0xff]
      %v5285 = vld [vmem:[%s5283 + $0x8] sm:$0xff]
      %v5286 = vld [vmem:[%s5283 + $0x18] sm:$0xff]
      %v5287 = vld [vmem:[%s5283 + $0x20] sm:$0xff]
      %v5288 = vld [vmem:[%s5283 + $0x30] sm:$0xff]
      %v5289 = vld [vmem:[%s5283 + $0x38] sm:$0xff]
      %v5290 = vld [vmem:[%s5283 + $0x48] sm:$0xff]
      %v5291 = vld [vmem:[%s5283 + $0x50] sm:$0xff]
      %v5292 = vld [vmem:[%s5283 + $0x60] sm:$0xff]
      %v5293 = vld [vmem:[%s5283 + $0x68] sm:$0xff]
      %v5294 = vld [vmem:[%s5283 + $0x78] sm:$0xff]
      %v5295 = vld [vmem:[%s5283 + $0x80] sm:$0xff]
      %v5296 = vld [vmem:[%s5283 + $0x90] sm:$0xff]
      %v5297 = vld [vmem:[%s5283 + $0x98] sm:$0xff]
      %v5298 = vld [vmem:[%s5283 + $0xa8] sm:$0xff]
      %v5299 = vld [vmem:[%s5283 + $0xb0] sm:$0xff]
      %v5300 = vld [vmem:[%s5283 + $0xc0] sm:$0xff]
      %v5301 = vld [vmem:[%s5283 + $0xc8] sm:$0xff]
      %v5302 = vld [vmem:[%s5283 + $0xd8] sm:$0xff]
      %v5303 = vld [vmem:[%s5283 + $0xe0] sm:$0xff]
      %v5304 = vld [vmem:[%s5283 + $0xf0] sm:$0xff]
      %v5305 = vld [vmem:[%s5283 + $0xf8] sm:$0xff]
      %v5306 = vld [vmem:[%s5283 + $0x108] sm:$0xff]
      %v5307 = vld [vmem:[%s5283 + $0x110] sm:$0xff]
      %v5308 = vld [vmem:[%s5283 + $0x120] sm:$0xff]
      %v5309 = vld [vmem:[%s5283 + $0x128] sm:$0xff]
      %v5310 = vld [vmem:[%s5283 + $0x138] sm:$0xff]
      %v5311 = vld [vmem:[%s5283 + $0x140] sm:$0xff]
      %v5312 = vld [vmem:[%s5283 + $0x150] sm:$0xff]
      %v5313 = vld [vmem:[%s5283 + $0x158] sm:$0xff]
      %v5314 = vld [vmem:[%s5283 + $0x168] sm:$0xff]
      %v5315 = vld [vmem:[%s5283 + $0x170] sm:$0xff]
      %v5316 = vpack.c.bf16 %v5285, %v5284
      %v5317 = vpack.c.bf16 %v5287, %v5286
      %v5318 = vpack.c.bf16 %v5289, %v5288
      %v5319 = vpack.c.bf16 %v5291, %v5290
      %v5320 = vpack.c.bf16 %v5293, %v5292
      %v5321 = vpack.c.bf16 %v5295, %v5294
      %v5322 = vpack.c.bf16 %v5297, %v5296
      %v5323 = vpack.c.bf16 %v5299, %v5298
      %v5324 = vpack.c.bf16 %v5301, %v5300
      %v5325 = vpack.c.bf16 %v5303, %v5302
      %v5326 = vpack.c.bf16 %v5305, %v5304
      %v5327 = vpack.c.bf16 %v5307, %v5306
      %v5328 = vpack.c.bf16 %v5309, %v5308
      %v5329 = vpack.c.bf16 %v5311, %v5310
      %v5330 = vpack.c.bf16 %v5313, %v5312
      %v5331 = vpack.c.bf16 %v5315, %v5314
      %s5332 = scalar_lea.vmem %s3, 12
      %v5333 = vld [vmem:[%s5332] sm:$0x3]
      %v5335 = vsel %vm304, %v5316, 0
      %v5338 = vsel %vm304, %v5317, 0
      %v5341 = vsel %vm304, %v5318, 0
      %v5344 = vsel %vm304, %v5319, 0
      %v5347 = vsel %vm304, %v5320, 0
      %v5350 = vsel %vm304, %v5321, 0
      %v5353 = vsel %vm304, %v5322, 0
      %v5356 = vsel %vm304, %v5323, 0
      %v5359 = vsel %vm304, %v5324, 0
      %v5362 = vsel %vm304, %v5325, 0
      %v5365 = vsel %vm304, %v5326, 0
      %v5368 = vsel %vm304, %v5327, 0
      %v5371 = vsel %vm304, %v5328, 0
      %v5374 = vsel %vm304, %v5329, 0
      %v5377 = vsel %vm304, %v5330, 0
      %v5380 = vsel %vm304, %v5331, 0
      %v5383 = vsel %vm3730, %v5333, 0
      %5385 = vmatprep.subr.bf16.mxu0 0
      %5386 = vmatpush1.bf16.msra.mxu0 %v5383
      %5387 = vmatprep.subr.bf16.mxu0 0
      %5388 = vmatpush1.bf16.msra.mxu0 0
      %5389 = vmatprep.subr.bf16.mxu0 0
      %5390 = vmatpush1.bf16.msra.mxu0 0
      %5391 = vmatprep.subr.bf16.mxu0 0
      %5392 = vmatpush1.bf16.msra.mxu0 0
      %5393 = vmatprep.subr.bf16.mxu0 0
      %5394 = vmatpush1.bf16.msra.mxu0 0
      %5395 = vmatprep.subr.bf16.mxu0 0
      %5396 = vmatpush1.bf16.msra.mxu0 0
      %5397 = vmatprep.subr.bf16.mxu0 0
      %5398 = vmatpush1.bf16.msra.mxu0 0
      %5399 = vmatprep.subr.bf16.mxu0 0
      %5400 = vmatpush1.bf16.msra.mxu0 0
      %5401 = vmatprep.subr.bf16.mxu0 0
      %5402 = vmatpush1.bf16.msra.mxu0 0
      %5403 = vmatprep.subr.bf16.mxu0 0
      %5404 = vmatpush1.bf16.msra.mxu0 0
      %5405 = vmatprep.subr.bf16.mxu0 0
      %5406 = vmatpush1.bf16.msra.mxu0 0
      %5407 = vmatprep.subr.bf16.mxu0 0
      %5408 = vmatpush1.bf16.msra.mxu0 0
      %5409 = vmatprep.subr.bf16.mxu0 0
      %5410 = vmatpush1.bf16.msra.mxu0 0
      %5411 = vmatprep.subr.bf16.mxu0 0
      %5412 = vmatpush1.bf16.msra.mxu0 0
      %5413 = vmatprep.subr.bf16.mxu0 0
      %5414 = vmatpush1.bf16.msra.mxu0 0
      %5415 = vmatprep.subr.bf16.mxu0 0
      %5416 = vmatpush1.bf16.msra.mxu0 0
      %5417 = vmatprep.mubr.bf16.mxu0 0
      %5418 = vmatmul.mubr.bf16.gmra.mrb[0].mxu0 %v5335
      %v5419 = vpop.f32.mrb[0].mxu0
      %v5420 = vadd.f32 0.0, %v5419
      %v5421 = vpop.f32.mrb[0].mxu0
      %v5422 = vpop.f32.mrb[0].mxu0
      %v5423 = vadd.f32 0.0, %v5422
      %v5424 = vpop.f32.mrb[0].mxu0
      %5425 = vmatprep.mubr.bf16.mxu0 0
      %5426 = vmatmul.mubr.bf16.gmra.mrb[0].mxu0 %v5338
      %v5427 = vpop.f32.mrb[0].mxu0
      %v5428 = vadd.f32 0.0, %v5427
      %v5429 = vpop.f32.mrb[0].mxu0
      %v5430 = vpop.f32.mrb[0].mxu0
      %v5431 = vadd.f32 0.0, %v5430
      %v5432 = vpop.f32.mrb[0].mxu0
      %5433 = vmatprep.mubr.bf16.mxu0 0
      %5434 = vmatmul.mubr.bf16.gmra.mrb[0].mxu0 %v5341
      %v5435 = vpop.f32.mrb[0].mxu0
      %v5436 = vadd.f32 0.0, %v5435
      %v5437 = vpop.f32.mrb[0].mxu0
      %v5438 = vpop.f32.mrb[0].mxu0
      %v5439 = vadd.f32 0.0, %v5438
      %v5440 = vpop.f32.mrb[0].mxu0
      %5441 = vmatprep.mubr.bf16.mxu0 0
      %5442 = vmatmul.mubr.bf16.gmra.mrb[0].mxu0 %v5344
      %v5443 = vpop.f32.mrb[0].mxu0
      %v5444 = vadd.f32 0.0, %v5443
      %v5445 = vpop.f32.mrb[0].mxu0
      %v5446 = vpop.f32.mrb[0].mxu0
      %v5447 = vadd.f32 0.0, %v5446
      %v5448 = vpop.f32.mrb[0].mxu0
      %5449 = vmatprep.mubr.bf16.mxu0 0
      %5450 = vmatmul.mubr.bf16.gmra.mrb[0].mxu0 %v5347
      %v5451 = vpop.f32.mrb[0].mxu0
      %v5452 = vadd.f32 0.0, %v5451
      %v5453 = vpop.f32.mrb[0].mxu0
      %v5454 = vpop.f32.mrb[0].mxu0
      %v5455 = vadd.f32 0.0, %v5454
      %v5456 = vpop.f32.mrb[0].mxu0
      %5457 = vmatprep.mubr.bf16.mxu0 0
      %5458 = vmatmul.mubr.bf16.gmra.mrb[0].mxu0 %v5350
      %v5459 = vpop.f32.mrb[0].mxu0
      %v5460 = vadd.f32 0.0, %v5459
      %v5461 = vpop.f32.mrb[0].mxu0
      %v5462 = vpop.f32.mrb[0].mxu0
      %v5463 = vadd.f32 0.0, %v5462
      %v5464 = vpop.f32.mrb[0].mxu0
      %5465 = vmatprep.mubr.bf16.mxu0 0
      %5466 = vmatmul.mubr.bf16.gmra.mrb[0].mxu0 %v5353
      %v5467 = vpop.f32.mrb[0].mxu0
      %v5468 = vadd.f32 0.0, %v5467
      %v5469 = vpop.f32.mrb[0].mxu0
      %v5470 = vpop.f32.mrb[0].mxu0
      %v5471 = vadd.f32 0.0, %v5470
      %v5472 = vpop.f32.mrb[0].mxu0
      %5473 = vmatprep.mubr.bf16.mxu0 0
      %5474 = vmatmul.mubr.bf16.gmra.mrb[0].mxu0 %v5356
      %v5475 = vpop.f32.mrb[0].mxu0
      %v5476 = vadd.f32 0.0, %v5475
      %v5477 = vpop.f32.mrb[0].mxu0
      %v5478 = vpop.f32.mrb[0].mxu0
      %v5479 = vadd.f32 0.0, %v5478
      %v5480 = vpop.f32.mrb[0].mxu0
      %5481 = vmatprep.mubr.bf16.mxu0 0
      %5482 = vmatmul.mubr.bf16.gmra.mrb[0].mxu0 %v5359
      %v5483 = vpop.f32.mrb[0].mxu0
      %v5484 = vadd.f32 0.0, %v5483
      %v5485 = vpop.f32.mrb[0].mxu0
      %v5486 = vpop.f32.mrb[0].mxu0
      %v5487 = vadd.f32 0.0, %v5486
      %v5488 = vpop.f32.mrb[0].mxu0
      %5489 = vmatprep.mubr.bf16.mxu0 0
      %5490 = vmatmul.mubr.bf16.gmra.mrb[0].mxu0 %v5362
      %v5491 = vpop.f32.mrb[0].mxu0
      %v5492 = vadd.f32 0.0, %v5491
      %v5493 = vpop.f32.mrb[0].mxu0
      %v5494 = vpop.f32.mrb[0].mxu0
      %v5495 = vadd.f32 0.0, %v5494
      %v5496 = vpop.f32.mrb[0].mxu0
      %5497 = vmatprep.mubr.bf16.mxu0 0
      %5498 = vmatmul.mubr.bf16.gmra.mrb[0].mxu0 %v5365
      %v5499 = vpop.f32.mrb[0].mxu0
      %v5500 = vadd.f32 0.0, %v5499
      %v5501 = vpop.f32.mrb[0].mxu0
      %v5502 = vpop.f32.mrb[0].mxu0
      %v5503 = vadd.f32 0.0, %v5502
      %v5504 = vpop.f32.mrb[0].mxu0
      %5505 = vmatprep.mubr.bf16.mxu0 0
      %5506 = vmatmul.mubr.bf16.gmra.mrb[0].mxu0 %v5368
      %v5507 = vpop.f32.mrb[0].mxu0
      %v5508 = vadd.f32 0.0, %v5507
      %v5509 = vpop.f32.mrb[0].mxu0
      %v5510 = vpop.f32.mrb[0].mxu0
      %v5511 = vadd.f32 0.0, %v5510
      %v5512 = vpop.f32.mrb[0].mxu0
      %5513 = vmatprep.mubr.bf16.mxu0 0
      %5514 = vmatmul.mubr.bf16.gmra.mrb[0].mxu0 %v5371
      %v5515 = vpop.f32.mrb[0].mxu0
      %v5516 = vadd.f32 0.0, %v5515
      %v5517 = vpop.f32.mrb[0].mxu0
      %v5518 = vpop.f32.mrb[0].mxu0
      %v5519 = vadd.f32 0.0, %v5518
      %v5520 = vpop.f32.mrb[0].mxu0
      %5521 = vmatprep.mubr.bf16.mxu0 0
      %5522 = vmatmul.mubr.bf16.gmra.mrb[0].mxu0 %v5374
      %v5523 = vpop.f32.mrb[0].mxu0
      %v5524 = vadd.f32 0.0, %v5523
      %v5525 = vpop.f32.mrb[0].mxu0
      %v5526 = vpop.f32.mrb[0].mxu0
      %v5527 = vadd.f32 0.0, %v5526
      %v5528 = vpop.f32.mrb[0].mxu0
      %5529 = vmatprep.mubr.bf16.mxu0 0
      %5530 = vmatmul.mubr.bf16.gmra.mrb[0].mxu0 %v5377
      %v5531 = vpop.f32.mrb[0].mxu0
      %v5532 = vadd.f32 0.0, %v5531
      %v5533 = vpop.f32.mrb[0].mxu0
      %v5534 = vpop.f32.mrb[0].mxu0
      %v5535 = vadd.f32 0.0, %v5534
      %v5536 = vpop.f32.mrb[0].mxu0
      %5537 = vmatprep.mubr.bf16.mxu0 0
      %5538 = vmatmul.mubr.bf16.gmra.mrb[0].mxu0 %v5380
      %v5539 = vpop.f32.mrb[0].mxu0
      %v5540 = vadd.f32 0.0, %v5539
      %v5541 = vpop.f32.mrb[0].mxu0
      %v5542 = vpop.f32.mrb[0].mxu0
      %v5543 = vadd.f32 0.0, %v5542
      %v5544 = vpop.f32.mrb[0].mxu0
      %5545 = vdwg.mxu0
      %v5546 = vadd.f32 %v5251, %v5420
      %v5547 = vadd.f32 %v5252, %v5423
      %v5548 = vadd.f32 %v5253, %v5428
      %v5549 = vadd.f32 %v5254, %v5431
      %v5550 = vadd.f32 %v5255, %v5436
      %v5551 = vadd.f32 %v5256, %v5439
      %v5552 = vadd.f32 %v5257, %v5444
      %v5553 = vadd.f32 %v5258, %v5447
      %v5554 = vadd.f32 %v5259, %v5452
      %v5555 = vadd.f32 %v5260, %v5455
      %v5556 = vadd.f32 %v5261, %v5460
      %v5557 = vadd.f32 %v5262, %v5463
      %v5558 = vadd.f32 %v5263, %v5468
      %v5559 = vadd.f32 %v5264, %v5471
      %v5560 = vadd.f32 %v5265, %v5476
      %v5561 = vadd.f32 %v5266, %v5479
      %v5562 = vadd.f32 %v5267, %v5484
      %v5563 = vadd.f32 %v5268, %v5487
      %v5564 = vadd.f32 %v5269, %v5492
      %v5565 = vadd.f32 %v5270, %v5495
      %v5566 = vadd.f32 %v5271, %v5500
      %v5567 = vadd.f32 %v5272, %v5503
      %v5568 = vadd.f32 %v5273, %v5508
      %v5569 = vadd.f32 %v5274, %v5511
      %v5570 = vadd.f32 %v5275, %v5516
      %v5571 = vadd.f32 %v5276, %v5519
      %v5572 = vadd.f32 %v5277, %v5524
      %v5573 = vadd.f32 %v5278, %v5527
      %v5574 = vadd.f32 %v5279, %v5532
      %v5575 = vadd.f32 %v5280, %v5535
      %v5576 = vadd.f32 %v5281, %v5540
      %v5577 = vadd.f32 %v5282, %v5543
      %v5578 = vld [vmem:[%s5283 + $0x1] sm:$0xff]
      %v5579 = vld [vmem:[%s5283 + $0x9] sm:$0xff]
      %v5580 = vld [vmem:[%s5283 + $0x19] sm:$0xff]
      %v5581 = vld [vmem:[%s5283 + $0x21] sm:$0xff]
      %v5582 = vld [vmem:[%s5283 + $0x31] sm:$0xff]
      %v5583 = vld [vmem:[%s5283 + $0x39] sm:$0xff]
      %v5584 = vld [vmem:[%s5283 + $0x49] sm:$0xff]
      %v5585 = vld [vmem:[%s5283 + $0x51] sm:$0xff]
      %v5586 = vld [vmem:[%s5283 + $0x61] sm:$0xff]
      %v5587 = vld [vmem:[%s5283 + $0x69] sm:$0xff]
      %v5588 = vld [vmem:[%s5283 + $0x79] sm:$0xff]
      %v5589 = vld [vmem:[%s5283 + $0x81] sm:$0xff]
      %v5590 = vld [vmem:[%s5283 + $0x91] sm:$0xff]
      %v5591 = vld [vmem:[%s5283 + $0x99] sm:$0xff]
      %v5592 = vld [vmem:[%s5283 + $0xa9] sm:$0xff]
      %v5593 = vld [vmem:[%s5283 + $0xb1] sm:$0xff]
      %v5594 = vld [vmem:[%s5283 + $0xc1] sm:$0xff]
      %v5595 = vld [vmem:[%s5283 + $0xc9] sm:$0xff]
      %v5596 = vld [vmem:[%s5283 + $0xd9] sm:$0xff]
      %v5597 = vld [vmem:[%s5283 + $0xe1] sm:$0xff]
      %v5598 = vld [vmem:[%s5283 + $0xf1] sm:$0xff]
      %v5599 = vld [vmem:[%s5283 + $0xf9] sm:$0xff]
      %v5600 = vld [vmem:[%s5283 + $0x109] sm:$0xff]
      %v5601 = vld [vmem:[%s5283 + $0x111] sm:$0xff]
      %v5602 = vld [vmem:[%s5283 + $0x121] sm:$0xff]
      %v5603 = vld [vmem:[%s5283 + $0x129] sm:$0xff]
      %v5604 = vld [vmem:[%s5283 + $0x139] sm:$0xff]
      %v5605 = vld [vmem:[%s5283 + $0x141] sm:$0xff]
      %v5606 = vld [vmem:[%s5283 + $0x151] sm:$0xff]
      %v5607 = vld [vmem:[%s5283 + $0x159] sm:$0xff]
      %v5608 = vld [vmem:[%s5283 + $0x169] sm:$0xff]
      %v5609 = vld [vmem:[%s5283 + $0x171] sm:$0xff]
      %v5610 = vpack.c.bf16 %v5579, %v5578
      %v5611 = vpack.c.bf16 %v5581, %v5580
      %v5612 = vpack.c.bf16 %v5583, %v5582
      %v5613 = vpack.c.bf16 %v5585, %v5584
      %v5614 = vpack.c.bf16 %v5587, %v5586
      %v5615 = vpack.c.bf16 %v5589, %v5588
      %v5616 = vpack.c.bf16 %v5591, %v5590
      %v5617 = vpack.c.bf16 %v5593, %v5592
      %v5618 = vpack.c.bf16 %v5595, %v5594
      %v5619 = vpack.c.bf16 %v5597, %v5596
      %v5620 = vpack.c.bf16 %v5599, %v5598
      %v5621 = vpack.c.bf16 %v5601, %v5600
      %v5622 = vpack.c.bf16 %v5603, %v5602
      %v5623 = vpack.c.bf16 %v5605, %v5604
      %v5624 = vpack.c.bf16 %v5607, %v5606
      %v5625 = vpack.c.bf16 %v5609, %v5608
      %s5626 = scalar_lea.vmem %s3, 14
      %v5627 = vld [vmem:[%s5626] sm:$0x3]
      %v5629 = vsel %vm304, %v5610, 0
      %v5632 = vsel %vm304, %v5611, 0
      %v5635 = vsel %vm304, %v5612, 0
      %v5638 = vsel %vm304, %v5613, 0
      %v5641 = vsel %vm304, %v5614, 0
      %v5644 = vsel %vm304, %v5615, 0
      %v5647 = vsel %vm304, %v5616, 0
      %v5650 = vsel %vm304, %v5617, 0
      %v5653 = vsel %vm304, %v5618, 0
      %v5656 = vsel %vm304, %v5619, 0
      %v5659 = vsel %vm304, %v5620, 0
      %v5662 = vsel %vm304, %v5621, 0
      %v5665 = vsel %vm304, %v5622, 0
      %v5668 = vsel %vm304, %v5623, 0
      %v5671 = vsel %vm304, %v5624, 0
      %v5674 = vsel %vm304, %v5625, 0
      %v5677 = vsel %vm3730, %v5627, 0
      %5679 = vmatprep.subr.bf16.mxu0 0
      %5680 = vmatpush1.bf16.msra.mxu0 %v5677
      %5681 = vmatprep.subr.bf16.mxu0 0
      %5682 = vmatpush1.bf16.msra.mxu0 0
      %5683 = vmatprep.subr.bf16.mxu0 0
      %5684 = vmatpush1.bf16.msra.mxu0 0
      %5685 = vmatprep.subr.bf16.mxu0 0
      %5686 = vmatpush1.bf16.msra.mxu0 0
      %5687 = vmatprep.subr.bf16.mxu0 0
      %5688 = vmatpush1.bf16.msra.mxu0 0
      %5689 = vmatprep.subr.bf16.mxu0 0
      %5690 = vmatpush1.bf16.msra.mxu0 0
      %5691 = vmatprep.subr.bf16.mxu0 0
      %5692 = vmatpush1.bf16.msra.mxu0 0
      %5693 = vmatprep.subr.bf16.mxu0 0
      %5694 = vmatpush1.bf16.msra.mxu0 0
      %5695 = vmatprep.subr.bf16.mxu0 0
      %5696 = vmatpush1.bf16.msra.mxu0 0
      %5697 = vmatprep.subr.bf16.mxu0 0
      %5698 = vmatpush1.bf16.msra.mxu0 0
      %5699 = vmatprep.subr.bf16.mxu0 0
      %5700 = vmatpush1.bf16.msra.mxu0 0
      %5701 = vmatprep.subr.bf16.mxu0 0
      %5702 = vmatpush1.bf16.msra.mxu0 0
      %5703 = vmatprep.subr.bf16.mxu0 0
      %5704 = vmatpush1.bf16.msra.mxu0 0
      %5705 = vmatprep.subr.bf16.mxu0 0
      %5706 = vmatpush1.bf16.msra.mxu0 0
      %5707 = vmatprep.subr.bf16.mxu0 0
      %5708 = vmatpush1.bf16.msra.mxu0 0
      %5709 = vmatprep.subr.bf16.mxu0 0
      %5710 = vmatpush1.bf16.msra.mxu0 0
      %5711 = vmatprep.mubr.bf16.mxu0 0
      %5712 = vmatmul.mubr.bf16.gmra.mrb[0].mxu0 %v5629
      %v5713 = vpop.f32.mrb[0].mxu0
      %v5714 = vadd.f32 0.0, %v5713
      %v5715 = vpop.f32.mrb[0].mxu0
      %v5716 = vpop.f32.mrb[0].mxu0
      %v5717 = vadd.f32 0.0, %v5716
      %v5718 = vpop.f32.mrb[0].mxu0
      %5719 = vmatprep.mubr.bf16.mxu0 0
      %5720 = vmatmul.mubr.bf16.gmra.mrb[0].mxu0 %v5632
      %v5721 = vpop.f32.mrb[0].mxu0
      %v5722 = vadd.f32 0.0, %v5721
      %v5723 = vpop.f32.mrb[0].mxu0
      %v5724 = vpop.f32.mrb[0].mxu0
      %v5725 = vadd.f32 0.0, %v5724
      %v5726 = vpop.f32.mrb[0].mxu0
      %5727 = vmatprep.mubr.bf16.mxu0 0
      %5728 = vmatmul.mubr.bf16.gmra.mrb[0].mxu0 %v5635
      %v5729 = vpop.f32.mrb[0].mxu0
      %v5730 = vadd.f32 0.0, %v5729
      %v5731 = vpop.f32.mrb[0].mxu0
      %v5732 = vpop.f32.mrb[0].mxu0
      %v5733 = vadd.f32 0.0, %v5732
      %v5734 = vpop.f32.mrb[0].mxu0
      %5735 = vmatprep.mubr.bf16.mxu0 0
      %5736 = vmatmul.mubr.bf16.gmra.mrb[0].mxu0 %v5638
      %v5737 = vpop.f32.mrb[0].mxu0
      %v5738 = vadd.f32 0.0, %v5737
      %v5739 = vpop.f32.mrb[0].mxu0
      %v5740 = vpop.f32.mrb[0].mxu0
      %v5741 = vadd.f32 0.0, %v5740
      %v5742 = vpop.f32.mrb[0].mxu0
      %5743 = vmatprep.mubr.bf16.mxu0 0
      %5744 = vmatmul.mubr.bf16.gmra.mrb[0].mxu0 %v5641
      %v5745 = vpop.f32.mrb[0].mxu0
      %v5746 = vadd.f32 0.0, %v5745
      %v5747 = vpop.f32.mrb[0].mxu0
      %v5748 = vpop.f32.mrb[0].mxu0
      %v5749 = vadd.f32 0.0, %v5748
      %v5750 = vpop.f32.mrb[0].mxu0
      %5751 = vmatprep.mubr.bf16.mxu0 0
      %5752 = vmatmul.mubr.bf16.gmra.mrb[0].mxu0 %v5644
      %v5753 = vpop.f32.mrb[0].mxu0
      %v5754 = vadd.f32 0.0, %v5753
      %v5755 = vpop.f32.mrb[0].mxu0
      %v5756 = vpop.f32.mrb[0].mxu0
      %v5757 = vadd.f32 0.0, %v5756
      %v5758 = vpop.f32.mrb[0].mxu0
      %5759 = vmatprep.mubr.bf16.mxu0 0
      %5760 = vmatmul.mubr.bf16.gmra.mrb[0].mxu0 %v5647
      %v5761 = vpop.f32.mrb[0].mxu0
      %v5762 = vadd.f32 0.0, %v5761
      %v5763 = vpop.f32.mrb[0].mxu0
      %v5764 = vpop.f32.mrb[0].mxu0
      %v5765 = vadd.f32 0.0, %v5764
      %v5766 = vpop.f32.mrb[0].mxu0
      %5767 = vmatprep.mubr.bf16.mxu0 0
      %5768 = vmatmul.mubr.bf16.gmra.mrb[0].mxu0 %v5650
      %v5769 = vpop.f32.mrb[0].mxu0
      %v5770 = vadd.f32 0.0, %v5769
      %v5771 = vpop.f32.mrb[0].mxu0
      %v5772 = vpop.f32.mrb[0].mxu0
      %v5773 = vadd.f32 0.0, %v5772
      %v5774 = vpop.f32.mrb[0].mxu0
      %5775 = vmatprep.mubr.bf16.mxu0 0
      %5776 = vmatmul.mubr.bf16.gmra.mrb[0].mxu0 %v5653
      %v5777 = vpop.f32.mrb[0].mxu0
      %v5778 = vadd.f32 0.0, %v5777
      %v5779 = vpop.f32.mrb[0].mxu0
      %v5780 = vpop.f32.mrb[0].mxu0
      %v5781 = vadd.f32 0.0, %v5780
      %v5782 = vpop.f32.mrb[0].mxu0
      %5783 = vmatprep.mubr.bf16.mxu0 0
      %5784 = vmatmul.mubr.bf16.gmra.mrb[0].mxu0 %v5656
      %v5785 = vpop.f32.mrb[0].mxu0
      %v5786 = vadd.f32 0.0, %v5785
      %v5787 = vpop.f32.mrb[0].mxu0
      %v5788 = vpop.f32.mrb[0].mxu0
      %v5789 = vadd.f32 0.0, %v5788
      %v5790 = vpop.f32.mrb[0].mxu0
      %5791 = vmatprep.mubr.bf16.mxu0 0
      %5792 = vmatmul.mubr.bf16.gmra.mrb[0].mxu0 %v5659
      %v5793 = vpop.f32.mrb[0].mxu0
      %v5794 = vadd.f32 0.0, %v5793
      %v5795 = vpop.f32.mrb[0].mxu0
      %v5796 = vpop.f32.mrb[0].mxu0
      %v5797 = vadd.f32 0.0, %v5796
      %v5798 = vpop.f32.mrb[0].mxu0
      %5799 = vmatprep.mubr.bf16.mxu0 0
      %5800 = vmatmul.mubr.bf16.gmra.mrb[0].mxu0 %v5662
      %v5801 = vpop.f32.mrb[0].mxu0
      %v5802 = vadd.f32 0.0, %v5801
      %v5803 = vpop.f32.mrb[0].mxu0
      %v5804 = vpop.f32.mrb[0].mxu0
      %v5805 = vadd.f32 0.0, %v5804
      %v5806 = vpop.f32.mrb[0].mxu0
      %5807 = vmatprep.mubr.bf16.mxu0 0
      %5808 = vmatmul.mubr.bf16.gmra.mrb[0].mxu0 %v5665
      %v5809 = vpop.f32.mrb[0].mxu0
      %v5810 = vadd.f32 0.0, %v5809
      %v5811 = vpop.f32.mrb[0].mxu0
      %v5812 = vpop.f32.mrb[0].mxu0
      %v5813 = vadd.f32 0.0, %v5812
      %v5814 = vpop.f32.mrb[0].mxu0
      %5815 = vmatprep.mubr.bf16.mxu0 0
      %5816 = vmatmul.mubr.bf16.gmra.mrb[0].mxu0 %v5668
      %v5817 = vpop.f32.mrb[0].mxu0
      %v5818 = vadd.f32 0.0, %v5817
      %v5819 = vpop.f32.mrb[0].mxu0
      %v5820 = vpop.f32.mrb[0].mxu0
      %v5821 = vadd.f32 0.0, %v5820
      %v5822 = vpop.f32.mrb[0].mxu0
      %5823 = vmatprep.mubr.bf16.mxu0 0
      %5824 = vmatmul.mubr.bf16.gmra.mrb[0].mxu0 %v5671
      %v5825 = vpop.f32.mrb[0].mxu0
      %v5826 = vadd.f32 0.0, %v5825
      %v5827 = vpop.f32.mrb[0].mxu0
      %v5828 = vpop.f32.mrb[0].mxu0
      %v5829 = vadd.f32 0.0, %v5828
      %v5830 = vpop.f32.mrb[0].mxu0
      %5831 = vmatprep.mubr.bf16.mxu0 0
      %5832 = vmatmul.mubr.bf16.gmra.mrb[0].mxu0 %v5674
      %v5833 = vpop.f32.mrb[0].mxu0
      %v5834 = vadd.f32 0.0, %v5833
      %v5835 = vpop.f32.mrb[0].mxu0
      %v5836 = vpop.f32.mrb[0].mxu0
      %v5837 = vadd.f32 0.0, %v5836
      %v5838 = vpop.f32.mrb[0].mxu0
      %5839 = vdwg.mxu0
      %v5840 = vadd.f32 %v5546, %v5714
      %v5841 = vadd.f32 %v5547, %v5717
      %v5842 = vadd.f32 %v5548, %v5722
      %v5843 = vadd.f32 %v5549, %v5725
      %v5844 = vadd.f32 %v5550, %v5730
      %v5845 = vadd.f32 %v5551, %v5733
      %v5846 = vadd.f32 %v5552, %v5738
      %v5847 = vadd.f32 %v5553, %v5741
      %v5848 = vadd.f32 %v5554, %v5746
      %v5849 = vadd.f32 %v5555, %v5749
      %v5850 = vadd.f32 %v5556, %v5754
      %v5851 = vadd.f32 %v5557, %v5757
      %v5852 = vadd.f32 %v5558, %v5762
      %v5853 = vadd.f32 %v5559, %v5765
      %v5854 = vadd.f32 %v5560, %v5770
      %v5855 = vadd.f32 %v5561, %v5773
      %v5856 = vadd.f32 %v5562, %v5778
      %v5857 = vadd.f32 %v5563, %v5781
      %v5858 = vadd.f32 %v5564, %v5786
      %v5859 = vadd.f32 %v5565, %v5789
      %v5860 = vadd.f32 %v5566, %v5794
      %v5861 = vadd.f32 %v5567, %v5797
      %v5862 = vadd.f32 %v5568, %v5802
      %v5863 = vadd.f32 %v5569, %v5805
      %v5864 = vadd.f32 %v5570, %v5810
      %v5865 = vadd.f32 %v5571, %v5813
      %v5866 = vadd.f32 %v5572, %v5818
      %v5867 = vadd.f32 %v5573, %v5821
      %v5868 = vadd.f32 %v5574, %v5826
      %v5869 = vadd.f32 %v5575, %v5829
      %v5870 = vadd.f32 %v5576, %v5834
      %v5871 = vadd.f32 %v5577, %v5837
      %v5872 = vld [vmem:[%s5283 + $0x2] sm:$0xff]
      %v5873 = vld [vmem:[%s5283 + $0xa] sm:$0xff]
      %v5874 = vld [vmem:[%s5283 + $0x1a] sm:$0xff]
      %v5875 = vld [vmem:[%s5283 + $0x22] sm:$0xff]
      %v5876 = vld [vmem:[%s5283 + $0x32] sm:$0xff]
      %v5877 = vld [vmem:[%s5283 + $0x3a] sm:$0xff]
      %v5878 = vld [vmem:[%s5283 + $0x4a] sm:$0xff]
      %v5879 = vld [vmem:[%s5283 + $0x52] sm:$0xff]
      %v5880 = vld [vmem:[%s5283 + $0x62] sm:$0xff]
      %v5881 = vld [vmem:[%s5283 + $0x6a] sm:$0xff]
      %v5882 = vld [vmem:[%s5283 + $0x7a] sm:$0xff]
      %v5883 = vld [vmem:[%s5283 + $0x82] sm:$0xff]
      %v5884 = vld [vmem:[%s5283 + $0x92] sm:$0xff]
      %v5885 = vld [vmem:[%s5283 + $0x9a] sm:$0xff]
      %v5886 = vld [vmem:[%s5283 + $0xaa] sm:$0xff]
      %v5887 = vld [vmem:[%s5283 + $0xb2] sm:$0xff]
      %v5888 = vld [vmem:[%s5283 + $0xc2] sm:$0xff]
      %v5889 = vld [vmem:[%s5283 + $0xca] sm:$0xff]
      %v5890 = vld [vmem:[%s5283 + $0xda] sm:$0xff]
      %v5891 = vld [vmem:[%s5283 + $0xe2] sm:$0xff]
      %v5892 = vld [vmem:[%s5283 + $0xf2] sm:$0xff]
      %v5893 = vld [vmem:[%s5283 + $0xfa] sm:$0xff]
      %v5894 = vld [vmem:[%s5283 + $0x10a] sm:$0xff]
      %v5895 = vld [vmem:[%s5283 + $0x112] sm:$0xff]
      %v5896 = vld [vmem:[%s5283 + $0x122] sm:$0xff]
      %v5897 = vld [vmem:[%s5283 + $0x12a] sm:$0xff]
      %v5898 = vld [vmem:[%s5283 + $0x13a] sm:$0xff]
      %v5899 = vld [vmem:[%s5283 + $0x142] sm:$0xff]
      %v5900 = vld [vmem:[%s5283 + $0x152] sm:$0xff]
      %v5901 = vld [vmem:[%s5283 + $0x15a] sm:$0xff]
      %v5902 = vld [vmem:[%s5283 + $0x16a] sm:$0xff]
      %v5903 = vld [vmem:[%s5283 + $0x172] sm:$0xff]
      %v5904 = vpack.c.bf16 %v5873, %v5872
      %v5905 = vpack.c.bf16 %v5875, %v5874
      %v5906 = vpack.c.bf16 %v5877, %v5876
      %v5907 = vpack.c.bf16 %v5879, %v5878
      %v5908 = vpack.c.bf16 %v5881, %v5880
      %v5909 = vpack.c.bf16 %v5883, %v5882
      %v5910 = vpack.c.bf16 %v5885, %v5884
      %v5911 = vpack.c.bf16 %v5887, %v5886
      %v5912 = vpack.c.bf16 %v5889, %v5888
      %v5913 = vpack.c.bf16 %v5891, %v5890
      %v5914 = vpack.c.bf16 %v5893, %v5892
      %v5915 = vpack.c.bf16 %v5895, %v5894
      %v5916 = vpack.c.bf16 %v5897, %v5896
      %v5917 = vpack.c.bf16 %v5899, %v5898
      %v5918 = vpack.c.bf16 %v5901, %v5900
      %v5919 = vpack.c.bf16 %v5903, %v5902
      %s5920 = scalar_lea.vmem %s3, 16
      %v5921 = vld [vmem:[%s5920] sm:$0x3]
      %v5923 = vsel %vm304, %v5904, 0
      %v5926 = vsel %vm304, %v5905, 0
      %v5929 = vsel %vm304, %v5906, 0
      %v5932 = vsel %vm304, %v5907, 0
      %v5935 = vsel %vm304, %v5908, 0
      %v5938 = vsel %vm304, %v5909, 0
      %v5941 = vsel %vm304, %v5910, 0
      %v5944 = vsel %vm304, %v5911, 0
      %v5947 = vsel %vm304, %v5912, 0
      %v5950 = vsel %vm304, %v5913, 0
      %v5953 = vsel %vm304, %v5914, 0
      %v5956 = vsel %vm304, %v5915, 0
      %v5959 = vsel %vm304, %v5916, 0
      %v5962 = vsel %vm304, %v5917, 0
      %v5965 = vsel %vm304, %v5918, 0
      %v5968 = vsel %vm304, %v5919, 0
      %v5971 = vsel %vm3730, %v5921, 0
      %5973 = vmatprep.subr.bf16.mxu0 0
      %5974 = vmatpush1.bf16.msra.mxu0 %v5971
      %5975 = vmatprep.subr.bf16.mxu0 0
      %5976 = vmatpush1.bf16.msra.mxu0 0
      %5977 = vmatprep.subr.bf16.mxu0 0
      %5978 = vmatpush1.bf16.msra.mxu0 0
      %5979 = vmatprep.subr.bf16.mxu0 0
      %5980 = vmatpush1.bf16.msra.mxu0 0
      %5981 = vmatprep.subr.bf16.mxu0 0
      %5982 = vmatpush1.bf16.msra.mxu0 0
      %5983 = vmatprep.subr.bf16.mxu0 0
      %5984 = vmatpush1.bf16.msra.mxu0 0
      %5985 = vmatprep.subr.bf16.mxu0 0
      %5986 = vmatpush1.bf16.msra.mxu0 0
      %5987 = vmatprep.subr.bf16.mxu0 0
      %5988 = vmatpush1.bf16.msra.mxu0 0
      %5989 = vmatprep.subr.bf16.mxu0 0
      %5990 = vmatpush1.bf16.msra.mxu0 0
      %5991 = vmatprep.subr.bf16.mxu0 0
      %5992 = vmatpush1.bf16.msra.mxu0 0
      %5993 = vmatprep.subr.bf16.mxu0 0
      %5994 = vmatpush1.bf16.msra.mxu0 0
      %5995 = vmatprep.subr.bf16.mxu0 0
      %5996 = vmatpush1.bf16.msra.mxu0 0
      %5997 = vmatprep.subr.bf16.mxu0 0
      %5998 = vmatpush1.bf16.msra.mxu0 0
      %5999 = vmatprep.subr.bf16.mxu0 0
      %6000 = vmatpush1.bf16.msra.mxu0 0
      %6001 = vmatprep.subr.bf16.mxu0 0
      %6002 = vmatpush1.bf16.msra.mxu0 0
      %6003 = vmatprep.subr.bf16.mxu0 0
      %6004 = vmatpush1.bf16.msra.mxu0 0
      %6005 = vmatprep.mubr.bf16.mxu0 0
      %6006 = vmatmul.mubr.bf16.gmra.mrb[0].mxu0 %v5923
      %v6007 = vpop.f32.mrb[0].mxu0
      %v6008 = vadd.f32 0.0, %v6007
      %v6009 = vpop.f32.mrb[0].mxu0
      %v6010 = vpop.f32.mrb[0].mxu0
      %v6011 = vadd.f32 0.0, %v6010
      %v6012 = vpop.f32.mrb[0].mxu0
      %6013 = vmatprep.mubr.bf16.mxu0 0
      %6014 = vmatmul.mubr.bf16.gmra.mrb[0].mxu0 %v5926
      %v6015 = vpop.f32.mrb[0].mxu0
      %v6016 = vadd.f32 0.0, %v6015
      %v6017 = vpop.f32.mrb[0].mxu0
      %v6018 = vpop.f32.mrb[0].mxu0
      %v6019 = vadd.f32 0.0, %v6018
      %v6020 = vpop.f32.mrb[0].mxu0
      %6021 = vmatprep.mubr.bf16.mxu0 0
      %6022 = vmatmul.mubr.bf16.gmra.mrb[0].mxu0 %v5929
      %v6023 = vpop.f32.mrb[0].mxu0
      %v6024 = vadd.f32 0.0, %v6023
      %v6025 = vpop.f32.mrb[0].mxu0
      %v6026 = vpop.f32.mrb[0].mxu0
      %v6027 = vadd.f32 0.0, %v6026
      %v6028 = vpop.f32.mrb[0].mxu0
      %6029 = vmatprep.mubr.bf16.mxu0 0
      %6030 = vmatmul.mubr.bf16.gmra.mrb[0].mxu0 %v5932
      %v6031 = vpop.f32.mrb[0].mxu0
      %v6032 = vadd.f32 0.0, %v6031
      %v6033 = vpop.f32.mrb[0].mxu0
      %v6034 = vpop.f32.mrb[0].mxu0
      %v6035 = vadd.f32 0.0, %v6034
      %v6036 = vpop.f32.mrb[0].mxu0
      %6037 = vmatprep.mubr.bf16.mxu0 0
      %6038 = vmatmul.mubr.bf16.gmra.mrb[0].mxu0 %v5935
      %v6039 = vpop.f32.mrb[0].mxu0
      %v6040 = vadd.f32 0.0, %v6039
      %v6041 = vpop.f32.mrb[0].mxu0
      %v6042 = vpop.f32.mrb[0].mxu0
      %v6043 = vadd.f32 0.0, %v6042
      %v6044 = vpop.f32.mrb[0].mxu0
      %6045 = vmatprep.mubr.bf16.mxu0 0
      %6046 = vmatmul.mubr.bf16.gmra.mrb[0].mxu0 %v5938
      %v6047 = vpop.f32.mrb[0].mxu0
      %v6048 = vadd.f32 0.0, %v6047
      %v6049 = vpop.f32.mrb[0].mxu0
      %v6050 = vpop.f32.mrb[0].mxu0
      %v6051 = vadd.f32 0.0, %v6050
      %v6052 = vpop.f32.mrb[0].mxu0
      %6053 = vmatprep.mubr.bf16.mxu0 0
      %6054 = vmatmul.mubr.bf16.gmra.mrb[0].mxu0 %v5941
      %v6055 = vpop.f32.mrb[0].mxu0
      %v6056 = vadd.f32 0.0, %v6055
      %v6057 = vpop.f32.mrb[0].mxu0
      %v6058 = vpop.f32.mrb[0].mxu0
      %v6059 = vadd.f32 0.0, %v6058
      %v6060 = vpop.f32.mrb[0].mxu0
      %6061 = vmatprep.mubr.bf16.mxu0 0
      %6062 = vmatmul.mubr.bf16.gmra.mrb[0].mxu0 %v5944
      %v6063 = vpop.f32.mrb[0].mxu0
      %v6064 = vadd.f32 0.0, %v6063
      %v6065 = vpop.f32.mrb[0].mxu0
      %v6066 = vpop.f32.mrb[0].mxu0
      %v6067 = vadd.f32 0.0, %v6066
      %v6068 = vpop.f32.mrb[0].mxu0
      %6069 = vmatprep.mubr.bf16.mxu0 0
      %6070 = vmatmul.mubr.bf16.gmra.mrb[0].mxu0 %v5947
      %v6071 = vpop.f32.mrb[0].mxu0
      %v6072 = vadd.f32 0.0, %v6071
      %v6073 = vpop.f32.mrb[0].mxu0
      %v6074 = vpop.f32.mrb[0].mxu0
      %v6075 = vadd.f32 0.0, %v6074
      %v6076 = vpop.f32.mrb[0].mxu0
      %6077 = vmatprep.mubr.bf16.mxu0 0
      %6078 = vmatmul.mubr.bf16.gmra.mrb[0].mxu0 %v5950
      %v6079 = vpop.f32.mrb[0].mxu0
      %v6080 = vadd.f32 0.0, %v6079
      %v6081 = vpop.f32.mrb[0].mxu0
      %v6082 = vpop.f32.mrb[0].mxu0
      %v6083 = vadd.f32 0.0, %v6082
      %v6084 = vpop.f32.mrb[0].mxu0
      %6085 = vmatprep.mubr.bf16.mxu0 0
      %6086 = vmatmul.mubr.bf16.gmra.mrb[0].mxu0 %v5953
      %v6087 = vpop.f32.mrb[0].mxu0
      %v6088 = vadd.f32 0.0, %v6087
      %v6089 = vpop.f32.mrb[0].mxu0
      %v6090 = vpop.f32.mrb[0].mxu0
      %v6091 = vadd.f32 0.0, %v6090
      %v6092 = vpop.f32.mrb[0].mxu0
      %6093 = vmatprep.mubr.bf16.mxu0 0
      %6094 = vmatmul.mubr.bf16.gmra.mrb[0].mxu0 %v5956
      %v6095 = vpop.f32.mrb[0].mxu0
      %v6096 = vadd.f32 0.0, %v6095
      %v6097 = vpop.f32.mrb[0].mxu0
      %v6098 = vpop.f32.mrb[0].mxu0
      %v6099 = vadd.f32 0.0, %v6098
      %v6100 = vpop.f32.mrb[0].mxu0
      %6101 = vmatprep.mubr.bf16.mxu0 0
      %6102 = vmatmul.mubr.bf16.gmra.mrb[0].mxu0 %v5959
      %v6103 = vpop.f32.mrb[0].mxu0
      %v6104 = vadd.f32 0.0, %v6103
      %v6105 = vpop.f32.mrb[0].mxu0
      %v6106 = vpop.f32.mrb[0].mxu0
      %v6107 = vadd.f32 0.0, %v6106
      %v6108 = vpop.f32.mrb[0].mxu0
      %6109 = vmatprep.mubr.bf16.mxu0 0
      %6110 = vmatmul.mubr.bf16.gmra.mrb[0].mxu0 %v5962
      %v6111 = vpop.f32.mrb[0].mxu0
      %v6112 = vadd.f32 0.0, %v6111
      %v6113 = vpop.f32.mrb[0].mxu0
      %v6114 = vpop.f32.mrb[0].mxu0
      %v6115 = vadd.f32 0.0, %v6114
      %v6116 = vpop.f32.mrb[0].mxu0
      %6117 = vmatprep.mubr.bf16.mxu0 0
      %6118 = vmatmul.mubr.bf16.gmra.mrb[0].mxu0 %v5965
      %v6119 = vpop.f32.mrb[0].mxu0
      %v6120 = vadd.f32 0.0, %v6119
      %v6121 = vpop.f32.mrb[0].mxu0
      %v6122 = vpop.f32.mrb[0].mxu0
      %v6123 = vadd.f32 0.0, %v6122
      %v6124 = vpop.f32.mrb[0].mxu0
      %6125 = vmatprep.mubr.bf16.mxu0 0
      %6126 = vmatmul.mubr.bf16.gmra.mrb[0].mxu0 %v5968
      %v6127 = vpop.f32.mrb[0].mxu0
      %v6128 = vadd.f32 0.0, %v6127
      %v6129 = vpop.f32.mrb[0].mxu0
      %v6130 = vpop.f32.mrb[0].mxu0
      %v6131 = vadd.f32 0.0, %v6130
      %v6132 = vpop.f32.mrb[0].mxu0
      %6133 = vdwg.mxu0
      %v6134 = vadd.f32 %v5840, %v6008
      %v6135 = vadd.f32 %v5841, %v6011
      %v6136 = vadd.f32 %v5842, %v6016
      %v6137 = vadd.f32 %v5843, %v6019
      %v6138 = vadd.f32 %v5844, %v6024
      %v6139 = vadd.f32 %v5845, %v6027
      %v6140 = vadd.f32 %v5846, %v6032
      %v6141 = vadd.f32 %v5847, %v6035
      %v6142 = vadd.f32 %v5848, %v6040
      %v6143 = vadd.f32 %v5849, %v6043
      %v6144 = vadd.f32 %v5850, %v6048
      %v6145 = vadd.f32 %v5851, %v6051
      %v6146 = vadd.f32 %v5852, %v6056
      %v6147 = vadd.f32 %v5853, %v6059
      %v6148 = vadd.f32 %v5854, %v6064
      %v6149 = vadd.f32 %v5855, %v6067
      %v6150 = vadd.f32 %v5856, %v6072
      %v6151 = vadd.f32 %v5857, %v6075
      %v6152 = vadd.f32 %v5858, %v6080
      %v6153 = vadd.f32 %v5859, %v6083
      %v6154 = vadd.f32 %v5860, %v6088
      %v6155 = vadd.f32 %v5861, %v6091
      %v6156 = vadd.f32 %v5862, %v6096
      %v6157 = vadd.f32 %v5863, %v6099
      %v6158 = vadd.f32 %v5864, %v6104
      %v6159 = vadd.f32 %v5865, %v6107
      %v6160 = vadd.f32 %v5866, %v6112
      %v6161 = vadd.f32 %v5867, %v6115
      %v6162 = vadd.f32 %v5868, %v6120
      %v6163 = vadd.f32 %v5869, %v6123
      %v6164 = vadd.f32 %v5870, %v6128
      %v6165 = vadd.f32 %v5871, %v6131
      %v6166 = vld [vmem:[%s4 + $0x1] sm:$0x1]
      %v6167 = vlaneseq
      %v6168 = vshrl.u32 %v6167, 7
      %v6169 = vsub.s32 0, %v6168
      %v6170 = vrot.slane %v6166, %v6169
      %v6171 = vadd.f32 %v6134, %v6170
      %v6172 = vadd.f32 %v6135, %v6170
      %v6173 = vadd.f32 %v6136, %v6170
      %v6174 = vadd.f32 %v6137, %v6170
      %v6175 = vadd.f32 %v6138, %v6170
      %v6176 = vadd.f32 %v6139, %v6170
      %v6177 = vadd.f32 %v6140, %v6170
      %v6178 = vadd.f32 %v6141, %v6170
      %v6179 = vadd.f32 %v6142, %v6170
      %v6180 = vadd.f32 %v6143, %v6170
      %v6181 = vadd.f32 %v6144, %v6170
      %v6182 = vadd.f32 %v6145, %v6170
      %v6183 = vadd.f32 %v6146, %v6170
      %v6184 = vadd.f32 %v6147, %v6170
      %v6185 = vadd.f32 %v6148, %v6170
      %v6186 = vadd.f32 %v6149, %v6170
      %v6187 = vadd.f32 %v6150, %v6170
      %v6188 = vadd.f32 %v6151, %v6170
      %v6189 = vadd.f32 %v6152, %v6170
      %v6190 = vadd.f32 %v6153, %v6170
      %v6191 = vadd.f32 %v6154, %v6170
      %v6192 = vadd.f32 %v6155, %v6170
      %v6193 = vadd.f32 %v6156, %v6170
      %v6194 = vadd.f32 %v6157, %v6170
      %v6195 = vadd.f32 %v6158, %v6170
      %v6196 = vadd.f32 %v6159, %v6170
      %v6197 = vadd.f32 %v6160, %v6170
      %v6198 = vadd.f32 %v6161, %v6170
      %v6199 = vadd.f32 %v6162, %v6170
      %v6200 = vadd.f32 %v6163, %v6170
      %v6201 = vadd.f32 %v6164, %v6170
      %v6202 = vadd.f32 %v6165, %v6170
      %v6203 = vmax.f32 %v6171, 0.0
      %v6204 = vmax.f32 %v6172, 0.0
      %v6205 = vmax.f32 %v6173, 0.0
      %v6206 = vmax.f32 %v6174, 0.0
      %v6207 = vmax.f32 %v6175, 0.0
      %v6208 = vmax.f32 %v6176, 0.0
      %v6209 = vmax.f32 %v6177, 0.0
      %v6210 = vmax.f32 %v6178, 0.0
      %v6211 = vmax.f32 %v6179, 0.0
      %v6212 = vmax.f32 %v6180, 0.0
      %v6213 = vmax.f32 %v6181, 0.0
      %v6214 = vmax.f32 %v6182, 0.0
      %v6215 = vmax.f32 %v6183, 0.0
      %v6216 = vmax.f32 %v6184, 0.0
      %v6217 = vmax.f32 %v6185, 0.0
      %v6218 = vmax.f32 %v6186, 0.0
      %v6219 = vmax.f32 %v6187, 0.0
      %v6220 = vmax.f32 %v6188, 0.0
      %v6221 = vmax.f32 %v6189, 0.0
      %v6222 = vmax.f32 %v6190, 0.0
      %v6223 = vmax.f32 %v6191, 0.0
      %v6224 = vmax.f32 %v6192, 0.0
      %v6225 = vmax.f32 %v6193, 0.0
      %v6226 = vmax.f32 %v6194, 0.0
      %v6227 = vmax.f32 %v6195, 0.0
      %v6228 = vmax.f32 %v6196, 0.0
      %v6229 = vmax.f32 %v6197, 0.0
      %v6230 = vmax.f32 %v6198, 0.0
      %v6231 = vmax.f32 %v6199, 0.0
      %v6232 = vmax.f32 %v6200, 0.0
      %v6233 = vmax.f32 %v6201, 0.0
      %v6234 = vmax.f32 %v6202, 0.0
      %v6235 = vadd.f32 %v6203, %v226
      %v6236 = vadd.f32 %v6204, %v227
      %v6237 = vadd.f32 %v6205, %v228
      %v6238 = vadd.f32 %v6206, %v229
      %v6239 = vadd.f32 %v6207, %v230
      %v6240 = vadd.f32 %v6208, %v231
      %v6241 = vadd.f32 %v6209, %v232
      %v6242 = vadd.f32 %v6210, %v233
      %v6243 = vadd.f32 %v6211, %v234
      %v6244 = vadd.f32 %v6212, %v235
      %v6245 = vadd.f32 %v6213, %v236
      %v6246 = vadd.f32 %v6214, %v237
      %v6247 = vadd.f32 %v6215, %v238
      %v6248 = vadd.f32 %v6216, %v239
      %v6249 = vadd.f32 %v6217, %v240
      %v6250 = vadd.f32 %v6218, %v241
      %v6251 = vadd.f32 %v6219, %v242
      %v6252 = vadd.f32 %v6220, %v243
      %v6253 = vadd.f32 %v6221, %v244
      %v6254 = vadd.f32 %v6222, %v245
      %v6255 = vadd.f32 %v6223, %v246
      %v6256 = vadd.f32 %v6224, %v247
      %v6257 = vadd.f32 %v6225, %v248
      %v6258 = vadd.f32 %v6226, %v249
      %v6259 = vadd.f32 %v6227, %v250
      %v6260 = vadd.f32 %v6228, %v251
      %v6261 = vadd.f32 %v6229, %v252
      %v6262 = vadd.f32 %v6230, %v253
      %v6263 = vadd.f32 %v6231, %v254
      %v6264 = vadd.f32 %v6232, %v255
      %v6265 = vadd.f32 %v6233, %v256
      %v6266 = vadd.f32 %v6234, %v257
      %6267 = vst.msk [vmem:[%s224] sm:$0xff] %vm304, %v6235
      %6268 = vst.msk [vmem:[%s224 + $0x8] sm:$0xff] %vm304, %v6236
      %6269 = vst.msk [vmem:[%s224 + $0x10] sm:$0xff] %vm304, %v6237
      %6270 = vst.msk [vmem:[%s224 + $0x18] sm:$0xff] %vm304, %v6238
      %6271 = vst.msk [vmem:[%s224 + $0x20] sm:$0xff] %vm304, %v6239
      %6272 = vst.msk [vmem:[%s224 + $0x28] sm:$0xff] %vm304, %v6240
      %6273 = vst.msk [vmem:[%s224 + $0x30] sm:$0xff] %vm304, %v6241
      %6274 = vst.msk [vmem:[%s224 + $0x38] sm:$0xff] %vm304, %v6242
      %6275 = vst.msk [vmem:[%s224 + $0x40] sm:$0xff] %vm304, %v6243
      %6276 = vst.msk [vmem:[%s224 + $0x48] sm:$0xff] %vm304, %v6244
      %6277 = vst.msk [vmem:[%s224 + $0x50] sm:$0xff] %vm304, %v6245
      %6278 = vst.msk [vmem:[%s224 + $0x58] sm:$0xff] %vm304, %v6246
      %6279 = vst.msk [vmem:[%s224 + $0x60] sm:$0xff] %vm304, %v6247
      %6280 = vst.msk [vmem:[%s224 + $0x68] sm:$0xff] %vm304, %v6248
      %6281 = vst.msk [vmem:[%s224 + $0x70] sm:$0xff] %vm304, %v6249
      %6282 = vst.msk [vmem:[%s224 + $0x78] sm:$0xff] %vm304, %v6250
      %6283 = vst.msk [vmem:[%s224 + $0x80] sm:$0xff] %vm304, %v6251
      %6284 = vst.msk [vmem:[%s224 + $0x88] sm:$0xff] %vm304, %v6252
      %6285 = vst.msk [vmem:[%s224 + $0x90] sm:$0xff] %vm304, %v6253
      %6286 = vst.msk [vmem:[%s224 + $0x98] sm:$0xff] %vm304, %v6254
      %6287 = vst.msk [vmem:[%s224 + $0xa0] sm:$0xff] %vm304, %v6255
      %6288 = vst.msk [vmem:[%s224 + $0xa8] sm:$0xff] %vm304, %v6256
      %6289 = vst.msk [vmem:[%s224 + $0xb0] sm:$0xff] %vm304, %v6257
      %6290 = vst.msk [vmem:[%s224 + $0xb8] sm:$0xff] %vm304, %v6258
      %6291 = vst.msk [vmem:[%s224 + $0xc0] sm:$0xff] %vm304, %v6259
      %6292 = vst.msk [vmem:[%s224 + $0xc8] sm:$0xff] %vm304, %v6260
      %6293 = vst.msk [vmem:[%s224 + $0xd0] sm:$0xff] %vm304, %v6261
      %6294 = vst.msk [vmem:[%s224 + $0xd8] sm:$0xff] %vm304, %v6262
      %6295 = vst.msk [vmem:[%s224 + $0xe0] sm:$0xff] %vm304, %v6263
      %6296 = vst.msk [vmem:[%s224 + $0xe8] sm:$0xff] %vm304, %v6264
      %6297 = vst.msk [vmem:[%s224 + $0xf0] sm:$0xff] %vm304, %v6265
      %6298 = vst.msk [vmem:[%s224 + $0xf8] sm:$0xff] %vm304, %v6266
      %p6299 = scmp.lt.s32.totalorder %s16, 1
      %s6300 = scalar_select %p6299, %s16, 1
      %s6301 = smul.addr %s6300, 32
      %s6302 = smul.addr %s6301, 8
      %s6303 = scalar_lea.vmem %s5, %s6302
      // Predicated region
      $region41: #{tpu_custom_call.1} parent=39 // pred_check
        %p6304 = pneg %p144
      $region42: #{tpu_custom_call.1} parent=39 // pred_check_branch
        %6306 = sbr.rel (%p6304) target = $region44
      $region43: #{tpu_custom_call.1} parent=39 // pred_region
        _
      $region44: #{tpu_custom_call.1} parent=39 // pred_fallthru
        _
    $region40: #{tpu_custom_call.1} parent=5 // pred_fallthru
      _
    %p6307 = scmp.le.s32.totalorder 2, %s11
    // Predicated region
    $region45: #{tpu_custom_call.1} parent=5 // pred_check
      %p6308 = pneg %p6307
    $region46: #{tpu_custom_call.1} parent=5 // pred_check_branch
      %6310 = sbr.rel (%p6308) target = $region48
    $region47: #{tpu_custom_call.1} parent=5 // pred_region
      %s6311 = ssub.s32 %s11, 2
      // Predicated region
      $region49: #{tpu_custom_call.1} parent=47 // pred_check
        %p6312 = pneg %p150
      $region50: #{tpu_custom_call.1} parent=47 // pred_check_branch
        %6314 = sbr.rel (%p6312) target = $region52
      $region51: #{tpu_custom_call.1} parent=47 // pred_region
        %p6315 = scmp.lt.s32.totalorder %s17, 1
        %s6316 = scalar_select %p6315, %s17, 1
        %s6317 = smul.addr %s6316, 32
        %s6318 = smul.addr %s6317, 8
        %s6319 = scalar_lea.vmem %s5, %s6318
      $region52: #{tpu_custom_call.1} parent=47 // pred_fallthru
        _
    $region48: #{tpu_custom_call.1} parent=5 // pred_fallthru
      _
  $region6: #{tpu_custom_call.1} parent=0 // loop_footer
    %s15 = sadd.s32 1, %s11
  $region7: #{tpu_custom_call.1} parent=0 // loop_footer_branch
    %10 = sbr.rel target = $region3
  $region8: #{tpu_custom_call.1} parent=0 // loop_exit
    _

</llo_original>
